<compile_context>
chip_gen: v5e
topology: v5e:2x2
jax: 0.10.0
libtpu: 0.0.40
codegen_flags: <defaults>
</compile_context>

<pallas_src>
import functools

import jax
import jax.numpy as jnp
from jax import lax
from jax.experimental import pallas as pl
from jax.experimental.pallas import tpu as pltpu


# -----------------------------------------------------------------------------
# In-kernel building blocks (operate on loaded values, not Refs)
# -----------------------------------------------------------------------------
def _layer_norm(x, gamma, beta, eps=1e-6):
    mean = jnp.mean(x, axis=-1, keepdims=True)
    var = jnp.mean(jnp.square(x - mean), axis=-1, keepdims=True)
    return (x - mean) * lax.rsqrt(var + eps) * gamma + beta


def _mha_block(x_q, x_kv, bias, wq, wk, wv, wo, gamma, beta, *, n_head):
    """Multi-head attention + output proj + residual + post-LayerNorm.

    x_q:   (B, Lq, D) f32     x_kv: (B, Lk, D) f32 (may be the same object as x_q)
    bias:  (B, 1, Lk) or (B, Lq, Lk) f32 additive mask (0 keep / -1e9 drop), no head dim
    wq/wk: (H, D, d_k) bf16   wv: (H, D, d_v) bf16   wo: (H, d_v, D) bf16
    gamma/beta: (1, D) f32
    """
    B, Lq, D = x_q.shape
    Lk = x_kv.shape[1]
    H = n_head
    d_k = wq.shape[-1]
    d_v = wv.shape[-1]
    cdt = wq.dtype                      # bf16 compute dtype for the MXU
    residual = x_q

    # Cast once, fold batch into the row dim, broadcast over heads (leading dim only).
    xq = jnp.broadcast_to(x_q.astype(cdt).reshape(1, B * Lq, D), (H, B * Lq, D))
    if x_kv is x_q:
        xkv = xq                        # reuse the broadcast for self-attention
    else:
        xkv = jnp.broadcast_to(x_kv.astype(cdt).reshape(1, B * Lk, D), (H, B * Lk, D))

    # Per-head projections: H batched (B*L, D) @ (D, d) matmuls, f32 accumulation.
    q = jnp.einsum("hnd,hde->hne", xq, wq, preferred_element_type=jnp.float32)
    k = jnp.einsum("hnd,hde->hne", xkv, wk, preferred_element_type=jnp.float32)
    v = jnp.einsum("hnd,hde->hne", xkv, wv, preferred_element_type=jnp.float32)

    # (H, B*L, d) -> (H*B, L, d): sublane-aligned leading reshapes only.
    q = q.reshape(H, B, Lq, d_k).reshape(H * B, Lq, d_k)
    k = k.reshape(H, B, Lk, d_k).reshape(H * B, Lk, d_k)
    v = v.reshape(H, B, Lk, d_v).reshape(H * B, Lk, d_v)

    s = jnp.einsum("bqd,bkd->bqk", q.astype(cdt), k.astype(cdt),
                   preferred_element_type=jnp.float32)            # (H*B, Lq, Lk)
    s = s * (1.0 / (d_k ** 0.5))
    # Compact mask broadcast over heads in-kernel (no H-expanded mask in HBM).
    s = (s.reshape(H, B, Lq, Lk) + bias[None]).reshape(H * B, Lq, Lk)

    # Softmax in f32; reciprocal goes to the EUP slot.
    m = jnp.max(s, axis=-1, keepdims=True)
    e = jnp.exp(s - m)
    attn = e * pl.reciprocal(jnp.sum(e, axis=-1, keepdims=True), approx=True)

    o = jnp.einsum("bqk,bkd->bqd", attn.astype(cdt), v.astype(cdt),
                   preferred_element_type=jnp.float32)            # (H*B, Lq, d_v)

    # Per-head output projection + head-sum over the leading axis, residual, LN.
    o = o.reshape(H, B, Lq, d_v).reshape(H, B * Lq, d_v)
    proj = jnp.einsum("hnd,hde->hne", o.astype(cdt), wo,
                      preferred_element_type=jnp.float32)          # (H, B*Lq, D)
    out = jnp.sum(proj, axis=0).reshape(B, Lq, D) + residual
    return _layer_norm(out, gamma, beta)


def _ffn_block(x, w1, b1, w2, b2, gamma, beta):
    """Position-wise FFN: relu(x W1 + b1) W2 + b2, residual, LayerNorm."""
    B, L, D = x.shape
    cdt = w1.dtype
    x2 = x.reshape(B * L, D)
    h = jnp.dot(x2.astype(cdt), w1, preferred_element_type=jnp.float32) + b1
    h = jnp.maximum(h, 0.0)
    y = jnp.dot(h.astype(cdt), w2, preferred_element_type=jnp.float32) + b2
    y = y.reshape(B, L, D) + x
    return _layer_norm(y, gamma, beta)


# -----------------------------------------------------------------------------
# Single fused Pallas kernel: encoder stack -> decoder stack -> vocab projection
# grid = (n_enc_layers + n_dec_layers,); activations carried in VMEM scratch.
# -----------------------------------------------------------------------------
def _transformer_kernel(
        enc_x_ref, dec_x_ref, src_bias_ref, tgt_bias_ref,
        e_wq, e_wk, e_wv, e_wo, e_ag, e_ab,
        e_w1, e_b1, e_w2, e_b2, e_fg, e_fb,
        s_wq, s_wk, s_wv, s_wo, s_g, s_b,
        c_wq, c_wk, c_wv, c_wo, c_g, c_b,
        d_w1, d_b1, d_w2, d_b2, d_fg, d_fb,
        wprj_ref,
        logits_ref,
        enc_carry, dec_carry,
        *, n_head, n_enc):
    l = pl.program_id(0)
    last = pl.num_programs(0) - 1

    @pl.when(l == 0)
    def _init_encoder():
        enc_carry[...] = enc_x_ref[...]

    @pl.when(l == n_enc)
    def _init_decoder():
        dec_carry[...] = dec_x_ref[...]

    @pl.when(l < n_enc)
    def _encoder_layer():
        x = enc_carry[...]
        x = _mha_block(x, x, src_bias_ref[...],
                       e_wq[...], e_wk[...], e_wv[...], e_wo[...],
                       e_ag[...], e_ab[...], n_head=n_head)
        x = _ffn_block(x, e_w1[...], e_b1[...], e_w2[...], e_b2[...],
                       e_fg[...], e_fb[...])
        enc_carry[...] = x

    @pl.when(l >= n_enc)
    def _decoder_layer():
        x = dec_carry[...]
        enc = enc_carry[...]
        x = _mha_block(x, x, tgt_bias_ref[...],
                       s_wq[...], s_wk[...], s_wv[...], s_wo[...],
                       s_g[...], s_b[...], n_head=n_head)
        x = _mha_block(x, enc, src_bias_ref[...],
                       c_wq[...], c_wk[...], c_wv[...], c_wo[...],
                       c_g[...], c_b[...], n_head=n_head)
        x = _ffn_block(x, d_w1[...], d_b1[...], d_w2[...], d_b2[...],
                       d_fg[...], d_fb[...])
        dec_carry[...] = x

    @pl.when(l == last)
    def _project():
        B, Lt, D = dec_carry.shape
        x2 = dec_carry[...].reshape(B * Lt, D).astype(wprj_ref.dtype)
        # Lane-dense (multiple-of-128) logits store; wrapper slices back to V.
        logits_ref[...] = jnp.dot(x2, wprj_ref[...],
                                  preferred_element_type=jnp.float32)


def transformer_stack(enc_x, dec_x, src_bias, tgt_bias, params, *, n_head):
    B, Ls, D = enc_x.shape
    _, Lt, _ = dec_x.shape
    w_prj = params["w_prj"]                      # (D, Vp) bf16, precomputed
    Vp = w_prj.shape[1]

    enc_attn, enc_ffn = params["enc_attn"], params["enc_ffn"]
    dec_slf, dec_crs, dec_ffn = params["dec_slf"], params["dec_crs"], params["dec_ffn"]
    n_enc = enc_attn["wq"].shape[0]
    n_dec = dec_slf["wq"].shape[0]

    full_arrays = [enc_x, dec_x, src_bias, tgt_bias]
    enc_arrays = [enc_attn["wq"], enc_attn["wk"], enc_attn["wv"], enc_attn["wo"],
                  enc_attn["g"], enc_attn["b"],
                  enc_ffn["w1"], enc_ffn["b1"], enc_ffn["w2"], enc_ffn["b2"],
                  enc_ffn["g"], enc_ffn["b"]]
    dec_arrays = [dec_slf["wq"], dec_slf["wk"], dec_slf["wv"], dec_slf["wo"],
                  dec_slf["g"], dec_slf["b"],
                  dec_crs["wq"], dec_crs["wk"], dec_crs["wv"], dec_crs["wo"],
                  dec_crs["g"], dec_crs["b"],
                  dec_ffn["w1"], dec_ffn["b1"], dec_ffn["w2"], dec_ffn["b2"],
                  dec_ffn["g"], dec_ffn["b"]]

    def full_spec(a):
        nd = a.ndim
        return pl.BlockSpec(a.shape, lambda l, nd=nd: (0,) * nd)

    def enc_spec(a):
        nd = a.ndim
        # Clamp to the last encoder block during the decoder phase (no re-DMA).
        return pl.BlockSpec((None,) + a.shape[1:],
                            lambda l, nd=nd: (jnp.minimum(l, n_enc - 1),) + (0,) * (nd - 1))

    def dec_spec(a):
        nd = a.ndim
        return pl.BlockSpec((None,) + a.shape[1:],
                            lambda l, nd=nd: (jnp.maximum(l - n_enc, 0),) + (0,) * (nd - 1))

    in_specs = ([full_spec(a) for a in full_arrays]
                + [enc_spec(a) for a in enc_arrays]
                + [dec_spec(a) for a in dec_arrays]
                + [full_spec(w_prj)])

    kernel = functools.partial(_transformer_kernel, n_head=n_head, n_enc=n_enc)

    return pl.pallas_call(
        kernel,
        out_shape=jax.ShapeDtypeStruct((B * Lt, Vp), jnp.float32),
        grid=(n_enc + n_dec,),
        in_specs=in_specs,
        out_specs=pl.BlockSpec((B * Lt, Vp), lambda l: (0, 0)),
        scratch_shapes=[pltpu.VMEM((B, Ls, D), jnp.float32),   # encoder carry
                        pltpu.VMEM((B, Lt, D), jnp.float32)],  # decoder carry
        compiler_params=pltpu.CompilerParams(dimension_semantics=("arbitrary",)),
    )(*(full_arrays + enc_arrays + dec_arrays + [w_prj]))


# -----------------------------------------------------------------------------
# Parameter construction (deterministic, synthetic) and glue
# -----------------------------------------------------------------------------
def build_attn_stack(keys, d_model, n_head, d_k, d_v, dtype=jnp.bfloat16):
    wq_l, wk_l, wv_l, wo_l = [], [], [], []
    for key in keys:
        ks = jax.random.split(key, 4)
        s = 1.0 / jnp.sqrt(d_model)
        wq = jax.random.normal(ks[0], (d_model, n_head * d_k), jnp.float32) * s
        wk = jax.random.normal(ks[1], (d_model, n_head * d_k), jnp.float32) * s
        wv = jax.random.normal(ks[2], (d_model, n_head * d_v), jnp.float32) * s
        wo = jax.random.normal(ks[3], (n_head * d_v, d_model), jnp.float32) * s
        wq_l.append(wq.reshape(d_model, n_head, d_k).transpose(1, 0, 2))   # (H, D, dk)
        wk_l.append(wk.reshape(d_model, n_head, d_k).transpose(1, 0, 2))
        wv_l.append(wv.reshape(d_model, n_head, d_v).transpose(1, 0, 2))
        wo_l.append(wo.reshape(n_head, d_v, d_model))                      # (H, dv, D)
    n_layers = len(keys)
    return dict(
        wq=jnp.stack(wq_l).astype(dtype), wk=jnp.stack(wk_l).astype(dtype),
        wv=jnp.stack(wv_l).astype(dtype), wo=jnp.stack(wo_l).astype(dtype),
        g=jnp.ones((n_layers, 1, d_model), jnp.float32),
        b=jnp.zeros((n_layers, 1, d_model), jnp.float32),
    )


def build_ffn_stack(keys, d_model, d_inner, dtype=jnp.bfloat16):
    w1_l, b1_l, w2_l, b2_l = [], [], [], []
    for key in keys:
        ks = jax.random.split(key, 4)
        w1_l.append(jax.random.normal(ks[0], (d_model, d_inner), jnp.float32) / jnp.sqrt(d_model))
        b1_l.append(jax.random.normal(ks[1], (1, d_inner), jnp.float32) * 0.01)
        w2_l.append(jax.random.normal(ks[2], (d_inner, d_model), jnp.float32) / jnp.sqrt(d_inner))
        b2_l.append(jax.random.normal(ks[3], (1, d_model), jnp.float32) * 0.01)
    n_layers = len(keys)
    return dict(
        w1=jnp.stack(w1_l).astype(dtype), b1=jnp.stack(b1_l),
        w2=jnp.stack(w2_l).astype(dtype), b2=jnp.stack(b2_l),
        g=jnp.ones((n_layers, 1, d_model), jnp.float32),
        b=jnp.zeros((n_layers, 1, d_model), jnp.float32),
    )


def sinusoid_table(n_position, d_hid):
    pos = jnp.arange(n_position, dtype=jnp.float32)[:, None]
    i = jnp.arange(d_hid)[None, :]
    angle = pos / jnp.power(10000.0, (2 * (i // 2)).astype(jnp.float32) / d_hid)
    return jnp.where(i % 2 == 0, jnp.sin(angle), jnp.cos(angle))   # (n_position, d_hid)


# -----------------------------------------------------------------------------
# Full Transformer forward
# -----------------------------------------------------------------------------
def transformer_forward(src_seq, tgt_seq, params, cfg):
    n_head = cfg["n_head"]
    B, Ls = src_seq.shape
    _, Lt = tgt_seq.shape
    V = cfg["n_tgt_vocab"]

    # Compact additive masks (no head expansion; -1e9 matches torch masked_fill).
    src_keep = src_seq != cfg["src_pad_idx"]
    tgt_keep = tgt_seq != cfg["tgt_pad_idx"]
    causal = jnp.tril(jnp.ones((Lt, Lt), dtype=bool))
    src_bias = jnp.where(src_keep[:, None, :], 0.0, -1e9).astype(jnp.float32)   # (B, 1, Ls)
    tgt_bias = jnp.where(tgt_keep[:, None, :] & causal[None], 0.0,
                         -1e9).astype(jnp.float32)                              # (B, Lt, Lt)

    # Embeddings + positional encoding (glue; dropout = identity in eval mode).
    pos = params["pos_table"]
    enc_x = params["src_emb"][src_seq] + pos[None, :Ls]
    dec_x = params["tgt_emb"][tgt_seq] + pos[None, :Lt]

    logits_padded = transformer_stack(enc_x, dec_x, src_bias, tgt_bias, params,
                                      n_head=n_head)
    return logits_padded[:, :V]                                   # (B*Lt, V)


# -----------------------------------------------------------------------------
# Main
# -----------------------------------------------------------------------------
if __name__ == "__main__":
    cfg = dict(
        n_src_vocab=16, n_tgt_vocab=16,
        src_pad_idx=0, tgt_pad_idx=0,
        d_model=32, d_inner=64,
        n_layers=2, n_head=4, d_k=8, d_v=8,
        n_position=16,
    )
    B, Ls, Lt = 2, 8, 8

    key = jax.random.PRNGKey(0)
    k_src_emb, k_tgt_emb, k_enc, k_dec, k_in = jax.random.split(key, 5)

    D = cfg["d_model"]
    V = cfg["n_tgt_vocab"]
    src_emb = jax.random.normal(k_src_emb, (cfg["n_src_vocab"], D), jnp.float32)
    src_emb = src_emb.at[cfg["src_pad_idx"]].set(0.0)            # padding_idx row zeroed
    # tgt embedding tied to the output projection; xavier-like re-init (matches
    # nn.init.xavier_normal_ applied to the shared weight after tying).
    tgt_emb = (jax.random.normal(k_tgt_emb, (V, D), jnp.float32)
               * jnp.sqrt(2.0 / (V + D)))

    # Tied output projection weight: transpose + lane-pad + bf16 cast ONCE here.
    v_pad = ((V + 127) // 128) * 128
    w_prj = jnp.pad(tgt_emb.T, ((0, 0), (0, v_pad - V))).astype(jnp.bfloat16)

    enc_keys = jax.random.split(k_enc, cfg["n_layers"] * 2)
    dec_keys = jax.random.split(k_dec, cfg["n_layers"] * 3)
    params = dict(
        src_emb=src_emb,
        tgt_emb=tgt_emb,
        w_prj=w_prj,
        pos_table=sinusoid_table(cfg["n_position"], D),
        enc_attn=build_attn_stack(enc_keys[0::2], D, cfg["n_head"], cfg["d_k"], cfg["d_v"]),
        enc_ffn=build_ffn_stack(enc_keys[1::2], D, cfg["d_inner"]),
        dec_slf=build_attn_stack(dec_keys[0::3], D, cfg["n_head"], cfg["d_k"], cfg["d_v"]),
        dec_crs=build_attn_stack(dec_keys[1::3], D, cfg["n_head"], cfg["d_k"], cfg["d_v"]),
        dec_ffn=build_ffn_stack(dec_keys[2::3], D, cfg["d_inner"]),
    )

    k_s, k_t = jax.random.split(k_in)
    src_seq = jax.random.randint(k_s, (B, Ls), 1, cfg["n_src_vocab"], dtype=jnp.int32)
    tgt_seq = jax.random.randint(k_t, (B, Lt), 1, cfg["n_tgt_vocab"], dtype=jnp.int32)
    # Pad tokens to exercise the masks.
    src_seq = src_seq.at[0, -1].set(cfg["src_pad_idx"])
    tgt_seq = tgt_seq.at[1, -2:].set(cfg["tgt_pad_idx"])

    fwd = jax.jit(lambda s, t, p: transformer_forward(s, t, p, cfg))
    out = jax.block_until_ready(fwd(src_seq, tgt_seq, params))
    assert out.shape == (B * Lt, cfg["n_tgt_vocab"]), out.shape
    assert bool(jnp.all(jnp.isfinite(out)))
    print("KERNEL_OK")
</pallas_src>

<mosaic_0001>
module attributes {stable_mosaic.version = 11 : i64} {
  func.func @_transformer_kernel(%arg0: i32, %arg1: memref<2x8x32xf32, #tpu.memory_space<vmem>>, %arg2: memref<2x8x32xf32, #tpu.memory_space<vmem>>, %arg3: memref<2x1x8xf32, #tpu.memory_space<vmem>>, %arg4: memref<2x8x8xf32, #tpu.memory_space<vmem>>, %arg5: memref<1x4x32x8xbf16, #tpu.memory_space<vmem>>, %arg6: memref<1x4x32x8xbf16, #tpu.memory_space<vmem>>, %arg7: memref<1x4x32x8xbf16, #tpu.memory_space<vmem>>, %arg8: memref<1x4x8x32xbf16, #tpu.memory_space<vmem>>, %arg9: memref<1x1x32xf32, #tpu.memory_space<vmem>>, %arg10: memref<1x1x32xf32, #tpu.memory_space<vmem>>, %arg11: memref<1x32x64xbf16, #tpu.memory_space<vmem>>, %arg12: memref<1x1x64xf32, #tpu.memory_space<vmem>>, %arg13: memref<1x64x32xbf16, #tpu.memory_space<vmem>>, %arg14: memref<1x1x32xf32, #tpu.memory_space<vmem>>, %arg15: memref<1x1x32xf32, #tpu.memory_space<vmem>>, %arg16: memref<1x1x32xf32, #tpu.memory_space<vmem>>, %arg17: memref<1x4x32x8xbf16, #tpu.memory_space<vmem>>, %arg18: memref<1x4x32x8xbf16, #tpu.memory_space<vmem>>, %arg19: memref<1x4x32x8xbf16, #tpu.memory_space<vmem>>, %arg20: memref<1x4x8x32xbf16, #tpu.memory_space<vmem>>, %arg21: memref<1x1x32xf32, #tpu.memory_space<vmem>>, %arg22: memref<1x1x32xf32, #tpu.memory_space<vmem>>, %arg23: memref<1x4x32x8xbf16, #tpu.memory_space<vmem>>, %arg24: memref<1x4x32x8xbf16, #tpu.memory_space<vmem>>, %arg25: memref<1x4x32x8xbf16, #tpu.memory_space<vmem>>, %arg26: memref<1x4x8x32xbf16, #tpu.memory_space<vmem>>, %arg27: memref<1x1x32xf32, #tpu.memory_space<vmem>>, %arg28: memref<1x1x32xf32, #tpu.memory_space<vmem>>, %arg29: memref<1x32x64xbf16, #tpu.memory_space<vmem>>, %arg30: memref<1x1x64xf32, #tpu.memory_space<vmem>>, %arg31: memref<1x64x32xbf16, #tpu.memory_space<vmem>>, %arg32: memref<1x1x32xf32, #tpu.memory_space<vmem>>, %arg33: memref<1x1x32xf32, #tpu.memory_space<vmem>>, %arg34: memref<1x1x32xf32, #tpu.memory_space<vmem>>, %arg35: memref<32x128xbf16, #tpu.memory_space<vmem>>, %arg36: memref<16x128xf32, #tpu.memory_space<vmem>>, %arg37: memref<2x8x32xf32, #tpu.memory_space<vmem>>, %arg38: memref<2x8x32xf32, #tpu.memory_space<vmem>>) attributes {dimension_semantics = [#tpu.dimension_semantics<arbitrary>], iteration_bounds = array<i64: 4>, scalar_prefetch = 0 : i64, scratch_operands = 2 : i64, tpu.core_type = #tpu.core_type<tc>, window_params = [{pipeline_mode = #tpu.pipeline_mode<synchronous>, transform_indices = @transform_0, window_bounds = array<i64: 2, 8, 32>}, {pipeline_mode = #tpu.pipeline_mode<synchronous>, transform_indices = @transform_1, window_bounds = array<i64: 2, 8, 32>}, {pipeline_mode = #tpu.pipeline_mode<synchronous>, transform_indices = @transform_2, window_bounds = array<i64: 2, 1, 8>}, {pipeline_mode = #tpu.pipeline_mode<synchronous>, transform_indices = @transform_3, window_bounds = array<i64: 2, 8, 8>}, {transform_indices = @transform_4, window_bounds = array<i64: 1, 4, 32, 8>}, {transform_indices = @transform_5, window_bounds = array<i64: 1, 4, 32, 8>}, {transform_indices = @transform_6, window_bounds = array<i64: 1, 4, 32, 8>}, {transform_indices = @transform_7, window_bounds = array<i64: 1, 4, 8, 32>}, {transform_indices = @transform_8, window_bounds = array<i64: 1, 1, 32>}, {transform_indices = @transform_9, window_bounds = array<i64: 1, 1, 32>}, {transform_indices = @transform_10, window_bounds = array<i64: 1, 32, 64>}, {transform_indices = @transform_11, window_bounds = array<i64: 1, 1, 64>}, {transform_indices = @transform_12, window_bounds = array<i64: 1, 64, 32>}, {transform_indices = @transform_13, window_bounds = array<i64: 1, 1, 32>}, {transform_indices = @transform_14, window_bounds = array<i64: 1, 1, 32>}, {transform_indices = @transform_15, window_bounds = array<i64: 1, 1, 32>}, {transform_indices = @transform_16, window_bounds = array<i64: 1, 4, 32, 8>}, {transform_indices = @transform_17, window_bounds = array<i64: 1, 4, 32, 8>}, {transform_indices = @transform_18, window_bounds = array<i64: 1, 4, 32, 8>}, {transform_indices = @transform_19, window_bounds = array<i64: 1, 4, 8, 32>}, {transform_indices = @transform_20, window_bounds = array<i64: 1, 1, 32>}, {transform_indices = @transform_21, window_bounds = array<i64: 1, 1, 32>}, {transform_indices = @transform_22, window_bounds = array<i64: 1, 4, 32, 8>}, {transform_indices = @transform_23, window_bounds = array<i64: 1, 4, 32, 8>}, {transform_indices = @transform_24, window_bounds = array<i64: 1, 4, 32, 8>}, {transform_indices = @transform_25, window_bounds = array<i64: 1, 4, 8, 32>}, {transform_indices = @transform_26, window_bounds = array<i64: 1, 1, 32>}, {transform_indices = @transform_27, window_bounds = array<i64: 1, 1, 32>}, {transform_indices = @transform_28, window_bounds = array<i64: 1, 32, 64>}, {transform_indices = @transform_29, window_bounds = array<i64: 1, 1, 64>}, {transform_indices = @transform_30, window_bounds = array<i64: 1, 64, 32>}, {transform_indices = @transform_31, window_bounds = array<i64: 1, 1, 32>}, {transform_indices = @transform_32, window_bounds = array<i64: 1, 1, 32>}, {transform_indices = @transform_33, window_bounds = array<i64: 1, 1, 32>}, {pipeline_mode = #tpu.pipeline_mode<synchronous>, transform_indices = @transform_34, window_bounds = array<i64: 32, 128>}, {pipeline_mode = #tpu.pipeline_mode<synchronous>, transform_indices = @transform_35, window_bounds = array<i64: 16, 128>}]} {
    %c0_i32 = arith.constant 0 : i32
    %0 = arith.cmpi eq, %arg0, %c0_i32 : i32
    %1 = arith.extui %0 : i1 to i32
    %c0_i32_0 = arith.constant 0 : i32
    %2 = arith.cmpi ne, %1, %c0_i32_0 : i32
    scf.if %2 {
      %c0 = arith.constant 0 : index
      %c0_7 = arith.constant 0 : index
      %c0_8 = arith.constant 0 : index
      %15 = vector.load %arg1[%c0, %c0_7, %c0_8] : memref<2x8x32xf32, #tpu.memory_space<vmem>>, vector<2x8x32xf32>
      %c0_9 = arith.constant 0 : index
      %c0_10 = arith.constant 0 : index
      %c0_11 = arith.constant 0 : index
      %16 = vector.load %arg37[%c0_9, %c0_10, %c0_11] : memref<2x8x32xf32, #tpu.memory_space<vmem>>, vector<2x8x32xf32>
      tpu.vector_store %arg37[%c0_9, %c0_10, %c0_11], %15 {strides = array<i32>} : memref<2x8x32xf32, #tpu.memory_space<vmem>>, vector<2x8x32xf32>,
    } else {
    }
    %c2_i32 = arith.constant 2 : i32
    %3 = arith.cmpi eq, %arg0, %c2_i32 : i32
    %4 = arith.extui %3 : i1 to i32
    %c0_i32_1 = arith.constant 0 : i32
    %5 = arith.cmpi ne, %4, %c0_i32_1 : i32
    scf.if %5 {
      %c0 = arith.constant 0 : index
      %c0_7 = arith.constant 0 : index
      %c0_8 = arith.constant 0 : index
      %15 = vector.load %arg2[%c0, %c0_7, %c0_8] : memref<2x8x32xf32, #tpu.memory_space<vmem>>, vector<2x8x32xf32>
      %c0_9 = arith.constant 0 : index
      %c0_10 = arith.constant 0 : index
      %c0_11 = arith.constant 0 : index
      %16 = vector.load %arg38[%c0_9, %c0_10, %c0_11] : memref<2x8x32xf32, #tpu.memory_space<vmem>>, vector<2x8x32xf32>
      tpu.vector_store %arg38[%c0_9, %c0_10, %c0_11], %15 {strides = array<i32>} : memref<2x8x32xf32, #tpu.memory_space<vmem>>, vector<2x8x32xf32>,
    } else {
    }
    %c2_i32_2 = arith.constant 2 : i32
    %6 = arith.cmpi slt, %arg0, %c2_i32_2 : i32
    %7 = arith.extui %6 : i1 to i32
    %c0_i32_3 = arith.constant 0 : i32
    %8 = arith.cmpi ne, %7, %c0_i32_3 : i32
    scf.if %8 {
      %c0 = arith.constant 0 : index
      %c0_7 = arith.constant 0 : index
      %c0_8 = arith.constant 0 : index
      %15 = vector.load %arg37[%c0, %c0_7, %c0_8] : memref<2x8x32xf32, #tpu.memory_space<vmem>>, vector<2x8x32xf32>
      %c0_9 = arith.constant 0 : index
      %c0_10 = arith.constant 0 : index
      %c0_11 = arith.constant 0 : index
      %16 = vector.load %arg3[%c0_9, %c0_10, %c0_11] : memref<2x1x8xf32, #tpu.memory_space<vmem>>, vector<2x1x8xf32>
      %c0_12 = arith.constant 0 : index
      %c0_13 = arith.constant 0 : index
      %c0_14 = arith.constant 0 : index
      %c0_15 = arith.constant 0 : index
      %17 = vector.load %arg5[%c0_12, %c0_13, %c0_14, %c0_15] : memref<1x4x32x8xbf16, #tpu.memory_space<vmem>>, vector<1x4x32x8xbf16>
      %18 = vector.shape_cast %17 : vector<1x4x32x8xbf16> to vector<4x32x8xbf16>
      %c0_16 = arith.constant 0 : index
      %c0_17 = arith.constant 0 : index
      %c0_18 = arith.constant 0 : index
      %c0_19 = arith.constant 0 : index
      %19 = vector.load %arg6[%c0_16, %c0_17, %c0_18, %c0_19] : memref<1x4x32x8xbf16, #tpu.memory_space<vmem>>, vector<1x4x32x8xbf16>
      %20 = vector.shape_cast %19 : vector<1x4x32x8xbf16> to vector<4x32x8xbf16>
      %c0_20 = arith.constant 0 : index
      %c0_21 = arith.constant 0 : index
      %c0_22 = arith.constant 0 : index
      %c0_23 = arith.constant 0 : index
      %21 = vector.load %arg7[%c0_20, %c0_21, %c0_22, %c0_23] : memref<1x4x32x8xbf16, #tpu.memory_space<vmem>>, vector<1x4x32x8xbf16>
      %22 = vector.shape_cast %21 : vector<1x4x32x8xbf16> to vector<4x32x8xbf16>
      %c0_24 = arith.constant 0 : index
      %c0_25 = arith.constant 0 : index
      %c0_26 = arith.constant 0 : index
      %c0_27 = arith.constant 0 : index
      %23 = vector.load %arg8[%c0_24, %c0_25, %c0_26, %c0_27] : memref<1x4x8x32xbf16, #tpu.memory_space<vmem>>, vector<1x4x8x32xbf16>
      %24 = vector.shape_cast %23 : vector<1x4x8x32xbf16> to vector<4x8x32xbf16>
      %c0_28 = arith.constant 0 : index
      %c0_29 = arith.constant 0 : index
      %c0_30 = arith.constant 0 : index
      %25 = vector.load %arg9[%c0_28, %c0_29, %c0_30] : memref<1x1x32xf32, #tpu.memory_space<vmem>>, vector<1x1x32xf32>
      %26 = vector.shape_cast %25 : vector<1x1x32xf32> to vector<1x32xf32>
      %c0_31 = arith.constant 0 : index
      %c0_32 = arith.constant 0 : index
      %c0_33 = arith.constant 0 : index
      %27 = vector.load %arg10[%c0_31, %c0_32, %c0_33] : memref<1x1x32xf32, #tpu.memory_space<vmem>>, vector<1x1x32xf32>
      %28 = vector.shape_cast %27 : vector<1x1x32xf32> to vector<1x32xf32>
      %29 = arith.truncf %15 : vector<2x8x32xf32> to vector<2x8x32xbf16>
      %30 = vector.shape_cast %29 : vector<2x8x32xbf16> to vector<1x16x32xbf16>
      %31 = vector.shape_cast %30 : vector<1x16x32xbf16> to vector<1x16x32xbf16>
      %32 = vector.broadcast %31 : vector<1x16x32xbf16> to vector<4x16x32xbf16>
      "tpu.trace_start"() <{level = 10 : i32, message = "hnd,hde->hne"}> : () -> ()
      %cst = arith.constant dense<0.000000e+00> : vector<4x16x8xf32>
      %33 = tpu.matmul %32, %18, %cst {dimension_numbers = #tpu.dot_dimension_numbers<[2], [1], [1], [2], [0, 0, 0, 1, 1, 2], [0], [0]>} : vector<4x16x32xbf16>, vector<4x32x8xbf16>, vector<4x16x8xf32> -> vector<4x16x8xf32>
      %cst_34 = arith.constant dense<0.000000e+00> : vector<4x16x8xf32>
      %34 = tpu.matmul %32, %20, %cst_34 {dimension_numbers = #tpu.dot_dimension_numbers<[2], [1], [1], [2], [0, 0, 0, 1, 1, 2], [0], [0]>} : vector<4x16x32xbf16>, vector<4x32x8xbf16>, vector<4x16x8xf32> -> vector<4x16x8xf32>
      %cst_35 = arith.constant dense<0.000000e+00> : vector<4x16x8xf32>
      %35 = tpu.matmul %32, %22, %cst_35 {dimension_numbers = #tpu.dot_dimension_numbers<[2], [1], [1], [2], [0, 0, 0, 1, 1, 2], [0], [0]>} : vector<4x16x32xbf16>, vector<4x32x8xbf16>, vector<4x16x8xf32> -> vector<4x16x8xf32>
      "tpu.trace_stop"() : () -> ()
      %36 = vector.shape_cast %33 : vector<4x16x8xf32> to vector<4x2x8x8xf32>
      %37 = vector.shape_cast %36 : vector<4x2x8x8xf32> to vector<8x8x8xf32>
      %38 = vector.shape_cast %34 : vector<4x16x8xf32> to vector<4x2x8x8xf32>
      %39 = vector.shape_cast %38 : vector<4x2x8x8xf32> to vector<8x8x8xf32>
      %40 = vector.shape_cast %35 : vector<4x16x8xf32> to vector<4x2x8x8xf32>
      %41 = vector.shape_cast %40 : vector<4x2x8x8xf32> to vector<8x8x8xf32>
      %42 = arith.truncf %37 : vector<8x8x8xf32> to vector<8x8x8xbf16>
      %43 = arith.truncf %39 : vector<8x8x8xf32> to vector<8x8x8xbf16>
      "tpu.trace_start"() <{level = 10 : i32, message = "bqd,bkd->bqk"}> : () -> ()
      %cst_36 = arith.constant dense<0.000000e+00> : vector<8x8x8xf32>
      %44 = tpu.matmul %42, %43, %cst_36 {dimension_numbers = #tpu.dot_dimension_numbers<[2], [2], [1], [1], [0, 0, 0, 1, 1, 1], [0], [0]>} : vector<8x8x8xbf16>, vector<8x8x8xbf16>, vector<8x8x8xf32> -> vector<8x8x8xf32>
      "tpu.trace_stop"() : () -> ()
      %cst_37 = arith.constant 0.353553385 : f32
      %45 = vector.broadcast %cst_37 : f32 to vector<8x8x8xf32>
      %46 = arith.mulf %44, %45 : vector<8x8x8xf32>
      %47 = vector.shape_cast %46 : vector<8x8x8xf32> to vector<4x2x8x8xf32>
      %48 = vector.shape_cast %16 : vector<2x1x8xf32> to vector<1x2x1x8xf32>
      %49 = vector.broadcast %48 : vector<1x2x1x8xf32> to vector<4x2x8x8xf32>
      %50 = arith.addf %47, %49 : vector<4x2x8x8xf32>
      %51 = vector.shape_cast %50 : vector<4x2x8x8xf32> to vector<8x8x8xf32>
      %cst_38 = arith.constant dense<0xFF800000> : vector<8x8xf32>
      %52 = vector.multi_reduction <maximumf>, %51, %cst_38 [2] : vector<8x8x8xf32> to vector<8x8xf32>
      %53 = vector.shape_cast %52 : vector<8x8xf32> to vector<8x8x1xf32>
      %54 = vector.broadcast %53 : vector<8x8x1xf32> to vector<8x8x8xf32>
      %55 = arith.subf %51, %54 : vector<8x8x8xf32>
      %56 = math.exp %55 : vector<8x8x8xf32>
      %cst_39 = arith.constant dense<0.000000e+00> : vector<8x8xf32>
      %57 = vector.multi_reduction <add>, %56, %cst_39 [2] : vector<8x8x8xf32> to vector<8x8xf32>
      %58 = vector.shape_cast %57 : vector<8x8xf32> to vector<8x8x1xf32>
      %59 = tpu.reciprocal %58 {approx = true} : vector<8x8x1xf32> -> vector<8x8x1xf32>
      %60 = vector.broadcast %59 : vector<8x8x1xf32> to vector<8x8x8xf32>
      %61 = arith.mulf %56, %60 : vector<8x8x8xf32>
      %62 = arith.truncf %61 : vector<8x8x8xf32> to vector<8x8x8xbf16>
      %63 = arith.truncf %41 : vector<8x8x8xf32> to vector<8x8x8xbf16>
      "tpu.trace_start"() <{level = 10 : i32, message = "bqk,bkd->bqd"}> : () -> ()
      %cst_40 = arith.constant dense<0.000000e+00> : vector<8x8x8xf32>
      %64 = tpu.matmul %62, %63, %cst_40 {dimension_numbers = #tpu.dot_dimension_numbers<[2], [1], [1], [2], [0, 0, 0, 1, 1, 2], [0], [0]>} : vector<8x8x8xbf16>, vector<8x8x8xbf16>, vector<8x8x8xf32> -> vector<8x8x8xf32>
      "tpu.trace_stop"() : () -> ()
      %65 = vector.shape_cast %64 : vector<8x8x8xf32> to vector<4x2x8x8xf32>
      %66 = vector.shape_cast %65 : vector<4x2x8x8xf32> to vector<4x16x8xf32>
      %67 = arith.truncf %66 : vector<4x16x8xf32> to vector<4x16x8xbf16>
      "tpu.trace_start"() <{level = 10 : i32, message = "hnd,hde->hne"}> : () -> ()
      %cst_41 = arith.constant dense<0.000000e+00> : vector<4x16x32xf32>
      %68 = tpu.matmul %67, %24, %cst_41 {dimension_numbers = #tpu.dot_dimension_numbers<[2], [1], [1], [2], [0, 0, 0, 1, 1, 2], [0], [0]>} : vector<4x16x8xbf16>, vector<4x8x32xbf16>, vector<4x16x32xf32> -> vector<4x16x32xf32>
      "tpu.trace_stop"() : () -> ()
      %cst_42 = arith.constant dense<0.000000e+00> : vector<16x32xf32>
      %69 = vector.multi_reduction <add>, %68, %cst_42 [0] : vector<4x16x32xf32> to vector<16x32xf32>
      %70 = vector.shape_cast %69 : vector<16x32xf32> to vector<2x8x32xf32>
      %71 = arith.addf %70, %15 : vector<2x8x32xf32>
      %cst_43 = arith.constant dense<0.000000e+00> : vector<2x8xf32>
      %72 = vector.multi_reduction <add>, %71, %cst_43 [2] : vector<2x8x32xf32> to vector<2x8xf32>
      %73 = vector.shape_cast %72 : vector<2x8xf32> to vector<2x8x1xf32>
      %cst_44 = arith.constant 3.200000e+01 : f32
      %74 = vector.broadcast %cst_44 : f32 to vector<2x8x1xf32>
      %75 = arith.divf %73, %74 : vector<2x8x1xf32>
      %76 = vector.broadcast %75 : vector<2x8x1xf32> to vector<2x8x32xf32>
      %77 = arith.subf %71, %76 : vector<2x8x32xf32>
      %78 = arith.mulf %77, %77 : vector<2x8x32xf32>
      %cst_45 = arith.constant dense<0.000000e+00> : vector<2x8xf32>
      %79 = vector.multi_reduction <add>, %78, %cst_45 [2] : vector<2x8x32xf32> to vector<2x8xf32>
      %80 = vector.shape_cast %79 : vector<2x8xf32> to vector<2x8x1xf32>
      %cst_46 = arith.constant 3.200000e+01 : f32
      %81 = vector.broadcast %cst_46 : f32 to vector<2x8x1xf32>
      %82 = arith.divf %80, %81 : vector<2x8x1xf32>
      %83 = vector.broadcast %75 : vector<2x8x1xf32> to vector<2x8x32xf32>
      %84 = arith.subf %71, %83 : vector<2x8x32xf32>
      %cst_47 = arith.constant 9.99999997E-7 : f32
      %85 = vector.broadcast %cst_47 : f32 to vector<2x8x1xf32>
      %86 = arith.addf %82, %85 : vector<2x8x1xf32>
      %87 = math.rsqrt %86 : vector<2x8x1xf32>
      %88 = vector.broadcast %87 : vector<2x8x1xf32> to vector<2x8x32xf32>
      %89 = arith.mulf %84, %88 : vector<2x8x32xf32>
      %90 = vector.shape_cast %26 : vector<1x32xf32> to vector<1x1x32xf32>
      %91 = vector.broadcast %90 : vector<1x1x32xf32> to vector<2x8x32xf32>
      %92 = arith.mulf %89, %91 : vector<2x8x32xf32>
      %93 = vector.shape_cast %28 : vector<1x32xf32> to vector<1x1x32xf32>
      %94 = vector.broadcast %93 : vector<1x1x32xf32> to vector<2x8x32xf32>
      %95 = arith.addf %92, %94 : vector<2x8x32xf32>
      %c0_48 = arith.constant 0 : index
      %c0_49 = arith.constant 0 : index
      %c0_50 = arith.constant 0 : index
      %96 = vector.load %arg11[%c0_48, %c0_49, %c0_50] : memref<1x32x64xbf16, #tpu.memory_space<vmem>>, vector<1x32x64xbf16>
      %97 = vector.shape_cast %96 : vector<1x32x64xbf16> to vector<32x64xbf16>
      %c0_51 = arith.constant 0 : index
      %c0_52 = arith.constant 0 : index
      %c0_53 = arith.constant 0 : index
      %98 = vector.load %arg12[%c0_51, %c0_52, %c0_53] : memref<1x1x64xf32, #tpu.memory_space<vmem>>, vector<1x1x64xf32>
      %99 = vector.shape_cast %98 : vector<1x1x64xf32> to vector<1x64xf32>
      %c0_54 = arith.constant 0 : index
      %c0_55 = arith.constant 0 : index
      %c0_56 = arith.constant 0 : index
      %100 = vector.load %arg13[%c0_54, %c0_55, %c0_56] : memref<1x64x32xbf16, #tpu.memory_space<vmem>>, vector<1x64x32xbf16>
      %101 = vector.shape_cast %100 : vector<1x64x32xbf16> to vector<64x32xbf16>
      %c0_57 = arith.constant 0 : index
      %c0_58 = arith.constant 0 : index
      %c0_59 = arith.constant 0 : index
      %102 = vector.load %arg14[%c0_57, %c0_58, %c0_59] : memref<1x1x32xf32, #tpu.memory_space<vmem>>, vector<1x1x32xf32>
      %103 = vector.shape_cast %102 : vector<1x1x32xf32> to vector<1x32xf32>
      %c0_60 = arith.constant 0 : index
      %c0_61 = arith.constant 0 : index
      %c0_62 = arith.constant 0 : index
      %104 = vector.load %arg15[%c0_60, %c0_61, %c0_62] : memref<1x1x32xf32, #tpu.memory_space<vmem>>, vector<1x1x32xf32>
      %105 = vector.shape_cast %104 : vector<1x1x32xf32> to vector<1x32xf32>
      %c0_63 = arith.constant 0 : index
      %c0_64 = arith.constant 0 : index
      %c0_65 = arith.constant 0 : index
      %106 = vector.load %arg16[%c0_63, %c0_64, %c0_65] : memref<1x1x32xf32, #tpu.memory_space<vmem>>, vector<1x1x32xf32>
      %107 = vector.shape_cast %106 : vector<1x1x32xf32> to vector<1x32xf32>
      %108 = vector.shape_cast %95 : vector<2x8x32xf32> to vector<16x32xf32>
      %109 = arith.truncf %108 : vector<16x32xf32> to vector<16x32xbf16>
      %cst_66 = arith.constant dense<0.000000e+00> : vector<16x64xf32>
      %110 = tpu.matmul %109, %97, %cst_66 {dimension_numbers = #tpu.dot_dimension_numbers<[1], [0], [0], [1], [0, 0, 1, 1], [], []>} : vector<16x32xbf16>, vector<32x64xbf16>, vector<16x64xf32> -> vector<16x64xf32>
      %111 = vector.broadcast %99 : vector<1x64xf32> to vector<16x64xf32>
      %112 = arith.addf %110, %111 : vector<16x64xf32>
      %cst_67 = arith.constant 0.000000e+00 : f32
      %113 = vector.broadcast %cst_67 : f32 to vector<16x64xf32>
      %114 = arith.maximumf %112, %113 : vector<16x64xf32>
      %115 = arith.truncf %114 : vector<16x64xf32> to vector<16x64xbf16>
      %cst_68 = arith.constant dense<0.000000e+00> : vector<16x32xf32>
      %116 = tpu.matmul %115, %101, %cst_68 {dimension_numbers = #tpu.dot_dimension_numbers<[1], [0], [0], [1], [0, 0, 1, 1], [], []>} : vector<16x64xbf16>, vector<64x32xbf16>, vector<16x32xf32> -> vector<16x32xf32>
      %117 = vector.broadcast %103 : vector<1x32xf32> to vector<16x32xf32>
      %118 = arith.addf %116, %117 : vector<16x32xf32>
      %119 = vector.shape_cast %118 : vector<16x32xf32> to vector<2x8x32xf32>
      %120 = arith.addf %119, %95 : vector<2x8x32xf32>
      %cst_69 = arith.constant dense<0.000000e+00> : vector<2x8xf32>
      %121 = vector.multi_reduction <add>, %120, %cst_69 [2] : vector<2x8x32xf32> to vector<2x8xf32>
      %122 = vector.shape_cast %121 : vector<2x8xf32> to vector<2x8x1xf32>
      %cst_70 = arith.constant 3.200000e+01 : f32
      %123 = vector.broadcast %cst_70 : f32 to vector<2x8x1xf32>
      %124 = arith.divf %122, %123 : vector<2x8x1xf32>
      %125 = vector.broadcast %124 : vector<2x8x1xf32> to vector<2x8x32xf32>
      %126 = arith.subf %120, %125 : vector<2x8x32xf32>
      %127 = arith.mulf %126, %126 : vector<2x8x32xf32>
      %cst_71 = arith.constant dense<0.000000e+00> : vector<2x8xf32>
      %128 = vector.multi_reduction <add>, %127, %cst_71 [2] : vector<2x8x32xf32> to vector<2x8xf32>
      %129 = vector.shape_cast %128 : vector<2x8xf32> to vector<2x8x1xf32>
      %cst_72 = arith.constant 3.200000e+01 : f32
      %130 = vector.broadcast %cst_72 : f32 to vector<2x8x1xf32>
      %131 = arith.divf %129, %130 : vector<2x8x1xf32>
      %132 = vector.broadcast %124 : vector<2x8x1xf32> to vector<2x8x32xf32>
      %133 = arith.subf %120, %132 : vector<2x8x32xf32>
      %cst_73 = arith.constant 9.99999997E-7 : f32
      %134 = vector.broadcast %cst_73 : f32 to vector<2x8x1xf32>
      %135 = arith.addf %131, %134 : vector<2x8x1xf32>
      %136 = math.rsqrt %135 : vector<2x8x1xf32>
      %137 = vector.broadcast %136 : vector<2x8x1xf32> to vector<2x8x32xf32>
      %138 = arith.mulf %133, %137 : vector<2x8x32xf32>
      %139 = vector.shape_cast %105 : vector<1x32xf32> to vector<1x1x32xf32>
      %140 = vector.broadcast %139 : vector<1x1x32xf32> to vector<2x8x32xf32>
      %141 = arith.mulf %138, %140 : vector<2x8x32xf32>
      %142 = vector.shape_cast %107 : vector<1x32xf32> to vector<1x1x32xf32>
      %143 = vector.broadcast %142 : vector<1x1x32xf32> to vector<2x8x32xf32>
      %144 = arith.addf %141, %143 : vector<2x8x32xf32>
      %c0_74 = arith.constant 0 : index
      %c0_75 = arith.constant 0 : index
      %c0_76 = arith.constant 0 : index
      %145 = vector.load %arg37[%c0_74, %c0_75, %c0_76] : memref<2x8x32xf32, #tpu.memory_space<vmem>>, vector<2x8x32xf32>
      tpu.vector_store %arg37[%c0_74, %c0_75, %c0_76], %144 {strides = array<i32>} : memref<2x8x32xf32, #tpu.memory_space<vmem>>, vector<2x8x32xf32>,
    } else {
    }
    %c2_i32_4 = arith.constant 2 : i32
    %9 = arith.cmpi sge, %arg0, %c2_i32_4 : i32
    %10 = arith.extui %9 : i1 to i32
    %c0_i32_5 = arith.constant 0 : i32
    %11 = arith.cmpi ne, %10, %c0_i32_5 : i32
    scf.if %11 {
      %c0 = arith.constant 0 : index
      %c0_7 = arith.constant 0 : index
      %c0_8 = arith.constant 0 : index
      %15 = vector.load %arg38[%c0, %c0_7, %c0_8] : memref<2x8x32xf32, #tpu.memory_space<vmem>>, vector<2x8x32xf32>
      %c0_9 = arith.constant 0 : index
      %c0_10 = arith.constant 0 : index
      %c0_11 = arith.constant 0 : index
      %16 = vector.load %arg37[%c0_9, %c0_10, %c0_11] : memref<2x8x32xf32, #tpu.memory_space<vmem>>, vector<2x8x32xf32>
      %c0_12 = arith.constant 0 : index
      %c0_13 = arith.constant 0 : index
      %c0_14 = arith.constant 0 : index
      %17 = vector.load %arg4[%c0_12, %c0_13, %c0_14] : memref<2x8x8xf32, #tpu.memory_space<vmem>>, vector<2x8x8xf32>
      %c0_15 = arith.constant 0 : index
      %c0_16 = arith.constant 0 : index
      %c0_17 = arith.constant 0 : index
      %c0_18 = arith.constant 0 : index
      %18 = vector.load %arg17[%c0_15, %c0_16, %c0_17, %c0_18] : memref<1x4x32x8xbf16, #tpu.memory_space<vmem>>, vector<1x4x32x8xbf16>
      %19 = vector.shape_cast %18 : vector<1x4x32x8xbf16> to vector<4x32x8xbf16>
      %c0_19 = arith.constant 0 : index
      %c0_20 = arith.constant 0 : index
      %c0_21 = arith.constant 0 : index
      %c0_22 = arith.constant 0 : index
      %20 = vector.load %arg18[%c0_19, %c0_20, %c0_21, %c0_22] : memref<1x4x32x8xbf16, #tpu.memory_space<vmem>>, vector<1x4x32x8xbf16>
      %21 = vector.shape_cast %20 : vector<1x4x32x8xbf16> to vector<4x32x8xbf16>
      %c0_23 = arith.constant 0 : index
      %c0_24 = arith.constant 0 : index
      %c0_25 = arith.constant 0 : index
      %c0_26 = arith.constant 0 : index
      %22 = vector.load %arg19[%c0_23, %c0_24, %c0_25, %c0_26] : memref<1x4x32x8xbf16, #tpu.memory_space<vmem>>, vector<1x4x32x8xbf16>
      %23 = vector.shape_cast %22 : vector<1x4x32x8xbf16> to vector<4x32x8xbf16>
      %c0_27 = arith.constant 0 : index
      %c0_28 = arith.constant 0 : index
      %c0_29 = arith.constant 0 : index
      %c0_30 = arith.constant 0 : index
      %24 = vector.load %arg20[%c0_27, %c0_28, %c0_29, %c0_30] : memref<1x4x8x32xbf16, #tpu.memory_space<vmem>>, vector<1x4x8x32xbf16>
      %25 = vector.shape_cast %24 : vector<1x4x8x32xbf16> to vector<4x8x32xbf16>
      %c0_31 = arith.constant 0 : index
      %c0_32 = arith.constant 0 : index
      %c0_33 = arith.constant 0 : index
      %26 = vector.load %arg21[%c0_31, %c0_32, %c0_33] : memref<1x1x32xf32, #tpu.memory_space<vmem>>, vector<1x1x32xf32>
      %27 = vector.shape_cast %26 : vector<1x1x32xf32> to vector<1x32xf32>
      %c0_34 = arith.constant 0 : index
      %c0_35 = arith.constant 0 : index
      %c0_36 = arith.constant 0 : index
      %28 = vector.load %arg22[%c0_34, %c0_35, %c0_36] : memref<1x1x32xf32, #tpu.memory_space<vmem>>, vector<1x1x32xf32>
      %29 = vector.shape_cast %28 : vector<1x1x32xf32> to vector<1x32xf32>
      %30 = arith.truncf %15 : vector<2x8x32xf32> to vector<2x8x32xbf16>
      %31 = vector.shape_cast %30 : vector<2x8x32xbf16> to vector<1x16x32xbf16>
      %32 = vector.shape_cast %31 : vector<1x16x32xbf16> to vector<1x16x32xbf16>
      %33 = vector.broadcast %32 : vector<1x16x32xbf16> to vector<4x16x32xbf16>
      "tpu.trace_start"() <{level = 10 : i32, message = "hnd,hde->hne"}> : () -> ()
      %cst = arith.constant dense<0.000000e+00> : vector<4x16x8xf32>
      %34 = tpu.matmul %33, %19, %cst {dimension_numbers = #tpu.dot_dimension_numbers<[2], [1], [1], [2], [0, 0, 0, 1, 1, 2], [0], [0]>} : vector<4x16x32xbf16>, vector<4x32x8xbf16>, vector<4x16x8xf32> -> vector<4x16x8xf32>
      %cst_37 = arith.constant dense<0.000000e+00> : vector<4x16x8xf32>
      %35 = tpu.matmul %33, %21, %cst_37 {dimension_numbers = #tpu.dot_dimension_numbers<[2], [1], [1], [2], [0, 0, 0, 1, 1, 2], [0], [0]>} : vector<4x16x32xbf16>, vector<4x32x8xbf16>, vector<4x16x8xf32> -> vector<4x16x8xf32>
      %cst_38 = arith.constant dense<0.000000e+00> : vector<4x16x8xf32>
      %36 = tpu.matmul %33, %23, %cst_38 {dimension_numbers = #tpu.dot_dimension_numbers<[2], [1], [1], [2], [0, 0, 0, 1, 1, 2], [0], [0]>} : vector<4x16x32xbf16>, vector<4x32x8xbf16>, vector<4x16x8xf32> -> vector<4x16x8xf32>
      "tpu.trace_stop"() : () -> ()
      %37 = vector.shape_cast %34 : vector<4x16x8xf32> to vector<4x2x8x8xf32>
      %38 = vector.shape_cast %37 : vector<4x2x8x8xf32> to vector<8x8x8xf32>
      %39 = vector.shape_cast %35 : vector<4x16x8xf32> to vector<4x2x8x8xf32>
      %40 = vector.shape_cast %39 : vector<4x2x8x8xf32> to vector<8x8x8xf32>
      %41 = vector.shape_cast %36 : vector<4x16x8xf32> to vector<4x2x8x8xf32>
      %42 = vector.shape_cast %41 : vector<4x2x8x8xf32> to vector<8x8x8xf32>
      %43 = arith.truncf %38 : vector<8x8x8xf32> to vector<8x8x8xbf16>
      %44 = arith.truncf %40 : vector<8x8x8xf32> to vector<8x8x8xbf16>
      "tpu.trace_start"() <{level = 10 : i32, message = "bqd,bkd->bqk"}> : () -> ()
      %cst_39 = arith.constant dense<0.000000e+00> : vector<8x8x8xf32>
      %45 = tpu.matmul %43, %44, %cst_39 {dimension_numbers = #tpu.dot_dimension_numbers<[2], [2], [1], [1], [0, 0, 0, 1, 1, 1], [0], [0]>} : vector<8x8x8xbf16>, vector<8x8x8xbf16>, vector<8x8x8xf32> -> vector<8x8x8xf32>
      "tpu.trace_stop"() : () -> ()
      %cst_40 = arith.constant 0.353553385 : f32
      %46 = vector.broadcast %cst_40 : f32 to vector<8x8x8xf32>
      %47 = arith.mulf %45, %46 : vector<8x8x8xf32>
      %48 = vector.shape_cast %47 : vector<8x8x8xf32> to vector<4x2x8x8xf32>
      %49 = vector.shape_cast %17 : vector<2x8x8xf32> to vector<1x2x8x8xf32>
      %50 = vector.broadcast %49 : vector<1x2x8x8xf32> to vector<4x2x8x8xf32>
      %51 = arith.addf %48, %50 : vector<4x2x8x8xf32>
      %52 = vector.shape_cast %51 : vector<4x2x8x8xf32> to vector<8x8x8xf32>
      %cst_41 = arith.constant dense<0xFF800000> : vector<8x8xf32>
      %53 = vector.multi_reduction <maximumf>, %52, %cst_41 [2] : vector<8x8x8xf32> to vector<8x8xf32>
      %54 = vector.shape_cast %53 : vector<8x8xf32> to vector<8x8x1xf32>
      %55 = vector.broadcast %54 : vector<8x8x1xf32> to vector<8x8x8xf32>
      %56 = arith.subf %52, %55 : vector<8x8x8xf32>
      %57 = math.exp %56 : vector<8x8x8xf32>
      %cst_42 = arith.constant dense<0.000000e+00> : vector<8x8xf32>
      %58 = vector.multi_reduction <add>, %57, %cst_42 [2] : vector<8x8x8xf32> to vector<8x8xf32>
      %59 = vector.shape_cast %58 : vector<8x8xf32> to vector<8x8x1xf32>
      %60 = tpu.reciprocal %59 {approx = true} : vector<8x8x1xf32> -> vector<8x8x1xf32>
      %61 = vector.broadcast %60 : vector<8x8x1xf32> to vector<8x8x8xf32>
      %62 = arith.mulf %57, %61 : vector<8x8x8xf32>
      %63 = arith.truncf %62 : vector<8x8x8xf32> to vector<8x8x8xbf16>
      %64 = arith.truncf %42 : vector<8x8x8xf32> to vector<8x8x8xbf16>
      "tpu.trace_start"() <{level = 10 : i32, message = "bqk,bkd->bqd"}> : () -> ()
      %cst_43 = arith.constant dense<0.000000e+00> : vector<8x8x8xf32>
      %65 = tpu.matmul %63, %64, %cst_43 {dimension_numbers = #tpu.dot_dimension_numbers<[2], [1], [1], [2], [0, 0, 0, 1, 1, 2], [0], [0]>} : vector<8x8x8xbf16>, vector<8x8x8xbf16>, vector<8x8x8xf32> -> vector<8x8x8xf32>
      "tpu.trace_stop"() : () -> ()
      %66 = vector.shape_cast %65 : vector<8x8x8xf32> to vector<4x2x8x8xf32>
      %67 = vector.shape_cast %66 : vector<4x2x8x8xf32> to vector<4x16x8xf32>
      %68 = arith.truncf %67 : vector<4x16x8xf32> to vector<4x16x8xbf16>
      "tpu.trace_start"() <{level = 10 : i32, message = "hnd,hde->hne"}> : () -> ()
      %cst_44 = arith.constant dense<0.000000e+00> : vector<4x16x32xf32>
      %69 = tpu.matmul %68, %25, %cst_44 {dimension_numbers = #tpu.dot_dimension_numbers<[2], [1], [1], [2], [0, 0, 0, 1, 1, 2], [0], [0]>} : vector<4x16x8xbf16>, vector<4x8x32xbf16>, vector<4x16x32xf32> -> vector<4x16x32xf32>
      "tpu.trace_stop"() : () -> ()
      %cst_45 = arith.constant dense<0.000000e+00> : vector<16x32xf32>
      %70 = vector.multi_reduction <add>, %69, %cst_45 [0] : vector<4x16x32xf32> to vector<16x32xf32>
      %71 = vector.shape_cast %70 : vector<16x32xf32> to vector<2x8x32xf32>
      %72 = arith.addf %71, %15 : vector<2x8x32xf32>
      %cst_46 = arith.constant dense<0.000000e+00> : vector<2x8xf32>
      %73 = vector.multi_reduction <add>, %72, %cst_46 [2] : vector<2x8x32xf32> to vector<2x8xf32>
      %74 = vector.shape_cast %73 : vector<2x8xf32> to vector<2x8x1xf32>
      %cst_47 = arith.constant 3.200000e+01 : f32
      %75 = vector.broadcast %cst_47 : f32 to vector<2x8x1xf32>
      %76 = arith.divf %74, %75 : vector<2x8x1xf32>
      %77 = vector.broadcast %76 : vector<2x8x1xf32> to vector<2x8x32xf32>
      %78 = arith.subf %72, %77 : vector<2x8x32xf32>
      %79 = arith.mulf %78, %78 : vector<2x8x32xf32>
      %cst_48 = arith.constant dense<0.000000e+00> : vector<2x8xf32>
      %80 = vector.multi_reduction <add>, %79, %cst_48 [2] : vector<2x8x32xf32> to vector<2x8xf32>
      %81 = vector.shape_cast %80 : vector<2x8xf32> to vector<2x8x1xf32>
      %cst_49 = arith.constant 3.200000e+01 : f32
      %82 = vector.broadcast %cst_49 : f32 to vector<2x8x1xf32>
      %83 = arith.divf %81, %82 : vector<2x8x1xf32>
      %84 = vector.broadcast %76 : vector<2x8x1xf32> to vector<2x8x32xf32>
      %85 = arith.subf %72, %84 : vector<2x8x32xf32>
      %cst_50 = arith.constant 9.99999997E-7 : f32
      %86 = vector.broadcast %cst_50 : f32 to vector<2x8x1xf32>
      %87 = arith.addf %83, %86 : vector<2x8x1xf32>
      %88 = math.rsqrt %87 : vector<2x8x1xf32>
      %89 = vector.broadcast %88 : vector<2x8x1xf32> to vector<2x8x32xf32>
      %90 = arith.mulf %85, %89 : vector<2x8x32xf32>
      %91 = vector.shape_cast %27 : vector<1x32xf32> to vector<1x1x32xf32>
      %92 = vector.broadcast %91 : vector<1x1x32xf32> to vector<2x8x32xf32>
      %93 = arith.mulf %90, %92 : vector<2x8x32xf32>
      %94 = vector.shape_cast %29 : vector<1x32xf32> to vector<1x1x32xf32>
      %95 = vector.broadcast %94 : vector<1x1x32xf32> to vector<2x8x32xf32>
      %96 = arith.addf %93, %95 : vector<2x8x32xf32>
      %c0_51 = arith.constant 0 : index
      %c0_52 = arith.constant 0 : index
      %c0_53 = arith.constant 0 : index
      %97 = vector.load %arg3[%c0_51, %c0_52, %c0_53] : memref<2x1x8xf32, #tpu.memory_space<vmem>>, vector<2x1x8xf32>
      %c0_54 = arith.constant 0 : index
      %c0_55 = arith.constant 0 : index
      %c0_56 = arith.constant 0 : index
      %c0_57 = arith.constant 0 : index
      %98 = vector.load %arg23[%c0_54, %c0_55, %c0_56, %c0_57] : memref<1x4x32x8xbf16, #tpu.memory_space<vmem>>, vector<1x4x32x8xbf16>
      %99 = vector.shape_cast %98 : vector<1x4x32x8xbf16> to vector<4x32x8xbf16>
      %c0_58 = arith.constant 0 : index
      %c0_59 = arith.constant 0 : index
      %c0_60 = arith.constant 0 : index
      %c0_61 = arith.constant 0 : index
      %100 = vector.load %arg24[%c0_58, %c0_59, %c0_60, %c0_61] : memref<1x4x32x8xbf16, #tpu.memory_space<vmem>>, vector<1x4x32x8xbf16>
      %101 = vector.shape_cast %100 : vector<1x4x32x8xbf16> to vector<4x32x8xbf16>
      %c0_62 = arith.constant 0 : index
      %c0_63 = arith.constant 0 : index
      %c0_64 = arith.constant 0 : index
      %c0_65 = arith.constant 0 : index
      %102 = vector.load %arg25[%c0_62, %c0_63, %c0_64, %c0_65] : memref<1x4x32x8xbf16, #tpu.memory_space<vmem>>, vector<1x4x32x8xbf16>
      %103 = vector.shape_cast %102 : vector<1x4x32x8xbf16> to vector<4x32x8xbf16>
      %c0_66 = arith.constant 0 : index
      %c0_67 = arith.constant 0 : index
      %c0_68 = arith.constant 0 : index
      %c0_69 = arith.constant 0 : index
      %104 = vector.load %arg26[%c0_66, %c0_67, %c0_68, %c0_69] : memref<1x4x8x32xbf16, #tpu.memory_space<vmem>>, vector<1x4x8x32xbf16>
      %105 = vector.shape_cast %104 : vector<1x4x8x32xbf16> to vector<4x8x32xbf16>
      %c0_70 = arith.constant 0 : index
      %c0_71 = arith.constant 0 : index
      %c0_72 = arith.constant 0 : index
      %106 = vector.load %arg27[%c0_70, %c0_71, %c0_72] : memref<1x1x32xf32, #tpu.memory_space<vmem>>, vector<1x1x32xf32>
      %107 = vector.shape_cast %106 : vector<1x1x32xf32> to vector<1x32xf32>
      %c0_73 = arith.constant 0 : index
      %c0_74 = arith.constant 0 : index
      %c0_75 = arith.constant 0 : index
      %108 = vector.load %arg28[%c0_73, %c0_74, %c0_75] : memref<1x1x32xf32, #tpu.memory_space<vmem>>, vector<1x1x32xf32>
      %109 = vector.shape_cast %108 : vector<1x1x32xf32> to vector<1x32xf32>
      %110 = arith.truncf %96 : vector<2x8x32xf32> to vector<2x8x32xbf16>
      %111 = vector.shape_cast %110 : vector<2x8x32xbf16> to vector<1x16x32xbf16>
      %112 = vector.shape_cast %111 : vector<1x16x32xbf16> to vector<1x16x32xbf16>
      %113 = vector.broadcast %112 : vector<1x16x32xbf16> to vector<4x16x32xbf16>
      %114 = arith.truncf %16 : vector<2x8x32xf32> to vector<2x8x32xbf16>
      %115 = vector.shape_cast %114 : vector<2x8x32xbf16> to vector<1x16x32xbf16>
      %116 = vector.shape_cast %115 : vector<1x16x32xbf16> to vector<1x16x32xbf16>
      %117 = vector.broadcast %116 : vector<1x16x32xbf16> to vector<4x16x32xbf16>
      "tpu.trace_start"() <{level = 10 : i32, message = "hnd,hde->hne"}> : () -> ()
      %cst_76 = arith.constant dense<0.000000e+00> : vector<4x16x8xf32>
      %118 = tpu.matmul %113, %99, %cst_76 {dimension_numbers = #tpu.dot_dimension_numbers<[2], [1], [1], [2], [0, 0, 0, 1, 1, 2], [0], [0]>} : vector<4x16x32xbf16>, vector<4x32x8xbf16>, vector<4x16x8xf32> -> vector<4x16x8xf32>
      %cst_77 = arith.constant dense<0.000000e+00> : vector<4x16x8xf32>
      %119 = tpu.matmul %117, %101, %cst_77 {dimension_numbers = #tpu.dot_dimension_numbers<[2], [1], [1], [2], [0, 0, 0, 1, 1, 2], [0], [0]>} : vector<4x16x32xbf16>, vector<4x32x8xbf16>, vector<4x16x8xf32> -> vector<4x16x8xf32>
      %cst_78 = arith.constant dense<0.000000e+00> : vector<4x16x8xf32>
      %120 = tpu.matmul %117, %103, %cst_78 {dimension_numbers = #tpu.dot_dimension_numbers<[2], [1], [1], [2], [0, 0, 0, 1, 1, 2], [0], [0]>} : vector<4x16x32xbf16>, vector<4x32x8xbf16>, vector<4x16x8xf32> -> vector<4x16x8xf32>
      "tpu.trace_stop"() : () -> ()
      %121 = vector.shape_cast %118 : vector<4x16x8xf32> to vector<4x2x8x8xf32>
      %122 = vector.shape_cast %121 : vector<4x2x8x8xf32> to vector<8x8x8xf32>
      %123 = vector.shape_cast %119 : vector<4x16x8xf32> to vector<4x2x8x8xf32>
      %124 = vector.shape_cast %123 : vector<4x2x8x8xf32> to vector<8x8x8xf32>
      %125 = vector.shape_cast %120 : vector<4x16x8xf32> to vector<4x2x8x8xf32>
      %126 = vector.shape_cast %125 : vector<4x2x8x8xf32> to vector<8x8x8xf32>
      %127 = arith.truncf %122 : vector<8x8x8xf32> to vector<8x8x8xbf16>
      %128 = arith.truncf %124 : vector<8x8x8xf32> to vector<8x8x8xbf16>
      "tpu.trace_start"() <{level = 10 : i32, message = "bqd,bkd->bqk"}> : () -> ()
      %cst_79 = arith.constant dense<0.000000e+00> : vector<8x8x8xf32>
      %129 = tpu.matmul %127, %128, %cst_79 {dimension_numbers = #tpu.dot_dimension_numbers<[2], [2], [1], [1], [0, 0, 0, 1, 1, 1], [0], [0]>} : vector<8x8x8xbf16>, vector<8x8x8xbf16>, vector<8x8x8xf32> -> vector<8x8x8xf32>
      "tpu.trace_stop"() : () -> ()
      %cst_80 = arith.constant 0.353553385 : f32
      %130 = vector.broadcast %cst_80 : f32 to vector<8x8x8xf32>
      %131 = arith.mulf %129, %130 : vector<8x8x8xf32>
      %132 = vector.shape_cast %131 : vector<8x8x8xf32> to vector<4x2x8x8xf32>
      %133 = vector.shape_cast %97 : vector<2x1x8xf32> to vector<1x2x1x8xf32>
      %134 = vector.broadcast %133 : vector<1x2x1x8xf32> to vector<4x2x8x8xf32>
      %135 = arith.addf %132, %134 : vector<4x2x8x8xf32>
      %136 = vector.shape_cast %135 : vector<4x2x8x8xf32> to vector<8x8x8xf32>
      %cst_81 = arith.constant dense<0xFF800000> : vector<8x8xf32>
      %137 = vector.multi_reduction <maximumf>, %136, %cst_81 [2] : vector<8x8x8xf32> to vector<8x8xf32>
      %138 = vector.shape_cast %137 : vector<8x8xf32> to vector<8x8x1xf32>
      %139 = vector.broadcast %138 : vector<8x8x1xf32> to vector<8x8x8xf32>
      %140 = arith.subf %136, %139 : vector<8x8x8xf32>
      %141 = math.exp %140 : vector<8x8x8xf32>
      %cst_82 = arith.constant dense<0.000000e+00> : vector<8x8xf32>
      %142 = vector.multi_reduction <add>, %141, %cst_82 [2] : vector<8x8x8xf32> to vector<8x8xf32>
      %143 = vector.shape_cast %142 : vector<8x8xf32> to vector<8x8x1xf32>
      %144 = tpu.reciprocal %143 {approx = true} : vector<8x8x1xf32> -> vector<8x8x1xf32>
      %145 = vector.broadcast %144 : vector<8x8x1xf32> to vector<8x8x8xf32>
      %146 = arith.mulf %141, %145 : vector<8x8x8xf32>
      %147 = arith.truncf %146 : vector<8x8x8xf32> to vector<8x8x8xbf16>
      %148 = arith.truncf %126 : vector<8x8x8xf32> to vector<8x8x8xbf16>
      "tpu.trace_start"() <{level = 10 : i32, message = "bqk,bkd->bqd"}> : () -> ()
      %cst_83 = arith.constant dense<0.000000e+00> : vector<8x8x8xf32>
      %149 = tpu.matmul %147, %148, %cst_83 {dimension_numbers = #tpu.dot_dimension_numbers<[2], [1], [1], [2], [0, 0, 0, 1, 1, 2], [0], [0]>} : vector<8x8x8xbf16>, vector<8x8x8xbf16>, vector<8x8x8xf32> -> vector<8x8x8xf32>
      "tpu.trace_stop"() : () -> ()
      %150 = vector.shape_cast %149 : vector<8x8x8xf32> to vector<4x2x8x8xf32>
      %151 = vector.shape_cast %150 : vector<4x2x8x8xf32> to vector<4x16x8xf32>
      %152 = arith.truncf %151 : vector<4x16x8xf32> to vector<4x16x8xbf16>
      "tpu.trace_start"() <{level = 10 : i32, message = "hnd,hde->hne"}> : () -> ()
      %cst_84 = arith.constant dense<0.000000e+00> : vector<4x16x32xf32>
      %153 = tpu.matmul %152, %105, %cst_84 {dimension_numbers = #tpu.dot_dimension_numbers<[2], [1], [1], [2], [0, 0, 0, 1, 1, 2], [0], [0]>} : vector<4x16x8xbf16>, vector<4x8x32xbf16>, vector<4x16x32xf32> -> vector<4x16x32xf32>
      "tpu.trace_stop"() : () -> ()
      %cst_85 = arith.constant dense<0.000000e+00> : vector<16x32xf32>
      %154 = vector.multi_reduction <add>, %153, %cst_85 [0] : vector<4x16x32xf32> to vector<16x32xf32>
      %155 = vector.shape_cast %154 : vector<16x32xf32> to vector<2x8x32xf32>
      %156 = arith.addf %155, %96 : vector<2x8x32xf32>
      %cst_86 = arith.constant dense<0.000000e+00> : vector<2x8xf32>
      %157 = vector.multi_reduction <add>, %156, %cst_86 [2] : vector<2x8x32xf32> to vector<2x8xf32>
      %158 = vector.shape_cast %157 : vector<2x8xf32> to vector<2x8x1xf32>
      %cst_87 = arith.constant 3.200000e+01 : f32
      %159 = vector.broadcast %cst_87 : f32 to vector<2x8x1xf32>
      %160 = arith.divf %158, %159 : vector<2x8x1xf32>
      %161 = vector.broadcast %160 : vector<2x8x1xf32> to vector<2x8x32xf32>
      %162 = arith.subf %156, %161 : vector<2x8x32xf32>
      %163 = arith.mulf %162, %162 : vector<2x8x32xf32>
      %cst_88 = arith.constant dense<0.000000e+00> : vector<2x8xf32>
      %164 = vector.multi_reduction <add>, %163, %cst_88 [2] : vector<2x8x32xf32> to vector<2x8xf32>
      %165 = vector.shape_cast %164 : vector<2x8xf32> to vector<2x8x1xf32>
      %cst_89 = arith.constant 3.200000e+01 : f32
      %166 = vector.broadcast %cst_89 : f32 to vector<2x8x1xf32>
      %167 = arith.divf %165, %166 : vector<2x8x1xf32>
      %168 = vector.broadcast %160 : vector<2x8x1xf32> to vector<2x8x32xf32>
      %169 = arith.subf %156, %168 : vector<2x8x32xf32>
      %cst_90 = arith.constant 9.99999997E-7 : f32
      %170 = vector.broadcast %cst_90 : f32 to vector<2x8x1xf32>
      %171 = arith.addf %167, %170 : vector<2x8x1xf32>
      %172 = math.rsqrt %171 : vector<2x8x1xf32>
      %173 = vector.broadcast %172 : vector<2x8x1xf32> to vector<2x8x32xf32>
      %174 = arith.mulf %169, %173 : vector<2x8x32xf32>
      %175 = vector.shape_cast %107 : vector<1x32xf32> to vector<1x1x32xf32>
      %176 = vector.broadcast %175 : vector<1x1x32xf32> to vector<2x8x32xf32>
      %177 = arith.mulf %174, %176 : vector<2x8x32xf32>
      %178 = vector.shape_cast %109 : vector<1x32xf32> to vector<1x1x32xf32>
      %179 = vector.broadcast %178 : vector<1x1x32xf32> to vector<2x8x32xf32>
      %180 = arith.addf %177, %179 : vector<2x8x32xf32>
      %c0_91 = arith.constant 0 : index
      %c0_92 = arith.constant 0 : index
      %c0_93 = arith.constant 0 : index
      %181 = vector.load %arg29[%c0_91, %c0_92, %c0_93] : memref<1x32x64xbf16, #tpu.memory_space<vmem>>, vector<1x32x64xbf16>
      %182 = vector.shape_cast %181 : vector<1x32x64xbf16> to vector<32x64xbf16>
      %c0_94 = arith.constant 0 : index
      %c0_95 = arith.constant 0 : index
      %c0_96 = arith.constant 0 : index
      %183 = vector.load %arg30[%c0_94, %c0_95, %c0_96] : memref<1x1x64xf32, #tpu.memory_space<vmem>>, vector<1x1x64xf32>
      %184 = vector.shape_cast %183 : vector<1x1x64xf32> to vector<1x64xf32>
      %c0_97 = arith.constant 0 : index
      %c0_98 = arith.constant 0 : index
      %c0_99 = arith.constant 0 : index
      %185 = vector.load %arg31[%c0_97, %c0_98, %c0_99] : memref<1x64x32xbf16, #tpu.memory_space<vmem>>, vector<1x64x32xbf16>
      %186 = vector.shape_cast %185 : vector<1x64x32xbf16> to vector<64x32xbf16>
      %c0_100 = arith.constant 0 : index
      %c0_101 = arith.constant 0 : index
      %c0_102 = arith.constant 0 : index
      %187 = vector.load %arg32[%c0_100, %c0_101, %c0_102] : memref<1x1x32xf32, #tpu.memory_space<vmem>>, vector<1x1x32xf32>
      %188 = vector.shape_cast %187 : vector<1x1x32xf32> to vector<1x32xf32>
      %c0_103 = arith.constant 0 : index
      %c0_104 = arith.constant 0 : index
      %c0_105 = arith.constant 0 : index
      %189 = vector.load %arg33[%c0_103, %c0_104, %c0_105] : memref<1x1x32xf32, #tpu.memory_space<vmem>>, vector<1x1x32xf32>
      %190 = vector.shape_cast %189 : vector<1x1x32xf32> to vector<1x32xf32>
      %c0_106 = arith.constant 0 : index
      %c0_107 = arith.constant 0 : index
      %c0_108 = arith.constant 0 : index
      %191 = vector.load %arg34[%c0_106, %c0_107, %c0_108] : memref<1x1x32xf32, #tpu.memory_space<vmem>>, vector<1x1x32xf32>
      %192 = vector.shape_cast %191 : vector<1x1x32xf32> to vector<1x32xf32>
      %193 = vector.shape_cast %180 : vector<2x8x32xf32> to vector<16x32xf32>
      %194 = arith.truncf %193 : vector<16x32xf32> to vector<16x32xbf16>
      %cst_109 = arith.constant dense<0.000000e+00> : vector<16x64xf32>
      %195 = tpu.matmul %194, %182, %cst_109 {dimension_numbers = #tpu.dot_dimension_numbers<[1], [0], [0], [1], [0, 0, 1, 1], [], []>} : vector<16x32xbf16>, vector<32x64xbf16>, vector<16x64xf32> -> vector<16x64xf32>
      %196 = vector.broadcast %184 : vector<1x64xf32> to vector<16x64xf32>
      %197 = arith.addf %195, %196 : vector<16x64xf32>
      %cst_110 = arith.constant 0.000000e+00 : f32
      %198 = vector.broadcast %cst_110 : f32 to vector<16x64xf32>
      %199 = arith.maximumf %197, %198 : vector<16x64xf32>
      %200 = arith.truncf %199 : vector<16x64xf32> to vector<16x64xbf16>
      %cst_111 = arith.constant dense<0.000000e+00> : vector<16x32xf32>
      %201 = tpu.matmul %200, %186, %cst_111 {dimension_numbers = #tpu.dot_dimension_numbers<[1], [0], [0], [1], [0, 0, 1, 1], [], []>} : vector<16x64xbf16>, vector<64x32xbf16>, vector<16x32xf32> -> vector<16x32xf32>
      %202 = vector.broadcast %188 : vector<1x32xf32> to vector<16x32xf32>
      %203 = arith.addf %201, %202 : vector<16x32xf32>
      %204 = vector.shape_cast %203 : vector<16x32xf32> to vector<2x8x32xf32>
      %205 = arith.addf %204, %180 : vector<2x8x32xf32>
      %cst_112 = arith.constant dense<0.000000e+00> : vector<2x8xf32>
      %206 = vector.multi_reduction <add>, %205, %cst_112 [2] : vector<2x8x32xf32> to vector<2x8xf32>
      %207 = vector.shape_cast %206 : vector<2x8xf32> to vector<2x8x1xf32>
      %cst_113 = arith.constant 3.200000e+01 : f32
      %208 = vector.broadcast %cst_113 : f32 to vector<2x8x1xf32>
      %209 = arith.divf %207, %208 : vector<2x8x1xf32>
      %210 = vector.broadcast %209 : vector<2x8x1xf32> to vector<2x8x32xf32>
      %211 = arith.subf %205, %210 : vector<2x8x32xf32>
      %212 = arith.mulf %211, %211 : vector<2x8x32xf32>
      %cst_114 = arith.constant dense<0.000000e+00> : vector<2x8xf32>
      %213 = vector.multi_reduction <add>, %212, %cst_114 [2] : vector<2x8x32xf32> to vector<2x8xf32>
      %214 = vector.shape_cast %213 : vector<2x8xf32> to vector<2x8x1xf32>
      %cst_115 = arith.constant 3.200000e+01 : f32
      %215 = vector.broadcast %cst_115 : f32 to vector<2x8x1xf32>
      %216 = arith.divf %214, %215 : vector<2x8x1xf32>
      %217 = vector.broadcast %209 : vector<2x8x1xf32> to vector<2x8x32xf32>
      %218 = arith.subf %205, %217 : vector<2x8x32xf32>
      %cst_116 = arith.constant 9.99999997E-7 : f32
      %219 = vector.broadcast %cst_116 : f32 to vector<2x8x1xf32>
      %220 = arith.addf %216, %219 : vector<2x8x1xf32>
      %221 = math.rsqrt %220 : vector<2x8x1xf32>
      %222 = vector.broadcast %221 : vector<2x8x1xf32> to vector<2x8x32xf32>
      %223 = arith.mulf %218, %222 : vector<2x8x32xf32>
      %224 = vector.shape_cast %190 : vector<1x32xf32> to vector<1x1x32xf32>
      %225 = vector.broadcast %224 : vector<1x1x32xf32> to vector<2x8x32xf32>
      %226 = arith.mulf %223, %225 : vector<2x8x32xf32>
      %227 = vector.shape_cast %192 : vector<1x32xf32> to vector<1x1x32xf32>
      %228 = vector.broadcast %227 : vector<1x1x32xf32> to vector<2x8x32xf32>
      %229 = arith.addf %226, %228 : vector<2x8x32xf32>
      %c0_117 = arith.constant 0 : index
      %c0_118 = arith.constant 0 : index
      %c0_119 = arith.constant 0 : index
      %230 = vector.load %arg38[%c0_117, %c0_118, %c0_119] : memref<2x8x32xf32, #tpu.memory_space<vmem>>, vector<2x8x32xf32>
      tpu.vector_store %arg38[%c0_117, %c0_118, %c0_119], %229 {strides = array<i32>} : memref<2x8x32xf32, #tpu.memory_space<vmem>>, vector<2x8x32xf32>,
    } else {
    }
    %c3_i32 = arith.constant 3 : i32
    %12 = arith.cmpi eq, %arg0, %c3_i32 : i32
    %13 = arith.extui %12 : i1 to i32
    %c0_i32_6 = arith.constant 0 : i32
    %14 = arith.cmpi ne, %13, %c0_i32_6 : i32
    scf.if %14 {
      %c0 = arith.constant 0 : index
      %c0_7 = arith.constant 0 : index
      %c0_8 = arith.constant 0 : index
      %15 = vector.load %arg38[%c0, %c0_7, %c0_8] : memref<2x8x32xf32, #tpu.memory_space<vmem>>, vector<2x8x32xf32>
      %16 = vector.shape_cast %15 : vector<2x8x32xf32> to vector<16x32xf32>
      %17 = arith.truncf %16 : vector<16x32xf32> to vector<16x32xbf16>
      %c0_9 = arith.constant 0 : index
      %c0_10 = arith.constant 0 : index
      %18 = vector.load %arg35[%c0_9, %c0_10] : memref<32x128xbf16, #tpu.memory_space<vmem>>, vector<32x128xbf16>
      %cst = arith.constant dense<0.000000e+00> : vector<16x128xf32>
      %19 = tpu.matmul %17, %18, %cst {dimension_numbers = #tpu.dot_dimension_numbers<[1], [0], [0], [1], [0, 0, 1, 1], [], []>} : vector<16x32xbf16>, vector<32x128xbf16>, vector<16x128xf32> -> vector<16x128xf32>
      %c0_11 = arith.constant 0 : index
      %c0_12 = arith.constant 0 : index
      %20 = vector.load %arg36[%c0_11, %c0_12] : memref<16x128xf32, #tpu.memory_space<vmem>>, vector<16x128xf32>
      tpu.vector_store %arg36[%c0_11, %c0_12], %19 {strides = array<i32>} : memref<16x128xf32, #tpu.memory_space<vmem>>, vector<16x128xf32>,
    } else {
    }
    return
  }
  func.func @transform_0(%arg0: i32) -> (i32, i32, i32) {
    %c0_i32 = arith.constant 0 : i32
    %c0_i32_0 = arith.constant 0 : i32
    %c0_i32_1 = arith.constant 0 : i32
    %c0_i32_2 = arith.constant 0 : i32
    return %c0_i32, %c0_i32_0, %c0_i32_1 : i32, i32, i32
  }
  func.func @transform_1(%arg0: i32) -> (i32, i32, i32) {
    %c0_i32 = arith.constant 0 : i32
    %c0_i32_0 = arith.constant 0 : i32
    %c0_i32_1 = arith.constant 0 : i32
    %c0_i32_2 = arith.constant 0 : i32
    return %c0_i32, %c0_i32_0, %c0_i32_1 : i32, i32, i32
  }
  func.func @transform_2(%arg0: i32) -> (i32, i32, i32) {
    %c0_i32 = arith.constant 0 : i32
    %c0_i32_0 = arith.constant 0 : i32
    %c0_i32_1 = arith.constant 0 : i32
    %c0_i32_2 = arith.constant 0 : i32
    return %c0_i32, %c0_i32_0, %c0_i32_1 : i32, i32, i32
  }
  func.func @transform_3(%arg0: i32) -> (i32, i32, i32) {
    %c0_i32 = arith.constant 0 : i32
    %c0_i32_0 = arith.constant 0 : i32
    %c0_i32_1 = arith.constant 0 : i32
    %c0_i32_2 = arith.constant 0 : i32
    return %c0_i32, %c0_i32_0, %c0_i32_1 : i32, i32, i32
  }
  func.func @transform_4(%arg0: i32) -> (i32, i32, i32, i32) {
    %c1_i32 = arith.constant 1 : i32
    %0 = arith.minsi %arg0, %c1_i32 : i32
    %c0_i32 = arith.constant 0 : i32
    %c0_i32_0 = arith.constant 0 : i32
    %c0_i32_1 = arith.constant 0 : i32
    %c0_i32_2 = arith.constant 0 : i32
    return %0, %c0_i32, %c0_i32_0, %c0_i32_1 : i32, i32, i32, i32
  }
  func.func @transform_5(%arg0: i32) -> (i32, i32, i32, i32) {
    %c1_i32 = arith.constant 1 : i32
    %0 = arith.minsi %arg0, %c1_i32 : i32
    %c0_i32 = arith.constant 0 : i32
    %c0_i32_0 = arith.constant 0 : i32
    %c0_i32_1 = arith.constant 0 : i32
    %c0_i32_2 = arith.constant 0 : i32
    return %0, %c0_i32, %c0_i32_0, %c0_i32_1 : i32, i32, i32, i32
  }
  func.func @transform_6(%arg0: i32) -> (i32, i32, i32, i32) {
    %c1_i32 = arith.constant 1 : i32
    %0 = arith.minsi %arg0, %c1_i32 : i32
    %c0_i32 = arith.constant 0 : i32
    %c0_i32_0 = arith.constant 0 : i32
    %c0_i32_1 = arith.constant 0 : i32
    %c0_i32_2 = arith.constant 0 : i32
    return %0, %c0_i32, %c0_i32_0, %c0_i32_1 : i32, i32, i32, i32
  }
  func.func @transform_7(%arg0: i32) -> (i32, i32, i32, i32) {
    %c1_i32 = arith.constant 1 : i32
    %0 = arith.minsi %arg0, %c1_i32 : i32
    %c0_i32 = arith.constant 0 : i32
    %c0_i32_0 = arith.constant 0 : i32
    %c0_i32_1 = arith.constant 0 : i32
    %c0_i32_2 = arith.constant 0 : i32
    return %0, %c0_i32, %c0_i32_0, %c0_i32_1 : i32, i32, i32, i32
  }
  func.func @transform_8(%arg0: i32) -> (i32, i32, i32) {
    %c1_i32 = arith.constant 1 : i32
    %0 = arith.minsi %arg0, %c1_i32 : i32
    %c0_i32 = arith.constant 0 : i32
    %c0_i32_0 = arith.constant 0 : i32
    %c0_i32_1 = arith.constant 0 : i32
    return %0, %c0_i32, %c0_i32_0 : i32, i32, i32
  }
  func.func @transform_9(%arg0: i32) -> (i32, i32, i32) {
    %c1_i32 = arith.constant 1 : i32
    %0 = arith.minsi %arg0, %c1_i32 : i32
    %c0_i32 = arith.constant 0 : i32
    %c0_i32_0 = arith.constant 0 : i32
    %c0_i32_1 = arith.constant 0 : i32
    return %0, %c0_i32, %c0_i32_0 : i32, i32, i32
  }
  func.func @transform_10(%arg0: i32) -> (i32, i32, i32) {
    %c1_i32 = arith.constant 1 : i32
    %0 = arith.minsi %arg0, %c1_i32 : i32
    %c0_i32 = arith.constant 0 : i32
    %c0_i32_0 = arith.constant 0 : i32
    %c0_i32_1 = arith.constant 0 : i32
    return %0, %c0_i32, %c0_i32_0 : i32, i32, i32
  }
  func.func @transform_11(%arg0: i32) -> (i32, i32, i32) {
    %c1_i32 = arith.constant 1 : i32
    %0 = arith.minsi %arg0, %c1_i32 : i32
    %c0_i32 = arith.constant 0 : i32
    %c0_i32_0 = arith.constant 0 : i32
    %c0_i32_1 = arith.constant 0 : i32
    return %0, %c0_i32, %c0_i32_0 : i32, i32, i32
  }
  func.func @transform_12(%arg0: i32) -> (i32, i32, i32) {
    %c1_i32 = arith.constant 1 : i32
    %0 = arith.minsi %arg0, %c1_i32 : i32
    %c0_i32 = arith.constant 0 : i32
    %c0_i32_0 = arith.constant 0 : i32
    %c0_i32_1 = arith.constant 0 : i32
    return %0, %c0_i32, %c0_i32_0 : i32, i32, i32
  }
  func.func @transform_13(%arg0: i32) -> (i32, i32, i32) {
    %c1_i32 = arith.constant 1 : i32
    %0 = arith.minsi %arg0, %c1_i32 : i32
    %c0_i32 = arith.constant 0 : i32
    %c0_i32_0 = arith.constant 0 : i32
    %c0_i32_1 = arith.constant 0 : i32
    return %0, %c0_i32, %c0_i32_0 : i32, i32, i32
  }
  func.func @transform_14(%arg0: i32) -> (i32, i32, i32) {
    %c1_i32 = arith.constant 1 : i32
    %0 = arith.minsi %arg0, %c1_i32 : i32
    %c0_i32 = arith.constant 0 : i32
    %c0_i32_0 = arith.constant 0 : i32
    %c0_i32_1 = arith.constant 0 : i32
    return %0, %c0_i32, %c0_i32_0 : i32, i32, i32
  }
  func.func @transform_15(%arg0: i32) -> (i32, i32, i32) {
    %c1_i32 = arith.constant 1 : i32
    %0 = arith.minsi %arg0, %c1_i32 : i32
    %c0_i32 = arith.constant 0 : i32
    %c0_i32_0 = arith.constant 0 : i32
    %c0_i32_1 = arith.constant 0 : i32
    return %0, %c0_i32, %c0_i32_0 : i32, i32, i32
  }
  func.func @transform_16(%arg0: i32) -> (i32, i32, i32, i32) {
    %c2_i32 = arith.constant 2 : i32
    %0 = arith.subi %arg0, %c2_i32 : i32
    %c0_i32 = arith.constant 0 : i32
    %1 = arith.maxsi %0, %c0_i32 : i32
    %c0_i32_0 = arith.constant 0 : i32
    %c0_i32_1 = arith.constant 0 : i32
    %c0_i32_2 = arith.constant 0 : i32
    %c0_i32_3 = arith.constant 0 : i32
    return %1, %c0_i32_0, %c0_i32_1, %c0_i32_2 : i32, i32, i32, i32
  }
  func.func @transform_17(%arg0: i32) -> (i32, i32, i32, i32) {
    %c2_i32 = arith.constant 2 : i32
    %0 = arith.subi %arg0, %c2_i32 : i32
    %c0_i32 = arith.constant 0 : i32
    %1 = arith.maxsi %0, %c0_i32 : i32
    %c0_i32_0 = arith.constant 0 : i32
    %c0_i32_1 = arith.constant 0 : i32
    %c0_i32_2 = arith.constant 0 : i32
    %c0_i32_3 = arith.constant 0 : i32
    return %1, %c0_i32_0, %c0_i32_1, %c0_i32_2 : i32, i32, i32, i32
  }
  func.func @transform_18(%arg0: i32) -> (i32, i32, i32, i32) {
    %c2_i32 = arith.constant 2 : i32
    %0 = arith.subi %arg0, %c2_i32 : i32
    %c0_i32 = arith.constant 0 : i32
    %1 = arith.maxsi %0, %c0_i32 : i32
    %c0_i32_0 = arith.constant 0 : i32
    %c0_i32_1 = arith.constant 0 : i32
    %c0_i32_2 = arith.constant 0 : i32
    %c0_i32_3 = arith.constant 0 : i32
    return %1, %c0_i32_0, %c0_i32_1, %c0_i32_2 : i32, i32, i32, i32
  }
  func.func @transform_19(%arg0: i32) -> (i32, i32, i32, i32) {
    %c2_i32 = arith.constant 2 : i32
    %0 = arith.subi %arg0, %c2_i32 : i32
    %c0_i32 = arith.constant 0 : i32
    %1 = arith.maxsi %0, %c0_i32 : i32
    %c0_i32_0 = arith.constant 0 : i32
    %c0_i32_1 = arith.constant 0 : i32
    %c0_i32_2 = arith.constant 0 : i32
    %c0_i32_3 = arith.constant 0 : i32
    return %1, %c0_i32_0, %c0_i32_1, %c0_i32_2 : i32, i32, i32, i32
  }
  func.func @transform_20(%arg0: i32) -> (i32, i32, i32) {
    %c2_i32 = arith.constant 2 : i32
    %0 = arith.subi %arg0, %c2_i32 : i32
    %c0_i32 = arith.constant 0 : i32
    %1 = arith.maxsi %0, %c0_i32 : i32
    %c0_i32_0 = arith.constant 0 : i32
    %c0_i32_1 = arith.constant 0 : i32
    %c0_i32_2 = arith.constant 0 : i32
    return %1, %c0_i32_0, %c0_i32_1 : i32, i32, i32
  }
  func.func @transform_21(%arg0: i32) -> (i32, i32, i32) {
    %c2_i32 = arith.constant 2 : i32
    %0 = arith.subi %arg0, %c2_i32 : i32
    %c0_i32 = arith.constant 0 : i32
    %1 = arith.maxsi %0, %c0_i32 : i32
    %c0_i32_0 = arith.constant 0 : i32
    %c0_i32_1 = arith.constant 0 : i32
    %c0_i32_2 = arith.constant 0 : i32
    return %1, %c0_i32_0, %c0_i32_1 : i32, i32, i32
  }
  func.func @transform_22(%arg0: i32) -> (i32, i32, i32, i32) {
    %c2_i32 = arith.constant 2 : i32
    %0 = arith.subi %arg0, %c2_i32 : i32
    %c0_i32 = arith.constant 0 : i32
    %1 = arith.maxsi %0, %c0_i32 : i32
    %c0_i32_0 = arith.constant 0 : i32
    %c0_i32_1 = arith.constant 0 : i32
    %c0_i32_2 = arith.constant 0 : i32
    %c0_i32_3 = arith.constant 0 : i32
    return %1, %c0_i32_0, %c0_i32_1, %c0_i32_2 : i32, i32, i32, i32
  }
  func.func @transform_23(%arg0: i32) -> (i32, i32, i32, i32) {
    %c2_i32 = arith.constant 2 : i32
    %0 = arith.subi %arg0, %c2_i32 : i32
    %c0_i32 = arith.constant 0 : i32
    %1 = arith.maxsi %0, %c0_i32 : i32
    %c0_i32_0 = arith.constant 0 : i32
    %c0_i32_1 = arith.constant 0 : i32
    %c0_i32_2 = arith.constant 0 : i32
    %c0_i32_3 = arith.constant 0 : i32
    return %1, %c0_i32_0, %c0_i32_1, %c0_i32_2 : i32, i32, i32, i32
  }
  func.func @transform_24(%arg0: i32) -> (i32, i32, i32, i32) {
    %c2_i32 = arith.constant 2 : i32
    %0 = arith.subi %arg0, %c2_i32 : i32
    %c0_i32 = arith.constant 0 : i32
    %1 = arith.maxsi %0, %c0_i32 : i32
    %c0_i32_0 = arith.constant 0 : i32
    %c0_i32_1 = arith.constant 0 : i32
    %c0_i32_2 = arith.constant 0 : i32
    %c0_i32_3 = arith.constant 0 : i32
    return %1, %c0_i32_0, %c0_i32_1, %c0_i32_2 : i32, i32, i32, i32
  }
  func.func @transform_25(%arg0: i32) -> (i32, i32, i32, i32) {
    %c2_i32 = arith.constant 2 : i32
    %0 = arith.subi %arg0, %c2_i32 : i32
    %c0_i32 = arith.constant 0 : i32
    %1 = arith.maxsi %0, %c0_i32 : i32
    %c0_i32_0 = arith.constant 0 : i32
    %c0_i32_1 = arith.constant 0 : i32
    %c0_i32_2 = arith.constant 0 : i32
    %c0_i32_3 = arith.constant 0 : i32
    return %1, %c0_i32_0, %c0_i32_1, %c0_i32_2 : i32, i32, i32, i32
  }
  func.func @transform_26(%arg0: i32) -> (i32, i32, i32) {
    %c2_i32 = arith.constant 2 : i32
    %0 = arith.subi %arg0, %c2_i32 : i32
    %c0_i32 = arith.constant 0 : i32
    %1 = arith.maxsi %0, %c0_i32 : i32
    %c0_i32_0 = arith.constant 0 : i32
    %c0_i32_1 = arith.constant 0 : i32
    %c0_i32_2 = arith.constant 0 : i32
    return %1, %c0_i32_0, %c0_i32_1 : i32, i32, i32
  }
  func.func @transform_27(%arg0: i32) -> (i32, i32, i32) {
    %c2_i32 = arith.constant 2 : i32
    %0 = arith.subi %arg0, %c2_i32 : i32
    %c0_i32 = arith.constant 0 : i32
    %1 = arith.maxsi %0, %c0_i32 : i32
    %c0_i32_0 = arith.constant 0 : i32
    %c0_i32_1 = arith.constant 0 : i32
    %c0_i32_2 = arith.constant 0 : i32
    return %1, %c0_i32_0, %c0_i32_1 : i32, i32, i32
  }
  func.func @transform_28(%arg0: i32) -> (i32, i32, i32) {
    %c2_i32 = arith.constant 2 : i32
    %0 = arith.subi %arg0, %c2_i32 : i32
    %c0_i32 = arith.constant 0 : i32
    %1 = arith.maxsi %0, %c0_i32 : i32
    %c0_i32_0 = arith.constant 0 : i32
    %c0_i32_1 = arith.constant 0 : i32
    %c0_i32_2 = arith.constant 0 : i32
    return %1, %c0_i32_0, %c0_i32_1 : i32, i32, i32
  }
  func.func @transform_29(%arg0: i32) -> (i32, i32, i32) {
    %c2_i32 = arith.constant 2 : i32
    %0 = arith.subi %arg0, %c2_i32 : i32
    %c0_i32 = arith.constant 0 : i32
    %1 = arith.maxsi %0, %c0_i32 : i32
    %c0_i32_0 = arith.constant 0 : i32
    %c0_i32_1 = arith.constant 0 : i32
    %c0_i32_2 = arith.constant 0 : i32
    return %1, %c0_i32_0, %c0_i32_1 : i32, i32, i32
  }
  func.func @transform_30(%arg0: i32) -> (i32, i32, i32) {
    %c2_i32 = arith.constant 2 : i32
    %0 = arith.subi %arg0, %c2_i32 : i32
    %c0_i32 = arith.constant 0 : i32
    %1 = arith.maxsi %0, %c0_i32 : i32
    %c0_i32_0 = arith.constant 0 : i32
    %c0_i32_1 = arith.constant 0 : i32
    %c0_i32_2 = arith.constant 0 : i32
    return %1, %c0_i32_0, %c0_i32_1 : i32, i32, i32
  }
  func.func @transform_31(%arg0: i32) -> (i32, i32, i32) {
    %c2_i32 = arith.constant 2 : i32
    %0 = arith.subi %arg0, %c2_i32 : i32
    %c0_i32 = arith.constant 0 : i32
    %1 = arith.maxsi %0, %c0_i32 : i32
    %c0_i32_0 = arith.constant 0 : i32
    %c0_i32_1 = arith.constant 0 : i32
    %c0_i32_2 = arith.constant 0 : i32
    return %1, %c0_i32_0, %c0_i32_1 : i32, i32, i32
  }
  func.func @transform_32(%arg0: i32) -> (i32, i32, i32) {
    %c2_i32 = arith.constant 2 : i32
    %0 = arith.subi %arg0, %c2_i32 : i32
    %c0_i32 = arith.constant 0 : i32
    %1 = arith.maxsi %0, %c0_i32 : i32
    %c0_i32_0 = arith.constant 0 : i32
    %c0_i32_1 = arith.constant 0 : i32
    %c0_i32_2 = arith.constant 0 : i32
    return %1, %c0_i32_0, %c0_i32_1 : i32, i32, i32
  }
  func.func @transform_33(%arg0: i32) -> (i32, i32, i32) {
    %c2_i32 = arith.constant 2 : i32
    %0 = arith.subi %arg0, %c2_i32 : i32
    %c0_i32 = arith.constant 0 : i32
    %1 = arith.maxsi %0, %c0_i32 : i32
    %c0_i32_0 = arith.constant 0 : i32
    %c0_i32_1 = arith.constant 0 : i32
    %c0_i32_2 = arith.constant 0 : i32
    return %1, %c0_i32_0, %c0_i32_1 : i32, i32, i32
  }
  func.func @transform_34(%arg0: i32) -> (i32, i32) {
    %c0_i32 = arith.constant 0 : i32
    %c0_i32_0 = arith.constant 0 : i32
    %c0_i32_1 = arith.constant 0 : i32
    return %c0_i32, %c0_i32_0 : i32, i32
  }
  func.func @transform_35(%arg0: i32) -> (i32, i32) {
    %c0_i32 = arith.constant 0 : i32
    %c0_i32_0 = arith.constant 0 : i32
    %c0_i32_1 = arith.constant 0 : i32
    return %c0_i32, %c0_i32_0 : i32, i32
  }
}

</mosaic_0001>

<llo_original>
// kernel: _lambda_.1
$region0: #{_lambda_.1}
  #allocation0 [shape = 'u32[]', space=smem, size = 0x4, offset = 0x4, fixed_abs, tag = 'smem constant byte address 0x4 - core index']
  #allocation1 [shape = 'u32[72,128]{1,0:T(1,128)}', space=vmem, size = 0x9000, scoped, tag = 'internal scratch']
  #allocation2 [shape = 'f32[2,8,32]{2,1,0:T(8,128)}', space=vmem, size = 0x2000, scoped, tag = 'scratch operand']
  #allocation3 [shape = 'f32[2,8,32]{2,1,0:T(8,128)}', space=vmem, size = 0x2000, scoped, tag = 'scratch operand']
  %s0 = inlined_call_operand.smem [shape: u32[36], index: -1, kind: input, shape index: {}]
  %s1 = sld [smem:[%s0]]
  %s2 = scalar_lea.smem %s0, 1
  %s3 = sld [smem:[%s2]]
  %s4 = scalar_lea.smem %s0, 2
  %s5 = sld [smem:[%s4]]
  %s6 = scalar_lea.smem %s0, 3
  %s7 = sld [smem:[%s6]]
  %s8 = scalar_lea.smem %s0, 4
  %s9 = sld [smem:[%s8]]
  %s10 = scalar_lea.smem %s0, 5
  %s11 = sld [smem:[%s10]]
  %s12 = scalar_lea.smem %s0, 6
  %s13 = sld [smem:[%s12]]
  %s14 = scalar_lea.smem %s0, 7
  %s15 = sld [smem:[%s14]]
  %s16 = scalar_lea.smem %s0, 8
  %s17 = sld [smem:[%s16]]
  %s18 = scalar_lea.smem %s0, 9
  %s19 = sld [smem:[%s18]]
  %s20 = scalar_lea.smem %s0, 10
  %s21 = sld [smem:[%s20]]
  %s22 = scalar_lea.smem %s0, 11
  %s23 = sld [smem:[%s22]]
  %s24 = scalar_lea.smem %s0, 12
  %s25 = sld [smem:[%s24]]
  %s26 = scalar_lea.smem %s0, 13
  %s27 = sld [smem:[%s26]]
  %s28 = scalar_lea.smem %s0, 14
  %s29 = sld [smem:[%s28]]
  %s30 = scalar_lea.smem %s0, 15
  %s31 = sld [smem:[%s30]]
  %s32 = scalar_lea.smem %s0, 16
  %s33 = sld [smem:[%s32]]
  %s34 = scalar_lea.smem %s0, 17
  %s35 = sld [smem:[%s34]]
  %s36 = scalar_lea.smem %s0, 18
  %s37 = sld [smem:[%s36]]
  %s38 = scalar_lea.smem %s0, 19
  %s39 = sld [smem:[%s38]]
  %s40 = scalar_lea.smem %s0, 20
  %s41 = sld [smem:[%s40]]
  %s42 = scalar_lea.smem %s0, 21
  %s43 = sld [smem:[%s42]]
  %s44 = scalar_lea.smem %s0, 22
  %s45 = sld [smem:[%s44]]
  %s46 = scalar_lea.smem %s0, 23
  %s47 = sld [smem:[%s46]]
  %s48 = scalar_lea.smem %s0, 24
  %s49 = sld [smem:[%s48]]
  %s50 = scalar_lea.smem %s0, 25
  %s51 = sld [smem:[%s50]]
  %s52 = scalar_lea.smem %s0, 26
  %s53 = sld [smem:[%s52]]
  %s54 = scalar_lea.smem %s0, 27
  %s55 = sld [smem:[%s54]]
  %s56 = scalar_lea.smem %s0, 28
  %s57 = sld [smem:[%s56]]
  %s58 = scalar_lea.smem %s0, 29
  %s59 = sld [smem:[%s58]]
  %s60 = scalar_lea.smem %s0, 30
  %s61 = sld [smem:[%s60]]
  %s62 = scalar_lea.smem %s0, 31
  %s63 = sld [smem:[%s62]]
  %s64 = scalar_lea.smem %s0, 32
  %s65 = sld [smem:[%s64]]
  %s66 = scalar_lea.smem %s0, 33
  %s67 = sld [smem:[%s66]]
  %s68 = scalar_lea.smem %s0, 34
  %s69 = sld [smem:[%s68]]
  %s70 = scalar_lea.smem %s0, 35
  %s71 = sld [smem:[%s70]]
  %s72 = sld [smem:[#allocation0]]
  $region193: #{_lambda_.1} parent=0
    _
  %s74 = ssub.s32 1, %s72
  %s75 = scalar_select 0, %s74, %s72
  $region1: #{_lambda_.1} parent=0
    #allocation4 [shape = 'u8[8192]{0}', space=vmem, size = 0x2000, scoped, tag = 'output window, operand 0, single buffered']
    #allocation5 [shape = 's32[2]{0}', space=sflag, size = 0x8, scoped, tag = 'scoped memory for _lambda_.1']
    %76 = vsyncpa [#allocation5], 0
    loop: start=0, step=1, limit=6
    $region2: #{_lambda_.1} parent=1 // loop_pre_header
      _
    $region3: #{_lambda_.1} parent=1 // loop_header
      %s78 = sphi 0, %s82
      %p79 = scmp.ge.s32.totalorder %s78, 6
      %s86 = sphi 0, %s86
      %s88 = sphi 0, %s86
      %s89 = sphi 0, %s88
      %s103 = sphi 0, %s89
      %s107 = sphi 0, %s107
      %s109 = sphi 0, %s107
      %s110 = sphi 0, %s109
      %s124 = sphi 0, %s110
      %s128 = sphi 0, %s128
      %s130 = sphi 0, %s128
      %s131 = sphi 0, %s130
      %s145 = sphi 0, %s131
      %s149 = sphi 0, %s149
      %s151 = sphi 0, %s149
      %s152 = sphi 0, %s151
      %s166 = sphi 0, %s152
      %s176 = sphi 0, %s178
      %s179 = sphi 0, %s176
      %s180 = sphi 0, %s179
      %s196 = sphi 0, %s180
      %s206 = sphi 0, %s208
      %s209 = sphi 0, %s206
      %s210 = sphi 0, %s209
      %s226 = sphi 0, %s210
      %s236 = sphi 0, %s238
      %s239 = sphi 0, %s236
      %s240 = sphi 0, %s239
      %s256 = sphi 0, %s240
      %s266 = sphi 0, %s268
      %s269 = sphi 0, %s266
      %s270 = sphi 0, %s269
      %s286 = sphi 0, %s270
      %s296 = sphi 0, %s298
      %s299 = sphi 0, %s296
      %s300 = sphi 0, %s299
      %s316 = sphi 0, %s300
      %s326 = sphi 0, %s328
      %s329 = sphi 0, %s326
      %s330 = sphi 0, %s329
      %s346 = sphi 0, %s330
      %s356 = sphi 0, %s358
      %s359 = sphi 0, %s356
      %s360 = sphi 0, %s359
      %s376 = sphi 0, %s360
      %s386 = sphi 0, %s388
      %s389 = sphi 0, %s386
      %s390 = sphi 0, %s389
      %s406 = sphi 0, %s390
      %s416 = sphi 0, %s418
      %s419 = sphi 0, %s416
      %s420 = sphi 0, %s419
      %s436 = sphi 0, %s420
      %s446 = sphi 0, %s448
      %s449 = sphi 0, %s446
      %s450 = sphi 0, %s449
      %s466 = sphi 0, %s450
      %s476 = sphi 0, %s478
      %s479 = sphi 0, %s476
      %s480 = sphi 0, %s479
      %s496 = sphi 0, %s480
      %s506 = sphi 0, %s508
      %s509 = sphi 0, %s506
      %s510 = sphi 0, %s509
      %s526 = sphi 0, %s510
      %s538 = sphi 0, %s540
      %s541 = sphi 0, %s538
      %s542 = sphi 0, %s541
      %s558 = sphi 0, %s542
      %s570 = sphi 0, %s572
      %s573 = sphi 0, %s570
      %s574 = sphi 0, %s573
      %s590 = sphi 0, %s574
      %s602 = sphi 0, %s604
      %s605 = sphi 0, %s602
      %s606 = sphi 0, %s605
      %s622 = sphi 0, %s606
      %s634 = sphi 0, %s636
      %s637 = sphi 0, %s634
      %s638 = sphi 0, %s637
      %s654 = sphi 0, %s638
      %s666 = sphi 0, %s668
      %s669 = sphi 0, %s666
      %s670 = sphi 0, %s669
      %s686 = sphi 0, %s670
      %s698 = sphi 0, %s700
      %s701 = sphi 0, %s698
      %s702 = sphi 0, %s701
      %s718 = sphi 0, %s702
      %s730 = sphi 0, %s732
      %s733 = sphi 0, %s730
      %s734 = sphi 0, %s733
      %s750 = sphi 0, %s734
      %s762 = sphi 0, %s764
      %s765 = sphi 0, %s762
      %s766 = sphi 0, %s765
      %s782 = sphi 0, %s766
      %s794 = sphi 0, %s796
      %s797 = sphi 0, %s794
      %s798 = sphi 0, %s797
      %s814 = sphi 0, %s798
      %s826 = sphi 0, %s828
      %s829 = sphi 0, %s826
      %s830 = sphi 0, %s829
      %s846 = sphi 0, %s830
      %s858 = sphi 0, %s860
      %s861 = sphi 0, %s858
      %s862 = sphi 0, %s861
      %s878 = sphi 0, %s862
      %s890 = sphi 0, %s892
      %s893 = sphi 0, %s890
      %s894 = sphi 0, %s893
      %s910 = sphi 0, %s894
      %s922 = sphi 0, %s924
      %s925 = sphi 0, %s922
      %s926 = sphi 0, %s925
      %s942 = sphi 0, %s926
      %s954 = sphi 0, %s956
      %s957 = sphi 0, %s954
      %s958 = sphi 0, %s957
      %s974 = sphi 0, %s958
      %s986 = sphi 0, %s988
      %s989 = sphi 0, %s986
      %s990 = sphi 0, %s989
      %s1006 = sphi 0, %s990
      %s1018 = sphi 0, %s1020
      %s1021 = sphi 0, %s1018
      %s1022 = sphi 0, %s1021
      %s1038 = sphi 0, %s1022
      %s1050 = sphi 0, %s1052
      %s1053 = sphi 0, %s1050
      %s1054 = sphi 0, %s1053
      %s1070 = sphi 0, %s1054
      %s1082 = sphi 0, %s1084
      %s1085 = sphi 0, %s1082
      %s1086 = sphi 0, %s1085
      %s1102 = sphi 0, %s1086
      %s1106 = sphi 0, %s1106
      %s1108 = sphi 0, %s1106
      %s1109 = sphi 0, %s1108
      %s1123 = sphi 0, %s1109
      %s1127 = sphi 0, %s1127
      %s1129 = sphi 0, %s1127
      %s1130 = sphi 0, %s1129
      %s1144 = sphi 0, %s1130
    $region4: #{_lambda_.1} parent=1 // loop_header_branch
      %81 = sbr.rel (%p79) target = $region8
    $region5: #{_lambda_.1} parent=1 // loop_body
      %s83 = ssub.s32 %s78, 1
      %s84 = ssub.s32 %s78, 2
      %s85 = sadd.s32 %s78, 1
      %s87 = sadd.s32 %s86, 1
      %p90 = scmp.eq.s32.totalorder %s78, 3
      %p91 = scmp.ne.s32.totalorder %s86, %s88
      %p92 = scmp.eq.s32.totalorder %s78, 0
      %p93 = por %p91, %p92
      %p94 = scmp.ne.s32.totalorder %s86, %s88
      %p95 = scmp.eq.s32.totalorder %s83, 3
      %p96 = por %p94, %p95
      %p97 = scmp.ne.s32.totalorder %s88, %s89
      %p98 = scmp.eq.s32.totalorder %s83, 0
      %p99 = por %p97, %p98
      %p100 = scmp.ne.s32.totalorder %s88, %s89
      %p101 = scmp.eq.s32.totalorder %s84, 3
      %p102 = por %p100, %p101
      %p104 = scmp.ne.s32.totalorder %s89, %s103
      %p105 = scmp.eq.s32.totalorder %s84, 0
      %p106 = por %p104, %p105
      %s108 = sadd.s32 %s107, 1
      %p111 = scmp.eq.s32.totalorder %s78, 3
      %p112 = scmp.ne.s32.totalorder %s107, %s109
      %p113 = scmp.eq.s32.totalorder %s78, 0
      %p114 = por %p112, %p113
      %p115 = scmp.ne.s32.totalorder %s107, %s109
      %p116 = scmp.eq.s32.totalorder %s83, 3
      %p117 = por %p115, %p116
      %p118 = scmp.ne.s32.totalorder %s109, %s110
      %p119 = scmp.eq.s32.totalorder %s83, 0
      %p120 = por %p118, %p119
      %p121 = scmp.ne.s32.totalorder %s109, %s110
      %p122 = scmp.eq.s32.totalorder %s84, 3
      %p123 = por %p121, %p122
      %p125 = scmp.ne.s32.totalorder %s110, %s124
      %p126 = scmp.eq.s32.totalorder %s84, 0
      %p127 = por %p125, %p126
      %s129 = sadd.s32 %s128, 1
      %p132 = scmp.eq.s32.totalorder %s78, 3
      %p133 = scmp.ne.s32.totalorder %s128, %s130
      %p134 = scmp.eq.s32.totalorder %s78, 0
      %p135 = por %p133, %p134
      %p136 = scmp.ne.s32.totalorder %s128, %s130
      %p137 = scmp.eq.s32.totalorder %s83, 3
      %p138 = por %p136, %p137
      %p139 = scmp.ne.s32.totalorder %s130, %s131
      %p140 = scmp.eq.s32.totalorder %s83, 0
      %p141 = por %p139, %p140
      %p142 = scmp.ne.s32.totalorder %s130, %s131
      %p143 = scmp.eq.s32.totalorder %s84, 3
      %p144 = por %p142, %p143
      %p146 = scmp.ne.s32.totalorder %s131, %s145
      %p147 = scmp.eq.s32.totalorder %s84, 0
      %p148 = por %p146, %p147
      %s150 = sadd.s32 %s149, 1
      %p153 = scmp.eq.s32.totalorder %s78, 3
      %p154 = scmp.ne.s32.totalorder %s149, %s151
      %p155 = scmp.eq.s32.totalorder %s78, 0
      %p156 = por %p154, %p155
      %p157 = scmp.ne.s32.totalorder %s149, %s151
      %p158 = scmp.eq.s32.totalorder %s83, 3
      %p159 = por %p157, %p158
      %p160 = scmp.ne.s32.totalorder %s151, %s152
      %p161 = scmp.eq.s32.totalorder %s83, 0
      %p162 = por %p160, %p161
      %p163 = scmp.ne.s32.totalorder %s151, %s152
      %p164 = scmp.eq.s32.totalorder %s84, 3
      %p165 = por %p163, %p164
      %p167 = scmp.ne.s32.totalorder %s152, %s166
      %p168 = scmp.eq.s32.totalorder %s84, 0
      %p169 = por %p167, %p168
      %p170 = scmp.lt.s32.totalorder %s78, 1
      %s171 = scalar_select %p170, %s78, 1
      %p172 = scmp.lt.s32.totalorder %s85, 1
      %s173 = scalar_select %p172, %s85, 1
      %s174 = ssub.s32 %s171, %s173
      %p175 = scmp.eq.s32.totalorder %s174, 0
      %s177 = sadd.s32 %s176, 1
      %s178 = scalar_select %p175, %s176, %s177
      %p181 = pneg %p175
      %p182 = scmp.eq.s32.totalorder %s78, 3
      %p183 = por %p181, %p182
      %p184 = scmp.ne.s32.totalorder %s176, %s179
      %p185 = scmp.eq.s32.totalorder %s78, 0
      %p186 = por %p184, %p185
      %p187 = scmp.ne.s32.totalorder %s176, %s179
      %p188 = scmp.eq.s32.totalorder %s83, 3
      %p189 = por %p187, %p188
      %p190 = scmp.ne.s32.totalorder %s179, %s180
      %p191 = scmp.eq.s32.totalorder %s83, 0
      %p192 = por %p190, %p191
      %p193 = scmp.ne.s32.totalorder %s179, %s180
      %p194 = scmp.eq.s32.totalorder %s84, 3
      %p195 = por %p193, %p194
      %p197 = scmp.ne.s32.totalorder %s180, %s196
      %p198 = scmp.eq.s32.totalorder %s84, 0
      %p199 = por %p197, %p198
      %p200 = scmp.lt.s32.totalorder %s78, 1
      %s201 = scalar_select %p200, %s78, 1
      %p202 = scmp.lt.s32.totalorder %s85, 1
      %s203 = scalar_select %p202, %s85, 1
      %s204 = ssub.s32 %s201, %s203
      %p205 = scmp.eq.s32.totalorder %s204, 0
      %s207 = sadd.s32 %s206, 1
      %s208 = scalar_select %p205, %s206, %s207
      %p211 = pneg %p205
      %p212 = scmp.eq.s32.totalorder %s78, 3
      %p213 = por %p211, %p212
      %p214 = scmp.ne.s32.totalorder %s206, %s209
      %p215 = scmp.eq.s32.totalorder %s78, 0
      %p216 = por %p214, %p215
      %p217 = scmp.ne.s32.totalorder %s206, %s209
      %p218 = scmp.eq.s32.totalorder %s83, 3
      %p219 = por %p217, %p218
      %p220 = scmp.ne.s32.totalorder %s209, %s210
      %p221 = scmp.eq.s32.totalorder %s83, 0
      %p222 = por %p220, %p221
      %p223 = scmp.ne.s32.totalorder %s209, %s210
      %p224 = scmp.eq.s32.totalorder %s84, 3
      %p225 = por %p223, %p224
      %p227 = scmp.ne.s32.totalorder %s210, %s226
      %p228 = scmp.eq.s32.totalorder %s84, 0
      %p229 = por %p227, %p228
      %p230 = scmp.lt.s32.totalorder %s78, 1
      %s231 = scalar_select %p230, %s78, 1
      %p232 = scmp.lt.s32.totalorder %s85, 1
      %s233 = scalar_select %p232, %s85, 1
      %s234 = ssub.s32 %s231, %s233
      %p235 = scmp.eq.s32.totalorder %s234, 0
      %s237 = sadd.s32 %s236, 1
      %s238 = scalar_select %p235, %s236, %s237
      %p241 = pneg %p235
      %p242 = scmp.eq.s32.totalorder %s78, 3
      %p243 = por %p241, %p242
      %p244 = scmp.ne.s32.totalorder %s236, %s239
      %p245 = scmp.eq.s32.totalorder %s78, 0
      %p246 = por %p244, %p245
      %p247 = scmp.ne.s32.totalorder %s236, %s239
      %p248 = scmp.eq.s32.totalorder %s83, 3
      %p249 = por %p247, %p248
      %p250 = scmp.ne.s32.totalorder %s239, %s240
      %p251 = scmp.eq.s32.totalorder %s83, 0
      %p252 = por %p250, %p251
      %p253 = scmp.ne.s32.totalorder %s239, %s240
      %p254 = scmp.eq.s32.totalorder %s84, 3
      %p255 = por %p253, %p254
      %p257 = scmp.ne.s32.totalorder %s240, %s256
      %p258 = scmp.eq.s32.totalorder %s84, 0
      %p259 = por %p257, %p258
      %p260 = scmp.lt.s32.totalorder %s78, 1
      %s261 = scalar_select %p260, %s78, 1
      %p262 = scmp.lt.s32.totalorder %s85, 1
      %s263 = scalar_select %p262, %s85, 1
      %s264 = ssub.s32 %s261, %s263
      %p265 = scmp.eq.s32.totalorder %s264, 0
      %s267 = sadd.s32 %s266, 1
      %s268 = scalar_select %p265, %s266, %s267
      %p271 = pneg %p265
      %p272 = scmp.eq.s32.totalorder %s78, 3
      %p273 = por %p271, %p272
      %p274 = scmp.ne.s32.totalorder %s266, %s269
      %p275 = scmp.eq.s32.totalorder %s78, 0
      %p276 = por %p274, %p275
      %p277 = scmp.ne.s32.totalorder %s266, %s269
      %p278 = scmp.eq.s32.totalorder %s83, 3
      %p279 = por %p277, %p278
      %p280 = scmp.ne.s32.totalorder %s269, %s270
      %p281 = scmp.eq.s32.totalorder %s83, 0
      %p282 = por %p280, %p281
      %p283 = scmp.ne.s32.totalorder %s269, %s270
      %p284 = scmp.eq.s32.totalorder %s84, 3
      %p285 = por %p283, %p284
      %p287 = scmp.ne.s32.totalorder %s270, %s286
      %p288 = scmp.eq.s32.totalorder %s84, 0
      %p289 = por %p287, %p288
      %p290 = scmp.lt.s32.totalorder %s78, 1
      %s291 = scalar_select %p290, %s78, 1
      %p292 = scmp.lt.s32.totalorder %s85, 1
      %s293 = scalar_select %p292, %s85, 1
      %s294 = ssub.s32 %s291, %s293
      %p295 = scmp.eq.s32.totalorder %s294, 0
      %s297 = sadd.s32 %s296, 1
      %s298 = scalar_select %p295, %s296, %s297
      %p301 = pneg %p295
      %p302 = scmp.eq.s32.totalorder %s78, 3
      %p303 = por %p301, %p302
      %p304 = scmp.ne.s32.totalorder %s296, %s299
      %p305 = scmp.eq.s32.totalorder %s78, 0
      %p306 = por %p304, %p305
      %p307 = scmp.ne.s32.totalorder %s296, %s299
      %p308 = scmp.eq.s32.totalorder %s83, 3
      %p309 = por %p307, %p308
      %p310 = scmp.ne.s32.totalorder %s299, %s300
      %p311 = scmp.eq.s32.totalorder %s83, 0
      %p312 = por %p310, %p311
      %p313 = scmp.ne.s32.totalorder %s299, %s300
      %p314 = scmp.eq.s32.totalorder %s84, 3
      %p315 = por %p313, %p314
      %p317 = scmp.ne.s32.totalorder %s300, %s316
      %p318 = scmp.eq.s32.totalorder %s84, 0
      %p319 = por %p317, %p318
      %p320 = scmp.lt.s32.totalorder %s78, 1
      %s321 = scalar_select %p320, %s78, 1
      %p322 = scmp.lt.s32.totalorder %s85, 1
      %s323 = scalar_select %p322, %s85, 1
      %s324 = ssub.s32 %s321, %s323
      %p325 = scmp.eq.s32.totalorder %s324, 0
      %s327 = sadd.s32 %s326, 1
      %s328 = scalar_select %p325, %s326, %s327
      %p331 = pneg %p325
      %p332 = scmp.eq.s32.totalorder %s78, 3
      %p333 = por %p331, %p332
      %p334 = scmp.ne.s32.totalorder %s326, %s329
      %p335 = scmp.eq.s32.totalorder %s78, 0
      %p336 = por %p334, %p335
      %p337 = scmp.ne.s32.totalorder %s326, %s329
      %p338 = scmp.eq.s32.totalorder %s83, 3
      %p339 = por %p337, %p338
      %p340 = scmp.ne.s32.totalorder %s329, %s330
      %p341 = scmp.eq.s32.totalorder %s83, 0
      %p342 = por %p340, %p341
      %p343 = scmp.ne.s32.totalorder %s329, %s330
      %p344 = scmp.eq.s32.totalorder %s84, 3
      %p345 = por %p343, %p344
      %p347 = scmp.ne.s32.totalorder %s330, %s346
      %p348 = scmp.eq.s32.totalorder %s84, 0
      %p349 = por %p347, %p348
      %p350 = scmp.lt.s32.totalorder %s78, 1
      %s351 = scalar_select %p350, %s78, 1
      %p352 = scmp.lt.s32.totalorder %s85, 1
      %s353 = scalar_select %p352, %s85, 1
      %s354 = ssub.s32 %s351, %s353
      %p355 = scmp.eq.s32.totalorder %s354, 0
      %s357 = sadd.s32 %s356, 1
      %s358 = scalar_select %p355, %s356, %s357
      %p361 = pneg %p355
      %p362 = scmp.eq.s32.totalorder %s78, 3
      %p363 = por %p361, %p362
      %p364 = scmp.ne.s32.totalorder %s356, %s359
      %p365 = scmp.eq.s32.totalorder %s78, 0
      %p366 = por %p364, %p365
      %p367 = scmp.ne.s32.totalorder %s356, %s359
      %p368 = scmp.eq.s32.totalorder %s83, 3
      %p369 = por %p367, %p368
      %p370 = scmp.ne.s32.totalorder %s359, %s360
      %p371 = scmp.eq.s32.totalorder %s83, 0
      %p372 = por %p370, %p371
      %p373 = scmp.ne.s32.totalorder %s359, %s360
      %p374 = scmp.eq.s32.totalorder %s84, 3
      %p375 = por %p373, %p374
      %p377 = scmp.ne.s32.totalorder %s360, %s376
      %p378 = scmp.eq.s32.totalorder %s84, 0
      %p379 = por %p377, %p378
      %p380 = scmp.lt.s32.totalorder %s78, 1
      %s381 = scalar_select %p380, %s78, 1
      %p382 = scmp.lt.s32.totalorder %s85, 1
      %s383 = scalar_select %p382, %s85, 1
      %s384 = ssub.s32 %s381, %s383
      %p385 = scmp.eq.s32.totalorder %s384, 0
      %s387 = sadd.s32 %s386, 1
      %s388 = scalar_select %p385, %s386, %s387
      %p391 = pneg %p385
      %p392 = scmp.eq.s32.totalorder %s78, 3
      %p393 = por %p391, %p392
      %p394 = scmp.ne.s32.totalorder %s386, %s389
      %p395 = scmp.eq.s32.totalorder %s78, 0
      %p396 = por %p394, %p395
      %p397 = scmp.ne.s32.totalorder %s386, %s389
      %p398 = scmp.eq.s32.totalorder %s83, 3
      %p399 = por %p397, %p398
      %p400 = scmp.ne.s32.totalorder %s389, %s390
      %p401 = scmp.eq.s32.totalorder %s83, 0
      %p402 = por %p400, %p401
      %p403 = scmp.ne.s32.totalorder %s389, %s390
      %p404 = scmp.eq.s32.totalorder %s84, 3
      %p405 = por %p403, %p404
      %p407 = scmp.ne.s32.totalorder %s390, %s406
      %p408 = scmp.eq.s32.totalorder %s84, 0
      %p409 = por %p407, %p408
      %p410 = scmp.lt.s32.totalorder %s78, 1
      %s411 = scalar_select %p410, %s78, 1
      %p412 = scmp.lt.s32.totalorder %s85, 1
      %s413 = scalar_select %p412, %s85, 1
      %s414 = ssub.s32 %s411, %s413
      %p415 = scmp.eq.s32.totalorder %s414, 0
      %s417 = sadd.s32 %s416, 1
      %s418 = scalar_select %p415, %s416, %s417
      %p421 = pneg %p415
      %p422 = scmp.eq.s32.totalorder %s78, 3
      %p423 = por %p421, %p422
      %p424 = scmp.ne.s32.totalorder %s416, %s419
      %p425 = scmp.eq.s32.totalorder %s78, 0
      %p426 = por %p424, %p425
      %p427 = scmp.ne.s32.totalorder %s416, %s419
      %p428 = scmp.eq.s32.totalorder %s83, 3
      %p429 = por %p427, %p428
      %p430 = scmp.ne.s32.totalorder %s419, %s420
      %p431 = scmp.eq.s32.totalorder %s83, 0
      %p432 = por %p430, %p431
      %p433 = scmp.ne.s32.totalorder %s419, %s420
      %p434 = scmp.eq.s32.totalorder %s84, 3
      %p435 = por %p433, %p434
      %p437 = scmp.ne.s32.totalorder %s420, %s436
      %p438 = scmp.eq.s32.totalorder %s84, 0
      %p439 = por %p437, %p438
      %p440 = scmp.lt.s32.totalorder %s78, 1
      %s441 = scalar_select %p440, %s78, 1
      %p442 = scmp.lt.s32.totalorder %s85, 1
      %s443 = scalar_select %p442, %s85, 1
      %s444 = ssub.s32 %s441, %s443
      %p445 = scmp.eq.s32.totalorder %s444, 0
      %s447 = sadd.s32 %s446, 1
      %s448 = scalar_select %p445, %s446, %s447
      %p451 = pneg %p445
      %p452 = scmp.eq.s32.totalorder %s78, 3
      %p453 = por %p451, %p452
      %p454 = scmp.ne.s32.totalorder %s446, %s449
      %p455 = scmp.eq.s32.totalorder %s78, 0
      %p456 = por %p454, %p455
      %p457 = scmp.ne.s32.totalorder %s446, %s449
      %p458 = scmp.eq.s32.totalorder %s83, 3
      %p459 = por %p457, %p458
      %p460 = scmp.ne.s32.totalorder %s449, %s450
      %p461 = scmp.eq.s32.totalorder %s83, 0
      %p462 = por %p460, %p461
      %p463 = scmp.ne.s32.totalorder %s449, %s450
      %p464 = scmp.eq.s32.totalorder %s84, 3
      %p465 = por %p463, %p464
      %p467 = scmp.ne.s32.totalorder %s450, %s466
      %p468 = scmp.eq.s32.totalorder %s84, 0
      %p469 = por %p467, %p468
      %p470 = scmp.lt.s32.totalorder %s78, 1
      %s471 = scalar_select %p470, %s78, 1
      %p472 = scmp.lt.s32.totalorder %s85, 1
      %s473 = scalar_select %p472, %s85, 1
      %s474 = ssub.s32 %s471, %s473
      %p475 = scmp.eq.s32.totalorder %s474, 0
      %s477 = sadd.s32 %s476, 1
      %s478 = scalar_select %p475, %s476, %s477
      %p481 = pneg %p475
      %p482 = scmp.eq.s32.totalorder %s78, 3
      %p483 = por %p481, %p482
      %p484 = scmp.ne.s32.totalorder %s476, %s479
      %p485 = scmp.eq.s32.totalorder %s78, 0
      %p486 = por %p484, %p485
      %p487 = scmp.ne.s32.totalorder %s476, %s479
      %p488 = scmp.eq.s32.totalorder %s83, 3
      %p489 = por %p487, %p488
      %p490 = scmp.ne.s32.totalorder %s479, %s480
      %p491 = scmp.eq.s32.totalorder %s83, 0
      %p492 = por %p490, %p491
      %p493 = scmp.ne.s32.totalorder %s479, %s480
      %p494 = scmp.eq.s32.totalorder %s84, 3
      %p495 = por %p493, %p494
      %p497 = scmp.ne.s32.totalorder %s480, %s496
      %p498 = scmp.eq.s32.totalorder %s84, 0
      %p499 = por %p497, %p498
      %p500 = scmp.lt.s32.totalorder %s78, 1
      %s501 = scalar_select %p500, %s78, 1
      %p502 = scmp.lt.s32.totalorder %s85, 1
      %s503 = scalar_select %p502, %s85, 1
      %s504 = ssub.s32 %s501, %s503
      %p505 = scmp.eq.s32.totalorder %s504, 0
      %s507 = sadd.s32 %s506, 1
      %s508 = scalar_select %p505, %s506, %s507
      %p511 = pneg %p505
      %p512 = scmp.eq.s32.totalorder %s78, 3
      %p513 = por %p511, %p512
      %p514 = scmp.ne.s32.totalorder %s506, %s509
      %p515 = scmp.eq.s32.totalorder %s78, 0
      %p516 = por %p514, %p515
      %p517 = scmp.ne.s32.totalorder %s506, %s509
      %p518 = scmp.eq.s32.totalorder %s83, 3
      %p519 = por %p517, %p518
      %p520 = scmp.ne.s32.totalorder %s509, %s510
      %p521 = scmp.eq.s32.totalorder %s83, 0
      %p522 = por %p520, %p521
      %p523 = scmp.ne.s32.totalorder %s509, %s510
      %p524 = scmp.eq.s32.totalorder %s84, 3
      %p525 = por %p523, %p524
      %p527 = scmp.ne.s32.totalorder %s510, %s526
      %p528 = scmp.eq.s32.totalorder %s84, 0
      %p529 = por %p527, %p528
      %s530 = ssub.s32 %s78, 2
      %p531 = scmp.gt.s32.totalorder %s530, 0
      %s532 = scalar_select %p531, %s530, 0
      %s533 = ssub.s32 %s85, 2
      %p534 = scmp.gt.s32.totalorder %s533, 0
      %s535 = scalar_select %p534, %s533, 0
      %s536 = ssub.s32 %s532, %s535
      %p537 = scmp.eq.s32.totalorder %s536, 0
      %s539 = sadd.s32 %s538, 1
      %s540 = scalar_select %p537, %s538, %s539
      %p543 = pneg %p537
      %p544 = scmp.eq.s32.totalorder %s78, 3
      %p545 = por %p543, %p544
      %p546 = scmp.ne.s32.totalorder %s538, %s541
      %p547 = scmp.eq.s32.totalorder %s78, 0
      %p548 = por %p546, %p547
      %p549 = scmp.ne.s32.totalorder %s538, %s541
      %p550 = scmp.eq.s32.totalorder %s83, 3
      %p551 = por %p549, %p550
      %p552 = scmp.ne.s32.totalorder %s541, %s542
      %p553 = scmp.eq.s32.totalorder %s83, 0
      %p554 = por %p552, %p553
      %p555 = scmp.ne.s32.totalorder %s541, %s542
      %p556 = scmp.eq.s32.totalorder %s84, 3
      %p557 = por %p555, %p556
      %p559 = scmp.ne.s32.totalorder %s542, %s558
      %p560 = scmp.eq.s32.totalorder %s84, 0
      %p561 = por %p559, %p560
      %s562 = ssub.s32 %s78, 2
      %p563 = scmp.gt.s32.totalorder %s562, 0
      %s564 = scalar_select %p563, %s562, 0
      %s565 = ssub.s32 %s85, 2
      %p566 = scmp.gt.s32.totalorder %s565, 0
      %s567 = scalar_select %p566, %s565, 0
      %s568 = ssub.s32 %s564, %s567
      %p569 = scmp.eq.s32.totalorder %s568, 0
      %s571 = sadd.s32 %s570, 1
      %s572 = scalar_select %p569, %s570, %s571
      %p575 = pneg %p569
      %p576 = scmp.eq.s32.totalorder %s78, 3
      %p577 = por %p575, %p576
      %p578 = scmp.ne.s32.totalorder %s570, %s573
      %p579 = scmp.eq.s32.totalorder %s78, 0
      %p580 = por %p578, %p579
      %p581 = scmp.ne.s32.totalorder %s570, %s573
      %p582 = scmp.eq.s32.totalorder %s83, 3
      %p583 = por %p581, %p582
      %p584 = scmp.ne.s32.totalorder %s573, %s574
      %p585 = scmp.eq.s32.totalorder %s83, 0
      %p586 = por %p584, %p585
      %p587 = scmp.ne.s32.totalorder %s573, %s574
      %p588 = scmp.eq.s32.totalorder %s84, 3
      %p589 = por %p587, %p588
      %p591 = scmp.ne.s32.totalorder %s574, %s590
      %p592 = scmp.eq.s32.totalorder %s84, 0
      %p593 = por %p591, %p592
      %s594 = ssub.s32 %s78, 2
      %p595 = scmp.gt.s32.totalorder %s594, 0
      %s596 = scalar_select %p595, %s594, 0
      %s597 = ssub.s32 %s85, 2
      %p598 = scmp.gt.s32.totalorder %s597, 0
      %s599 = scalar_select %p598, %s597, 0
      %s600 = ssub.s32 %s596, %s599
      %p601 = scmp.eq.s32.totalorder %s600, 0
      %s603 = sadd.s32 %s602, 1
      %s604 = scalar_select %p601, %s602, %s603
      %p607 = pneg %p601
      %p608 = scmp.eq.s32.totalorder %s78, 3
      %p609 = por %p607, %p608
      %p610 = scmp.ne.s32.totalorder %s602, %s605
      %p611 = scmp.eq.s32.totalorder %s78, 0
      %p612 = por %p610, %p611
      %p613 = scmp.ne.s32.totalorder %s602, %s605
      %p614 = scmp.eq.s32.totalorder %s83, 3
      %p615 = por %p613, %p614
      %p616 = scmp.ne.s32.totalorder %s605, %s606
      %p617 = scmp.eq.s32.totalorder %s83, 0
      %p618 = por %p616, %p617
      %p619 = scmp.ne.s32.totalorder %s605, %s606
      %p620 = scmp.eq.s32.totalorder %s84, 3
      %p621 = por %p619, %p620
      %p623 = scmp.ne.s32.totalorder %s606, %s622
      %p624 = scmp.eq.s32.totalorder %s84, 0
      %p625 = por %p623, %p624
      %s626 = ssub.s32 %s78, 2
      %p627 = scmp.gt.s32.totalorder %s626, 0
      %s628 = scalar_select %p627, %s626, 0
      %s629 = ssub.s32 %s85, 2
      %p630 = scmp.gt.s32.totalorder %s629, 0
      %s631 = scalar_select %p630, %s629, 0
      %s632 = ssub.s32 %s628, %s631
      %p633 = scmp.eq.s32.totalorder %s632, 0
      %s635 = sadd.s32 %s634, 1
      %s636 = scalar_select %p633, %s634, %s635
      %p639 = pneg %p633
      %p640 = scmp.eq.s32.totalorder %s78, 3
      %p641 = por %p639, %p640
      %p642 = scmp.ne.s32.totalorder %s634, %s637
      %p643 = scmp.eq.s32.totalorder %s78, 0
      %p644 = por %p642, %p643
      %p645 = scmp.ne.s32.totalorder %s634, %s637
      %p646 = scmp.eq.s32.totalorder %s83, 3
      %p647 = por %p645, %p646
      %p648 = scmp.ne.s32.totalorder %s637, %s638
      %p649 = scmp.eq.s32.totalorder %s83, 0
      %p650 = por %p648, %p649
      %p651 = scmp.ne.s32.totalorder %s637, %s638
      %p652 = scmp.eq.s32.totalorder %s84, 3
      %p653 = por %p651, %p652
      %p655 = scmp.ne.s32.totalorder %s638, %s654
      %p656 = scmp.eq.s32.totalorder %s84, 0
      %p657 = por %p655, %p656
      %s658 = ssub.s32 %s78, 2
      %p659 = scmp.gt.s32.totalorder %s658, 0
      %s660 = scalar_select %p659, %s658, 0
      %s661 = ssub.s32 %s85, 2
      %p662 = scmp.gt.s32.totalorder %s661, 0
      %s663 = scalar_select %p662, %s661, 0
      %s664 = ssub.s32 %s660, %s663
      %p665 = scmp.eq.s32.totalorder %s664, 0
      %s667 = sadd.s32 %s666, 1
      %s668 = scalar_select %p665, %s666, %s667
      %p671 = pneg %p665
      %p672 = scmp.eq.s32.totalorder %s78, 3
      %p673 = por %p671, %p672
      %p674 = scmp.ne.s32.totalorder %s666, %s669
      %p675 = scmp.eq.s32.totalorder %s78, 0
      %p676 = por %p674, %p675
      %p677 = scmp.ne.s32.totalorder %s666, %s669
      %p678 = scmp.eq.s32.totalorder %s83, 3
      %p679 = por %p677, %p678
      %p680 = scmp.ne.s32.totalorder %s669, %s670
      %p681 = scmp.eq.s32.totalorder %s83, 0
      %p682 = por %p680, %p681
      %p683 = scmp.ne.s32.totalorder %s669, %s670
      %p684 = scmp.eq.s32.totalorder %s84, 3
      %p685 = por %p683, %p684
      %p687 = scmp.ne.s32.totalorder %s670, %s686
      %p688 = scmp.eq.s32.totalorder %s84, 0
      %p689 = por %p687, %p688
      %s690 = ssub.s32 %s78, 2
      %p691 = scmp.gt.s32.totalorder %s690, 0
      %s692 = scalar_select %p691, %s690, 0
      %s693 = ssub.s32 %s85, 2
      %p694 = scmp.gt.s32.totalorder %s693, 0
      %s695 = scalar_select %p694, %s693, 0
      %s696 = ssub.s32 %s692, %s695
      %p697 = scmp.eq.s32.totalorder %s696, 0
      %s699 = sadd.s32 %s698, 1
      %s700 = scalar_select %p697, %s698, %s699
      %p703 = pneg %p697
      %p704 = scmp.eq.s32.totalorder %s78, 3
      %p705 = por %p703, %p704
      %p706 = scmp.ne.s32.totalorder %s698, %s701
      %p707 = scmp.eq.s32.totalorder %s78, 0
      %p708 = por %p706, %p707
      %p709 = scmp.ne.s32.totalorder %s698, %s701
      %p710 = scmp.eq.s32.totalorder %s83, 3
      %p711 = por %p709, %p710
      %p712 = scmp.ne.s32.totalorder %s701, %s702
      %p713 = scmp.eq.s32.totalorder %s83, 0
      %p714 = por %p712, %p713
      %p715 = scmp.ne.s32.totalorder %s701, %s702
      %p716 = scmp.eq.s32.totalorder %s84, 3
      %p717 = por %p715, %p716
      %p719 = scmp.ne.s32.totalorder %s702, %s718
      %p720 = scmp.eq.s32.totalorder %s84, 0
      %p721 = por %p719, %p720
      %s722 = ssub.s32 %s78, 2
      %p723 = scmp.gt.s32.totalorder %s722, 0
      %s724 = scalar_select %p723, %s722, 0
      %s725 = ssub.s32 %s85, 2
      %p726 = scmp.gt.s32.totalorder %s725, 0
      %s727 = scalar_select %p726, %s725, 0
      %s728 = ssub.s32 %s724, %s727
      %p729 = scmp.eq.s32.totalorder %s728, 0
      %s731 = sadd.s32 %s730, 1
      %s732 = scalar_select %p729, %s730, %s731
      %p735 = pneg %p729
      %p736 = scmp.eq.s32.totalorder %s78, 3
      %p737 = por %p735, %p736
      %p738 = scmp.ne.s32.totalorder %s730, %s733
      %p739 = scmp.eq.s32.totalorder %s78, 0
      %p740 = por %p738, %p739
      %p741 = scmp.ne.s32.totalorder %s730, %s733
      %p742 = scmp.eq.s32.totalorder %s83, 3
      %p743 = por %p741, %p742
      %p744 = scmp.ne.s32.totalorder %s733, %s734
      %p745 = scmp.eq.s32.totalorder %s83, 0
      %p746 = por %p744, %p745
      %p747 = scmp.ne.s32.totalorder %s733, %s734
      %p748 = scmp.eq.s32.totalorder %s84, 3
      %p749 = por %p747, %p748
      %p751 = scmp.ne.s32.totalorder %s734, %s750
      %p752 = scmp.eq.s32.totalorder %s84, 0
      %p753 = por %p751, %p752
      %s754 = ssub.s32 %s78, 2
      %p755 = scmp.gt.s32.totalorder %s754, 0
      %s756 = scalar_select %p755, %s754, 0
      %s757 = ssub.s32 %s85, 2
      %p758 = scmp.gt.s32.totalorder %s757, 0
      %s759 = scalar_select %p758, %s757, 0
      %s760 = ssub.s32 %s756, %s759
      %p761 = scmp.eq.s32.totalorder %s760, 0
      %s763 = sadd.s32 %s762, 1
      %s764 = scalar_select %p761, %s762, %s763
      %p767 = pneg %p761
      %p768 = scmp.eq.s32.totalorder %s78, 3
      %p769 = por %p767, %p768
      %p770 = scmp.ne.s32.totalorder %s762, %s765
      %p771 = scmp.eq.s32.totalorder %s78, 0
      %p772 = por %p770, %p771
      %p773 = scmp.ne.s32.totalorder %s762, %s765
      %p774 = scmp.eq.s32.totalorder %s83, 3
      %p775 = por %p773, %p774
      %p776 = scmp.ne.s32.totalorder %s765, %s766
      %p777 = scmp.eq.s32.totalorder %s83, 0
      %p778 = por %p776, %p777
      %p779 = scmp.ne.s32.totalorder %s765, %s766
      %p780 = scmp.eq.s32.totalorder %s84, 3
      %p781 = por %p779, %p780
      %p783 = scmp.ne.s32.totalorder %s766, %s782
      %p784 = scmp.eq.s32.totalorder %s84, 0
      %p785 = por %p783, %p784
      %s786 = ssub.s32 %s78, 2
      %p787 = scmp.gt.s32.totalorder %s786, 0
      %s788 = scalar_select %p787, %s786, 0
      %s789 = ssub.s32 %s85, 2
      %p790 = scmp.gt.s32.totalorder %s789, 0
      %s791 = scalar_select %p790, %s789, 0
      %s792 = ssub.s32 %s788, %s791
      %p793 = scmp.eq.s32.totalorder %s792, 0
      %s795 = sadd.s32 %s794, 1
      %s796 = scalar_select %p793, %s794, %s795
      %p799 = pneg %p793
      %p800 = scmp.eq.s32.totalorder %s78, 3
      %p801 = por %p799, %p800
      %p802 = scmp.ne.s32.totalorder %s794, %s797
      %p803 = scmp.eq.s32.totalorder %s78, 0
      %p804 = por %p802, %p803
      %p805 = scmp.ne.s32.totalorder %s794, %s797
      %p806 = scmp.eq.s32.totalorder %s83, 3
      %p807 = por %p805, %p806
      %p808 = scmp.ne.s32.totalorder %s797, %s798
      %p809 = scmp.eq.s32.totalorder %s83, 0
      %p810 = por %p808, %p809
      %p811 = scmp.ne.s32.totalorder %s797, %s798
      %p812 = scmp.eq.s32.totalorder %s84, 3
      %p813 = por %p811, %p812
      %p815 = scmp.ne.s32.totalorder %s798, %s814
      %p816 = scmp.eq.s32.totalorder %s84, 0
      %p817 = por %p815, %p816
      %s818 = ssub.s32 %s78, 2
      %p819 = scmp.gt.s32.totalorder %s818, 0
      %s820 = scalar_select %p819, %s818, 0
      %s821 = ssub.s32 %s85, 2
      %p822 = scmp.gt.s32.totalorder %s821, 0
      %s823 = scalar_select %p822, %s821, 0
      %s824 = ssub.s32 %s820, %s823
      %p825 = scmp.eq.s32.totalorder %s824, 0
      %s827 = sadd.s32 %s826, 1
      %s828 = scalar_select %p825, %s826, %s827
      %p831 = pneg %p825
      %p832 = scmp.eq.s32.totalorder %s78, 3
      %p833 = por %p831, %p832
      %p834 = scmp.ne.s32.totalorder %s826, %s829
      %p835 = scmp.eq.s32.totalorder %s78, 0
      %p836 = por %p834, %p835
      %p837 = scmp.ne.s32.totalorder %s826, %s829
      %p838 = scmp.eq.s32.totalorder %s83, 3
      %p839 = por %p837, %p838
      %p840 = scmp.ne.s32.totalorder %s829, %s830
      %p841 = scmp.eq.s32.totalorder %s83, 0
      %p842 = por %p840, %p841
      %p843 = scmp.ne.s32.totalorder %s829, %s830
      %p844 = scmp.eq.s32.totalorder %s84, 3
      %p845 = por %p843, %p844
      %p847 = scmp.ne.s32.totalorder %s830, %s846
      %p848 = scmp.eq.s32.totalorder %s84, 0
      %p849 = por %p847, %p848
      %s850 = ssub.s32 %s78, 2
      %p851 = scmp.gt.s32.totalorder %s850, 0
      %s852 = scalar_select %p851, %s850, 0
      %s853 = ssub.s32 %s85, 2
      %p854 = scmp.gt.s32.totalorder %s853, 0
      %s855 = scalar_select %p854, %s853, 0
      %s856 = ssub.s32 %s852, %s855
      %p857 = scmp.eq.s32.totalorder %s856, 0
      %s859 = sadd.s32 %s858, 1
      %s860 = scalar_select %p857, %s858, %s859
      %p863 = pneg %p857
      %p864 = scmp.eq.s32.totalorder %s78, 3
      %p865 = por %p863, %p864
      %p866 = scmp.ne.s32.totalorder %s858, %s861
      %p867 = scmp.eq.s32.totalorder %s78, 0
      %p868 = por %p866, %p867
      %p869 = scmp.ne.s32.totalorder %s858, %s861
      %p870 = scmp.eq.s32.totalorder %s83, 3
      %p871 = por %p869, %p870
      %p872 = scmp.ne.s32.totalorder %s861, %s862
      %p873 = scmp.eq.s32.totalorder %s83, 0
      %p874 = por %p872, %p873
      %p875 = scmp.ne.s32.totalorder %s861, %s862
      %p876 = scmp.eq.s32.totalorder %s84, 3
      %p877 = por %p875, %p876
      %p879 = scmp.ne.s32.totalorder %s862, %s878
      %p880 = scmp.eq.s32.totalorder %s84, 0
      %p881 = por %p879, %p880
      %s882 = ssub.s32 %s78, 2
      %p883 = scmp.gt.s32.totalorder %s882, 0
      %s884 = scalar_select %p883, %s882, 0
      %s885 = ssub.s32 %s85, 2
      %p886 = scmp.gt.s32.totalorder %s885, 0
      %s887 = scalar_select %p886, %s885, 0
      %s888 = ssub.s32 %s884, %s887
      %p889 = scmp.eq.s32.totalorder %s888, 0
      %s891 = sadd.s32 %s890, 1
      %s892 = scalar_select %p889, %s890, %s891
      %p895 = pneg %p889
      %p896 = scmp.eq.s32.totalorder %s78, 3
      %p897 = por %p895, %p896
      %p898 = scmp.ne.s32.totalorder %s890, %s893
      %p899 = scmp.eq.s32.totalorder %s78, 0
      %p900 = por %p898, %p899
      %p901 = scmp.ne.s32.totalorder %s890, %s893
      %p902 = scmp.eq.s32.totalorder %s83, 3
      %p903 = por %p901, %p902
      %p904 = scmp.ne.s32.totalorder %s893, %s894
      %p905 = scmp.eq.s32.totalorder %s83, 0
      %p906 = por %p904, %p905
      %p907 = scmp.ne.s32.totalorder %s893, %s894
      %p908 = scmp.eq.s32.totalorder %s84, 3
      %p909 = por %p907, %p908
      %p911 = scmp.ne.s32.totalorder %s894, %s910
      %p912 = scmp.eq.s32.totalorder %s84, 0
      %p913 = por %p911, %p912
      %s914 = ssub.s32 %s78, 2
      %p915 = scmp.gt.s32.totalorder %s914, 0
      %s916 = scalar_select %p915, %s914, 0
      %s917 = ssub.s32 %s85, 2
      %p918 = scmp.gt.s32.totalorder %s917, 0
      %s919 = scalar_select %p918, %s917, 0
      %s920 = ssub.s32 %s916, %s919
      %p921 = scmp.eq.s32.totalorder %s920, 0
      %s923 = sadd.s32 %s922, 1
      %s924 = scalar_select %p921, %s922, %s923
      %p927 = pneg %p921
      %p928 = scmp.eq.s32.totalorder %s78, 3
      %p929 = por %p927, %p928
      %p930 = scmp.ne.s32.totalorder %s922, %s925
      %p931 = scmp.eq.s32.totalorder %s78, 0
      %p932 = por %p930, %p931
      %p933 = scmp.ne.s32.totalorder %s922, %s925
      %p934 = scmp.eq.s32.totalorder %s83, 3
      %p935 = por %p933, %p934
      %p936 = scmp.ne.s32.totalorder %s925, %s926
      %p937 = scmp.eq.s32.totalorder %s83, 0
      %p938 = por %p936, %p937
      %p939 = scmp.ne.s32.totalorder %s925, %s926
      %p940 = scmp.eq.s32.totalorder %s84, 3
      %p941 = por %p939, %p940
      %p943 = scmp.ne.s32.totalorder %s926, %s942
      %p944 = scmp.eq.s32.totalorder %s84, 0
      %p945 = por %p943, %p944
      %s946 = ssub.s32 %s78, 2
      %p947 = scmp.gt.s32.totalorder %s946, 0
      %s948 = scalar_select %p947, %s946, 0
      %s949 = ssub.s32 %s85, 2
      %p950 = scmp.gt.s32.totalorder %s949, 0
      %s951 = scalar_select %p950, %s949, 0
      %s952 = ssub.s32 %s948, %s951
      %p953 = scmp.eq.s32.totalorder %s952, 0
      %s955 = sadd.s32 %s954, 1
      %s956 = scalar_select %p953, %s954, %s955
      %p959 = pneg %p953
      %p960 = scmp.eq.s32.totalorder %s78, 3
      %p961 = por %p959, %p960
      %p962 = scmp.ne.s32.totalorder %s954, %s957
      %p963 = scmp.eq.s32.totalorder %s78, 0
      %p964 = por %p962, %p963
      %p965 = scmp.ne.s32.totalorder %s954, %s957
      %p966 = scmp.eq.s32.totalorder %s83, 3
      %p967 = por %p965, %p966
      %p968 = scmp.ne.s32.totalorder %s957, %s958
      %p969 = scmp.eq.s32.totalorder %s83, 0
      %p970 = por %p968, %p969
      %p971 = scmp.ne.s32.totalorder %s957, %s958
      %p972 = scmp.eq.s32.totalorder %s84, 3
      %p973 = por %p971, %p972
      %p975 = scmp.ne.s32.totalorder %s958, %s974
      %p976 = scmp.eq.s32.totalorder %s84, 0
      %p977 = por %p975, %p976
      %s978 = ssub.s32 %s78, 2
      %p979 = scmp.gt.s32.totalorder %s978, 0
      %s980 = scalar_select %p979, %s978, 0
      %s981 = ssub.s32 %s85, 2
      %p982 = scmp.gt.s32.totalorder %s981, 0
      %s983 = scalar_select %p982, %s981, 0
      %s984 = ssub.s32 %s980, %s983
      %p985 = scmp.eq.s32.totalorder %s984, 0
      %s987 = sadd.s32 %s986, 1
      %s988 = scalar_select %p985, %s986, %s987
      %p991 = pneg %p985
      %p992 = scmp.eq.s32.totalorder %s78, 3
      %p993 = por %p991, %p992
      %p994 = scmp.ne.s32.totalorder %s986, %s989
      %p995 = scmp.eq.s32.totalorder %s78, 0
      %p996 = por %p994, %p995
      %p997 = scmp.ne.s32.totalorder %s986, %s989
      %p998 = scmp.eq.s32.totalorder %s83, 3
      %p999 = por %p997, %p998
      %p1000 = scmp.ne.s32.totalorder %s989, %s990
      %p1001 = scmp.eq.s32.totalorder %s83, 0
      %p1002 = por %p1000, %p1001
      %p1003 = scmp.ne.s32.totalorder %s989, %s990
      %p1004 = scmp.eq.s32.totalorder %s84, 3
      %p1005 = por %p1003, %p1004
      %p1007 = scmp.ne.s32.totalorder %s990, %s1006
      %p1008 = scmp.eq.s32.totalorder %s84, 0
      %p1009 = por %p1007, %p1008
      %s1010 = ssub.s32 %s78, 2
      %p1011 = scmp.gt.s32.totalorder %s1010, 0
      %s1012 = scalar_select %p1011, %s1010, 0
      %s1013 = ssub.s32 %s85, 2
      %p1014 = scmp.gt.s32.totalorder %s1013, 0
      %s1015 = scalar_select %p1014, %s1013, 0
      %s1016 = ssub.s32 %s1012, %s1015
      %p1017 = scmp.eq.s32.totalorder %s1016, 0
      %s1019 = sadd.s32 %s1018, 1
      %s1020 = scalar_select %p1017, %s1018, %s1019
      %p1023 = pneg %p1017
      %p1024 = scmp.eq.s32.totalorder %s78, 3
      %p1025 = por %p1023, %p1024
      %p1026 = scmp.ne.s32.totalorder %s1018, %s1021
      %p1027 = scmp.eq.s32.totalorder %s78, 0
      %p1028 = por %p1026, %p1027
      %p1029 = scmp.ne.s32.totalorder %s1018, %s1021
      %p1030 = scmp.eq.s32.totalorder %s83, 3
      %p1031 = por %p1029, %p1030
      %p1032 = scmp.ne.s32.totalorder %s1021, %s1022
      %p1033 = scmp.eq.s32.totalorder %s83, 0
      %p1034 = por %p1032, %p1033
      %p1035 = scmp.ne.s32.totalorder %s1021, %s1022
      %p1036 = scmp.eq.s32.totalorder %s84, 3
      %p1037 = por %p1035, %p1036
      %p1039 = scmp.ne.s32.totalorder %s1022, %s1038
      %p1040 = scmp.eq.s32.totalorder %s84, 0
      %p1041 = por %p1039, %p1040
      %s1042 = ssub.s32 %s78, 2
      %p1043 = scmp.gt.s32.totalorder %s1042, 0
      %s1044 = scalar_select %p1043, %s1042, 0
      %s1045 = ssub.s32 %s85, 2
      %p1046 = scmp.gt.s32.totalorder %s1045, 0
      %s1047 = scalar_select %p1046, %s1045, 0
      %s1048 = ssub.s32 %s1044, %s1047
      %p1049 = scmp.eq.s32.totalorder %s1048, 0
      %s1051 = sadd.s32 %s1050, 1
      %s1052 = scalar_select %p1049, %s1050, %s1051
      %p1055 = pneg %p1049
      %p1056 = scmp.eq.s32.totalorder %s78, 3
      %p1057 = por %p1055, %p1056
      %p1058 = scmp.ne.s32.totalorder %s1050, %s1053
      %p1059 = scmp.eq.s32.totalorder %s78, 0
      %p1060 = por %p1058, %p1059
      %p1061 = scmp.ne.s32.totalorder %s1050, %s1053
      %p1062 = scmp.eq.s32.totalorder %s83, 3
      %p1063 = por %p1061, %p1062
      %p1064 = scmp.ne.s32.totalorder %s1053, %s1054
      %p1065 = scmp.eq.s32.totalorder %s83, 0
      %p1066 = por %p1064, %p1065
      %p1067 = scmp.ne.s32.totalorder %s1053, %s1054
      %p1068 = scmp.eq.s32.totalorder %s84, 3
      %p1069 = por %p1067, %p1068
      %p1071 = scmp.ne.s32.totalorder %s1054, %s1070
      %p1072 = scmp.eq.s32.totalorder %s84, 0
      %p1073 = por %p1071, %p1072
      %s1074 = ssub.s32 %s78, 2
      %p1075 = scmp.gt.s32.totalorder %s1074, 0
      %s1076 = scalar_select %p1075, %s1074, 0
      %s1077 = ssub.s32 %s85, 2
      %p1078 = scmp.gt.s32.totalorder %s1077, 0
      %s1079 = scalar_select %p1078, %s1077, 0
      %s1080 = ssub.s32 %s1076, %s1079
      %p1081 = scmp.eq.s32.totalorder %s1080, 0
      %s1083 = sadd.s32 %s1082, 1
      %s1084 = scalar_select %p1081, %s1082, %s1083
      %p1087 = pneg %p1081
      %p1088 = scmp.eq.s32.totalorder %s78, 3
      %p1089 = por %p1087, %p1088
      %p1090 = scmp.ne.s32.totalorder %s1082, %s1085
      %p1091 = scmp.eq.s32.totalorder %s78, 0
      %p1092 = por %p1090, %p1091
      %p1093 = scmp.ne.s32.totalorder %s1082, %s1085
      %p1094 = scmp.eq.s32.totalorder %s83, 3
      %p1095 = por %p1093, %p1094
      %p1096 = scmp.ne.s32.totalorder %s1085, %s1086
      %p1097 = scmp.eq.s32.totalorder %s83, 0
      %p1098 = por %p1096, %p1097
      %p1099 = scmp.ne.s32.totalorder %s1085, %s1086
      %p1100 = scmp.eq.s32.totalorder %s84, 3
      %p1101 = por %p1099, %p1100
      %p1103 = scmp.ne.s32.totalorder %s1086, %s1102
      %p1104 = scmp.eq.s32.totalorder %s84, 0
      %p1105 = por %p1103, %p1104
      %s1107 = sadd.s32 %s1106, 1
      %p1110 = scmp.eq.s32.totalorder %s78, 3
      %p1111 = scmp.ne.s32.totalorder %s1106, %s1108
      %p1112 = scmp.eq.s32.totalorder %s78, 0
      %p1113 = por %p1111, %p1112
      %p1114 = scmp.ne.s32.totalorder %s1106, %s1108
      %p1115 = scmp.eq.s32.totalorder %s83, 3
      %p1116 = por %p1114, %p1115
      %p1117 = scmp.ne.s32.totalorder %s1108, %s1109
      %p1118 = scmp.eq.s32.totalorder %s83, 0
      %p1119 = por %p1117, %p1118
      %p1120 = scmp.ne.s32.totalorder %s1108, %s1109
      %p1121 = scmp.eq.s32.totalorder %s84, 3
      %p1122 = por %p1120, %p1121
      %p1124 = scmp.ne.s32.totalorder %s1109, %s1123
      %p1125 = scmp.eq.s32.totalorder %s84, 0
      %p1126 = por %p1124, %p1125
      %s1128 = sadd.s32 %s1127, 1
      %p1131 = scmp.eq.s32.totalorder %s78, 3
      %p1132 = scmp.ne.s32.totalorder %s1127, %s1129
      %p1133 = scmp.eq.s32.totalorder %s78, 0
      %p1134 = por %p1132, %p1133
      %p1135 = scmp.ne.s32.totalorder %s1127, %s1129
      %p1136 = scmp.eq.s32.totalorder %s83, 3
      %p1137 = por %p1135, %p1136
      %p1138 = scmp.ne.s32.totalorder %s1129, %s1130
      %p1139 = scmp.eq.s32.totalorder %s83, 0
      %p1140 = por %p1138, %p1139
      %p1141 = scmp.ne.s32.totalorder %s1129, %s1130
      %p1142 = scmp.eq.s32.totalorder %s84, 3
      %p1143 = por %p1141, %p1142
      %p1145 = scmp.ne.s32.totalorder %s1130, %s1144
      %p1146 = scmp.eq.s32.totalorder %s84, 0
      %p1147 = por %p1145, %p1146
      %p1148 = scmp.le.s32.totalorder 1, %s78
      %p1149 = scmp.lt.s32.totalorder %s78, 5
      %p1150 = pnand %p1148, %p1149
      %p1151 = pneg %p1150
      // Predicated region
      $region9: #{_lambda_.1} parent=5 // pred_check
        _
      $region10: #{_lambda_.1} parent=5 // pred_check_branch
        %1153 = sbr.rel (%p1150) target = $region12
      $region11: #{_lambda_.1} parent=5 // pred_region
        %s1154 = ssub.s32 %s78, 1
        // Predicated region
        $region13: #{_lambda_.1} parent=11 // pred_check
          %p1155 = pneg %p99
        $region14: #{_lambda_.1} parent=11 // pred_check_branch
          %1157 = sbr.rel (%p1155) target = $region16
        $region15: #{_lambda_.1} parent=11 // pred_region
          _
        $region16: #{_lambda_.1} parent=11 // pred_fallthru
          _
        // Predicated region
        $region17: #{_lambda_.1} parent=11 // pred_check
          %p1158 = pneg %p120
        $region18: #{_lambda_.1} parent=11 // pred_check_branch
          %1160 = sbr.rel (%p1158) target = $region20
        $region19: #{_lambda_.1} parent=11 // pred_region
          _
        $region20: #{_lambda_.1} parent=11 // pred_fallthru
          _
        // Predicated region
        $region21: #{_lambda_.1} parent=11 // pred_check
          %p1161 = pneg %p141
        $region22: #{_lambda_.1} parent=11 // pred_check_branch
          %1163 = sbr.rel (%p1161) target = $region24
        $region23: #{_lambda_.1} parent=11 // pred_region
          _
        $region24: #{_lambda_.1} parent=11 // pred_fallthru
          _
        // Predicated region
        $region25: #{_lambda_.1} parent=11 // pred_check
          %p1164 = pneg %p162
        $region26: #{_lambda_.1} parent=11 // pred_check_branch
          %1166 = sbr.rel (%p1164) target = $region28
        $region27: #{_lambda_.1} parent=11 // pred_region
          _
        $region28: #{_lambda_.1} parent=11 // pred_fallthru
          _
        // Predicated region
        $region29: #{_lambda_.1} parent=11 // pred_check
          %p1167 = pneg %p1119
        $region30: #{_lambda_.1} parent=11 // pred_check_branch
          %1169 = sbr.rel (%p1167) target = $region32
        $region31: #{_lambda_.1} parent=11 // pred_region
          _
        $region32: #{_lambda_.1} parent=11 // pred_fallthru
          _
      $region12: #{_lambda_.1} parent=5 // pred_fallthru
        _
      %p1170 = scmp.lt.s32.totalorder %s78, 4
      // Predicated region
      $region33: #{_lambda_.1} parent=5 // pred_check
        %p1171 = pneg %p1170
      $region34: #{_lambda_.1} parent=5 // pred_check_branch
        %1173 = sbr.rel (%p1171) target = $region36
      $region35: #{_lambda_.1} parent=5 // pred_region
        // Predicated region
        $region37: #{_lambda_.1} parent=35 // pred_check
          %p1174 = pneg %p186
        $region38: #{_lambda_.1} parent=35 // pred_check_branch
          %1176 = sbr.rel (%p1174) target = $region40
        $region39: #{_lambda_.1} parent=35 // pred_region
          %p1177 = scmp.lt.s32.totalorder %s78, 1
          %s1178 = scalar_select %p1177, %s78, 1
          %p1179 = scmp.lt.s32.totalorder %s1178, 1
          %s1180 = scalar_select %p1179, %s1178, 1
          %s1181 = smul.addr %s1180, 16
          %s1182 = smul.addr %s1181, 4
          %s1183 = scalar_lea.vmem %s9, %s1182
          %p1184 = scmp.lt.s32.totalorder %s78, 1
          %s1185 = scalar_select %p1184, %s78, 1
        $region40: #{_lambda_.1} parent=35 // pred_fallthru
          _
        // Predicated region
        $region41: #{_lambda_.1} parent=35 // pred_check
          %p1186 = pneg %p216
        $region42: #{_lambda_.1} parent=35 // pred_check_branch
          %1188 = sbr.rel (%p1186) target = $region44
        $region43: #{_lambda_.1} parent=35 // pred_region
          %p1189 = scmp.lt.s32.totalorder %s78, 1
          %s1190 = scalar_select %p1189, %s78, 1
          %p1191 = scmp.lt.s32.totalorder %s1190, 1
          %s1192 = scalar_select %p1191, %s1190, 1
          %s1193 = smul.addr %s1192, 16
          %s1194 = smul.addr %s1193, 4
          %s1195 = scalar_lea.vmem %s11, %s1194
          %p1196 = scmp.lt.s32.totalorder %s78, 1
          %s1197 = scalar_select %p1196, %s78, 1
        $region44: #{_lambda_.1} parent=35 // pred_fallthru
          _
        // Predicated region
        $region45: #{_lambda_.1} parent=35 // pred_check
          %p1198 = pneg %p246
        $region46: #{_lambda_.1} parent=35 // pred_check_branch
          %1200 = sbr.rel (%p1198) target = $region48
        $region47: #{_lambda_.1} parent=35 // pred_region
          %p1201 = scmp.lt.s32.totalorder %s78, 1
          %s1202 = scalar_select %p1201, %s78, 1
          %p1203 = scmp.lt.s32.totalorder %s1202, 1
          %s1204 = scalar_select %p1203, %s1202, 1
          %s1205 = smul.addr %s1204, 16
          %s1206 = smul.addr %s1205, 4
          %s1207 = scalar_lea.vmem %s13, %s1206
          %p1208 = scmp.lt.s32.totalorder %s78, 1
          %s1209 = scalar_select %p1208, %s78, 1
        $region48: #{_lambda_.1} parent=35 // pred_fallthru
          _
        // Predicated region
        $region49: #{_lambda_.1} parent=35 // pred_check
          %p1210 = pneg %p276
        $region50: #{_lambda_.1} parent=35 // pred_check_branch
          %1212 = sbr.rel (%p1210) target = $region52
        $region51: #{_lambda_.1} parent=35 // pred_region
          %p1213 = scmp.lt.s32.totalorder %s78, 1
          %s1214 = scalar_select %p1213, %s78, 1
          %p1215 = scmp.lt.s32.totalorder %s1214, 1
          %s1216 = scalar_select %p1215, %s1214, 1
          %s1217 = smul.addr %s1216, 4
          %s1218 = smul.addr %s1217, 4
          %s1219 = scalar_lea.vmem %s15, %s1218
          %p1220 = scmp.lt.s32.totalorder %s78, 1
          %s1221 = scalar_select %p1220, %s78, 1
        $region52: #{_lambda_.1} parent=35 // pred_fallthru
          _
        // Predicated region
        $region53: #{_lambda_.1} parent=35 // pred_check
          %p1222 = pneg %p306
        $region54: #{_lambda_.1} parent=35 // pred_check_branch
          %1224 = sbr.rel (%p1222) target = $region56
        $region55: #{_lambda_.1} parent=35 // pred_region
          %p1225 = scmp.lt.s32.totalorder %s78, 1
          %s1226 = scalar_select %p1225, %s78, 1
          %p1227 = scmp.lt.s32.totalorder %s1226, 1
          %s1228 = scalar_select %p1227, %s1226, 1
          %s1229 = scalar_lea.vmem %s17, %s1228
          %p1230 = scmp.lt.s32.totalorder %s78, 1
          %s1231 = scalar_select %p1230, %s78, 1
        $region56: #{_lambda_.1} parent=35 // pred_fallthru
          _
        // Predicated region
        $region57: #{_lambda_.1} parent=35 // pred_check
          %p1232 = pneg %p336
        $region58: #{_lambda_.1} parent=35 // pred_check_branch
          %1234 = sbr.rel (%p1232) target = $region60
        $region59: #{_lambda_.1} parent=35 // pred_region
          %p1235 = scmp.lt.s32.totalorder %s78, 1
          %s1236 = scalar_select %p1235, %s78, 1
          %p1237 = scmp.lt.s32.totalorder %s1236, 1
          %s1238 = scalar_select %p1237, %s1236, 1
          %s1239 = scalar_lea.vmem %s19, %s1238
          %p1240 = scmp.lt.s32.totalorder %s78, 1
          %s1241 = scalar_select %p1240, %s78, 1
        $region60: #{_lambda_.1} parent=35 // pred_fallthru
          _
        // Predicated region
        $region61: #{_lambda_.1} parent=35 // pred_check
          %p1242 = pneg %p366
        $region62: #{_lambda_.1} parent=35 // pred_check_branch
          %1244 = sbr.rel (%p1242) target = $region64
        $region63: #{_lambda_.1} parent=35 // pred_region
          %p1245 = scmp.lt.s32.totalorder %s78, 1
          %s1246 = scalar_select %p1245, %s78, 1
          %p1247 = scmp.lt.s32.totalorder %s1246, 1
          %s1248 = scalar_select %p1247, %s1246, 1
          %s1249 = smul.addr %s1248, 4
          %s1250 = smul.addr %s1249, 4
          %s1251 = scalar_lea.vmem %s21, %s1250
          %p1252 = scmp.lt.s32.totalorder %s78, 1
          %s1253 = scalar_select %p1252, %s78, 1
        $region64: #{_lambda_.1} parent=35 // pred_fallthru
          _
        // Predicated region
        $region65: #{_lambda_.1} parent=35 // pred_check
          %p1254 = pneg %p396
        $region66: #{_lambda_.1} parent=35 // pred_check_branch
          %1256 = sbr.rel (%p1254) target = $region68
        $region67: #{_lambda_.1} parent=35 // pred_region
          %p1257 = scmp.lt.s32.totalorder %s78, 1
          %s1258 = scalar_select %p1257, %s78, 1
          %p1259 = scmp.lt.s32.totalorder %s1258, 1
          %s1260 = scalar_select %p1259, %s1258, 1
          %s1261 = scalar_lea.vmem %s23, %s1260
          %p1262 = scmp.lt.s32.totalorder %s78, 1
          %s1263 = scalar_select %p1262, %s78, 1
        $region68: #{_lambda_.1} parent=35 // pred_fallthru
          _
        // Predicated region
        $region69: #{_lambda_.1} parent=35 // pred_check
          %p1264 = pneg %p426
        $region70: #{_lambda_.1} parent=35 // pred_check_branch
          %1266 = sbr.rel (%p1264) target = $region72
        $region71: #{_lambda_.1} parent=35 // pred_region
          %p1267 = scmp.lt.s32.totalorder %s78, 1
          %s1268 = scalar_select %p1267, %s78, 1
          %p1269 = scmp.lt.s32.totalorder %s1268, 1
          %s1270 = scalar_select %p1269, %s1268, 1
          %s1271 = smul.addr %s1270, 8
          %s1272 = smul.addr %s1271, 4
          %s1273 = scalar_lea.vmem %s25, %s1272
          %p1274 = scmp.lt.s32.totalorder %s78, 1
          %s1275 = scalar_select %p1274, %s78, 1
        $region72: #{_lambda_.1} parent=35 // pred_fallthru
          _
        // Predicated region
        $region73: #{_lambda_.1} parent=35 // pred_check
          %p1276 = pneg %p456
        $region74: #{_lambda_.1} parent=35 // pred_check_branch
          %1278 = sbr.rel (%p1276) target = $region76
        $region75: #{_lambda_.1} parent=35 // pred_region
          %p1279 = scmp.lt.s32.totalorder %s78, 1
          %s1280 = scalar_select %p1279, %s78, 1
          %p1281 = scmp.lt.s32.totalorder %s1280, 1
          %s1282 = scalar_select %p1281, %s1280, 1
          %s1283 = scalar_lea.vmem %s27, %s1282
          %p1284 = scmp.lt.s32.totalorder %s78, 1
          %s1285 = scalar_select %p1284, %s78, 1
        $region76: #{_lambda_.1} parent=35 // pred_fallthru
          _
        // Predicated region
        $region77: #{_lambda_.1} parent=35 // pred_check
          %p1286 = pneg %p486
        $region78: #{_lambda_.1} parent=35 // pred_check_branch
          %1288 = sbr.rel (%p1286) target = $region80
        $region79: #{_lambda_.1} parent=35 // pred_region
          %p1289 = scmp.lt.s32.totalorder %s78, 1
          %s1290 = scalar_select %p1289, %s78, 1
          %p1291 = scmp.lt.s32.totalorder %s1290, 1
          %s1292 = scalar_select %p1291, %s1290, 1
          %s1293 = scalar_lea.vmem %s29, %s1292
          %p1294 = scmp.lt.s32.totalorder %s78, 1
          %s1295 = scalar_select %p1294, %s78, 1
        $region80: #{_lambda_.1} parent=35 // pred_fallthru
          _
        // Predicated region
        $region81: #{_lambda_.1} parent=35 // pred_check
          %p1296 = pneg %p516
        $region82: #{_lambda_.1} parent=35 // pred_check_branch
          %1298 = sbr.rel (%p1296) target = $region84
        $region83: #{_lambda_.1} parent=35 // pred_region
          %p1299 = scmp.lt.s32.totalorder %s78, 1
          %s1300 = scalar_select %p1299, %s78, 1
          %p1301 = scmp.lt.s32.totalorder %s1300, 1
          %s1302 = scalar_select %p1301, %s1300, 1
          %s1303 = scalar_lea.vmem %s31, %s1302
          %p1304 = scmp.lt.s32.totalorder %s78, 1
          %s1305 = scalar_select %p1304, %s78, 1
        $region84: #{_lambda_.1} parent=35 // pred_fallthru
          _
        // Predicated region
        $region85: #{_lambda_.1} parent=35 // pred_check
          %p1306 = pneg %p548
        $region86: #{_lambda_.1} parent=35 // pred_check_branch
          %1308 = sbr.rel (%p1306) target = $region88
        $region87: #{_lambda_.1} parent=35 // pred_region
          %s1309 = ssub.s32 %s78, 2
          %p1310 = scmp.gt.s32.totalorder %s1309, 0
          %s1311 = scalar_select %p1310, %s1309, 0
          %p1312 = scmp.lt.s32.totalorder %s1311, 1
          %s1313 = scalar_select %p1312, %s1311, 1
          %s1314 = smul.addr %s1313, 16
          %s1315 = smul.addr %s1314, 4
          %s1316 = scalar_lea.vmem %s33, %s1315
          %s1317 = ssub.s32 %s78, 2
          %p1318 = scmp.gt.s32.totalorder %s1317, 0
          %s1319 = scalar_select %p1318, %s1317, 0
        $region88: #{_lambda_.1} parent=35 // pred_fallthru
          _
        // Predicated region
        $region89: #{_lambda_.1} parent=35 // pred_check
          %p1320 = pneg %p580
        $region90: #{_lambda_.1} parent=35 // pred_check_branch
          %1322 = sbr.rel (%p1320) target = $region92
        $region91: #{_lambda_.1} parent=35 // pred_region
          %s1323 = ssub.s32 %s78, 2
          %p1324 = scmp.gt.s32.totalorder %s1323, 0
          %s1325 = scalar_select %p1324, %s1323, 0
          %p1326 = scmp.lt.s32.totalorder %s1325, 1
          %s1327 = scalar_select %p1326, %s1325, 1
          %s1328 = smul.addr %s1327, 16
          %s1329 = smul.addr %s1328, 4
          %s1330 = scalar_lea.vmem %s35, %s1329
          %s1331 = ssub.s32 %s78, 2
          %p1332 = scmp.gt.s32.totalorder %s1331, 0
          %s1333 = scalar_select %p1332, %s1331, 0
        $region92: #{_lambda_.1} parent=35 // pred_fallthru
          _
        // Predicated region
        $region93: #{_lambda_.1} parent=35 // pred_check
          %p1334 = pneg %p612
        $region94: #{_lambda_.1} parent=35 // pred_check_branch
          %1336 = sbr.rel (%p1334) target = $region96
        $region95: #{_lambda_.1} parent=35 // pred_region
          %s1337 = ssub.s32 %s78, 2
          %p1338 = scmp.gt.s32.totalorder %s1337, 0
          %s1339 = scalar_select %p1338, %s1337, 0
          %p1340 = scmp.lt.s32.totalorder %s1339, 1
          %s1341 = scalar_select %p1340, %s1339, 1
          %s1342 = smul.addr %s1341, 16
          %s1343 = smul.addr %s1342, 4
          %s1344 = scalar_lea.vmem %s37, %s1343
          %s1345 = ssub.s32 %s78, 2
          %p1346 = scmp.gt.s32.totalorder %s1345, 0
          %s1347 = scalar_select %p1346, %s1345, 0
        $region96: #{_lambda_.1} parent=35 // pred_fallthru
          _
        // Predicated region
        $region97: #{_lambda_.1} parent=35 // pred_check
          %p1348 = pneg %p644
        $region98: #{_lambda_.1} parent=35 // pred_check_branch
          %1350 = sbr.rel (%p1348) target = $region100
        $region99: #{_lambda_.1} parent=35 // pred_region
          %s1351 = ssub.s32 %s78, 2
          %p1352 = scmp.gt.s32.totalorder %s1351, 0
          %s1353 = scalar_select %p1352, %s1351, 0
          %p1354 = scmp.lt.s32.totalorder %s1353, 1
          %s1355 = scalar_select %p1354, %s1353, 1
          %s1356 = smul.addr %s1355, 4
          %s1357 = smul.addr %s1356, 4
          %s1358 = scalar_lea.vmem %s39, %s1357
          %s1359 = ssub.s32 %s78, 2
          %p1360 = scmp.gt.s32.totalorder %s1359, 0
          %s1361 = scalar_select %p1360, %s1359, 0
        $region100: #{_lambda_.1} parent=35 // pred_fallthru
          _
        // Predicated region
        $region101: #{_lambda_.1} parent=35 // pred_check
          %p1362 = pneg %p676
        $region102: #{_lambda_.1} parent=35 // pred_check_branch
          %1364 = sbr.rel (%p1362) target = $region104
        $region103: #{_lambda_.1} parent=35 // pred_region
          %s1365 = ssub.s32 %s78, 2
          %p1366 = scmp.gt.s32.totalorder %s1365, 0
          %s1367 = scalar_select %p1366, %s1365, 0
          %p1368 = scmp.lt.s32.totalorder %s1367, 1
          %s1369 = scalar_select %p1368, %s1367, 1
          %s1370 = scalar_lea.vmem %s41, %s1369
          %s1371 = ssub.s32 %s78, 2
          %p1372 = scmp.gt.s32.totalorder %s1371, 0
          %s1373 = scalar_select %p1372, %s1371, 0
        $region104: #{_lambda_.1} parent=35 // pred_fallthru
          _
        // Predicated region
        $region105: #{_lambda_.1} parent=35 // pred_check
          %p1374 = pneg %p708
        $region106: #{_lambda_.1} parent=35 // pred_check_branch
          %1376 = sbr.rel (%p1374) target = $region108
        $region107: #{_lambda_.1} parent=35 // pred_region
          %s1377 = ssub.s32 %s78, 2
          %p1378 = scmp.gt.s32.totalorder %s1377, 0
          %s1379 = scalar_select %p1378, %s1377, 0
          %p1380 = scmp.lt.s32.totalorder %s1379, 1
          %s1381 = scalar_select %p1380, %s1379, 1
          %s1382 = scalar_lea.vmem %s43, %s1381
          %s1383 = ssub.s32 %s78, 2
          %p1384 = scmp.gt.s32.totalorder %s1383, 0
          %s1385 = scalar_select %p1384, %s1383, 0
        $region108: #{_lambda_.1} parent=35 // pred_fallthru
          _
        // Predicated region
        $region109: #{_lambda_.1} parent=35 // pred_check
          %p1386 = pneg %p740
        $region110: #{_lambda_.1} parent=35 // pred_check_branch
          %1388 = sbr.rel (%p1386) target = $region112
        $region111: #{_lambda_.1} parent=35 // pred_region
          %s1389 = ssub.s32 %s78, 2
          %p1390 = scmp.gt.s32.totalorder %s1389, 0
          %s1391 = scalar_select %p1390, %s1389, 0
          %p1392 = scmp.lt.s32.totalorder %s1391, 1
          %s1393 = scalar_select %p1392, %s1391, 1
          %s1394 = smul.addr %s1393, 16
          %s1395 = smul.addr %s1394, 4
          %s1396 = scalar_lea.vmem %s45, %s1395
          %s1397 = ssub.s32 %s78, 2
          %p1398 = scmp.gt.s32.totalorder %s1397, 0
          %s1399 = scalar_select %p1398, %s1397, 0
        $region112: #{_lambda_.1} parent=35 // pred_fallthru
          _
        // Predicated region
        $region113: #{_lambda_.1} parent=35 // pred_check
          %p1400 = pneg %p772
        $region114: #{_lambda_.1} parent=35 // pred_check_branch
          %1402 = sbr.rel (%p1400) target = $region116
        $region115: #{_lambda_.1} parent=35 // pred_region
          %s1403 = ssub.s32 %s78, 2
          %p1404 = scmp.gt.s32.totalorder %s1403, 0
          %s1405 = scalar_select %p1404, %s1403, 0
          %p1406 = scmp.lt.s32.totalorder %s1405, 1
          %s1407 = scalar_select %p1406, %s1405, 1
          %s1408 = smul.addr %s1407, 16
          %s1409 = smul.addr %s1408, 4
          %s1410 = scalar_lea.vmem %s47, %s1409
          %s1411 = ssub.s32 %s78, 2
          %p1412 = scmp.gt.s32.totalorder %s1411, 0
          %s1413 = scalar_select %p1412, %s1411, 0
        $region116: #{_lambda_.1} parent=35 // pred_fallthru
          _
        // Predicated region
        $region117: #{_lambda_.1} parent=35 // pred_check
          %p1414 = pneg %p804
        $region118: #{_lambda_.1} parent=35 // pred_check_branch
          %1416 = sbr.rel (%p1414) target = $region120
        $region119: #{_lambda_.1} parent=35 // pred_region
          %s1417 = ssub.s32 %s78, 2
          %p1418 = scmp.gt.s32.totalorder %s1417, 0
          %s1419 = scalar_select %p1418, %s1417, 0
          %p1420 = scmp.lt.s32.totalorder %s1419, 1
          %s1421 = scalar_select %p1420, %s1419, 1
          %s1422 = smul.addr %s1421, 16
          %s1423 = smul.addr %s1422, 4
          %s1424 = scalar_lea.vmem %s49, %s1423
          %s1425 = ssub.s32 %s78, 2
          %p1426 = scmp.gt.s32.totalorder %s1425, 0
          %s1427 = scalar_select %p1426, %s1425, 0
        $region120: #{_lambda_.1} parent=35 // pred_fallthru
          _
        // Predicated region
        $region121: #{_lambda_.1} parent=35 // pred_check
          %p1428 = pneg %p836
        $region122: #{_lambda_.1} parent=35 // pred_check_branch
          %1430 = sbr.rel (%p1428) target = $region124
        $region123: #{_lambda_.1} parent=35 // pred_region
          %s1431 = ssub.s32 %s78, 2
          %p1432 = scmp.gt.s32.totalorder %s1431, 0
          %s1433 = scalar_select %p1432, %s1431, 0
          %p1434 = scmp.lt.s32.totalorder %s1433, 1
          %s1435 = scalar_select %p1434, %s1433, 1
          %s1436 = smul.addr %s1435, 4
          %s1437 = smul.addr %s1436, 4
          %s1438 = scalar_lea.vmem %s51, %s1437
          %s1439 = ssub.s32 %s78, 2
          %p1440 = scmp.gt.s32.totalorder %s1439, 0
          %s1441 = scalar_select %p1440, %s1439, 0
        $region124: #{_lambda_.1} parent=35 // pred_fallthru
          _
        // Predicated region
        $region125: #{_lambda_.1} parent=35 // pred_check
          %p1442 = pneg %p868
        $region126: #{_lambda_.1} parent=35 // pred_check_branch
          %1444 = sbr.rel (%p1442) target = $region128
        $region127: #{_lambda_.1} parent=35 // pred_region
          %s1445 = ssub.s32 %s78, 2
          %p1446 = scmp.gt.s32.totalorder %s1445, 0
          %s1447 = scalar_select %p1446, %s1445, 0
          %p1448 = scmp.lt.s32.totalorder %s1447, 1
          %s1449 = scalar_select %p1448, %s1447, 1
          %s1450 = scalar_lea.vmem %s53, %s1449
          %s1451 = ssub.s32 %s78, 2
          %p1452 = scmp.gt.s32.totalorder %s1451, 0
          %s1453 = scalar_select %p1452, %s1451, 0
        $region128: #{_lambda_.1} parent=35 // pred_fallthru
          _
        // Predicated region
        $region129: #{_lambda_.1} parent=35 // pred_check
          %p1454 = pneg %p900
        $region130: #{_lambda_.1} parent=35 // pred_check_branch
          %1456 = sbr.rel (%p1454) target = $region132
        $region131: #{_lambda_.1} parent=35 // pred_region
          %s1457 = ssub.s32 %s78, 2
          %p1458 = scmp.gt.s32.totalorder %s1457, 0
          %s1459 = scalar_select %p1458, %s1457, 0
          %p1460 = scmp.lt.s32.totalorder %s1459, 1
          %s1461 = scalar_select %p1460, %s1459, 1
          %s1462 = scalar_lea.vmem %s55, %s1461
          %s1463 = ssub.s32 %s78, 2
          %p1464 = scmp.gt.s32.totalorder %s1463, 0
          %s1465 = scalar_select %p1464, %s1463, 0
        $region132: #{_lambda_.1} parent=35 // pred_fallthru
          _
        // Predicated region
        $region133: #{_lambda_.1} parent=35 // pred_check
          %p1466 = pneg %p932
        $region134: #{_lambda_.1} parent=35 // pred_check_branch
          %1468 = sbr.rel (%p1466) target = $region136
        $region135: #{_lambda_.1} parent=35 // pred_region
          %s1469 = ssub.s32 %s78, 2
          %p1470 = scmp.gt.s32.totalorder %s1469, 0
          %s1471 = scalar_select %p1470, %s1469, 0
          %p1472 = scmp.lt.s32.totalorder %s1471, 1
          %s1473 = scalar_select %p1472, %s1471, 1
          %s1474 = smul.addr %s1473, 4
          %s1475 = smul.addr %s1474, 4
          %s1476 = scalar_lea.vmem %s57, %s1475
          %s1477 = ssub.s32 %s78, 2
          %p1478 = scmp.gt.s32.totalorder %s1477, 0
          %s1479 = scalar_select %p1478, %s1477, 0
        $region136: #{_lambda_.1} parent=35 // pred_fallthru
          _
        // Predicated region
        $region137: #{_lambda_.1} parent=35 // pred_check
          %p1480 = pneg %p964
        $region138: #{_lambda_.1} parent=35 // pred_check_branch
          %1482 = sbr.rel (%p1480) target = $region140
        $region139: #{_lambda_.1} parent=35 // pred_region
          %s1483 = ssub.s32 %s78, 2
          %p1484 = scmp.gt.s32.totalorder %s1483, 0
          %s1485 = scalar_select %p1484, %s1483, 0
          %p1486 = scmp.lt.s32.totalorder %s1485, 1
          %s1487 = scalar_select %p1486, %s1485, 1
          %s1488 = scalar_lea.vmem %s59, %s1487
          %s1489 = ssub.s32 %s78, 2
          %p1490 = scmp.gt.s32.totalorder %s1489, 0
          %s1491 = scalar_select %p1490, %s1489, 0
        $region140: #{_lambda_.1} parent=35 // pred_fallthru
          _
        // Predicated region
        $region141: #{_lambda_.1} parent=35 // pred_check
          %p1492 = pneg %p996
        $region142: #{_lambda_.1} parent=35 // pred_check_branch
          %1494 = sbr.rel (%p1492) target = $region144
        $region143: #{_lambda_.1} parent=35 // pred_region
          %s1495 = ssub.s32 %s78, 2
          %p1496 = scmp.gt.s32.totalorder %s1495, 0
          %s1497 = scalar_select %p1496, %s1495, 0
          %p1498 = scmp.lt.s32.totalorder %s1497, 1
          %s1499 = scalar_select %p1498, %s1497, 1
          %s1500 = smul.addr %s1499, 8
          %s1501 = smul.addr %s1500, 4
          %s1502 = scalar_lea.vmem %s61, %s1501
          %s1503 = ssub.s32 %s78, 2
          %p1504 = scmp.gt.s32.totalorder %s1503, 0
          %s1505 = scalar_select %p1504, %s1503, 0
        $region144: #{_lambda_.1} parent=35 // pred_fallthru
          _
        // Predicated region
        $region145: #{_lambda_.1} parent=35 // pred_check
          %p1506 = pneg %p1028
        $region146: #{_lambda_.1} parent=35 // pred_check_branch
          %1508 = sbr.rel (%p1506) target = $region148
        $region147: #{_lambda_.1} parent=35 // pred_region
          %s1509 = ssub.s32 %s78, 2
          %p1510 = scmp.gt.s32.totalorder %s1509, 0
          %s1511 = scalar_select %p1510, %s1509, 0
          %p1512 = scmp.lt.s32.totalorder %s1511, 1
          %s1513 = scalar_select %p1512, %s1511, 1
          %s1514 = scalar_lea.vmem %s63, %s1513
          %s1515 = ssub.s32 %s78, 2
          %p1516 = scmp.gt.s32.totalorder %s1515, 0
          %s1517 = scalar_select %p1516, %s1515, 0
        $region148: #{_lambda_.1} parent=35 // pred_fallthru
          _
        // Predicated region
        $region149: #{_lambda_.1} parent=35 // pred_check
          %p1518 = pneg %p1060
        $region150: #{_lambda_.1} parent=35 // pred_check_branch
          %1520 = sbr.rel (%p1518) target = $region152
        $region151: #{_lambda_.1} parent=35 // pred_region
          %s1521 = ssub.s32 %s78, 2
          %p1522 = scmp.gt.s32.totalorder %s1521, 0
          %s1523 = scalar_select %p1522, %s1521, 0
          %p1524 = scmp.lt.s32.totalorder %s1523, 1
          %s1525 = scalar_select %p1524, %s1523, 1
          %s1526 = scalar_lea.vmem %s65, %s1525
          %s1527 = ssub.s32 %s78, 2
          %p1528 = scmp.gt.s32.totalorder %s1527, 0
          %s1529 = scalar_select %p1528, %s1527, 0
        $region152: #{_lambda_.1} parent=35 // pred_fallthru
          _
        // Predicated region
        $region153: #{_lambda_.1} parent=35 // pred_check
          %p1530 = pneg %p1092
        $region154: #{_lambda_.1} parent=35 // pred_check_branch
          %1532 = sbr.rel (%p1530) target = $region156
        $region155: #{_lambda_.1} parent=35 // pred_region
          %s1533 = ssub.s32 %s78, 2
          %p1534 = scmp.gt.s32.totalorder %s1533, 0
          %s1535 = scalar_select %p1534, %s1533, 0
          %p1536 = scmp.lt.s32.totalorder %s1535, 1
          %s1537 = scalar_select %p1536, %s1535, 1
          %s1538 = scalar_lea.vmem %s67, %s1537
          %s1539 = ssub.s32 %s78, 2
          %p1540 = scmp.gt.s32.totalorder %s1539, 0
          %s1541 = scalar_select %p1540, %s1539, 0
        $region156: #{_lambda_.1} parent=35 // pred_fallthru
          _
      $region36: #{_lambda_.1} parent=5 // pred_fallthru
        _
      %p1542 = scmp.le.s32.totalorder 1, %s78
      %p1543 = scmp.lt.s32.totalorder %s78, 5
      %p1544 = pnand %p1542, %p1543
      %p1545 = pneg %p1544
      // Predicated region
      $region157: #{_lambda_.1} parent=5 // pred_check
        _
      $region158: #{_lambda_.1} parent=5 // pred_check_branch
        %1547 = sbr.rel (%p1544) target = $region160
      $region159: #{_lambda_.1} parent=5 // pred_region
        %s1548 = ssub.s32 %s78, 1
        %p1549 = pneg %p99
        %p1550 = pneg %p96
        %p1551 = pneg %p120
        %p1552 = pneg %p117
        %p1553 = pneg %p141
        %p1554 = pneg %p138
        %p1555 = pneg %p162
        %p1556 = pneg %p159
        %p1557 = scmp.lt.s32.totalorder %s83, 1
        %s1558 = scalar_select %p1557, %s83, 1
        %p1559 = scmp.lt.s32.totalorder %s1558, 1
        %s1560 = scalar_select %p1559, %s1558, 1
        %s1561 = smul.addr %s1560, 16
        %s1562 = smul.addr %s1561, 4
        %s1563 = scalar_lea.vmem %s9, %s1562
        %p1564 = pneg %p192
        %p1565 = pneg %p189
        %p1566 = scmp.lt.s32.totalorder %s83, 1
        %s1567 = scalar_select %p1566, %s83, 1
        %p1568 = scmp.lt.s32.totalorder %s1567, 1
        %s1569 = scalar_select %p1568, %s1567, 1
        %s1570 = smul.addr %s1569, 16
        %s1571 = smul.addr %s1570, 4
        %s1572 = scalar_lea.vmem %s11, %s1571
        %p1573 = pneg %p222
        %p1574 = pneg %p219
        %p1575 = scmp.lt.s32.totalorder %s83, 1
        %s1576 = scalar_select %p1575, %s83, 1
        %p1577 = scmp.lt.s32.totalorder %s1576, 1
        %s1578 = scalar_select %p1577, %s1576, 1
        %s1579 = smul.addr %s1578, 16
        %s1580 = smul.addr %s1579, 4
        %s1581 = scalar_lea.vmem %s13, %s1580
        %p1582 = pneg %p252
        %p1583 = pneg %p249
        %p1584 = scmp.lt.s32.totalorder %s83, 1
        %s1585 = scalar_select %p1584, %s83, 1
        %p1586 = scmp.lt.s32.totalorder %s1585, 1
        %s1587 = scalar_select %p1586, %s1585, 1
        %s1588 = smul.addr %s1587, 4
        %s1589 = smul.addr %s1588, 4
        %s1590 = scalar_lea.vmem %s15, %s1589
        %p1591 = pneg %p282
        %p1592 = pneg %p279
        %p1593 = scmp.lt.s32.totalorder %s83, 1
        %s1594 = scalar_select %p1593, %s83, 1
        %p1595 = scmp.lt.s32.totalorder %s1594, 1
        %s1596 = scalar_select %p1595, %s1594, 1
        %s1597 = scalar_lea.vmem %s17, %s1596
        %p1598 = pneg %p312
        %p1599 = pneg %p309
        %p1600 = scmp.lt.s32.totalorder %s83, 1
        %s1601 = scalar_select %p1600, %s83, 1
        %p1602 = scmp.lt.s32.totalorder %s1601, 1
        %s1603 = scalar_select %p1602, %s1601, 1
        %s1604 = scalar_lea.vmem %s19, %s1603
        %p1605 = pneg %p342
        %p1606 = pneg %p339
        %p1607 = scmp.lt.s32.totalorder %s83, 1
        %s1608 = scalar_select %p1607, %s83, 1
        %p1609 = scmp.lt.s32.totalorder %s1608, 1
        %s1610 = scalar_select %p1609, %s1608, 1
        %s1611 = smul.addr %s1610, 4
        %s1612 = smul.addr %s1611, 4
        %s1613 = scalar_lea.vmem %s21, %s1612
        %p1614 = pneg %p372
        %p1615 = pneg %p369
        %p1616 = scmp.lt.s32.totalorder %s83, 1
        %s1617 = scalar_select %p1616, %s83, 1
        %p1618 = scmp.lt.s32.totalorder %s1617, 1
        %s1619 = scalar_select %p1618, %s1617, 1
        %s1620 = scalar_lea.vmem %s23, %s1619
        %p1621 = pneg %p402
        %p1622 = pneg %p399
        %p1623 = scmp.lt.s32.totalorder %s83, 1
        %s1624 = scalar_select %p1623, %s83, 1
        %p1625 = scmp.lt.s32.totalorder %s1624, 1
        %s1626 = scalar_select %p1625, %s1624, 1
        %s1627 = smul.addr %s1626, 8
        %s1628 = smul.addr %s1627, 4
        %s1629 = scalar_lea.vmem %s25, %s1628
        %p1630 = pneg %p432
        %p1631 = pneg %p429
        %p1632 = scmp.lt.s32.totalorder %s83, 1
        %s1633 = scalar_select %p1632, %s83, 1
        %p1634 = scmp.lt.s32.totalorder %s1633, 1
        %s1635 = scalar_select %p1634, %s1633, 1
        %s1636 = scalar_lea.vmem %s27, %s1635
        %p1637 = pneg %p462
        %p1638 = pneg %p459
        %p1639 = scmp.lt.s32.totalorder %s83, 1
        %s1640 = scalar_select %p1639, %s83, 1
        %p1641 = scmp.lt.s32.totalorder %s1640, 1
        %s1642 = scalar_select %p1641, %s1640, 1
        %s1643 = scalar_lea.vmem %s29, %s1642
        %p1644 = pneg %p492
        %p1645 = pneg %p489
        %p1646 = scmp.lt.s32.totalorder %s83, 1
        %s1647 = scalar_select %p1646, %s83, 1
        %p1648 = scmp.lt.s32.totalorder %s1647, 1
        %s1649 = scalar_select %p1648, %s1647, 1
        %s1650 = scalar_lea.vmem %s31, %s1649
        %p1651 = pneg %p522
        %p1652 = pneg %p519
        %s1653 = ssub.s32 %s83, 2
        %p1654 = scmp.gt.s32.totalorder %s1653, 0
        %s1655 = scalar_select %p1654, %s1653, 0
        %p1656 = scmp.lt.s32.totalorder %s1655, 1
        %s1657 = scalar_select %p1656, %s1655, 1
        %s1658 = smul.addr %s1657, 16
        %s1659 = smul.addr %s1658, 4
        %s1660 = scalar_lea.vmem %s33, %s1659
        %p1661 = pneg %p554
        %p1662 = pneg %p551
        %s1663 = ssub.s32 %s83, 2
        %p1664 = scmp.gt.s32.totalorder %s1663, 0
        %s1665 = scalar_select %p1664, %s1663, 0
        %p1666 = scmp.lt.s32.totalorder %s1665, 1
        %s1667 = scalar_select %p1666, %s1665, 1
        %s1668 = smul.addr %s1667, 16
        %s1669 = smul.addr %s1668, 4
        %s1670 = scalar_lea.vmem %s35, %s1669
        %p1671 = pneg %p586
        %p1672 = pneg %p583
        %s1673 = ssub.s32 %s83, 2
        %p1674 = scmp.gt.s32.totalorder %s1673, 0
        %s1675 = scalar_select %p1674, %s1673, 0
        %p1676 = scmp.lt.s32.totalorder %s1675, 1
        %s1677 = scalar_select %p1676, %s1675, 1
        %s1678 = smul.addr %s1677, 16
        %s1679 = smul.addr %s1678, 4
        %s1680 = scalar_lea.vmem %s37, %s1679
        %p1681 = pneg %p618
        %p1682 = pneg %p615
        %s1683 = ssub.s32 %s83, 2
        %p1684 = scmp.gt.s32.totalorder %s1683, 0
        %s1685 = scalar_select %p1684, %s1683, 0
        %p1686 = scmp.lt.s32.totalorder %s1685, 1
        %s1687 = scalar_select %p1686, %s1685, 1
        %s1688 = smul.addr %s1687, 4
        %s1689 = smul.addr %s1688, 4
        %s1690 = scalar_lea.vmem %s39, %s1689
        %p1691 = pneg %p650
        %p1692 = pneg %p647
        %s1693 = ssub.s32 %s83, 2
        %p1694 = scmp.gt.s32.totalorder %s1693, 0
        %s1695 = scalar_select %p1694, %s1693, 0
        %p1696 = scmp.lt.s32.totalorder %s1695, 1
        %s1697 = scalar_select %p1696, %s1695, 1
        %s1698 = scalar_lea.vmem %s41, %s1697
        %p1699 = pneg %p682
        %p1700 = pneg %p679
        %s1701 = ssub.s32 %s83, 2
        %p1702 = scmp.gt.s32.totalorder %s1701, 0
        %s1703 = scalar_select %p1702, %s1701, 0
        %p1704 = scmp.lt.s32.totalorder %s1703, 1
        %s1705 = scalar_select %p1704, %s1703, 1
        %s1706 = scalar_lea.vmem %s43, %s1705
        %p1707 = pneg %p714
        %p1708 = pneg %p711
        %s1709 = ssub.s32 %s83, 2
        %p1710 = scmp.gt.s32.totalorder %s1709, 0
        %s1711 = scalar_select %p1710, %s1709, 0
        %p1712 = scmp.lt.s32.totalorder %s1711, 1
        %s1713 = scalar_select %p1712, %s1711, 1
        %s1714 = smul.addr %s1713, 16
        %s1715 = smul.addr %s1714, 4
        %s1716 = scalar_lea.vmem %s45, %s1715
        %p1717 = pneg %p746
        %p1718 = pneg %p743
        %s1719 = ssub.s32 %s83, 2
        %p1720 = scmp.gt.s32.totalorder %s1719, 0
        %s1721 = scalar_select %p1720, %s1719, 0
        %p1722 = scmp.lt.s32.totalorder %s1721, 1
        %s1723 = scalar_select %p1722, %s1721, 1
        %s1724 = smul.addr %s1723, 16
        %s1725 = smul.addr %s1724, 4
        %s1726 = scalar_lea.vmem %s47, %s1725
        %p1727 = pneg %p778
        %p1728 = pneg %p775
        %s1729 = ssub.s32 %s83, 2
        %p1730 = scmp.gt.s32.totalorder %s1729, 0
        %s1731 = scalar_select %p1730, %s1729, 0
        %p1732 = scmp.lt.s32.totalorder %s1731, 1
        %s1733 = scalar_select %p1732, %s1731, 1
        %s1734 = smul.addr %s1733, 16
        %s1735 = smul.addr %s1734, 4
        %s1736 = scalar_lea.vmem %s49, %s1735
        %p1737 = pneg %p810
        %p1738 = pneg %p807
        %s1739 = ssub.s32 %s83, 2
        %p1740 = scmp.gt.s32.totalorder %s1739, 0
        %s1741 = scalar_select %p1740, %s1739, 0
        %p1742 = scmp.lt.s32.totalorder %s1741, 1
        %s1743 = scalar_select %p1742, %s1741, 1
        %s1744 = smul.addr %s1743, 4
        %s1745 = smul.addr %s1744, 4
        %s1746 = scalar_lea.vmem %s51, %s1745
        %p1747 = pneg %p842
        %p1748 = pneg %p839
        %s1749 = ssub.s32 %s83, 2
        %p1750 = scmp.gt.s32.totalorder %s1749, 0
        %s1751 = scalar_select %p1750, %s1749, 0
        %p1752 = scmp.lt.s32.totalorder %s1751, 1
        %s1753 = scalar_select %p1752, %s1751, 1
        %s1754 = scalar_lea.vmem %s53, %s1753
        %p1755 = pneg %p874
        %p1756 = pneg %p871
        %s1757 = ssub.s32 %s83, 2
        %p1758 = scmp.gt.s32.totalorder %s1757, 0
        %s1759 = scalar_select %p1758, %s1757, 0
        %p1760 = scmp.lt.s32.totalorder %s1759, 1
        %s1761 = scalar_select %p1760, %s1759, 1
        %s1762 = scalar_lea.vmem %s55, %s1761
        %p1763 = pneg %p906
        %p1764 = pneg %p903
        %s1765 = ssub.s32 %s83, 2
        %p1766 = scmp.gt.s32.totalorder %s1765, 0
        %s1767 = scalar_select %p1766, %s1765, 0
        %p1768 = scmp.lt.s32.totalorder %s1767, 1
        %s1769 = scalar_select %p1768, %s1767, 1
        %s1770 = smul.addr %s1769, 4
        %s1771 = smul.addr %s1770, 4
        %s1772 = scalar_lea.vmem %s57, %s1771
        %p1773 = pneg %p938
        %p1774 = pneg %p935
        %s1775 = ssub.s32 %s83, 2
        %p1776 = scmp.gt.s32.totalorder %s1775, 0
        %s1777 = scalar_select %p1776, %s1775, 0
        %p1778 = scmp.lt.s32.totalorder %s1777, 1
        %s1779 = scalar_select %p1778, %s1777, 1
        %s1780 = scalar_lea.vmem %s59, %s1779
        %p1781 = pneg %p970
        %p1782 = pneg %p967
        %s1783 = ssub.s32 %s83, 2
        %p1784 = scmp.gt.s32.totalorder %s1783, 0
        %s1785 = scalar_select %p1784, %s1783, 0
        %p1786 = scmp.lt.s32.totalorder %s1785, 1
        %s1787 = scalar_select %p1786, %s1785, 1
        %s1788 = smul.addr %s1787, 8
        %s1789 = smul.addr %s1788, 4
        %s1790 = scalar_lea.vmem %s61, %s1789
        %p1791 = pneg %p1002
        %p1792 = pneg %p999
        %s1793 = ssub.s32 %s83, 2
        %p1794 = scmp.gt.s32.totalorder %s1793, 0
        %s1795 = scalar_select %p1794, %s1793, 0
        %p1796 = scmp.lt.s32.totalorder %s1795, 1
        %s1797 = scalar_select %p1796, %s1795, 1
        %s1798 = scalar_lea.vmem %s63, %s1797
        %p1799 = pneg %p1034
        %p1800 = pneg %p1031
        %s1801 = ssub.s32 %s83, 2
        %p1802 = scmp.gt.s32.totalorder %s1801, 0
        %s1803 = scalar_select %p1802, %s1801, 0
        %p1804 = scmp.lt.s32.totalorder %s1803, 1
        %s1805 = scalar_select %p1804, %s1803, 1
        %s1806 = scalar_lea.vmem %s65, %s1805
        %p1807 = pneg %p1066
        %p1808 = pneg %p1063
        %s1809 = ssub.s32 %s83, 2
        %p1810 = scmp.gt.s32.totalorder %s1809, 0
        %s1811 = scalar_select %p1810, %s1809, 0
        %p1812 = scmp.lt.s32.totalorder %s1811, 1
        %s1813 = scalar_select %p1812, %s1811, 1
        %s1814 = scalar_lea.vmem %s67, %s1813
        %p1815 = pneg %p1098
        %p1816 = pneg %p1095
        %p1817 = pneg %p1119
        %p1818 = pneg %p1116
        %p1819 = pneg %p1140
        %p1820 = pneg %p1137
        %p1821 = scmp.lt.s32.totalorder %s83, 1
        %s1822 = scalar_select %p1821, %s83, 1
        %p1823 = scmp.lt.s32.totalorder %s1822, 1
        %s1824 = scalar_select %p1823, %s1822, 1
        %s1825 = smul.addr %s1824, 16
        %s1826 = smul.addr %s1825, 4
        %s1827 = scalar_lea.vmem %s9, %s1826
        %p1828 = scmp.lt.s32.totalorder %s83, 1
        %s1829 = scalar_select %p1828, %s83, 1
        %p1830 = scmp.lt.s32.totalorder %s83, 1
        %s1831 = scalar_select %p1830, %s83, 1
        %p1832 = scmp.lt.s32.totalorder %s1831, 1
        %s1833 = scalar_select %p1832, %s1831, 1
        %s1834 = smul.addr %s1833, 16
        %s1835 = smul.addr %s1834, 4
        %s1836 = scalar_lea.vmem %s11, %s1835
        %p1837 = scmp.lt.s32.totalorder %s83, 1
        %s1838 = scalar_select %p1837, %s83, 1
        %p1839 = scmp.lt.s32.totalorder %s83, 1
        %s1840 = scalar_select %p1839, %s83, 1
        %p1841 = scmp.lt.s32.totalorder %s1840, 1
        %s1842 = scalar_select %p1841, %s1840, 1
        %s1843 = smul.addr %s1842, 16
        %s1844 = smul.addr %s1843, 4
        %s1845 = scalar_lea.vmem %s13, %s1844
        %p1846 = scmp.lt.s32.totalorder %s83, 1
        %s1847 = scalar_select %p1846, %s83, 1
        %p1848 = scmp.lt.s32.totalorder %s83, 1
        %s1849 = scalar_select %p1848, %s83, 1
        %p1850 = scmp.lt.s32.totalorder %s1849, 1
        %s1851 = scalar_select %p1850, %s1849, 1
        %s1852 = smul.addr %s1851, 4
        %s1853 = smul.addr %s1852, 4
        %s1854 = scalar_lea.vmem %s15, %s1853
        %p1855 = scmp.lt.s32.totalorder %s83, 1
        %s1856 = scalar_select %p1855, %s83, 1
        %p1857 = scmp.lt.s32.totalorder %s83, 1
        %s1858 = scalar_select %p1857, %s83, 1
        %p1859 = scmp.lt.s32.totalorder %s1858, 1
        %s1860 = scalar_select %p1859, %s1858, 1
        %s1861 = scalar_lea.vmem %s17, %s1860
        %p1862 = scmp.lt.s32.totalorder %s83, 1
        %s1863 = scalar_select %p1862, %s83, 1
        %p1864 = scmp.lt.s32.totalorder %s83, 1
        %s1865 = scalar_select %p1864, %s83, 1
        %p1866 = scmp.lt.s32.totalorder %s1865, 1
        %s1867 = scalar_select %p1866, %s1865, 1
        %s1868 = scalar_lea.vmem %s19, %s1867
        %p1869 = scmp.lt.s32.totalorder %s83, 1
        %s1870 = scalar_select %p1869, %s83, 1
        %p1871 = scmp.lt.s32.totalorder %s83, 1
        %s1872 = scalar_select %p1871, %s83, 1
        %p1873 = scmp.lt.s32.totalorder %s1872, 1
        %s1874 = scalar_select %p1873, %s1872, 1
        %s1875 = smul.addr %s1874, 4
        %s1876 = smul.addr %s1875, 4
        %s1877 = scalar_lea.vmem %s21, %s1876
        %p1878 = scmp.lt.s32.totalorder %s83, 1
        %s1879 = scalar_select %p1878, %s83, 1
        %p1880 = scmp.lt.s32.totalorder %s83, 1
        %s1881 = scalar_select %p1880, %s83, 1
        %p1882 = scmp.lt.s32.totalorder %s1881, 1
        %s1883 = scalar_select %p1882, %s1881, 1
        %s1884 = scalar_lea.vmem %s23, %s1883
        %p1885 = scmp.lt.s32.totalorder %s83, 1
        %s1886 = scalar_select %p1885, %s83, 1
        %p1887 = scmp.lt.s32.totalorder %s83, 1
        %s1888 = scalar_select %p1887, %s83, 1
        %p1889 = scmp.lt.s32.totalorder %s1888, 1
        %s1890 = scalar_select %p1889, %s1888, 1
        %s1891 = smul.addr %s1890, 8
        %s1892 = smul.addr %s1891, 4
        %s1893 = scalar_lea.vmem %s25, %s1892
        %p1894 = scmp.lt.s32.totalorder %s83, 1
        %s1895 = scalar_select %p1894, %s83, 1
        %p1896 = scmp.lt.s32.totalorder %s83, 1
        %s1897 = scalar_select %p1896, %s83, 1
        %p1898 = scmp.lt.s32.totalorder %s1897, 1
        %s1899 = scalar_select %p1898, %s1897, 1
        %s1900 = scalar_lea.vmem %s27, %s1899
        %p1901 = scmp.lt.s32.totalorder %s83, 1
        %s1902 = scalar_select %p1901, %s83, 1
        %p1903 = scmp.lt.s32.totalorder %s83, 1
        %s1904 = scalar_select %p1903, %s83, 1
        %p1905 = scmp.lt.s32.totalorder %s1904, 1
        %s1906 = scalar_select %p1905, %s1904, 1
        %s1907 = scalar_lea.vmem %s29, %s1906
        %p1908 = scmp.lt.s32.totalorder %s83, 1
        %s1909 = scalar_select %p1908, %s83, 1
        %p1910 = scmp.lt.s32.totalorder %s83, 1
        %s1911 = scalar_select %p1910, %s83, 1
        %p1912 = scmp.lt.s32.totalorder %s1911, 1
        %s1913 = scalar_select %p1912, %s1911, 1
        %s1914 = scalar_lea.vmem %s31, %s1913
        %p1915 = scmp.lt.s32.totalorder %s83, 1
        %s1916 = scalar_select %p1915, %s83, 1
        %s1917 = ssub.s32 %s83, 2
        %p1918 = scmp.gt.s32.totalorder %s1917, 0
        %s1919 = scalar_select %p1918, %s1917, 0
        %p1920 = scmp.lt.s32.totalorder %s1919, 1
        %s1921 = scalar_select %p1920, %s1919, 1
        %s1922 = smul.addr %s1921, 16
        %s1923 = smul.addr %s1922, 4
        %s1924 = scalar_lea.vmem %s33, %s1923
        %s1925 = ssub.s32 %s83, 2
        %p1926 = scmp.gt.s32.totalorder %s1925, 0
        %s1927 = scalar_select %p1926, %s1925, 0
        %s1928 = ssub.s32 %s83, 2
        %p1929 = scmp.gt.s32.totalorder %s1928, 0
        %s1930 = scalar_select %p1929, %s1928, 0
        %p1931 = scmp.lt.s32.totalorder %s1930, 1
        %s1932 = scalar_select %p1931, %s1930, 1
        %s1933 = smul.addr %s1932, 16
        %s1934 = smul.addr %s1933, 4
        %s1935 = scalar_lea.vmem %s35, %s1934
        %s1936 = ssub.s32 %s83, 2
        %p1937 = scmp.gt.s32.totalorder %s1936, 0
        %s1938 = scalar_select %p1937, %s1936, 0
        %s1939 = ssub.s32 %s83, 2
        %p1940 = scmp.gt.s32.totalorder %s1939, 0
        %s1941 = scalar_select %p1940, %s1939, 0
        %p1942 = scmp.lt.s32.totalorder %s1941, 1
        %s1943 = scalar_select %p1942, %s1941, 1
        %s1944 = smul.addr %s1943, 16
        %s1945 = smul.addr %s1944, 4
        %s1946 = scalar_lea.vmem %s37, %s1945
        %s1947 = ssub.s32 %s83, 2
        %p1948 = scmp.gt.s32.totalorder %s1947, 0
        %s1949 = scalar_select %p1948, %s1947, 0
        %s1950 = ssub.s32 %s83, 2
        %p1951 = scmp.gt.s32.totalorder %s1950, 0
        %s1952 = scalar_select %p1951, %s1950, 0
        %p1953 = scmp.lt.s32.totalorder %s1952, 1
        %s1954 = scalar_select %p1953, %s1952, 1
        %s1955 = smul.addr %s1954, 4
        %s1956 = smul.addr %s1955, 4
        %s1957 = scalar_lea.vmem %s39, %s1956
        %s1958 = ssub.s32 %s83, 2
        %p1959 = scmp.gt.s32.totalorder %s1958, 0
        %s1960 = scalar_select %p1959, %s1958, 0
        %s1961 = ssub.s32 %s83, 2
        %p1962 = scmp.gt.s32.totalorder %s1961, 0
        %s1963 = scalar_select %p1962, %s1961, 0
        %p1964 = scmp.lt.s32.totalorder %s1963, 1
        %s1965 = scalar_select %p1964, %s1963, 1
        %s1966 = scalar_lea.vmem %s41, %s1965
        %s1967 = ssub.s32 %s83, 2
        %p1968 = scmp.gt.s32.totalorder %s1967, 0
        %s1969 = scalar_select %p1968, %s1967, 0
        %s1970 = ssub.s32 %s83, 2
        %p1971 = scmp.gt.s32.totalorder %s1970, 0
        %s1972 = scalar_select %p1971, %s1970, 0
        %p1973 = scmp.lt.s32.totalorder %s1972, 1
        %s1974 = scalar_select %p1973, %s1972, 1
        %s1975 = scalar_lea.vmem %s43, %s1974
        %s1976 = ssub.s32 %s83, 2
        %p1977 = scmp.gt.s32.totalorder %s1976, 0
        %s1978 = scalar_select %p1977, %s1976, 0
        %s1979 = ssub.s32 %s83, 2
        %p1980 = scmp.gt.s32.totalorder %s1979, 0
        %s1981 = scalar_select %p1980, %s1979, 0
        %p1982 = scmp.lt.s32.totalorder %s1981, 1
        %s1983 = scalar_select %p1982, %s1981, 1
        %s1984 = smul.addr %s1983, 16
        %s1985 = smul.addr %s1984, 4
        %s1986 = scalar_lea.vmem %s45, %s1985
        %s1987 = ssub.s32 %s83, 2
        %p1988 = scmp.gt.s32.totalorder %s1987, 0
        %s1989 = scalar_select %p1988, %s1987, 0
        %s1990 = ssub.s32 %s83, 2
        %p1991 = scmp.gt.s32.totalorder %s1990, 0
        %s1992 = scalar_select %p1991, %s1990, 0
        %p1993 = scmp.lt.s32.totalorder %s1992, 1
        %s1994 = scalar_select %p1993, %s1992, 1
        %s1995 = smul.addr %s1994, 16
        %s1996 = smul.addr %s1995, 4
        %s1997 = scalar_lea.vmem %s47, %s1996
        %s1998 = ssub.s32 %s83, 2
        %p1999 = scmp.gt.s32.totalorder %s1998, 0
        %s2000 = scalar_select %p1999, %s1998, 0
        %s2001 = ssub.s32 %s83, 2
        %p2002 = scmp.gt.s32.totalorder %s2001, 0
        %s2003 = scalar_select %p2002, %s2001, 0
        %p2004 = scmp.lt.s32.totalorder %s2003, 1
        %s2005 = scalar_select %p2004, %s2003, 1
        %s2006 = smul.addr %s2005, 16
        %s2007 = smul.addr %s2006, 4
        %s2008 = scalar_lea.vmem %s49, %s2007
        %s2009 = ssub.s32 %s83, 2
        %p2010 = scmp.gt.s32.totalorder %s2009, 0
        %s2011 = scalar_select %p2010, %s2009, 0
        %s2012 = ssub.s32 %s83, 2
        %p2013 = scmp.gt.s32.totalorder %s2012, 0
        %s2014 = scalar_select %p2013, %s2012, 0
        %p2015 = scmp.lt.s32.totalorder %s2014, 1
        %s2016 = scalar_select %p2015, %s2014, 1
        %s2017 = smul.addr %s2016, 4
        %s2018 = smul.addr %s2017, 4
        %s2019 = scalar_lea.vmem %s51, %s2018
        %s2020 = ssub.s32 %s83, 2
        %p2021 = scmp.gt.s32.totalorder %s2020, 0
        %s2022 = scalar_select %p2021, %s2020, 0
        %s2023 = ssub.s32 %s83, 2
        %p2024 = scmp.gt.s32.totalorder %s2023, 0
        %s2025 = scalar_select %p2024, %s2023, 0
        %p2026 = scmp.lt.s32.totalorder %s2025, 1
        %s2027 = scalar_select %p2026, %s2025, 1
        %s2028 = scalar_lea.vmem %s53, %s2027
        %s2029 = ssub.s32 %s83, 2
        %p2030 = scmp.gt.s32.totalorder %s2029, 0
        %s2031 = scalar_select %p2030, %s2029, 0
        %s2032 = ssub.s32 %s83, 2
        %p2033 = scmp.gt.s32.totalorder %s2032, 0
        %s2034 = scalar_select %p2033, %s2032, 0
        %p2035 = scmp.lt.s32.totalorder %s2034, 1
        %s2036 = scalar_select %p2035, %s2034, 1
        %s2037 = scalar_lea.vmem %s55, %s2036
        %s2038 = ssub.s32 %s83, 2
        %p2039 = scmp.gt.s32.totalorder %s2038, 0
        %s2040 = scalar_select %p2039, %s2038, 0
        %s2041 = ssub.s32 %s83, 2
        %p2042 = scmp.gt.s32.totalorder %s2041, 0
        %s2043 = scalar_select %p2042, %s2041, 0
        %p2044 = scmp.lt.s32.totalorder %s2043, 1
        %s2045 = scalar_select %p2044, %s2043, 1
        %s2046 = smul.addr %s2045, 4
        %s2047 = smul.addr %s2046, 4
        %s2048 = scalar_lea.vmem %s57, %s2047
        %s2049 = ssub.s32 %s83, 2
        %p2050 = scmp.gt.s32.totalorder %s2049, 0
        %s2051 = scalar_select %p2050, %s2049, 0
        %s2052 = ssub.s32 %s83, 2
        %p2053 = scmp.gt.s32.totalorder %s2052, 0
        %s2054 = scalar_select %p2053, %s2052, 0
        %p2055 = scmp.lt.s32.totalorder %s2054, 1
        %s2056 = scalar_select %p2055, %s2054, 1
        %s2057 = scalar_lea.vmem %s59, %s2056
        %s2058 = ssub.s32 %s83, 2
        %p2059 = scmp.gt.s32.totalorder %s2058, 0
        %s2060 = scalar_select %p2059, %s2058, 0
        %s2061 = ssub.s32 %s83, 2
        %p2062 = scmp.gt.s32.totalorder %s2061, 0
        %s2063 = scalar_select %p2062, %s2061, 0
        %p2064 = scmp.lt.s32.totalorder %s2063, 1
        %s2065 = scalar_select %p2064, %s2063, 1
        %s2066 = smul.addr %s2065, 8
        %s2067 = smul.addr %s2066, 4
        %s2068 = scalar_lea.vmem %s61, %s2067
        %s2069 = ssub.s32 %s83, 2
        %p2070 = scmp.gt.s32.totalorder %s2069, 0
        %s2071 = scalar_select %p2070, %s2069, 0
        %s2072 = ssub.s32 %s83, 2
        %p2073 = scmp.gt.s32.totalorder %s2072, 0
        %s2074 = scalar_select %p2073, %s2072, 0
        %p2075 = scmp.lt.s32.totalorder %s2074, 1
        %s2076 = scalar_select %p2075, %s2074, 1
        %s2077 = scalar_lea.vmem %s63, %s2076
        %s2078 = ssub.s32 %s83, 2
        %p2079 = scmp.gt.s32.totalorder %s2078, 0
        %s2080 = scalar_select %p2079, %s2078, 0
        %s2081 = ssub.s32 %s83, 2
        %p2082 = scmp.gt.s32.totalorder %s2081, 0
        %s2083 = scalar_select %p2082, %s2081, 0
        %p2084 = scmp.lt.s32.totalorder %s2083, 1
        %s2085 = scalar_select %p2084, %s2083, 1
        %s2086 = scalar_lea.vmem %s65, %s2085
        %s2087 = ssub.s32 %s83, 2
        %p2088 = scmp.gt.s32.totalorder %s2087, 0
        %s2089 = scalar_select %p2088, %s2087, 0
        %s2090 = ssub.s32 %s83, 2
        %p2091 = scmp.gt.s32.totalorder %s2090, 0
        %s2092 = scalar_select %p2091, %s2090, 0
        %p2093 = scmp.lt.s32.totalorder %s2092, 1
        %s2094 = scalar_select %p2093, %s2092, 1
        %s2095 = scalar_lea.vmem %s67, %s2094
        %s2096 = ssub.s32 %s83, 2
        %p2097 = scmp.gt.s32.totalorder %s2096, 0
        %s2098 = scalar_select %p2097, %s2096, 0
        %p2100 = scmp.eq.s32.totalorder %s83, 0
        // Predicated region
        $region161: #{_lambda_.1} parent=159 // pred_check
          %p2101 = pneg %p2100
        $region162: #{_lambda_.1} parent=159 // pred_check_branch
          %2103 = sbr.rel (%p2101) target = $region164
        $region163: #{_lambda_.1} parent=159 // pred_region
          %v2104 = vld [vmem:[%s1] sm:$0xff]
          %v2105 = vld [vmem:[%s1 + $0x8] sm:$0xff]
          %vm2106 = vcmask 261120
          %2107 = vst.msk [vmem:[#allocation2] sm:$0xff] %vm2106, %v2104
          %2108 = vst.msk [vmem:[#allocation2 + $0x8] sm:$0xff] %vm2106, %v2105
        $region164: #{_lambda_.1} parent=159 // pred_fallthru
          _
        %p2109 = scmp.eq.s32.totalorder %s83, 2
        // Predicated region
        $region165: #{_lambda_.1} parent=159 // pred_check
          %p2110 = pneg %p2109
        $region166: #{_lambda_.1} parent=159 // pred_check_branch
          %2112 = sbr.rel (%p2110) target = $region168
        $region167: #{_lambda_.1} parent=159 // pred_region
          %v2113 = vld [vmem:[%s3] sm:$0xff]
          %v2114 = vld [vmem:[%s3 + $0x8] sm:$0xff]
          %vm2115 = vcmask 261120
          %2116 = vst.msk [vmem:[#allocation3] sm:$0xff] %vm2115, %v2113
          %2117 = vst.msk [vmem:[#allocation3 + $0x8] sm:$0xff] %vm2115, %v2114
        $region168: #{_lambda_.1} parent=159 // pred_fallthru
          _
        %p2118 = scmp.lt.s32.totalorder %s83, 2
        // Predicated region
        $region169: #{_lambda_.1} parent=159 // pred_check
          %p2119 = pneg %p2118
        $region170: #{_lambda_.1} parent=159 // pred_check_branch
          %2121 = sbr.rel (%p2119) target = $region172
        $region171: #{_lambda_.1} parent=159 // pred_region
          %v2122 = vld [vmem:[#allocation2] sm:$0xff]
          %v2123 = vld [vmem:[#allocation2 + $0x8] sm:$0xff]
          %v2124 = vld [vmem:[%s5] sm:$0x1]
          %v2125 = vld [vmem:[%s5 + $0x1] sm:$0x1]
          %v2126 = vld [vmem:[%s1827] sm:$0xf]
          %v2127 = vld [vmem:[%s1827 + $0x4] sm:$0xf]
          %v2128 = vld [vmem:[%s1827 + $0x8] sm:$0xf]
          %v2129 = vld [vmem:[%s1827 + $0xc] sm:$0xf]
          %v2130 = vld [vmem:[%s1827 + $0x10] sm:$0xf]
          %v2131 = vld [vmem:[%s1827 + $0x14] sm:$0xf]
          %v2132 = vld [vmem:[%s1827 + $0x18] sm:$0xf]
          %v2133 = vld [vmem:[%s1827 + $0x1c] sm:$0xf]
          %v2134 = vld [vmem:[%s1827 + $0x20] sm:$0xf]
          %v2135 = vld [vmem:[%s1827 + $0x24] sm:$0xf]
          %v2136 = vld [vmem:[%s1827 + $0x28] sm:$0xf]
          %v2137 = vld [vmem:[%s1827 + $0x2c] sm:$0xf]
          %v2138 = vld [vmem:[%s1827 + $0x30] sm:$0xf]
          %v2139 = vld [vmem:[%s1827 + $0x34] sm:$0xf]
          %v2140 = vld [vmem:[%s1827 + $0x38] sm:$0xf]
          %v2141 = vld [vmem:[%s1827 + $0x3c] sm:$0xf]
          %v2142 = vld [vmem:[%s1836] sm:$0xf]
          %v2143 = vld [vmem:[%s1836 + $0x4] sm:$0xf]
          %v2144 = vld [vmem:[%s1836 + $0x8] sm:$0xf]
          %v2145 = vld [vmem:[%s1836 + $0xc] sm:$0xf]
          %v2146 = vld [vmem:[%s1836 + $0x10] sm:$0xf]
          %v2147 = vld [vmem:[%s1836 + $0x14] sm:$0xf]
          %v2148 = vld [vmem:[%s1836 + $0x18] sm:$0xf]
          %v2149 = vld [vmem:[%s1836 + $0x1c] sm:$0xf]
          %v2150 = vld [vmem:[%s1836 + $0x20] sm:$0xf]
          %v2151 = vld [vmem:[%s1836 + $0x24] sm:$0xf]
          %v2152 = vld [vmem:[%s1836 + $0x28] sm:$0xf]
          %v2153 = vld [vmem:[%s1836 + $0x2c] sm:$0xf]
          %v2154 = vld [vmem:[%s1836 + $0x30] sm:$0xf]
          %v2155 = vld [vmem:[%s1836 + $0x34] sm:$0xf]
          %v2156 = vld [vmem:[%s1836 + $0x38] sm:$0xf]
          %v2157 = vld [vmem:[%s1836 + $0x3c] sm:$0xf]
          %v2158 = vld [vmem:[%s1845] sm:$0xf]
          %v2159 = vld [vmem:[%s1845 + $0x4] sm:$0xf]
          %v2160 = vld [vmem:[%s1845 + $0x8] sm:$0xf]
          %v2161 = vld [vmem:[%s1845 + $0xc] sm:$0xf]
          %v2162 = vld [vmem:[%s1845 + $0x10] sm:$0xf]
          %v2163 = vld [vmem:[%s1845 + $0x14] sm:$0xf]
          %v2164 = vld [vmem:[%s1845 + $0x18] sm:$0xf]
          %v2165 = vld [vmem:[%s1845 + $0x1c] sm:$0xf]
          %v2166 = vld [vmem:[%s1845 + $0x20] sm:$0xf]
          %v2167 = vld [vmem:[%s1845 + $0x24] sm:$0xf]
          %v2168 = vld [vmem:[%s1845 + $0x28] sm:$0xf]
          %v2169 = vld [vmem:[%s1845 + $0x2c] sm:$0xf]
          %v2170 = vld [vmem:[%s1845 + $0x30] sm:$0xf]
          %v2171 = vld [vmem:[%s1845 + $0x34] sm:$0xf]
          %v2172 = vld [vmem:[%s1845 + $0x38] sm:$0xf]
          %v2173 = vld [vmem:[%s1845 + $0x3c] sm:$0xf]
          %v2174 = vld [vmem:[%s1854] sm:$0xf]
          %v2175 = vld [vmem:[%s1854 + $0x4] sm:$0xf]
          %v2176 = vld [vmem:[%s1854 + $0x8] sm:$0xf]
          %v2177 = vld [vmem:[%s1854 + $0xc] sm:$0xf]
          %v2178 = vld [vmem:[%s1861] sm:$0x1]
          %v2179 = vld [vmem:[%s1868] sm:$0x1]
          %v2180 = vpack.c.bf16 %v2122, %v2122
          %v2181 = vpack.c.bf16 %v2123, %v2123
          %v2184 = vunpack.c.l.b16 %v2180
          %v2185 = vunpack.c.l.b16 %v2181
          %v2186 = vpack.c.b16 %v2185, %v2184
          %v2191 = vunpack.c.l.b16 %v2126
          %v2192 = vunpack.c.l.b16 %v2127
          %v2193 = vunpack.c.l.b16 %v2128
          %v2194 = vunpack.c.l.b16 %v2129
          %v2195 = vpack.c.b16 %v2192, %v2191
          %v2196 = vpack.c.b16 %v2194, %v2193
          %vm2199 = vcmask 261120
          %v2201 = vsel %vm2199, %v2186, 0
          %2203 = vmatpush.bf16.msra.mxu0 0
          %2204 = vmatpush.bf16.msra.mxu0 0
          %2205 = vmatpush.bf16.msra.mxu0 0
          %2206 = vmatpush.bf16.msra.mxu0 0
          %2207 = vmatpush.bf16.msra.mxu0 0
          %2208 = vmatpush.bf16.msra.mxu0 0
          %2209 = vmatpush.bf16.msra.mxu0 %v2196
          %2210 = vmatpush.bf16.msra.mxu0 %v2195
          %2211 = vmatmul.bf16.gmra.mxu0 %v2201
          %v2212 = vpop.f32.mrf.mxu0
          %v2213 = vadd.f32 0.0, %v2212
          %v2214 = vpop.f32.mrf.mxu0
          %v2215 = vadd.f32 0.0, %v2214
          %2216 = vdwg.mxu0
          %v2221 = vunpack.c.l.b16 %v2130
          %v2222 = vunpack.c.l.b16 %v2131
          %v2223 = vunpack.c.l.b16 %v2132
          %v2224 = vunpack.c.l.b16 %v2133
          %v2225 = vpack.c.b16 %v2222, %v2221
          %v2226 = vpack.c.b16 %v2224, %v2223
          %2229 = vmatpush.bf16.msra.mxu0 0
          %2230 = vmatpush.bf16.msra.mxu0 0
          %2231 = vmatpush.bf16.msra.mxu0 0
          %2232 = vmatpush.bf16.msra.mxu0 0
          %2233 = vmatpush.bf16.msra.mxu0 0
          %2234 = vmatpush.bf16.msra.mxu0 0
          %2235 = vmatpush.bf16.msra.mxu0 %v2226
          %2236 = vmatpush.bf16.msra.mxu0 %v2225
          %2237 = vmatmul.bf16.gmra.mxu0 %v2201
          %v2238 = vpop.f32.mrf.mxu0
          %v2239 = vadd.f32 0.0, %v2238
          %v2240 = vpop.f32.mrf.mxu0
          %v2241 = vadd.f32 0.0, %v2240
          %2242 = vdwg.mxu0
          %v2247 = vunpack.c.l.b16 %v2134
          %v2248 = vunpack.c.l.b16 %v2135
          %v2249 = vunpack.c.l.b16 %v2136
          %v2250 = vunpack.c.l.b16 %v2137
          %v2251 = vpack.c.b16 %v2248, %v2247
          %v2252 = vpack.c.b16 %v2250, %v2249
          %2255 = vmatpush.bf16.msra.mxu0 0
          %2256 = vmatpush.bf16.msra.mxu0 0
          %2257 = vmatpush.bf16.msra.mxu0 0
          %2258 = vmatpush.bf16.msra.mxu0 0
          %2259 = vmatpush.bf16.msra.mxu0 0
          %2260 = vmatpush.bf16.msra.mxu0 0
          %2261 = vmatpush.bf16.msra.mxu0 %v2252
          %2262 = vmatpush.bf16.msra.mxu0 %v2251
          %2263 = vmatmul.bf16.gmra.mxu0 %v2201
          %v2264 = vpop.f32.mrf.mxu0
          %v2265 = vadd.f32 0.0, %v2264
          %v2266 = vpop.f32.mrf.mxu0
          %v2267 = vadd.f32 0.0, %v2266
          %2268 = vdwg.mxu0
          %v2273 = vunpack.c.l.b16 %v2138
          %v2274 = vunpack.c.l.b16 %v2139
          %v2275 = vunpack.c.l.b16 %v2140
          %v2276 = vunpack.c.l.b16 %v2141
          %v2277 = vpack.c.b16 %v2274, %v2273
          %v2278 = vpack.c.b16 %v2276, %v2275
          %2281 = vmatpush.bf16.msra.mxu0 0
          %2282 = vmatpush.bf16.msra.mxu0 0
          %2283 = vmatpush.bf16.msra.mxu0 0
          %2284 = vmatpush.bf16.msra.mxu0 0
          %2285 = vmatpush.bf16.msra.mxu0 0
          %2286 = vmatpush.bf16.msra.mxu0 0
          %2287 = vmatpush.bf16.msra.mxu0 %v2278
          %2288 = vmatpush.bf16.msra.mxu0 %v2277
          %2289 = vmatmul.bf16.gmra.mxu0 %v2201
          %v2290 = vpop.f32.mrf.mxu0
          %v2291 = vadd.f32 0.0, %v2290
          %v2292 = vpop.f32.mrf.mxu0
          %v2293 = vadd.f32 0.0, %v2292
          %2294 = vdwg.mxu0
          %v2299 = vunpack.c.l.b16 %v2142
          %v2300 = vunpack.c.l.b16 %v2143
          %v2301 = vunpack.c.l.b16 %v2144
          %v2302 = vunpack.c.l.b16 %v2145
          %v2303 = vpack.c.b16 %v2300, %v2299
          %v2304 = vpack.c.b16 %v2302, %v2301
          %2307 = vmatpush.bf16.msra.mxu0 0
          %2308 = vmatpush.bf16.msra.mxu0 0
          %2309 = vmatpush.bf16.msra.mxu0 0
          %2310 = vmatpush.bf16.msra.mxu0 0
          %2311 = vmatpush.bf16.msra.mxu0 0
          %2312 = vmatpush.bf16.msra.mxu0 0
          %2313 = vmatpush.bf16.msra.mxu0 %v2304
          %2314 = vmatpush.bf16.msra.mxu0 %v2303
          %2315 = vmatmul.bf16.gmra.mxu0 %v2201
          %v2316 = vpop.f32.mrf.mxu0
          %v2317 = vadd.f32 0.0, %v2316
          %v2318 = vpop.f32.mrf.mxu0
          %v2319 = vadd.f32 0.0, %v2318
          %2320 = vdwg.mxu0
          %v2325 = vunpack.c.l.b16 %v2146
          %v2326 = vunpack.c.l.b16 %v2147
          %v2327 = vunpack.c.l.b16 %v2148
          %v2328 = vunpack.c.l.b16 %v2149
          %v2329 = vpack.c.b16 %v2326, %v2325
          %v2330 = vpack.c.b16 %v2328, %v2327
          %2333 = vmatpush.bf16.msra.mxu0 0
          %2334 = vmatpush.bf16.msra.mxu0 0
          %2335 = vmatpush.bf16.msra.mxu0 0
          %2336 = vmatpush.bf16.msra.mxu0 0
          %2337 = vmatpush.bf16.msra.mxu0 0
          %2338 = vmatpush.bf16.msra.mxu0 0
          %2339 = vmatpush.bf16.msra.mxu0 %v2330
          %2340 = vmatpush.bf16.msra.mxu0 %v2329
          %2341 = vmatmul.bf16.gmra.mxu0 %v2201
          %v2342 = vpop.f32.mrf.mxu0
          %v2343 = vadd.f32 0.0, %v2342
          %v2344 = vpop.f32.mrf.mxu0
          %v2345 = vadd.f32 0.0, %v2344
          %2346 = vdwg.mxu0
          %v2351 = vunpack.c.l.b16 %v2150
          %v2352 = vunpack.c.l.b16 %v2151
          %v2353 = vunpack.c.l.b16 %v2152
          %v2354 = vunpack.c.l.b16 %v2153
          %v2355 = vpack.c.b16 %v2352, %v2351
          %v2356 = vpack.c.b16 %v2354, %v2353
          %2359 = vmatpush.bf16.msra.mxu0 0
          %2360 = vmatpush.bf16.msra.mxu0 0
          %2361 = vmatpush.bf16.msra.mxu0 0
          %2362 = vmatpush.bf16.msra.mxu0 0
          %2363 = vmatpush.bf16.msra.mxu0 0
          %2364 = vmatpush.bf16.msra.mxu0 0
          %2365 = vmatpush.bf16.msra.mxu0 %v2356
          %2366 = vmatpush.bf16.msra.mxu0 %v2355
          %2367 = vmatmul.bf16.gmra.mxu0 %v2201
          %v2368 = vpop.f32.mrf.mxu0
          %v2369 = vadd.f32 0.0, %v2368
          %v2370 = vpop.f32.mrf.mxu0
          %v2371 = vadd.f32 0.0, %v2370
          %2372 = vdwg.mxu0
          %v2377 = vunpack.c.l.b16 %v2154
          %v2378 = vunpack.c.l.b16 %v2155
          %v2379 = vunpack.c.l.b16 %v2156
          %v2380 = vunpack.c.l.b16 %v2157
          %v2381 = vpack.c.b16 %v2378, %v2377
          %v2382 = vpack.c.b16 %v2380, %v2379
          %2385 = vmatpush.bf16.msra.mxu0 0
          %2386 = vmatpush.bf16.msra.mxu0 0
          %2387 = vmatpush.bf16.msra.mxu0 0
          %2388 = vmatpush.bf16.msra.mxu0 0
          %2389 = vmatpush.bf16.msra.mxu0 0
          %2390 = vmatpush.bf16.msra.mxu0 0
          %2391 = vmatpush.bf16.msra.mxu0 %v2382
          %2392 = vmatpush.bf16.msra.mxu0 %v2381
          %2393 = vmatmul.bf16.gmra.mxu0 %v2201
          %v2394 = vpop.f32.mrf.mxu0
          %v2395 = vadd.f32 0.0, %v2394
          %v2396 = vpop.f32.mrf.mxu0
          %v2397 = vadd.f32 0.0, %v2396
          %2398 = vdwg.mxu0
          %v2403 = vunpack.c.l.b16 %v2158
          %v2404 = vunpack.c.l.b16 %v2159
          %v2405 = vunpack.c.l.b16 %v2160
          %v2406 = vunpack.c.l.b16 %v2161
          %v2407 = vpack.c.b16 %v2404, %v2403
          %v2408 = vpack.c.b16 %v2406, %v2405
          %2411 = vmatpush.bf16.msra.mxu0 0
          %2412 = vmatpush.bf16.msra.mxu0 0
          %2413 = vmatpush.bf16.msra.mxu0 0
          %2414 = vmatpush.bf16.msra.mxu0 0
          %2415 = vmatpush.bf16.msra.mxu0 0
          %2416 = vmatpush.bf16.msra.mxu0 0
          %2417 = vmatpush.bf16.msra.mxu0 %v2408
          %2418 = vmatpush.bf16.msra.mxu0 %v2407
          %2419 = vmatmul.bf16.gmra.mxu0 %v2201
          %v2420 = vpop.f32.mrf.mxu0
          %v2421 = vadd.f32 0.0, %v2420
          %v2422 = vpop.f32.mrf.mxu0
          %v2423 = vadd.f32 0.0, %v2422
          %2424 = vdwg.mxu0
          %v2429 = vunpack.c.l.b16 %v2162
          %v2430 = vunpack.c.l.b16 %v2163
          %v2431 = vunpack.c.l.b16 %v2164
          %v2432 = vunpack.c.l.b16 %v2165
          %v2433 = vpack.c.b16 %v2430, %v2429
          %v2434 = vpack.c.b16 %v2432, %v2431
          %2437 = vmatpush.bf16.msra.mxu0 0
          %2438 = vmatpush.bf16.msra.mxu0 0
          %2439 = vmatpush.bf16.msra.mxu0 0
          %2440 = vmatpush.bf16.msra.mxu0 0
          %2441 = vmatpush.bf16.msra.mxu0 0
          %2442 = vmatpush.bf16.msra.mxu0 0
          %2443 = vmatpush.bf16.msra.mxu0 %v2434
          %2444 = vmatpush.bf16.msra.mxu0 %v2433
          %2445 = vmatmul.bf16.gmra.mxu0 %v2201
          %v2446 = vpop.f32.mrf.mxu0
          %v2447 = vadd.f32 0.0, %v2446
          %v2448 = vpop.f32.mrf.mxu0
          %v2449 = vadd.f32 0.0, %v2448
          %2450 = vdwg.mxu0
          %v2455 = vunpack.c.l.b16 %v2166
          %v2456 = vunpack.c.l.b16 %v2167
          %v2457 = vunpack.c.l.b16 %v2168
          %v2458 = vunpack.c.l.b16 %v2169
          %v2459 = vpack.c.b16 %v2456, %v2455
          %v2460 = vpack.c.b16 %v2458, %v2457
          %2463 = vmatpush.bf16.msra.mxu0 0
          %2464 = vmatpush.bf16.msra.mxu0 0
          %2465 = vmatpush.bf16.msra.mxu0 0
          %2466 = vmatpush.bf16.msra.mxu0 0
          %2467 = vmatpush.bf16.msra.mxu0 0
          %2468 = vmatpush.bf16.msra.mxu0 0
          %2469 = vmatpush.bf16.msra.mxu0 %v2460
          %2470 = vmatpush.bf16.msra.mxu0 %v2459
          %2471 = vmatmul.bf16.gmra.mxu0 %v2201
          %v2472 = vpop.f32.mrf.mxu0
          %v2473 = vadd.f32 0.0, %v2472
          %v2474 = vpop.f32.mrf.mxu0
          %v2475 = vadd.f32 0.0, %v2474
          %2476 = vdwg.mxu0
          %v2481 = vunpack.c.l.b16 %v2170
          %v2482 = vunpack.c.l.b16 %v2171
          %v2483 = vunpack.c.l.b16 %v2172
          %v2484 = vunpack.c.l.b16 %v2173
          %v2485 = vpack.c.b16 %v2482, %v2481
          %v2486 = vpack.c.b16 %v2484, %v2483
          %2489 = vmatpush.bf16.msra.mxu0 0
          %2490 = vmatpush.bf16.msra.mxu0 0
          %2491 = vmatpush.bf16.msra.mxu0 0
          %2492 = vmatpush.bf16.msra.mxu0 0
          %2493 = vmatpush.bf16.msra.mxu0 0
          %2494 = vmatpush.bf16.msra.mxu0 0
          %2495 = vmatpush.bf16.msra.mxu0 %v2486
          %2496 = vmatpush.bf16.msra.mxu0 %v2485
          %2497 = vmatmul.bf16.gmra.mxu0 %v2201
          %v2498 = vpop.f32.mrf.mxu0
          %v2499 = vadd.f32 0.0, %v2498
          %v2500 = vpop.f32.mrf.mxu0
          %v2501 = vadd.f32 0.0, %v2500
          %2502 = vdwg.mxu0
          %v2503 = vpack.c.bf16 %v2213, %v2213
          %v2504 = vpack.c.bf16 %v2215, %v2215
          %v2505 = vpack.c.bf16 %v2239, %v2239
          %v2506 = vpack.c.bf16 %v2241, %v2241
          %v2507 = vpack.c.bf16 %v2265, %v2265
          %v2508 = vpack.c.bf16 %v2267, %v2267
          %v2509 = vpack.c.bf16 %v2291, %v2291
          %v2510 = vpack.c.bf16 %v2293, %v2293
          %v2511 = vpack.c.bf16 %v2317, %v2317
          %v2512 = vpack.c.bf16 %v2319, %v2319
          %v2513 = vpack.c.bf16 %v2343, %v2343
          %v2514 = vpack.c.bf16 %v2345, %v2345
          %v2515 = vpack.c.bf16 %v2369, %v2369
          %v2516 = vpack.c.bf16 %v2371, %v2371
          %v2517 = vpack.c.bf16 %v2395, %v2395
          %v2518 = vpack.c.bf16 %v2397, %v2397
          %vm2519 = vcmask 64512
          %v2521 = vsel %vm2519, %v2503, 0
          %v2524 = vsel %vm2519, %v2511, 0
          %2526 = vmatpush.bf16.xpose.msra.mxu0 0
          %2527 = vmatpush.bf16.xpose.msra.mxu0 0
          %2528 = vmatpush.bf16.xpose.msra.mxu0 0
          %2529 = vmatpush.bf16.xpose.msra.mxu0 0
          %2530 = vmatpush.bf16.xpose.msra.mxu0 0
          %2531 = vmatpush.bf16.xpose.msra.mxu0 0
          %2532 = vmatpush.bf16.xpose.msra.mxu0 0
          %2533 = vmatpush.bf16.xpose.msra.mxu0 %v2524
          %2534 = vmatmul.bf16.gmra.mxu0 %v2521
          %v2535 = vpop.f32.mrf.mxu0
          %v2536 = vadd.f32 0.0, %v2535
          %v2537 = vpop.f32.mrf.mxu0
          %2538 = vdwg.mxu0
          %v2540 = vsel %vm2519, %v2504, 0
          %v2543 = vsel %vm2519, %v2512, 0
          %2545 = vmatpush.bf16.xpose.msra.mxu0 0
          %2546 = vmatpush.bf16.xpose.msra.mxu0 0
          %2547 = vmatpush.bf16.xpose.msra.mxu0 0
          %2548 = vmatpush.bf16.xpose.msra.mxu0 0
          %2549 = vmatpush.bf16.xpose.msra.mxu0 0
          %2550 = vmatpush.bf16.xpose.msra.mxu0 0
          %2551 = vmatpush.bf16.xpose.msra.mxu0 0
          %2552 = vmatpush.bf16.xpose.msra.mxu0 %v2543
          %2553 = vmatmul.bf16.gmra.mxu0 %v2540
          %v2554 = vpop.f32.mrf.mxu0
          %v2555 = vadd.f32 0.0, %v2554
          %v2556 = vpop.f32.mrf.mxu0
          %2557 = vdwg.mxu0
          %v2559 = vsel %vm2519, %v2505, 0
          %v2562 = vsel %vm2519, %v2513, 0
          %2564 = vmatpush.bf16.xpose.msra.mxu0 0
          %2565 = vmatpush.bf16.xpose.msra.mxu0 0
          %2566 = vmatpush.bf16.xpose.msra.mxu0 0
          %2567 = vmatpush.bf16.xpose.msra.mxu0 0
          %2568 = vmatpush.bf16.xpose.msra.mxu0 0
          %2569 = vmatpush.bf16.xpose.msra.mxu0 0
          %2570 = vmatpush.bf16.xpose.msra.mxu0 0
          %2571 = vmatpush.bf16.xpose.msra.mxu0 %v2562
          %2572 = vmatmul.bf16.gmra.mxu0 %v2559
          %v2573 = vpop.f32.mrf.mxu0
          %v2574 = vadd.f32 0.0, %v2573
          %v2575 = vpop.f32.mrf.mxu0
          %2576 = vdwg.mxu0
          %v2578 = vsel %vm2519, %v2506, 0
          %v2581 = vsel %vm2519, %v2514, 0
          %2583 = vmatpush.bf16.xpose.msra.mxu0 0
          %2584 = vmatpush.bf16.xpose.msra.mxu0 0
          %2585 = vmatpush.bf16.xpose.msra.mxu0 0
          %2586 = vmatpush.bf16.xpose.msra.mxu0 0
          %2587 = vmatpush.bf16.xpose.msra.mxu0 0
          %2588 = vmatpush.bf16.xpose.msra.mxu0 0
          %2589 = vmatpush.bf16.xpose.msra.mxu0 0
          %2590 = vmatpush.bf16.xpose.msra.mxu0 %v2581
          %2591 = vmatmul.bf16.gmra.mxu0 %v2578
          %v2592 = vpop.f32.mrf.mxu0
          %v2593 = vadd.f32 0.0, %v2592
          %v2594 = vpop.f32.mrf.mxu0
          %2595 = vdwg.mxu0
          %v2597 = vsel %vm2519, %v2507, 0
          %v2600 = vsel %vm2519, %v2515, 0
          %2602 = vmatpush.bf16.xpose.msra.mxu0 0
          %2603 = vmatpush.bf16.xpose.msra.mxu0 0
          %2604 = vmatpush.bf16.xpose.msra.mxu0 0
          %2605 = vmatpush.bf16.xpose.msra.mxu0 0
          %2606 = vmatpush.bf16.xpose.msra.mxu0 0
          %2607 = vmatpush.bf16.xpose.msra.mxu0 0
          %2608 = vmatpush.bf16.xpose.msra.mxu0 0
          %2609 = vmatpush.bf16.xpose.msra.mxu0 %v2600
          %2610 = vmatmul.bf16.gmra.mxu0 %v2597
          %v2611 = vpop.f32.mrf.mxu0
          %v2612 = vadd.f32 0.0, %v2611
          %v2613 = vpop.f32.mrf.mxu0
          %2614 = vdwg.mxu0
          %v2616 = vsel %vm2519, %v2508, 0
          %v2619 = vsel %vm2519, %v2516, 0
          %2621 = vmatpush.bf16.xpose.msra.mxu0 0
          %2622 = vmatpush.bf16.xpose.msra.mxu0 0
          %2623 = vmatpush.bf16.xpose.msra.mxu0 0
          %2624 = vmatpush.bf16.xpose.msra.mxu0 0
          %2625 = vmatpush.bf16.xpose.msra.mxu0 0
          %2626 = vmatpush.bf16.xpose.msra.mxu0 0
          %2627 = vmatpush.bf16.xpose.msra.mxu0 0
          %2628 = vmatpush.bf16.xpose.msra.mxu0 %v2619
          %2629 = vmatmul.bf16.gmra.mxu0 %v2616
          %v2630 = vpop.f32.mrf.mxu0
          %v2631 = vadd.f32 0.0, %v2630
          %v2632 = vpop.f32.mrf.mxu0
          %2633 = vdwg.mxu0
          %v2635 = vsel %vm2519, %v2509, 0
          %v2638 = vsel %vm2519, %v2517, 0
          %2640 = vmatpush.bf16.xpose.msra.mxu0 0
          %2641 = vmatpush.bf16.xpose.msra.mxu0 0
          %2642 = vmatpush.bf16.xpose.msra.mxu0 0
          %2643 = vmatpush.bf16.xpose.msra.mxu0 0
          %2644 = vmatpush.bf16.xpose.msra.mxu0 0
          %2645 = vmatpush.bf16.xpose.msra.mxu0 0
          %2646 = vmatpush.bf16.xpose.msra.mxu0 0
          %2647 = vmatpush.bf16.xpose.msra.mxu0 %v2638
          %2648 = vmatmul.bf16.gmra.mxu0 %v2635
          %v2649 = vpop.f32.mrf.mxu0
          %v2650 = vadd.f32 0.0, %v2649
          %v2651 = vpop.f32.mrf.mxu0
          %2652 = vdwg.mxu0
          %v2654 = vsel %vm2519, %v2510, 0
          %v2657 = vsel %vm2519, %v2518, 0
          %2659 = vmatpush.bf16.xpose.msra.mxu0 0
          %2660 = vmatpush.bf16.xpose.msra.mxu0 0
          %2661 = vmatpush.bf16.xpose.msra.mxu0 0
          %2662 = vmatpush.bf16.xpose.msra.mxu0 0
          %2663 = vmatpush.bf16.xpose.msra.mxu0 0
          %2664 = vmatpush.bf16.xpose.msra.mxu0 0
          %2665 = vmatpush.bf16.xpose.msra.mxu0 0
          %2666 = vmatpush.bf16.xpose.msra.mxu0 %v2657
          %2667 = vmatmul.bf16.gmra.mxu0 %v2654
          %v2668 = vpop.f32.mrf.mxu0
          %v2669 = vadd.f32 0.0, %v2668
          %v2670 = vpop.f32.mrf.mxu0
          %2671 = vdwg.mxu0
          %v2672 = vmul.f32 %v2536, 0.35355338
          %v2673 = vmul.f32 %v2555, 0.35355338
          %v2674 = vmul.f32 %v2574, 0.35355338
          %v2675 = vmul.f32 %v2593, 0.35355338
          %v2676 = vmul.f32 %v2612, 0.35355338
          %v2677 = vmul.f32 %v2631, 0.35355338
          %v2678 = vmul.f32 %v2650, 0.35355338
          %v2679 = vmul.f32 %v2669, 0.35355338
          %v2682 = vperm.slane %v2124, 0
          %v2683 = vperm.slane %v2125, 0
          %v2686 = vadd.f32 %v2672, %v2682
          %v2687 = vadd.f32 %v2673, %v2683
          %v2688 = vadd.f32 %v2674, %v2682
          %v2689 = vadd.f32 %v2675, %v2683
          %v2690 = vadd.f32 %v2676, %v2682
          %v2691 = vadd.f32 %v2677, %v2683
          %v2692 = vadd.f32 %v2678, %v2682
          %v2693 = vadd.f32 %v2679, %v2683
          %v2694 = vsel %vm2519, %v2686, -inf
          %2695 = vmax.xlane.f32.xlu0 %v2694
          %v2696 = vpop.xlane.xlu0 %2695
          %v2697 = vsel %vm2519, %v2687, -inf
          %2698 = vmax.xlane.f32.xlu0 %v2697
          %v2699 = vpop.xlane.xlu0 %2698
          %v2700 = vsel %vm2519, %v2688, -inf
          %2701 = vmax.xlane.f32.xlu0 %v2700
          %v2702 = vpop.xlane.xlu0 %2701
          %v2703 = vsel %vm2519, %v2689, -inf
          %2704 = vmax.xlane.f32.xlu0 %v2703
          %v2705 = vpop.xlane.xlu0 %2704
          %v2706 = vsel %vm2519, %v2690, -inf
          %2707 = vmax.xlane.f32.xlu0 %v2706
          %v2708 = vpop.xlane.xlu0 %2707
          %v2709 = vsel %vm2519, %v2691, -inf
          %2710 = vmax.xlane.f32.xlu0 %v2709
          %v2711 = vpop.xlane.xlu0 %2710
          %v2712 = vsel %vm2519, %v2692, -inf
          %2713 = vmax.xlane.f32.xlu0 %v2712
          %v2714 = vpop.xlane.xlu0 %2713
          %v2715 = vsel %vm2519, %v2693, -inf
          %2716 = vmax.xlane.f32.xlu0 %v2715
          %v2717 = vpop.xlane.xlu0 %2716
          %v2718 = vsub.f32 %v2686, %v2696
          %v2719 = vsub.f32 %v2687, %v2699
          %v2720 = vsub.f32 %v2688, %v2702
          %v2721 = vsub.f32 %v2689, %v2705
          %v2722 = vsub.f32 %v2690, %v2708
          %v2723 = vsub.f32 %v2691, %v2711
          %v2724 = vsub.f32 %v2692, %v2714
          %v2725 = vsub.f32 %v2693, %v2717
          %v2726 = vmul.f32 %v2718, 1.442695
          %v2727 = vpow.pop %v2726
          %v2728 = vmul.f32 %v2719, 1.442695
          %v2729 = vpow.pop %v2728
          %v2730 = vmul.f32 %v2720, 1.442695
          %v2731 = vpow.pop %v2730
          %v2732 = vmul.f32 %v2721, 1.442695
          %v2733 = vpow.pop %v2732
          %v2734 = vmul.f32 %v2722, 1.442695
          %v2735 = vpow.pop %v2734
          %v2736 = vmul.f32 %v2723, 1.442695
          %v2737 = vpow.pop %v2736
          %v2738 = vmul.f32 %v2724, 1.442695
          %v2739 = vpow.pop %v2738
          %v2740 = vmul.f32 %v2725, 1.442695
          %v2741 = vpow.pop %v2740
          %v2742 = vsel %vm2519, %v2727, 0.0
          %2743 = vadd.xlane.f32.xlu0 %v2742
          %v2744 = vpop.xlane.xlu0 %2743
          %v2745 = vsel %vm2519, %v2729, 0.0
          %2746 = vadd.xlane.f32.xlu0 %v2745
          %v2747 = vpop.xlane.xlu0 %2746
          %v2748 = vsel %vm2519, %v2731, 0.0
          %2749 = vadd.xlane.f32.xlu0 %v2748
          %v2750 = vpop.xlane.xlu0 %2749
          %v2751 = vsel %vm2519, %v2733, 0.0
          %2752 = vadd.xlane.f32.xlu0 %v2751
          %v2753 = vpop.xlane.xlu0 %2752
          %v2754 = vsel %vm2519, %v2735, 0.0
          %2755 = vadd.xlane.f32.xlu0 %v2754
          %v2756 = vpop.xlane.xlu0 %2755
          %v2757 = vsel %vm2519, %v2737, 0.0
          %2758 = vadd.xlane.f32.xlu0 %v2757
          %v2759 = vpop.xlane.xlu0 %2758
          %v2760 = vsel %vm2519, %v2739, 0.0
          %2761 = vadd.xlane.f32.xlu0 %v2760
          %v2762 = vpop.xlane.xlu0 %2761
          %v2763 = vsel %vm2519, %v2741, 0.0
          %2764 = vadd.xlane.f32.xlu0 %v2763
          %v2765 = vpop.xlane.xlu0 %2764
          %v2766 = vrcp.pop %v2744
          %v2767 = vrcp.pop %v2747
          %v2768 = vrcp.pop %v2750
          %v2769 = vrcp.pop %v2753
          %v2770 = vrcp.pop %v2756
          %v2771 = vrcp.pop %v2759
          %v2772 = vrcp.pop %v2762
          %v2773 = vrcp.pop %v2765
          %v2774 = vmul.f32 %v2727, %v2766
          %v2775 = vmul.f32 %v2729, %v2767
          %v2776 = vmul.f32 %v2731, %v2768
          %v2777 = vmul.f32 %v2733, %v2769
          %v2778 = vmul.f32 %v2735, %v2770
          %v2779 = vmul.f32 %v2737, %v2771
          %v2780 = vmul.f32 %v2739, %v2772
          %v2781 = vmul.f32 %v2741, %v2773
          %v2782 = vpack.c.bf16 %v2774, %v2774
          %v2783 = vpack.c.bf16 %v2775, %v2775
          %v2784 = vpack.c.bf16 %v2776, %v2776
          %v2785 = vpack.c.bf16 %v2777, %v2777
          %v2786 = vpack.c.bf16 %v2778, %v2778
          %v2787 = vpack.c.bf16 %v2779, %v2779
          %v2788 = vpack.c.bf16 %v2780, %v2780
          %v2789 = vpack.c.bf16 %v2781, %v2781
          %v2790 = vpack.c.bf16 %v2421, %v2421
          %v2791 = vpack.c.bf16 %v2423, %v2423
          %v2792 = vpack.c.bf16 %v2447, %v2447
          %v2793 = vpack.c.bf16 %v2449, %v2449
          %v2794 = vpack.c.bf16 %v2473, %v2473
          %v2795 = vpack.c.bf16 %v2475, %v2475
          %v2796 = vpack.c.bf16 %v2499, %v2499
          %v2797 = vpack.c.bf16 %v2501, %v2501
          %v2799 = vsel %vm2519, %v2782, 0
          %vm2801 = vcmask 1043456
          %v2803 = vsel %vm2801, %v2790, 0
          %2805 = vmatpush.bf16.msra.mxu0 0
          %2806 = vmatpush.bf16.msra.mxu0 0
          %2807 = vmatpush.bf16.msra.mxu0 0
          %2808 = vmatpush.bf16.msra.mxu0 0
          %2809 = vmatpush.bf16.msra.mxu0 0
          %2810 = vmatpush.bf16.msra.mxu0 0
          %2811 = vmatpush.bf16.msra.mxu0 0
          %2812 = vmatpush.bf16.msra.mxu0 %v2803
          %2813 = vmatmul.bf16.gmra.mxu0 %v2799
          %v2814 = vpop.f32.mrf.mxu0
          %v2815 = vadd.f32 0.0, %v2814
          %v2816 = vpop.f32.mrf.mxu0
          %2817 = vdwg.mxu0
          %v2819 = vsel %vm2519, %v2783, 0
          %v2822 = vsel %vm2801, %v2791, 0
          %2824 = vmatpush.bf16.msra.mxu0 0
          %2825 = vmatpush.bf16.msra.mxu0 0
          %2826 = vmatpush.bf16.msra.mxu0 0
          %2827 = vmatpush.bf16.msra.mxu0 0
          %2828 = vmatpush.bf16.msra.mxu0 0
          %2829 = vmatpush.bf16.msra.mxu0 0
          %2830 = vmatpush.bf16.msra.mxu0 0
          %2831 = vmatpush.bf16.msra.mxu0 %v2822
          %2832 = vmatmul.bf16.gmra.mxu0 %v2819
          %v2833 = vpop.f32.mrf.mxu0
          %v2834 = vadd.f32 0.0, %v2833
          %v2835 = vpop.f32.mrf.mxu0
          %2836 = vdwg.mxu0
          %v2838 = vsel %vm2519, %v2784, 0
          %v2841 = vsel %vm2801, %v2792, 0
          %2843 = vmatpush.bf16.msra.mxu0 0
          %2844 = vmatpush.bf16.msra.mxu0 0
          %2845 = vmatpush.bf16.msra.mxu0 0
          %2846 = vmatpush.bf16.msra.mxu0 0
          %2847 = vmatpush.bf16.msra.mxu0 0
          %2848 = vmatpush.bf16.msra.mxu0 0
          %2849 = vmatpush.bf16.msra.mxu0 0
          %2850 = vmatpush.bf16.msra.mxu0 %v2841
          %2851 = vmatmul.bf16.gmra.mxu0 %v2838
          %v2852 = vpop.f32.mrf.mxu0
          %v2853 = vadd.f32 0.0, %v2852
          %v2854 = vpop.f32.mrf.mxu0
          %2855 = vdwg.mxu0
          %v2857 = vsel %vm2519, %v2785, 0
          %v2860 = vsel %vm2801, %v2793, 0
          %2862 = vmatpush.bf16.msra.mxu0 0
          %2863 = vmatpush.bf16.msra.mxu0 0
          %2864 = vmatpush.bf16.msra.mxu0 0
          %2865 = vmatpush.bf16.msra.mxu0 0
          %2866 = vmatpush.bf16.msra.mxu0 0
          %2867 = vmatpush.bf16.msra.mxu0 0
          %2868 = vmatpush.bf16.msra.mxu0 0
          %2869 = vmatpush.bf16.msra.mxu0 %v2860
          %2870 = vmatmul.bf16.gmra.mxu0 %v2857
          %v2871 = vpop.f32.mrf.mxu0
          %v2872 = vadd.f32 0.0, %v2871
          %v2873 = vpop.f32.mrf.mxu0
          %2874 = vdwg.mxu0
          %v2876 = vsel %vm2519, %v2786, 0
          %v2879 = vsel %vm2801, %v2794, 0
          %2881 = vmatpush.bf16.msra.mxu0 0
          %2882 = vmatpush.bf16.msra.mxu0 0
          %2883 = vmatpush.bf16.msra.mxu0 0
          %2884 = vmatpush.bf16.msra.mxu0 0
          %2885 = vmatpush.bf16.msra.mxu0 0
          %2886 = vmatpush.bf16.msra.mxu0 0
          %2887 = vmatpush.bf16.msra.mxu0 0
          %2888 = vmatpush.bf16.msra.mxu0 %v2879
          %2889 = vmatmul.bf16.gmra.mxu0 %v2876
          %v2890 = vpop.f32.mrf.mxu0
          %v2891 = vadd.f32 0.0, %v2890
          %v2892 = vpop.f32.mrf.mxu0
          %2893 = vdwg.mxu0
          %v2895 = vsel %vm2519, %v2787, 0
          %v2898 = vsel %vm2801, %v2795, 0
          %2900 = vmatpush.bf16.msra.mxu0 0
          %2901 = vmatpush.bf16.msra.mxu0 0
          %2902 = vmatpush.bf16.msra.mxu0 0
          %2903 = vmatpush.bf16.msra.mxu0 0
          %2904 = vmatpush.bf16.msra.mxu0 0
          %2905 = vmatpush.bf16.msra.mxu0 0
          %2906 = vmatpush.bf16.msra.mxu0 0
          %2907 = vmatpush.bf16.msra.mxu0 %v2898
          %2908 = vmatmul.bf16.gmra.mxu0 %v2895
          %v2909 = vpop.f32.mrf.mxu0
          %v2910 = vadd.f32 0.0, %v2909
          %v2911 = vpop.f32.mrf.mxu0
          %2912 = vdwg.mxu0
          %v2914 = vsel %vm2519, %v2788, 0
          %v2917 = vsel %vm2801, %v2796, 0
          %2919 = vmatpush.bf16.msra.mxu0 0
          %2920 = vmatpush.bf16.msra.mxu0 0
          %2921 = vmatpush.bf16.msra.mxu0 0
          %2922 = vmatpush.bf16.msra.mxu0 0
          %2923 = vmatpush.bf16.msra.mxu0 0
          %2924 = vmatpush.bf16.msra.mxu0 0
          %2925 = vmatpush.bf16.msra.mxu0 0
          %2926 = vmatpush.bf16.msra.mxu0 %v2917
          %2927 = vmatmul.bf16.gmra.mxu0 %v2914
          %v2928 = vpop.f32.mrf.mxu0
          %v2929 = vadd.f32 0.0, %v2928
          %v2930 = vpop.f32.mrf.mxu0
          %2931 = vdwg.mxu0
          %v2933 = vsel %vm2519, %v2789, 0
          %v2936 = vsel %vm2801, %v2797, 0
          %2938 = vmatpush.bf16.msra.mxu0 0
          %2939 = vmatpush.bf16.msra.mxu0 0
          %2940 = vmatpush.bf16.msra.mxu0 0
          %2941 = vmatpush.bf16.msra.mxu0 0
          %2942 = vmatpush.bf16.msra.mxu0 0
          %2943 = vmatpush.bf16.msra.mxu0 0
          %2944 = vmatpush.bf16.msra.mxu0 0
          %2945 = vmatpush.bf16.msra.mxu0 %v2936
          %2946 = vmatmul.bf16.gmra.mxu0 %v2933
          %v2947 = vpop.f32.mrf.mxu0
          %v2948 = vadd.f32 0.0, %v2947
          %v2949 = vpop.f32.mrf.mxu0
          %2950 = vdwg.mxu0
          %v2951 = vpack.c.bf16 %v2815, %v2815
          %v2952 = vpack.c.bf16 %v2834, %v2834
          %v2953 = vpack.c.bf16 %v2853, %v2853
          %v2954 = vpack.c.bf16 %v2872, %v2872
          %v2955 = vpack.c.bf16 %v2891, %v2891
          %v2956 = vpack.c.bf16 %v2910, %v2910
          %v2957 = vpack.c.bf16 %v2929, %v2929
          %v2958 = vpack.c.bf16 %v2948, %v2948
          %v2961 = vunpack.c.l.b16 %v2951
          %v2962 = vunpack.c.l.b16 %v2952
          %v2963 = vpack.c.b16 %v2962, %v2961
          %v2965 = vsel %vm2519, %v2963, 0
          %v2968 = vsel %vm2801, %v2174, 0
          %2970 = vmatpush.bf16.msra.mxu0 0
          %2971 = vmatpush.bf16.msra.mxu0 0
          %2972 = vmatpush.bf16.msra.mxu0 0
          %2973 = vmatpush.bf16.msra.mxu0 0
          %2974 = vmatpush.bf16.msra.mxu0 0
          %2975 = vmatpush.bf16.msra.mxu0 0
          %2976 = vmatpush.bf16.msra.mxu0 0
          %2977 = vmatpush.bf16.msra.mxu0 %v2968
          %2978 = vmatmul.bf16.gmra.mxu0 %v2965
          %v2979 = vpop.f32.mrf.mxu0
          %v2980 = vadd.f32 0.0, %v2979
          %v2981 = vpop.f32.mrf.mxu0
          %v2982 = vadd.f32 0.0, %v2981
          %2983 = vdwg.mxu0
          %v2986 = vunpack.c.l.b16 %v2953
          %v2987 = vunpack.c.l.b16 %v2954
          %v2988 = vpack.c.b16 %v2987, %v2986
          %v2990 = vsel %vm2519, %v2988, 0
          %v2993 = vsel %vm2801, %v2175, 0
          %2995 = vmatpush.bf16.msra.mxu0 0
          %2996 = vmatpush.bf16.msra.mxu0 0
          %2997 = vmatpush.bf16.msra.mxu0 0
          %2998 = vmatpush.bf16.msra.mxu0 0
          %2999 = vmatpush.bf16.msra.mxu0 0
          %3000 = vmatpush.bf16.msra.mxu0 0
          %3001 = vmatpush.bf16.msra.mxu0 0
          %3002 = vmatpush.bf16.msra.mxu0 %v2993
          %3003 = vmatmul.bf16.gmra.mxu0 %v2990
          %v3004 = vpop.f32.mrf.mxu0
          %v3005 = vadd.f32 0.0, %v3004
          %v3006 = vpop.f32.mrf.mxu0
          %v3007 = vadd.f32 0.0, %v3006
          %3008 = vdwg.mxu0
          %v3011 = vunpack.c.l.b16 %v2955
          %v3012 = vunpack.c.l.b16 %v2956
          %v3013 = vpack.c.b16 %v3012, %v3011
          %v3015 = vsel %vm2519, %v3013, 0
          %v3018 = vsel %vm2801, %v2176, 0
          %3020 = vmatpush.bf16.msra.mxu0 0
          %3021 = vmatpush.bf16.msra.mxu0 0
          %3022 = vmatpush.bf16.msra.mxu0 0
          %3023 = vmatpush.bf16.msra.mxu0 0
          %3024 = vmatpush.bf16.msra.mxu0 0
          %3025 = vmatpush.bf16.msra.mxu0 0
          %3026 = vmatpush.bf16.msra.mxu0 0
          %3027 = vmatpush.bf16.msra.mxu0 %v3018
          %3028 = vmatmul.bf16.gmra.mxu0 %v3015
          %v3029 = vpop.f32.mrf.mxu0
          %v3030 = vadd.f32 0.0, %v3029
          %v3031 = vpop.f32.mrf.mxu0
          %v3032 = vadd.f32 0.0, %v3031
          %3033 = vdwg.mxu0
          %v3036 = vunpack.c.l.b16 %v2957
          %v3037 = vunpack.c.l.b16 %v2958
          %v3038 = vpack.c.b16 %v3037, %v3036
          %v3040 = vsel %vm2519, %v3038, 0
          %v3043 = vsel %vm2801, %v2177, 0
          %3045 = vmatpush.bf16.msra.mxu0 0
          %3046 = vmatpush.bf16.msra.mxu0 0
          %3047 = vmatpush.bf16.msra.mxu0 0
          %3048 = vmatpush.bf16.msra.mxu0 0
          %3049 = vmatpush.bf16.msra.mxu0 0
          %3050 = vmatpush.bf16.msra.mxu0 0
          %3051 = vmatpush.bf16.msra.mxu0 0
          %3052 = vmatpush.bf16.msra.mxu0 %v3043
          %3053 = vmatmul.bf16.gmra.mxu0 %v3040
          %v3054 = vpop.f32.mrf.mxu0
          %v3055 = vadd.f32 0.0, %v3054
          %v3056 = vpop.f32.mrf.mxu0
          %v3057 = vadd.f32 0.0, %v3056
          %3058 = vdwg.mxu0
          %v3059 = vsel %vm2199, %v2980, 0.0
          %v3060 = vsel %vm2199, %v3005, 0.0
          %v3061 = vadd.f32 %v3059, %v3060
          %v3062 = vsel %vm2199, %v3030, 0.0
          %v3063 = vadd.f32 %v3061, %v3062
          %v3064 = vsel %vm2199, %v3055, 0.0
          %v3065 = vadd.f32 %v3063, %v3064
          %v3066 = vsel %vm2199, %v2982, 0.0
          %v3067 = vsel %vm2199, %v3007, 0.0
          %v3068 = vadd.f32 %v3066, %v3067
          %v3069 = vsel %vm2199, %v3032, 0.0
          %v3070 = vadd.f32 %v3068, %v3069
          %v3071 = vsel %vm2199, %v3057, 0.0
          %v3072 = vadd.f32 %v3070, %v3071
          %v3073 = vadd.f32 %v3065, %v2122
          %v3074 = vadd.f32 %v3072, %v2123
          %v3075 = vsel %vm2199, %v3073, 0.0
          %3076 = vadd.xlane.f32.xlu0 %v3075
          %v3077 = vpop.xlane.xlu0 %3076
          %v3078 = vsel %vm2199, %v3074, 0.0
          %3079 = vadd.xlane.f32.xlu0 %v3078
          %v3080 = vpop.xlane.xlu0 %3079
          %v3081 = vrcp.pop 32.0
          %v3082 = vmul.f32 32.0, %v3081
          %v3083 = vsub.f32 1.0, %v3082
          %v3084 = vmul.f32 %v3081, %v3083
          %v3085 = vadd.f32 %v3081, %v3084
          %vm3086 = vweird.f32 %v3081
          %v3087 = vsel %vm3086, %v3081, %v3085
          %v3088 = vmul.f32 %v3077, %v3087
          %v3089 = vmul.f32 %v3080, %v3087
          %v3090 = vsub.f32 %v3073, %v3088
          %v3091 = vsub.f32 %v3074, %v3089
          %v3092 = vmul.f32 %v3090, %v3090
          %v3093 = vmul.f32 %v3091, %v3091
          %v3094 = vsel %vm2199, %v3092, 0.0
          %3095 = vadd.xlane.f32.xlu0 %v3094
          %v3096 = vpop.xlane.xlu0 %3095
          %v3097 = vsel %vm2199, %v3093, 0.0
          %3098 = vadd.xlane.f32.xlu0 %v3097
          %v3099 = vpop.xlane.xlu0 %3098
          %v3100 = vmul.f32 %v3096, %v3087
          %v3101 = vmul.f32 %v3099, %v3087
          %v3102 = vadd.f32 %v3100, 1e-06
          %v3103 = vadd.f32 %v3101, 1e-06
          %v3104 = vrsqrt.pop %v3102
          %v3105 = vmul.f32 %v3104, %v3102
          %v3106 = vmul.f32 %v3105, %v3104
          %v3107 = vmul.f32 0.5, %v3106
          %v3108 = vsub.f32 1.5, %v3107
          %v3109 = vmul.f32 %v3104, %v3108
          %vm3110 = vweird.f32 %v3102
          %vm3111 = vweird.f32 %v3104
          %vm3112 = vmor %vm3110, %vm3111
          %v3113 = vsel %vm3112, %v3104, %v3109
          %v3114 = vrsqrt.pop %v3103
          %v3115 = vmul.f32 %v3114, %v3103
          %v3116 = vmul.f32 %v3115, %v3114
          %v3117 = vmul.f32 0.5, %v3116
          %v3118 = vsub.f32 1.5, %v3117
          %v3119 = vmul.f32 %v3114, %v3118
          %vm3120 = vweird.f32 %v3103
          %vm3121 = vweird.f32 %v3114
          %vm3122 = vmor %vm3120, %vm3121
          %v3123 = vsel %vm3122, %v3114, %v3119
          %v3124 = vmul.f32 %v3090, %v3113
          %v3125 = vmul.f32 %v3091, %v3123
          %v3127 = vperm.slane %v2178, 0
          %v3129 = vmul.f32 %v3124, %v3127
          %v3130 = vmul.f32 %v3125, %v3127
          %v3132 = vperm.slane %v2179, 0
          %v3134 = vadd.f32 %v3129, %v3132
          %v3135 = vadd.f32 %v3130, %v3132
          %v3136 = vld [vmem:[%s1877] sm:$0xf]
          %v3137 = vld [vmem:[%s1877 + $0x4] sm:$0xf]
          %v3138 = vld [vmem:[%s1877 + $0x8] sm:$0xf]
          %v3139 = vld [vmem:[%s1877 + $0xc] sm:$0xf]
          %v3140 = vld [vmem:[%s1884] sm:$0x1]
          %v3141 = vld [vmem:[%s1893] sm:$0xf]
          %v3142 = vld [vmem:[%s1893 + $0x4] sm:$0xf]
          %v3143 = vld [vmem:[%s1893 + $0x8] sm:$0xf]
          %v3144 = vld [vmem:[%s1893 + $0xc] sm:$0xf]
          %v3145 = vld [vmem:[%s1893 + $0x10] sm:$0xf]
          %v3146 = vld [vmem:[%s1893 + $0x14] sm:$0xf]
          %v3147 = vld [vmem:[%s1893 + $0x18] sm:$0xf]
          %v3148 = vld [vmem:[%s1893 + $0x1c] sm:$0xf]
          %v3149 = vld [vmem:[%s1900] sm:$0x1]
          %v3150 = vld [vmem:[%s1907] sm:$0x1]
          %v3151 = vld [vmem:[%s1914] sm:$0x1]
          %v3152 = vpack.c.bf16 %v3135, %v3134
          %v3154 = vperm.slane %v3140, 0
          %v3160 = vunpack.c.l.b16 %v3136
          %v3161 = vunpack.c.l.b16 %v3137
          %v3162 = vunpack.c.l.b16 %v3138
          %v3163 = vunpack.c.l.b16 %v3139
          %v3164 = vpack.c.b16 %v3161, %v3160
          %v3165 = vpack.c.b16 %v3163, %v3162
          %v3169 = vsel %vm2199, %v3152, 0
          %3171 = vmatpush.bf16.msra.mxu0 0
          %3172 = vmatpush.bf16.msra.mxu0 0
          %3173 = vmatpush.bf16.msra.mxu0 0
          %3174 = vmatpush.bf16.msra.mxu0 0
          %3175 = vmatpush.bf16.msra.mxu0 0
          %3176 = vmatpush.bf16.msra.mxu0 0
          %3177 = vmatpush.bf16.msra.mxu0 %v3165
          %3178 = vmatpush.bf16.msra.mxu0 %v3164
          %3179 = vmatmul.bf16.gmra.mxu0 %v3169
          %v3180 = vpop.f32.mrf.mxu0
          %v3181 = vadd.f32 %v3154, %v3180
          %v3182 = vpop.f32.mrf.mxu0
          %v3183 = vadd.f32 %v3154, %v3182
          %3184 = vdwg.mxu0
          %v3185 = vmax.f32 %v3181, 0.0
          %v3186 = vmax.f32 %v3183, 0.0
          %v3187 = vpack.c.bf16 %v3186, %v3185
          %v3189 = vperm.slane %v3149, 0
          %v3199 = vunpack.c.l.b16 %v3141
          %v3200 = vunpack.c.l.b16 %v3142
          %v3201 = vunpack.c.l.b16 %v3143
          %v3202 = vunpack.c.l.b16 %v3144
          %v3203 = vunpack.c.l.b16 %v3145
          %v3204 = vunpack.c.l.b16 %v3146
          %v3205 = vunpack.c.l.b16 %v3147
          %v3206 = vunpack.c.l.b16 %v3148
          %v3207 = vpack.c.b16 %v3200, %v3199
          %v3208 = vpack.c.b16 %v3202, %v3201
          %v3209 = vpack.c.b16 %v3204, %v3203
          %v3210 = vpack.c.b16 %v3206, %v3205
          %vm3215 = vcmask 523264
          %v3217 = vsel %vm3215, %v3187, 0
          %3219 = vmatpush.bf16.msra.mxu0 0
          %3220 = vmatpush.bf16.msra.mxu0 0
          %3221 = vmatpush.bf16.msra.mxu0 0
          %3222 = vmatpush.bf16.msra.mxu0 0
          %3223 = vmatpush.bf16.msra.mxu0 %v3210
          %3224 = vmatpush.bf16.msra.mxu0 %v3209
          %3225 = vmatpush.bf16.msra.mxu0 %v3208
          %3226 = vmatpush.bf16.msra.mxu0 %v3207
          %3227 = vmatmul.bf16.gmra.mxu0 %v3217
          %v3228 = vpop.f32.mrf.mxu0
          %v3229 = vadd.f32 %v3189, %v3228
          %v3230 = vpop.f32.mrf.mxu0
          %v3231 = vadd.f32 %v3189, %v3230
          %3232 = vdwg.mxu0
          %v3233 = vadd.f32 %v3229, %v3134
          %v3234 = vadd.f32 %v3231, %v3135
          %v3235 = vsel %vm2199, %v3233, 0.0
          %3236 = vadd.xlane.f32.xlu0 %v3235
          %v3237 = vpop.xlane.xlu0 %3236
          %v3238 = vsel %vm2199, %v3234, 0.0
          %3239 = vadd.xlane.f32.xlu0 %v3238
          %v3240 = vpop.xlane.xlu0 %3239
          %v3241 = vmul.f32 %v3237, %v3087
          %v3242 = vmul.f32 %v3240, %v3087
          %v3243 = vsub.f32 %v3233, %v3241
          %v3244 = vsub.f32 %v3234, %v3242
          %v3245 = vmul.f32 %v3243, %v3243
          %v3246 = vmul.f32 %v3244, %v3244
          %v3247 = vsel %vm2199, %v3245, 0.0
          %3248 = vadd.xlane.f32.xlu0 %v3247
          %v3249 = vpop.xlane.xlu0 %3248
          %v3250 = vsel %vm2199, %v3246, 0.0
          %3251 = vadd.xlane.f32.xlu0 %v3250
          %v3252 = vpop.xlane.xlu0 %3251
          %v3253 = vmul.f32 %v3249, %v3087
          %v3254 = vmul.f32 %v3252, %v3087
          %v3255 = vadd.f32 %v3253, 1e-06
          %v3256 = vadd.f32 %v3254, 1e-06
          %v3257 = vrsqrt.pop %v3255
          %v3258 = vmul.f32 %v3257, %v3255
          %v3259 = vmul.f32 %v3258, %v3257
          %v3260 = vmul.f32 0.5, %v3259
          %v3261 = vsub.f32 1.5, %v3260
          %v3262 = vmul.f32 %v3257, %v3261
          %vm3263 = vweird.f32 %v3255
          %vm3264 = vweird.f32 %v3257
          %vm3265 = vmor %vm3263, %vm3264
          %v3266 = vsel %vm3265, %v3257, %v3262
          %v3267 = vrsqrt.pop %v3256
          %v3268 = vmul.f32 %v3267, %v3256
          %v3269 = vmul.f32 %v3268, %v3267
          %v3270 = vmul.f32 0.5, %v3269
          %v3271 = vsub.f32 1.5, %v3270
          %v3272 = vmul.f32 %v3267, %v3271
          %vm3273 = vweird.f32 %v3256
          %vm3274 = vweird.f32 %v3267
          %vm3275 = vmor %vm3273, %vm3274
          %v3276 = vsel %vm3275, %v3267, %v3272
          %v3277 = vmul.f32 %v3243, %v3266
          %v3278 = vmul.f32 %v3244, %v3276
          %v3280 = vperm.slane %v3150, 0
          %v3282 = vmul.f32 %v3277, %v3280
          %v3283 = vmul.f32 %v3278, %v3280
          %v3285 = vperm.slane %v3151, 0
          %v3287 = vadd.f32 %v3282, %v3285
          %v3288 = vadd.f32 %v3283, %v3285
          %3289 = vst.msk [vmem:[#allocation2] sm:$0xff] %vm2199, %v3287
          %3290 = vst.msk [vmem:[#allocation2 + $0x8] sm:$0xff] %vm2199, %v3288
        $region172: #{_lambda_.1} parent=159 // pred_fallthru
          _
        %p3291 = scmp.ge.s32.totalorder %s83, 2
        // Predicated region
        $region173: #{_lambda_.1} parent=159 // pred_check
          %p3292 = pneg %p3291
        $region174: #{_lambda_.1} parent=159 // pred_check_branch
          %3294 = sbr.rel (%p3292) target = $region176
        $region175: #{_lambda_.1} parent=159 // pred_region
          %v3295 = vld [vmem:[#allocation3] sm:$0xff]
          %v3296 = vld [vmem:[#allocation3 + $0x8] sm:$0xff]
          %v3297 = vld [vmem:[#allocation2] sm:$0xff]
          %v3298 = vld [vmem:[#allocation2 + $0x8] sm:$0xff]
          %v3299 = vld [vmem:[%s7] sm:$0xff]
          %v3300 = vld [vmem:[%s7 + $0x8] sm:$0xff]
          %v3301 = vld [vmem:[%s1924] sm:$0xf]
          %v3302 = vld [vmem:[%s1924 + $0x4] sm:$0xf]
          %v3303 = vld [vmem:[%s1924 + $0x8] sm:$0xf]
          %v3304 = vld [vmem:[%s1924 + $0xc] sm:$0xf]
          %v3305 = vld [vmem:[%s1924 + $0x10] sm:$0xf]
          %v3306 = vld [vmem:[%s1924 + $0x14] sm:$0xf]
          %v3307 = vld [vmem:[%s1924 + $0x18] sm:$0xf]
          %v3308 = vld [vmem:[%s1924 + $0x1c] sm:$0xf]
          %v3309 = vld [vmem:[%s1924 + $0x20] sm:$0xf]
          %v3310 = vld [vmem:[%s1924 + $0x24] sm:$0xf]
          %v3311 = vld [vmem:[%s1924 + $0x28] sm:$0xf]
          %v3312 = vld [vmem:[%s1924 + $0x2c] sm:$0xf]
          %v3313 = vld [vmem:[%s1924 + $0x30] sm:$0xf]
          %v3314 = vld [vmem:[%s1924 + $0x34] sm:$0xf]
          %v3315 = vld [vmem:[%s1924 + $0x38] sm:$0xf]
          %v3316 = vld [vmem:[%s1924 + $0x3c] sm:$0xf]
          %v3317 = vld [vmem:[%s1935] sm:$0xf]
          %v3318 = vld [vmem:[%s1935 + $0x4] sm:$0xf]
          %v3319 = vld [vmem:[%s1935 + $0x8] sm:$0xf]
          %v3320 = vld [vmem:[%s1935 + $0xc] sm:$0xf]
          %v3321 = vld [vmem:[%s1935 + $0x10] sm:$0xf]
          %v3322 = vld [vmem:[%s1935 + $0x14] sm:$0xf]
          %v3323 = vld [vmem:[%s1935 + $0x18] sm:$0xf]
          %v3324 = vld [vmem:[%s1935 + $0x1c] sm:$0xf]
          %v3325 = vld [vmem:[%s1935 + $0x20] sm:$0xf]
          %v3326 = vld [vmem:[%s1935 + $0x24] sm:$0xf]
          %v3327 = vld [vmem:[%s1935 + $0x28] sm:$0xf]
          %v3328 = vld [vmem:[%s1935 + $0x2c] sm:$0xf]
          %v3329 = vld [vmem:[%s1935 + $0x30] sm:$0xf]
          %v3330 = vld [vmem:[%s1935 + $0x34] sm:$0xf]
          %v3331 = vld [vmem:[%s1935 + $0x38] sm:$0xf]
          %v3332 = vld [vmem:[%s1935 + $0x3c] sm:$0xf]
          %v3333 = vld [vmem:[%s1946] sm:$0xf]
          %v3334 = vld [vmem:[%s1946 + $0x4] sm:$0xf]
          %v3335 = vld [vmem:[%s1946 + $0x8] sm:$0xf]
          %v3336 = vld [vmem:[%s1946 + $0xc] sm:$0xf]
          %v3337 = vld [vmem:[%s1946 + $0x10] sm:$0xf]
          %v3338 = vld [vmem:[%s1946 + $0x14] sm:$0xf]
          %v3339 = vld [vmem:[%s1946 + $0x18] sm:$0xf]
          %v3340 = vld [vmem:[%s1946 + $0x1c] sm:$0xf]
          %v3341 = vld [vmem:[%s1946 + $0x20] sm:$0xf]
          %v3342 = vld [vmem:[%s1946 + $0x24] sm:$0xf]
          %v3343 = vld [vmem:[%s1946 + $0x28] sm:$0xf]
          %v3344 = vld [vmem:[%s1946 + $0x2c] sm:$0xf]
          %v3345 = vld [vmem:[%s1946 + $0x30] sm:$0xf]
          %v3346 = vld [vmem:[%s1946 + $0x34] sm:$0xf]
          %v3347 = vld [vmem:[%s1946 + $0x38] sm:$0xf]
          %v3348 = vld [vmem:[%s1946 + $0x3c] sm:$0xf]
          %v3349 = vld [vmem:[%s1957] sm:$0xf]
          %v3350 = vld [vmem:[%s1957 + $0x4] sm:$0xf]
          %v3351 = vld [vmem:[%s1957 + $0x8] sm:$0xf]
          %v3352 = vld [vmem:[%s1957 + $0xc] sm:$0xf]
          %v3353 = vld [vmem:[%s1966] sm:$0x1]
          %v3354 = vld [vmem:[%s1975] sm:$0x1]
          %v3355 = vpack.c.bf16 %v3295, %v3295
          %v3356 = vpack.c.bf16 %v3296, %v3296
          %v3359 = vunpack.c.l.b16 %v3355
          %v3360 = vunpack.c.l.b16 %v3356
          %v3361 = vpack.c.b16 %v3360, %v3359
          %v3366 = vunpack.c.l.b16 %v3301
          %v3367 = vunpack.c.l.b16 %v3302
          %v3368 = vunpack.c.l.b16 %v3303
          %v3369 = vunpack.c.l.b16 %v3304
          %v3370 = vpack.c.b16 %v3367, %v3366
          %v3371 = vpack.c.b16 %v3369, %v3368
          %vm3374 = vcmask 261120
          %v3376 = vsel %vm3374, %v3361, 0
          %3378 = vmatpush.bf16.msra.mxu0 0
          %3379 = vmatpush.bf16.msra.mxu0 0
          %3380 = vmatpush.bf16.msra.mxu0 0
          %3381 = vmatpush.bf16.msra.mxu0 0
          %3382 = vmatpush.bf16.msra.mxu0 0
          %3383 = vmatpush.bf16.msra.mxu0 0
          %3384 = vmatpush.bf16.msra.mxu0 %v3371
          %3385 = vmatpush.bf16.msra.mxu0 %v3370
          %3386 = vmatmul.bf16.gmra.mxu0 %v3376
          %v3387 = vpop.f32.mrf.mxu0
          %v3388 = vadd.f32 0.0, %v3387
          %v3389 = vpop.f32.mrf.mxu0
          %v3390 = vadd.f32 0.0, %v3389
          %3391 = vdwg.mxu0
          %v3396 = vunpack.c.l.b16 %v3305
          %v3397 = vunpack.c.l.b16 %v3306
          %v3398 = vunpack.c.l.b16 %v3307
          %v3399 = vunpack.c.l.b16 %v3308
          %v3400 = vpack.c.b16 %v3397, %v3396
          %v3401 = vpack.c.b16 %v3399, %v3398
          %3404 = vmatpush.bf16.msra.mxu0 0
          %3405 = vmatpush.bf16.msra.mxu0 0
          %3406 = vmatpush.bf16.msra.mxu0 0
          %3407 = vmatpush.bf16.msra.mxu0 0
          %3408 = vmatpush.bf16.msra.mxu0 0
          %3409 = vmatpush.bf16.msra.mxu0 0
          %3410 = vmatpush.bf16.msra.mxu0 %v3401
          %3411 = vmatpush.bf16.msra.mxu0 %v3400
          %3412 = vmatmul.bf16.gmra.mxu0 %v3376
          %v3413 = vpop.f32.mrf.mxu0
          %v3414 = vadd.f32 0.0, %v3413
          %v3415 = vpop.f32.mrf.mxu0
          %v3416 = vadd.f32 0.0, %v3415
          %3417 = vdwg.mxu0
          %v3422 = vunpack.c.l.b16 %v3309
          %v3423 = vunpack.c.l.b16 %v3310
          %v3424 = vunpack.c.l.b16 %v3311
          %v3425 = vunpack.c.l.b16 %v3312
          %v3426 = vpack.c.b16 %v3423, %v3422
          %v3427 = vpack.c.b16 %v3425, %v3424
          %3430 = vmatpush.bf16.msra.mxu0 0
          %3431 = vmatpush.bf16.msra.mxu0 0
          %3432 = vmatpush.bf16.msra.mxu0 0
          %3433 = vmatpush.bf16.msra.mxu0 0
          %3434 = vmatpush.bf16.msra.mxu0 0
          %3435 = vmatpush.bf16.msra.mxu0 0
          %3436 = vmatpush.bf16.msra.mxu0 %v3427
          %3437 = vmatpush.bf16.msra.mxu0 %v3426
          %3438 = vmatmul.bf16.gmra.mxu0 %v3376
          %v3439 = vpop.f32.mrf.mxu0
          %v3440 = vadd.f32 0.0, %v3439
          %v3441 = vpop.f32.mrf.mxu0
          %v3442 = vadd.f32 0.0, %v3441
          %3443 = vdwg.mxu0
          %v3448 = vunpack.c.l.b16 %v3313
          %v3449 = vunpack.c.l.b16 %v3314
          %v3450 = vunpack.c.l.b16 %v3315
          %v3451 = vunpack.c.l.b16 %v3316
          %v3452 = vpack.c.b16 %v3449, %v3448
          %v3453 = vpack.c.b16 %v3451, %v3450
          %3456 = vmatpush.bf16.msra.mxu0 0
          %3457 = vmatpush.bf16.msra.mxu0 0
          %3458 = vmatpush.bf16.msra.mxu0 0
          %3459 = vmatpush.bf16.msra.mxu0 0
          %3460 = vmatpush.bf16.msra.mxu0 0
          %3461 = vmatpush.bf16.msra.mxu0 0
          %3462 = vmatpush.bf16.msra.mxu0 %v3453
          %3463 = vmatpush.bf16.msra.mxu0 %v3452
          %3464 = vmatmul.bf16.gmra.mxu0 %v3376
          %v3465 = vpop.f32.mrf.mxu0
          %v3466 = vadd.f32 0.0, %v3465
          %v3467 = vpop.f32.mrf.mxu0
          %v3468 = vadd.f32 0.0, %v3467
          %3469 = vdwg.mxu0
          %v3474 = vunpack.c.l.b16 %v3317
          %v3475 = vunpack.c.l.b16 %v3318
          %v3476 = vunpack.c.l.b16 %v3319
          %v3477 = vunpack.c.l.b16 %v3320
          %v3478 = vpack.c.b16 %v3475, %v3474
          %v3479 = vpack.c.b16 %v3477, %v3476
          %3482 = vmatpush.bf16.msra.mxu0 0
          %3483 = vmatpush.bf16.msra.mxu0 0
          %3484 = vmatpush.bf16.msra.mxu0 0
          %3485 = vmatpush.bf16.msra.mxu0 0
          %3486 = vmatpush.bf16.msra.mxu0 0
          %3487 = vmatpush.bf16.msra.mxu0 0
          %3488 = vmatpush.bf16.msra.mxu0 %v3479
          %3489 = vmatpush.bf16.msra.mxu0 %v3478
          %3490 = vmatmul.bf16.gmra.mxu0 %v3376
          %v3491 = vpop.f32.mrf.mxu0
          %v3492 = vadd.f32 0.0, %v3491
          %v3493 = vpop.f32.mrf.mxu0
          %v3494 = vadd.f32 0.0, %v3493
          %3495 = vdwg.mxu0
          %v3500 = vunpack.c.l.b16 %v3321
          %v3501 = vunpack.c.l.b16 %v3322
          %v3502 = vunpack.c.l.b16 %v3323
          %v3503 = vunpack.c.l.b16 %v3324
          %v3504 = vpack.c.b16 %v3501, %v3500
          %v3505 = vpack.c.b16 %v3503, %v3502
          %3508 = vmatpush.bf16.msra.mxu0 0
          %3509 = vmatpush.bf16.msra.mxu0 0
          %3510 = vmatpush.bf16.msra.mxu0 0
          %3511 = vmatpush.bf16.msra.mxu0 0
          %3512 = vmatpush.bf16.msra.mxu0 0
          %3513 = vmatpush.bf16.msra.mxu0 0
          %3514 = vmatpush.bf16.msra.mxu0 %v3505
          %3515 = vmatpush.bf16.msra.mxu0 %v3504
          %3516 = vmatmul.bf16.gmra.mxu0 %v3376
          %v3517 = vpop.f32.mrf.mxu0
          %v3518 = vadd.f32 0.0, %v3517
          %v3519 = vpop.f32.mrf.mxu0
          %v3520 = vadd.f32 0.0, %v3519
          %3521 = vdwg.mxu0
          %v3526 = vunpack.c.l.b16 %v3325
          %v3527 = vunpack.c.l.b16 %v3326
          %v3528 = vunpack.c.l.b16 %v3327
          %v3529 = vunpack.c.l.b16 %v3328
          %v3530 = vpack.c.b16 %v3527, %v3526
          %v3531 = vpack.c.b16 %v3529, %v3528
          %3534 = vmatpush.bf16.msra.mxu0 0
          %3535 = vmatpush.bf16.msra.mxu0 0
          %3536 = vmatpush.bf16.msra.mxu0 0
          %3537 = vmatpush.bf16.msra.mxu0 0
          %3538 = vmatpush.bf16.msra.mxu0 0
          %3539 = vmatpush.bf16.msra.mxu0 0
          %3540 = vmatpush.bf16.msra.mxu0 %v3531
          %3541 = vmatpush.bf16.msra.mxu0 %v3530
          %3542 = vmatmul.bf16.gmra.mxu0 %v3376
          %v3543 = vpop.f32.mrf.mxu0
          %v3544 = vadd.f32 0.0, %v3543
          %v3545 = vpop.f32.mrf.mxu0
          %v3546 = vadd.f32 0.0, %v3545
          %3547 = vdwg.mxu0
          %v3552 = vunpack.c.l.b16 %v3329
          %v3553 = vunpack.c.l.b16 %v3330
          %v3554 = vunpack.c.l.b16 %v3331
          %v3555 = vunpack.c.l.b16 %v3332
          %v3556 = vpack.c.b16 %v3553, %v3552
          %v3557 = vpack.c.b16 %v3555, %v3554
          %3560 = vmatpush.bf16.msra.mxu0 0
          %3561 = vmatpush.bf16.msra.mxu0 0
          %3562 = vmatpush.bf16.msra.mxu0 0
          %3563 = vmatpush.bf16.msra.mxu0 0
          %3564 = vmatpush.bf16.msra.mxu0 0
          %3565 = vmatpush.bf16.msra.mxu0 0
          %3566 = vmatpush.bf16.msra.mxu0 %v3557
          %3567 = vmatpush.bf16.msra.mxu0 %v3556
          %3568 = vmatmul.bf16.gmra.mxu0 %v3376
          %v3569 = vpop.f32.mrf.mxu0
          %v3570 = vadd.f32 0.0, %v3569
          %v3571 = vpop.f32.mrf.mxu0
          %v3572 = vadd.f32 0.0, %v3571
          %3573 = vdwg.mxu0
          %v3578 = vunpack.c.l.b16 %v3333
          %v3579 = vunpack.c.l.b16 %v3334
          %v3580 = vunpack.c.l.b16 %v3335
          %v3581 = vunpack.c.l.b16 %v3336
          %v3582 = vpack.c.b16 %v3579, %v3578
          %v3583 = vpack.c.b16 %v3581, %v3580
          %3586 = vmatpush.bf16.msra.mxu0 0
          %3587 = vmatpush.bf16.msra.mxu0 0
          %3588 = vmatpush.bf16.msra.mxu0 0
          %3589 = vmatpush.bf16.msra.mxu0 0
          %3590 = vmatpush.bf16.msra.mxu0 0
          %3591 = vmatpush.bf16.msra.mxu0 0
          %3592 = vmatpush.bf16.msra.mxu0 %v3583
          %3593 = vmatpush.bf16.msra.mxu0 %v3582
          %3594 = vmatmul.bf16.gmra.mxu0 %v3376
          %v3595 = vpop.f32.mrf.mxu0
          %v3596 = vadd.f32 0.0, %v3595
          %v3597 = vpop.f32.mrf.mxu0
          %v3598 = vadd.f32 0.0, %v3597
          %3599 = vdwg.mxu0
          %v3604 = vunpack.c.l.b16 %v3337
          %v3605 = vunpack.c.l.b16 %v3338
          %v3606 = vunpack.c.l.b16 %v3339
          %v3607 = vunpack.c.l.b16 %v3340
          %v3608 = vpack.c.b16 %v3605, %v3604
          %v3609 = vpack.c.b16 %v3607, %v3606
          %3612 = vmatpush.bf16.msra.mxu0 0
          %3613 = vmatpush.bf16.msra.mxu0 0
          %3614 = vmatpush.bf16.msra.mxu0 0
          %3615 = vmatpush.bf16.msra.mxu0 0
          %3616 = vmatpush.bf16.msra.mxu0 0
          %3617 = vmatpush.bf16.msra.mxu0 0
          %3618 = vmatpush.bf16.msra.mxu0 %v3609
          %3619 = vmatpush.bf16.msra.mxu0 %v3608
          %3620 = vmatmul.bf16.gmra.mxu0 %v3376
          %v3621 = vpop.f32.mrf.mxu0
          %v3622 = vadd.f32 0.0, %v3621
          %v3623 = vpop.f32.mrf.mxu0
          %v3624 = vadd.f32 0.0, %v3623
          %3625 = vdwg.mxu0
          %v3630 = vunpack.c.l.b16 %v3341
          %v3631 = vunpack.c.l.b16 %v3342
          %v3632 = vunpack.c.l.b16 %v3343
          %v3633 = vunpack.c.l.b16 %v3344
          %v3634 = vpack.c.b16 %v3631, %v3630
          %v3635 = vpack.c.b16 %v3633, %v3632
          %3638 = vmatpush.bf16.msra.mxu0 0
          %3639 = vmatpush.bf16.msra.mxu0 0
          %3640 = vmatpush.bf16.msra.mxu0 0
          %3641 = vmatpush.bf16.msra.mxu0 0
          %3642 = vmatpush.bf16.msra.mxu0 0
          %3643 = vmatpush.bf16.msra.mxu0 0
          %3644 = vmatpush.bf16.msra.mxu0 %v3635
          %3645 = vmatpush.bf16.msra.mxu0 %v3634
          %3646 = vmatmul.bf16.gmra.mxu0 %v3376
          %v3647 = vpop.f32.mrf.mxu0
          %v3648 = vadd.f32 0.0, %v3647
          %v3649 = vpop.f32.mrf.mxu0
          %v3650 = vadd.f32 0.0, %v3649
          %3651 = vdwg.mxu0
          %v3656 = vunpack.c.l.b16 %v3345
          %v3657 = vunpack.c.l.b16 %v3346
          %v3658 = vunpack.c.l.b16 %v3347
          %v3659 = vunpack.c.l.b16 %v3348
          %v3660 = vpack.c.b16 %v3657, %v3656
          %v3661 = vpack.c.b16 %v3659, %v3658
          %3664 = vmatpush.bf16.msra.mxu0 0
          %3665 = vmatpush.bf16.msra.mxu0 0
          %3666 = vmatpush.bf16.msra.mxu0 0
          %3667 = vmatpush.bf16.msra.mxu0 0
          %3668 = vmatpush.bf16.msra.mxu0 0
          %3669 = vmatpush.bf16.msra.mxu0 0
          %3670 = vmatpush.bf16.msra.mxu0 %v3661
          %3671 = vmatpush.bf16.msra.mxu0 %v3660
          %3672 = vmatmul.bf16.gmra.mxu0 %v3376
          %v3673 = vpop.f32.mrf.mxu0
          %v3674 = vadd.f32 0.0, %v3673
          %v3675 = vpop.f32.mrf.mxu0
          %v3676 = vadd.f32 0.0, %v3675
          %3677 = vdwg.mxu0
          %v3678 = vpack.c.bf16 %v3388, %v3388
          %v3679 = vpack.c.bf16 %v3390, %v3390
          %v3680 = vpack.c.bf16 %v3414, %v3414
          %v3681 = vpack.c.bf16 %v3416, %v3416
          %v3682 = vpack.c.bf16 %v3440, %v3440
          %v3683 = vpack.c.bf16 %v3442, %v3442
          %v3684 = vpack.c.bf16 %v3466, %v3466
          %v3685 = vpack.c.bf16 %v3468, %v3468
          %v3686 = vpack.c.bf16 %v3492, %v3492
          %v3687 = vpack.c.bf16 %v3494, %v3494
          %v3688 = vpack.c.bf16 %v3518, %v3518
          %v3689 = vpack.c.bf16 %v3520, %v3520
          %v3690 = vpack.c.bf16 %v3544, %v3544
          %v3691 = vpack.c.bf16 %v3546, %v3546
          %v3692 = vpack.c.bf16 %v3570, %v3570
          %v3693 = vpack.c.bf16 %v3572, %v3572
          %vm3694 = vcmask 64512
          %v3696 = vsel %vm3694, %v3678, 0
          %v3699 = vsel %vm3694, %v3686, 0
          %3701 = vmatpush.bf16.xpose.msra.mxu0 0
          %3702 = vmatpush.bf16.xpose.msra.mxu0 0
          %3703 = vmatpush.bf16.xpose.msra.mxu0 0
          %3704 = vmatpush.bf16.xpose.msra.mxu0 0
          %3705 = vmatpush.bf16.xpose.msra.mxu0 0
          %3706 = vmatpush.bf16.xpose.msra.mxu0 0
          %3707 = vmatpush.bf16.xpose.msra.mxu0 0
          %3708 = vmatpush.bf16.xpose.msra.mxu0 %v3699
          %3709 = vmatmul.bf16.gmra.mxu0 %v3696
          %v3710 = vpop.f32.mrf.mxu0
          %v3711 = vadd.f32 0.0, %v3710
          %v3712 = vpop.f32.mrf.mxu0
          %3713 = vdwg.mxu0
          %v3715 = vsel %vm3694, %v3679, 0
          %v3718 = vsel %vm3694, %v3687, 0
          %3720 = vmatpush.bf16.xpose.msra.mxu0 0
          %3721 = vmatpush.bf16.xpose.msra.mxu0 0
          %3722 = vmatpush.bf16.xpose.msra.mxu0 0
          %3723 = vmatpush.bf16.xpose.msra.mxu0 0
          %3724 = vmatpush.bf16.xpose.msra.mxu0 0
          %3725 = vmatpush.bf16.xpose.msra.mxu0 0
          %3726 = vmatpush.bf16.xpose.msra.mxu0 0
          %3727 = vmatpush.bf16.xpose.msra.mxu0 %v3718
          %3728 = vmatmul.bf16.gmra.mxu0 %v3715
          %v3729 = vpop.f32.mrf.mxu0
          %v3730 = vadd.f32 0.0, %v3729
          %v3731 = vpop.f32.mrf.mxu0
          %3732 = vdwg.mxu0
          %v3734 = vsel %vm3694, %v3680, 0
          %v3737 = vsel %vm3694, %v3688, 0
          %3739 = vmatpush.bf16.xpose.msra.mxu0 0
          %3740 = vmatpush.bf16.xpose.msra.mxu0 0
          %3741 = vmatpush.bf16.xpose.msra.mxu0 0
          %3742 = vmatpush.bf16.xpose.msra.mxu0 0
          %3743 = vmatpush.bf16.xpose.msra.mxu0 0
          %3744 = vmatpush.bf16.xpose.msra.mxu0 0
          %3745 = vmatpush.bf16.xpose.msra.mxu0 0
          %3746 = vmatpush.bf16.xpose.msra.mxu0 %v3737
          %3747 = vmatmul.bf16.gmra.mxu0 %v3734
          %v3748 = vpop.f32.mrf.mxu0
          %v3749 = vadd.f32 0.0, %v3748
          %v3750 = vpop.f32.mrf.mxu0
          %3751 = vdwg.mxu0
          %v3753 = vsel %vm3694, %v3681, 0
          %v3756 = vsel %vm3694, %v3689, 0
          %3758 = vmatpush.bf16.xpose.msra.mxu0 0
          %3759 = vmatpush.bf16.xpose.msra.mxu0 0
          %3760 = vmatpush.bf16.xpose.msra.mxu0 0
          %3761 = vmatpush.bf16.xpose.msra.mxu0 0
          %3762 = vmatpush.bf16.xpose.msra.mxu0 0
          %3763 = vmatpush.bf16.xpose.msra.mxu0 0
          %3764 = vmatpush.bf16.xpose.msra.mxu0 0
          %3765 = vmatpush.bf16.xpose.msra.mxu0 %v3756
          %3766 = vmatmul.bf16.gmra.mxu0 %v3753
          %v3767 = vpop.f32.mrf.mxu0
          %v3768 = vadd.f32 0.0, %v3767
          %v3769 = vpop.f32.mrf.mxu0
          %3770 = vdwg.mxu0
          %v3772 = vsel %vm3694, %v3682, 0
          %v3775 = vsel %vm3694, %v3690, 0
          %3777 = vmatpush.bf16.xpose.msra.mxu0 0
          %3778 = vmatpush.bf16.xpose.msra.mxu0 0
          %3779 = vmatpush.bf16.xpose.msra.mxu0 0
          %3780 = vmatpush.bf16.xpose.msra.mxu0 0
          %3781 = vmatpush.bf16.xpose.msra.mxu0 0
          %3782 = vmatpush.bf16.xpose.msra.mxu0 0
          %3783 = vmatpush.bf16.xpose.msra.mxu0 0
          %3784 = vmatpush.bf16.xpose.msra.mxu0 %v3775
          %3785 = vmatmul.bf16.gmra.mxu0 %v3772
          %v3786 = vpop.f32.mrf.mxu0
          %v3787 = vadd.f32 0.0, %v3786
          %v3788 = vpop.f32.mrf.mxu0
          %3789 = vdwg.mxu0
          %v3791 = vsel %vm3694, %v3683, 0
          %v3794 = vsel %vm3694, %v3691, 0
          %3796 = vmatpush.bf16.xpose.msra.mxu0 0
          %3797 = vmatpush.bf16.xpose.msra.mxu0 0
          %3798 = vmatpush.bf16.xpose.msra.mxu0 0
          %3799 = vmatpush.bf16.xpose.msra.mxu0 0
          %3800 = vmatpush.bf16.xpose.msra.mxu0 0
          %3801 = vmatpush.bf16.xpose.msra.mxu0 0
          %3802 = vmatpush.bf16.xpose.msra.mxu0 0
          %3803 = vmatpush.bf16.xpose.msra.mxu0 %v3794
          %3804 = vmatmul.bf16.gmra.mxu0 %v3791
          %v3805 = vpop.f32.mrf.mxu0
          %v3806 = vadd.f32 0.0, %v3805
          %v3807 = vpop.f32.mrf.mxu0
          %3808 = vdwg.mxu0
          %v3810 = vsel %vm3694, %v3684, 0
          %v3813 = vsel %vm3694, %v3692, 0
          %3815 = vmatpush.bf16.xpose.msra.mxu0 0
          %3816 = vmatpush.bf16.xpose.msra.mxu0 0
          %3817 = vmatpush.bf16.xpose.msra.mxu0 0
          %3818 = vmatpush.bf16.xpose.msra.mxu0 0
          %3819 = vmatpush.bf16.xpose.msra.mxu0 0
          %3820 = vmatpush.bf16.xpose.msra.mxu0 0
          %3821 = vmatpush.bf16.xpose.msra.mxu0 0
          %3822 = vmatpush.bf16.xpose.msra.mxu0 %v3813
          %3823 = vmatmul.bf16.gmra.mxu0 %v3810
          %v3824 = vpop.f32.mrf.mxu0
          %v3825 = vadd.f32 0.0, %v3824
          %v3826 = vpop.f32.mrf.mxu0
          %3827 = vdwg.mxu0
          %v3829 = vsel %vm3694, %v3685, 0
          %v3832 = vsel %vm3694, %v3693, 0
          %3834 = vmatpush.bf16.xpose.msra.mxu0 0
          %3835 = vmatpush.bf16.xpose.msra.mxu0 0
          %3836 = vmatpush.bf16.xpose.msra.mxu0 0
          %3837 = vmatpush.bf16.xpose.msra.mxu0 0
          %3838 = vmatpush.bf16.xpose.msra.mxu0 0
          %3839 = vmatpush.bf16.xpose.msra.mxu0 0
          %3840 = vmatpush.bf16.xpose.msra.mxu0 0
          %3841 = vmatpush.bf16.xpose.msra.mxu0 %v3832
          %3842 = vmatmul.bf16.gmra.mxu0 %v3829
          %v3843 = vpop.f32.mrf.mxu0
          %v3844 = vadd.f32 0.0, %v3843
          %v3845 = vpop.f32.mrf.mxu0
          %3846 = vdwg.mxu0
          %v3847 = vmul.f32 %v3711, 0.35355338
          %v3848 = vmul.f32 %v3730, 0.35355338
          %v3849 = vmul.f32 %v3749, 0.35355338
          %v3850 = vmul.f32 %v3768, 0.35355338
          %v3851 = vmul.f32 %v3787, 0.35355338
          %v3852 = vmul.f32 %v3806, 0.35355338
          %v3853 = vmul.f32 %v3825, 0.35355338
          %v3854 = vmul.f32 %v3844, 0.35355338
          %v3855 = vadd.f32 %v3847, %v3299
          %v3856 = vadd.f32 %v3848, %v3300
          %v3857 = vadd.f32 %v3849, %v3299
          %v3858 = vadd.f32 %v3850, %v3300
          %v3859 = vadd.f32 %v3851, %v3299
          %v3860 = vadd.f32 %v3852, %v3300
          %v3861 = vadd.f32 %v3853, %v3299
          %v3862 = vadd.f32 %v3854, %v3300
          %v3863 = vsel %vm3694, %v3855, -inf
          %3864 = vmax.xlane.f32.xlu0 %v3863
          %v3865 = vpop.xlane.xlu0 %3864
          %v3866 = vsel %vm3694, %v3856, -inf
          %3867 = vmax.xlane.f32.xlu0 %v3866
          %v3868 = vpop.xlane.xlu0 %3867
          %v3869 = vsel %vm3694, %v3857, -inf
          %3870 = vmax.xlane.f32.xlu0 %v3869
          %v3871 = vpop.xlane.xlu0 %3870
          %v3872 = vsel %vm3694, %v3858, -inf
          %3873 = vmax.xlane.f32.xlu0 %v3872
          %v3874 = vpop.xlane.xlu0 %3873
          %v3875 = vsel %vm3694, %v3859, -inf
          %3876 = vmax.xlane.f32.xlu0 %v3875
          %v3877 = vpop.xlane.xlu0 %3876
          %v3878 = vsel %vm3694, %v3860, -inf
          %3879 = vmax.xlane.f32.xlu0 %v3878
          %v3880 = vpop.xlane.xlu0 %3879
          %v3881 = vsel %vm3694, %v3861, -inf
          %3882 = vmax.xlane.f32.xlu0 %v3881
          %v3883 = vpop.xlane.xlu0 %3882
          %v3884 = vsel %vm3694, %v3862, -inf
          %3885 = vmax.xlane.f32.xlu0 %v3884
          %v3886 = vpop.xlane.xlu0 %3885
          %v3887 = vsub.f32 %v3855, %v3865
          %v3888 = vsub.f32 %v3856, %v3868
          %v3889 = vsub.f32 %v3857, %v3871
          %v3890 = vsub.f32 %v3858, %v3874
          %v3891 = vsub.f32 %v3859, %v3877
          %v3892 = vsub.f32 %v3860, %v3880
          %v3893 = vsub.f32 %v3861, %v3883
          %v3894 = vsub.f32 %v3862, %v3886
          %v3895 = vmul.f32 %v3887, 1.442695
          %v3896 = vpow.pop %v3895
          %v3897 = vmul.f32 %v3888, 1.442695
          %v3898 = vpow.pop %v3897
          %v3899 = vmul.f32 %v3889, 1.442695
          %v3900 = vpow.pop %v3899
          %v3901 = vmul.f32 %v3890, 1.442695
          %v3902 = vpow.pop %v3901
          %v3903 = vmul.f32 %v3891, 1.442695
          %v3904 = vpow.pop %v3903
          %v3905 = vmul.f32 %v3892, 1.442695
          %v3906 = vpow.pop %v3905
          %v3907 = vmul.f32 %v3893, 1.442695
          %v3908 = vpow.pop %v3907
          %v3909 = vmul.f32 %v3894, 1.442695
          %v3910 = vpow.pop %v3909
          %v3911 = vsel %vm3694, %v3896, 0.0
          %3912 = vadd.xlane.f32.xlu0 %v3911
          %v3913 = vpop.xlane.xlu0 %3912
          %v3914 = vsel %vm3694, %v3898, 0.0
          %3915 = vadd.xlane.f32.xlu0 %v3914
          %v3916 = vpop.xlane.xlu0 %3915
          %v3917 = vsel %vm3694, %v3900, 0.0
          %3918 = vadd.xlane.f32.xlu0 %v3917
          %v3919 = vpop.xlane.xlu0 %3918
          %v3920 = vsel %vm3694, %v3902, 0.0
          %3921 = vadd.xlane.f32.xlu0 %v3920
          %v3922 = vpop.xlane.xlu0 %3921
          %v3923 = vsel %vm3694, %v3904, 0.0
          %3924 = vadd.xlane.f32.xlu0 %v3923
          %v3925 = vpop.xlane.xlu0 %3924
          %v3926 = vsel %vm3694, %v3906, 0.0
          %3927 = vadd.xlane.f32.xlu0 %v3926
          %v3928 = vpop.xlane.xlu0 %3927
          %v3929 = vsel %vm3694, %v3908, 0.0
          %3930 = vadd.xlane.f32.xlu0 %v3929
          %v3931 = vpop.xlane.xlu0 %3930
          %v3932 = vsel %vm3694, %v3910, 0.0
          %3933 = vadd.xlane.f32.xlu0 %v3932
          %v3934 = vpop.xlane.xlu0 %3933
          %v3935 = vrcp.pop %v3913
          %v3936 = vrcp.pop %v3916
          %v3937 = vrcp.pop %v3919
          %v3938 = vrcp.pop %v3922
          %v3939 = vrcp.pop %v3925
          %v3940 = vrcp.pop %v3928
          %v3941 = vrcp.pop %v3931
          %v3942 = vrcp.pop %v3934
          %v3943 = vmul.f32 %v3896, %v3935
          %v3944 = vmul.f32 %v3898, %v3936
          %v3945 = vmul.f32 %v3900, %v3937
          %v3946 = vmul.f32 %v3902, %v3938
          %v3947 = vmul.f32 %v3904, %v3939
          %v3948 = vmul.f32 %v3906, %v3940
          %v3949 = vmul.f32 %v3908, %v3941
          %v3950 = vmul.f32 %v3910, %v3942
          %v3951 = vpack.c.bf16 %v3943, %v3943
          %v3952 = vpack.c.bf16 %v3944, %v3944
          %v3953 = vpack.c.bf16 %v3945, %v3945
          %v3954 = vpack.c.bf16 %v3946, %v3946
          %v3955 = vpack.c.bf16 %v3947, %v3947
          %v3956 = vpack.c.bf16 %v3948, %v3948
          %v3957 = vpack.c.bf16 %v3949, %v3949
          %v3958 = vpack.c.bf16 %v3950, %v3950
          %v3959 = vpack.c.bf16 %v3596, %v3596
          %v3960 = vpack.c.bf16 %v3598, %v3598
          %v3961 = vpack.c.bf16 %v3622, %v3622
          %v3962 = vpack.c.bf16 %v3624, %v3624
          %v3963 = vpack.c.bf16 %v3648, %v3648
          %v3964 = vpack.c.bf16 %v3650, %v3650
          %v3965 = vpack.c.bf16 %v3674, %v3674
          %v3966 = vpack.c.bf16 %v3676, %v3676
          %v3968 = vsel %vm3694, %v3951, 0
          %vm3970 = vcmask 1043456
          %v3972 = vsel %vm3970, %v3959, 0
          %3974 = vmatpush.bf16.msra.mxu0 0
          %3975 = vmatpush.bf16.msra.mxu0 0
          %3976 = vmatpush.bf16.msra.mxu0 0
          %3977 = vmatpush.bf16.msra.mxu0 0
          %3978 = vmatpush.bf16.msra.mxu0 0
          %3979 = vmatpush.bf16.msra.mxu0 0
          %3980 = vmatpush.bf16.msra.mxu0 0
          %3981 = vmatpush.bf16.msra.mxu0 %v3972
          %3982 = vmatmul.bf16.gmra.mxu0 %v3968
          %v3983 = vpop.f32.mrf.mxu0
          %v3984 = vadd.f32 0.0, %v3983
          %v3985 = vpop.f32.mrf.mxu0
          %3986 = vdwg.mxu0
          %v3988 = vsel %vm3694, %v3952, 0
          %v3991 = vsel %vm3970, %v3960, 0
          %3993 = vmatpush.bf16.msra.mxu0 0
          %3994 = vmatpush.bf16.msra.mxu0 0
          %3995 = vmatpush.bf16.msra.mxu0 0
          %3996 = vmatpush.bf16.msra.mxu0 0
          %3997 = vmatpush.bf16.msra.mxu0 0
          %3998 = vmatpush.bf16.msra.mxu0 0
          %3999 = vmatpush.bf16.msra.mxu0 0
          %4000 = vmatpush.bf16.msra.mxu0 %v3991
          %4001 = vmatmul.bf16.gmra.mxu0 %v3988
          %v4002 = vpop.f32.mrf.mxu0
          %v4003 = vadd.f32 0.0, %v4002
          %v4004 = vpop.f32.mrf.mxu0
          %4005 = vdwg.mxu0
          %v4007 = vsel %vm3694, %v3953, 0
          %v4010 = vsel %vm3970, %v3961, 0
          %4012 = vmatpush.bf16.msra.mxu0 0
          %4013 = vmatpush.bf16.msra.mxu0 0
          %4014 = vmatpush.bf16.msra.mxu0 0
          %4015 = vmatpush.bf16.msra.mxu0 0
          %4016 = vmatpush.bf16.msra.mxu0 0
          %4017 = vmatpush.bf16.msra.mxu0 0
          %4018 = vmatpush.bf16.msra.mxu0 0
          %4019 = vmatpush.bf16.msra.mxu0 %v4010
          %4020 = vmatmul.bf16.gmra.mxu0 %v4007
          %v4021 = vpop.f32.mrf.mxu0
          %v4022 = vadd.f32 0.0, %v4021
          %v4023 = vpop.f32.mrf.mxu0
          %4024 = vdwg.mxu0
          %v4026 = vsel %vm3694, %v3954, 0
          %v4029 = vsel %vm3970, %v3962, 0
          %4031 = vmatpush.bf16.msra.mxu0 0
          %4032 = vmatpush.bf16.msra.mxu0 0
          %4033 = vmatpush.bf16.msra.mxu0 0
          %4034 = vmatpush.bf16.msra.mxu0 0
          %4035 = vmatpush.bf16.msra.mxu0 0
          %4036 = vmatpush.bf16.msra.mxu0 0
          %4037 = vmatpush.bf16.msra.mxu0 0
          %4038 = vmatpush.bf16.msra.mxu0 %v4029
          %4039 = vmatmul.bf16.gmra.mxu0 %v4026
          %v4040 = vpop.f32.mrf.mxu0
          %v4041 = vadd.f32 0.0, %v4040
          %v4042 = vpop.f32.mrf.mxu0
          %4043 = vdwg.mxu0
          %v4045 = vsel %vm3694, %v3955, 0
          %v4048 = vsel %vm3970, %v3963, 0
          %4050 = vmatpush.bf16.msra.mxu0 0
          %4051 = vmatpush.bf16.msra.mxu0 0
          %4052 = vmatpush.bf16.msra.mxu0 0
          %4053 = vmatpush.bf16.msra.mxu0 0
          %4054 = vmatpush.bf16.msra.mxu0 0
          %4055 = vmatpush.bf16.msra.mxu0 0
          %4056 = vmatpush.bf16.msra.mxu0 0
          %4057 = vmatpush.bf16.msra.mxu0 %v4048
          %4058 = vmatmul.bf16.gmra.mxu0 %v4045
          %v4059 = vpop.f32.mrf.mxu0
          %v4060 = vadd.f32 0.0, %v4059
          %v4061 = vpop.f32.mrf.mxu0
          %4062 = vdwg.mxu0
          %v4064 = vsel %vm3694, %v3956, 0
          %v4067 = vsel %vm3970, %v3964, 0
          %4069 = vmatpush.bf16.msra.mxu0 0
          %4070 = vmatpush.bf16.msra.mxu0 0
          %4071 = vmatpush.bf16.msra.mxu0 0
          %4072 = vmatpush.bf16.msra.mxu0 0
          %4073 = vmatpush.bf16.msra.mxu0 0
          %4074 = vmatpush.bf16.msra.mxu0 0
          %4075 = vmatpush.bf16.msra.mxu0 0
          %4076 = vmatpush.bf16.msra.mxu0 %v4067
          %4077 = vmatmul.bf16.gmra.mxu0 %v4064
          %v4078 = vpop.f32.mrf.mxu0
          %v4079 = vadd.f32 0.0, %v4078
          %v4080 = vpop.f32.mrf.mxu0
          %4081 = vdwg.mxu0
          %v4083 = vsel %vm3694, %v3957, 0
          %v4086 = vsel %vm3970, %v3965, 0
          %4088 = vmatpush.bf16.msra.mxu0 0
          %4089 = vmatpush.bf16.msra.mxu0 0
          %4090 = vmatpush.bf16.msra.mxu0 0
          %4091 = vmatpush.bf16.msra.mxu0 0
          %4092 = vmatpush.bf16.msra.mxu0 0
          %4093 = vmatpush.bf16.msra.mxu0 0
          %4094 = vmatpush.bf16.msra.mxu0 0
          %4095 = vmatpush.bf16.msra.mxu0 %v4086
          %4096 = vmatmul.bf16.gmra.mxu0 %v4083
          %v4097 = vpop.f32.mrf.mxu0
          %v4098 = vadd.f32 0.0, %v4097
          %v4099 = vpop.f32.mrf.mxu0
          %4100 = vdwg.mxu0
          %v4102 = vsel %vm3694, %v3958, 0
          %v4105 = vsel %vm3970, %v3966, 0
          %4107 = vmatpush.bf16.msra.mxu0 0
          %4108 = vmatpush.bf16.msra.mxu0 0
          %4109 = vmatpush.bf16.msra.mxu0 0
          %4110 = vmatpush.bf16.msra.mxu0 0
          %4111 = vmatpush.bf16.msra.mxu0 0
          %4112 = vmatpush.bf16.msra.mxu0 0
          %4113 = vmatpush.bf16.msra.mxu0 0
          %4114 = vmatpush.bf16.msra.mxu0 %v4105
          %4115 = vmatmul.bf16.gmra.mxu0 %v4102
          %v4116 = vpop.f32.mrf.mxu0
          %v4117 = vadd.f32 0.0, %v4116
          %v4118 = vpop.f32.mrf.mxu0
          %4119 = vdwg.mxu0
          %v4120 = vpack.c.bf16 %v3984, %v3984
          %v4121 = vpack.c.bf16 %v4003, %v4003
          %v4122 = vpack.c.bf16 %v4022, %v4022
          %v4123 = vpack.c.bf16 %v4041, %v4041
          %v4124 = vpack.c.bf16 %v4060, %v4060
          %v4125 = vpack.c.bf16 %v4079, %v4079
          %v4126 = vpack.c.bf16 %v4098, %v4098
          %v4127 = vpack.c.bf16 %v4117, %v4117
          %v4130 = vunpack.c.l.b16 %v4120
          %v4131 = vunpack.c.l.b16 %v4121
          %v4132 = vpack.c.b16 %v4131, %v4130
          %v4134 = vsel %vm3694, %v4132, 0
          %v4137 = vsel %vm3970, %v3349, 0
          %4139 = vmatpush.bf16.msra.mxu0 0
          %4140 = vmatpush.bf16.msra.mxu0 0
          %4141 = vmatpush.bf16.msra.mxu0 0
          %4142 = vmatpush.bf16.msra.mxu0 0
          %4143 = vmatpush.bf16.msra.mxu0 0
          %4144 = vmatpush.bf16.msra.mxu0 0
          %4145 = vmatpush.bf16.msra.mxu0 0
          %4146 = vmatpush.bf16.msra.mxu0 %v4137
          %4147 = vmatmul.bf16.gmra.mxu0 %v4134
          %v4148 = vpop.f32.mrf.mxu0
          %v4149 = vadd.f32 0.0, %v4148
          %v4150 = vpop.f32.mrf.mxu0
          %v4151 = vadd.f32 0.0, %v4150
          %4152 = vdwg.mxu0
          %v4155 = vunpack.c.l.b16 %v4122
          %v4156 = vunpack.c.l.b16 %v4123
          %v4157 = vpack.c.b16 %v4156, %v4155
          %v4159 = vsel %vm3694, %v4157, 0
          %v4162 = vsel %vm3970, %v3350, 0
          %4164 = vmatpush.bf16.msra.mxu0 0
          %4165 = vmatpush.bf16.msra.mxu0 0
          %4166 = vmatpush.bf16.msra.mxu0 0
          %4167 = vmatpush.bf16.msra.mxu0 0
          %4168 = vmatpush.bf16.msra.mxu0 0
          %4169 = vmatpush.bf16.msra.mxu0 0
          %4170 = vmatpush.bf16.msra.mxu0 0
          %4171 = vmatpush.bf16.msra.mxu0 %v4162
          %4172 = vmatmul.bf16.gmra.mxu0 %v4159
          %v4173 = vpop.f32.mrf.mxu0
          %v4174 = vadd.f32 0.0, %v4173
          %v4175 = vpop.f32.mrf.mxu0
          %v4176 = vadd.f32 0.0, %v4175
          %4177 = vdwg.mxu0
          %v4180 = vunpack.c.l.b16 %v4124
          %v4181 = vunpack.c.l.b16 %v4125
          %v4182 = vpack.c.b16 %v4181, %v4180
          %v4184 = vsel %vm3694, %v4182, 0
          %v4187 = vsel %vm3970, %v3351, 0
          %4189 = vmatpush.bf16.msra.mxu0 0
          %4190 = vmatpush.bf16.msra.mxu0 0
          %4191 = vmatpush.bf16.msra.mxu0 0
          %4192 = vmatpush.bf16.msra.mxu0 0
          %4193 = vmatpush.bf16.msra.mxu0 0
          %4194 = vmatpush.bf16.msra.mxu0 0
          %4195 = vmatpush.bf16.msra.mxu0 0
          %4196 = vmatpush.bf16.msra.mxu0 %v4187
          %4197 = vmatmul.bf16.gmra.mxu0 %v4184
          %v4198 = vpop.f32.mrf.mxu0
          %v4199 = vadd.f32 0.0, %v4198
          %v4200 = vpop.f32.mrf.mxu0
          %v4201 = vadd.f32 0.0, %v4200
          %4202 = vdwg.mxu0
          %v4205 = vunpack.c.l.b16 %v4126
          %v4206 = vunpack.c.l.b16 %v4127
          %v4207 = vpack.c.b16 %v4206, %v4205
          %v4209 = vsel %vm3694, %v4207, 0
          %v4212 = vsel %vm3970, %v3352, 0
          %4214 = vmatpush.bf16.msra.mxu0 0
          %4215 = vmatpush.bf16.msra.mxu0 0
          %4216 = vmatpush.bf16.msra.mxu0 0
          %4217 = vmatpush.bf16.msra.mxu0 0
          %4218 = vmatpush.bf16.msra.mxu0 0
          %4219 = vmatpush.bf16.msra.mxu0 0
          %4220 = vmatpush.bf16.msra.mxu0 0
          %4221 = vmatpush.bf16.msra.mxu0 %v4212
          %4222 = vmatmul.bf16.gmra.mxu0 %v4209
          %v4223 = vpop.f32.mrf.mxu0
          %v4224 = vadd.f32 0.0, %v4223
          %v4225 = vpop.f32.mrf.mxu0
          %v4226 = vadd.f32 0.0, %v4225
          %4227 = vdwg.mxu0
          %v4228 = vsel %vm3374, %v4149, 0.0
          %v4229 = vsel %vm3374, %v4174, 0.0
          %v4230 = vadd.f32 %v4228, %v4229
          %v4231 = vsel %vm3374, %v4199, 0.0
          %v4232 = vadd.f32 %v4230, %v4231
          %v4233 = vsel %vm3374, %v4224, 0.0
          %v4234 = vadd.f32 %v4232, %v4233
          %v4235 = vsel %vm3374, %v4151, 0.0
          %v4236 = vsel %vm3374, %v4176, 0.0
          %v4237 = vadd.f32 %v4235, %v4236
          %v4238 = vsel %vm3374, %v4201, 0.0
          %v4239 = vadd.f32 %v4237, %v4238
          %v4240 = vsel %vm3374, %v4226, 0.0
          %v4241 = vadd.f32 %v4239, %v4240
          %v4242 = vadd.f32 %v4234, %v3295
          %v4243 = vadd.f32 %v4241, %v3296
          %v4244 = vsel %vm3374, %v4242, 0.0
          %4245 = vadd.xlane.f32.xlu0 %v4244
          %v4246 = vpop.xlane.xlu0 %4245
          %v4247 = vsel %vm3374, %v4243, 0.0
          %4248 = vadd.xlane.f32.xlu0 %v4247
          %v4249 = vpop.xlane.xlu0 %4248
          %v4250 = vrcp.pop 32.0
          %v4251 = vmul.f32 32.0, %v4250
          %v4252 = vsub.f32 1.0, %v4251
          %v4253 = vmul.f32 %v4250, %v4252
          %v4254 = vadd.f32 %v4250, %v4253
          %vm4255 = vweird.f32 %v4250
          %v4256 = vsel %vm4255, %v4250, %v4254
          %v4257 = vmul.f32 %v4246, %v4256
          %v4258 = vmul.f32 %v4249, %v4256
          %v4259 = vsub.f32 %v4242, %v4257
          %v4260 = vsub.f32 %v4243, %v4258
          %v4261 = vmul.f32 %v4259, %v4259
          %v4262 = vmul.f32 %v4260, %v4260
          %v4263 = vsel %vm3374, %v4261, 0.0
          %4264 = vadd.xlane.f32.xlu0 %v4263
          %v4265 = vpop.xlane.xlu0 %4264
          %v4266 = vsel %vm3374, %v4262, 0.0
          %4267 = vadd.xlane.f32.xlu0 %v4266
          %v4268 = vpop.xlane.xlu0 %4267
          %v4269 = vmul.f32 %v4265, %v4256
          %v4270 = vmul.f32 %v4268, %v4256
          %v4271 = vadd.f32 %v4269, 1e-06
          %v4272 = vadd.f32 %v4270, 1e-06
          %v4273 = vrsqrt.pop %v4271
          %v4274 = vmul.f32 %v4273, %v4271
          %v4275 = vmul.f32 %v4274, %v4273
          %v4276 = vmul.f32 0.5, %v4275
          %v4277 = vsub.f32 1.5, %v4276
          %v4278 = vmul.f32 %v4273, %v4277
          %vm4279 = vweird.f32 %v4271
          %vm4280 = vweird.f32 %v4273
          %vm4281 = vmor %vm4279, %vm4280
          %v4282 = vsel %vm4281, %v4273, %v4278
          %v4283 = vrsqrt.pop %v4272
          %v4284 = vmul.f32 %v4283, %v4272
          %v4285 = vmul.f32 %v4284, %v4283
          %v4286 = vmul.f32 0.5, %v4285
          %v4287 = vsub.f32 1.5, %v4286
          %v4288 = vmul.f32 %v4283, %v4287
          %vm4289 = vweird.f32 %v4272
          %vm4290 = vweird.f32 %v4283
          %vm4291 = vmor %vm4289, %vm4290
          %v4292 = vsel %vm4291, %v4283, %v4288
          %v4293 = vmul.f32 %v4259, %v4282
          %v4294 = vmul.f32 %v4260, %v4292
          %v4296 = vperm.slane %v3353, 0
          %v4298 = vmul.f32 %v4293, %v4296
          %v4299 = vmul.f32 %v4294, %v4296
          %v4301 = vperm.slane %v3354, 0
          %v4303 = vadd.f32 %v4298, %v4301
          %v4304 = vadd.f32 %v4299, %v4301
          %v4305 = vld [vmem:[%s5] sm:$0x1]
          %v4306 = vld [vmem:[%s5 + $0x1] sm:$0x1]
          %v4307 = vld [vmem:[%s1986] sm:$0xf]
          %v4308 = vld [vmem:[%s1986 + $0x4] sm:$0xf]
          %v4309 = vld [vmem:[%s1986 + $0x8] sm:$0xf]
          %v4310 = vld [vmem:[%s1986 + $0xc] sm:$0xf]
          %v4311 = vld [vmem:[%s1986 + $0x10] sm:$0xf]
          %v4312 = vld [vmem:[%s1986 + $0x14] sm:$0xf]
          %v4313 = vld [vmem:[%s1986 + $0x18] sm:$0xf]
          %v4314 = vld [vmem:[%s1986 + $0x1c] sm:$0xf]
          %v4315 = vld [vmem:[%s1986 + $0x20] sm:$0xf]
          %v4316 = vld [vmem:[%s1986 + $0x24] sm:$0xf]
          %v4317 = vld [vmem:[%s1986 + $0x28] sm:$0xf]
          %v4318 = vld [vmem:[%s1986 + $0x2c] sm:$0xf]
          %v4319 = vld [vmem:[%s1986 + $0x30] sm:$0xf]
          %v4320 = vld [vmem:[%s1986 + $0x34] sm:$0xf]
          %v4321 = vld [vmem:[%s1986 + $0x38] sm:$0xf]
          %v4322 = vld [vmem:[%s1986 + $0x3c] sm:$0xf]
          %v4323 = vld [vmem:[%s1997] sm:$0xf]
          %v4324 = vld [vmem:[%s1997 + $0x4] sm:$0xf]
          %v4325 = vld [vmem:[%s1997 + $0x8] sm:$0xf]
          %v4326 = vld [vmem:[%s1997 + $0xc] sm:$0xf]
          %v4327 = vld [vmem:[%s1997 + $0x10] sm:$0xf]
          %v4328 = vld [vmem:[%s1997 + $0x14] sm:$0xf]
          %v4329 = vld [vmem:[%s1997 + $0x18] sm:$0xf]
          %v4330 = vld [vmem:[%s1997 + $0x1c] sm:$0xf]
          %v4331 = vld [vmem:[%s1997 + $0x20] sm:$0xf]
          %v4332 = vld [vmem:[%s1997 + $0x24] sm:$0xf]
          %v4333 = vld [vmem:[%s1997 + $0x28] sm:$0xf]
          %v4334 = vld [vmem:[%s1997 + $0x2c] sm:$0xf]
          %v4335 = vld [vmem:[%s1997 + $0x30] sm:$0xf]
          %v4336 = vld [vmem:[%s1997 + $0x34] sm:$0xf]
          %v4337 = vld [vmem:[%s1997 + $0x38] sm:$0xf]
          %v4338 = vld [vmem:[%s1997 + $0x3c] sm:$0xf]
          %v4339 = vld [vmem:[%s2008] sm:$0xf]
          %v4340 = vld [vmem:[%s2008 + $0x4] sm:$0xf]
          %v4341 = vld [vmem:[%s2008 + $0x8] sm:$0xf]
          %v4342 = vld [vmem:[%s2008 + $0xc] sm:$0xf]
          %v4343 = vld [vmem:[%s2008 + $0x10] sm:$0xf]
          %v4344 = vld [vmem:[%s2008 + $0x14] sm:$0xf]
          %v4345 = vld [vmem:[%s2008 + $0x18] sm:$0xf]
          %v4346 = vld [vmem:[%s2008 + $0x1c] sm:$0xf]
          %v4347 = vld [vmem:[%s2008 + $0x20] sm:$0xf]
          %v4348 = vld [vmem:[%s2008 + $0x24] sm:$0xf]
          %v4349 = vld [vmem:[%s2008 + $0x28] sm:$0xf]
          %v4350 = vld [vmem:[%s2008 + $0x2c] sm:$0xf]
          %v4351 = vld [vmem:[%s2008 + $0x30] sm:$0xf]
          %v4352 = vld [vmem:[%s2008 + $0x34] sm:$0xf]
          %v4353 = vld [vmem:[%s2008 + $0x38] sm:$0xf]
          %v4354 = vld [vmem:[%s2008 + $0x3c] sm:$0xf]
          %v4355 = vld [vmem:[%s2019] sm:$0xf]
          %v4356 = vld [vmem:[%s2019 + $0x4] sm:$0xf]
          %v4357 = vld [vmem:[%s2019 + $0x8] sm:$0xf]
          %v4358 = vld [vmem:[%s2019 + $0xc] sm:$0xf]
          %v4359 = vld [vmem:[%s2028] sm:$0x1]
          %v4360 = vld [vmem:[%s2037] sm:$0x1]
          %v4361 = vpack.c.bf16 %v4303, %v4303
          %v4362 = vpack.c.bf16 %v4304, %v4304
          %v4363 = vpack.c.bf16 %v3297, %v3297
          %v4364 = vpack.c.bf16 %v3298, %v3298
          %v4367 = vunpack.c.l.b16 %v4361
          %v4368 = vunpack.c.l.b16 %v4362
          %v4369 = vpack.c.b16 %v4368, %v4367
          %v4374 = vunpack.c.l.b16 %v4307
          %v4375 = vunpack.c.l.b16 %v4308
          %v4376 = vunpack.c.l.b16 %v4309
          %v4377 = vunpack.c.l.b16 %v4310
          %v4378 = vpack.c.b16 %v4375, %v4374
          %v4379 = vpack.c.b16 %v4377, %v4376
          %v4383 = vsel %vm3374, %v4369, 0
          %4385 = vmatpush.bf16.msra.mxu0 0
          %4386 = vmatpush.bf16.msra.mxu0 0
          %4387 = vmatpush.bf16.msra.mxu0 0
          %4388 = vmatpush.bf16.msra.mxu0 0
          %4389 = vmatpush.bf16.msra.mxu0 0
          %4390 = vmatpush.bf16.msra.mxu0 0
          %4391 = vmatpush.bf16.msra.mxu0 %v4379
          %4392 = vmatpush.bf16.msra.mxu0 %v4378
          %4393 = vmatmul.bf16.gmra.mxu0 %v4383
          %v4394 = vpop.f32.mrf.mxu0
          %v4395 = vadd.f32 0.0, %v4394
          %v4396 = vpop.f32.mrf.mxu0
          %v4397 = vadd.f32 0.0, %v4396
          %4398 = vdwg.mxu0
          %v4403 = vunpack.c.l.b16 %v4311
          %v4404 = vunpack.c.l.b16 %v4312
          %v4405 = vunpack.c.l.b16 %v4313
          %v4406 = vunpack.c.l.b16 %v4314
          %v4407 = vpack.c.b16 %v4404, %v4403
          %v4408 = vpack.c.b16 %v4406, %v4405
          %4411 = vmatpush.bf16.msra.mxu0 0
          %4412 = vmatpush.bf16.msra.mxu0 0
          %4413 = vmatpush.bf16.msra.mxu0 0
          %4414 = vmatpush.bf16.msra.mxu0 0
          %4415 = vmatpush.bf16.msra.mxu0 0
          %4416 = vmatpush.bf16.msra.mxu0 0
          %4417 = vmatpush.bf16.msra.mxu0 %v4408
          %4418 = vmatpush.bf16.msra.mxu0 %v4407
          %4419 = vmatmul.bf16.gmra.mxu0 %v4383
          %v4420 = vpop.f32.mrf.mxu0
          %v4421 = vadd.f32 0.0, %v4420
          %v4422 = vpop.f32.mrf.mxu0
          %v4423 = vadd.f32 0.0, %v4422
          %4424 = vdwg.mxu0
          %v4429 = vunpack.c.l.b16 %v4315
          %v4430 = vunpack.c.l.b16 %v4316
          %v4431 = vunpack.c.l.b16 %v4317
          %v4432 = vunpack.c.l.b16 %v4318
          %v4433 = vpack.c.b16 %v4430, %v4429
          %v4434 = vpack.c.b16 %v4432, %v4431
          %4437 = vmatpush.bf16.msra.mxu0 0
          %4438 = vmatpush.bf16.msra.mxu0 0
          %4439 = vmatpush.bf16.msra.mxu0 0
          %4440 = vmatpush.bf16.msra.mxu0 0
          %4441 = vmatpush.bf16.msra.mxu0 0
          %4442 = vmatpush.bf16.msra.mxu0 0
          %4443 = vmatpush.bf16.msra.mxu0 %v4434
          %4444 = vmatpush.bf16.msra.mxu0 %v4433
          %4445 = vmatmul.bf16.gmra.mxu0 %v4383
          %v4446 = vpop.f32.mrf.mxu0
          %v4447 = vadd.f32 0.0, %v4446
          %v4448 = vpop.f32.mrf.mxu0
          %v4449 = vadd.f32 0.0, %v4448
          %4450 = vdwg.mxu0
          %v4455 = vunpack.c.l.b16 %v4319
          %v4456 = vunpack.c.l.b16 %v4320
          %v4457 = vunpack.c.l.b16 %v4321
          %v4458 = vunpack.c.l.b16 %v4322
          %v4459 = vpack.c.b16 %v4456, %v4455
          %v4460 = vpack.c.b16 %v4458, %v4457
          %4463 = vmatpush.bf16.msra.mxu0 0
          %4464 = vmatpush.bf16.msra.mxu0 0
          %4465 = vmatpush.bf16.msra.mxu0 0
          %4466 = vmatpush.bf16.msra.mxu0 0
          %4467 = vmatpush.bf16.msra.mxu0 0
          %4468 = vmatpush.bf16.msra.mxu0 0
          %4469 = vmatpush.bf16.msra.mxu0 %v4460
          %4470 = vmatpush.bf16.msra.mxu0 %v4459
          %4471 = vmatmul.bf16.gmra.mxu0 %v4383
          %v4472 = vpop.f32.mrf.mxu0
          %v4473 = vadd.f32 0.0, %v4472
          %v4474 = vpop.f32.mrf.mxu0
          %v4475 = vadd.f32 0.0, %v4474
          %4476 = vdwg.mxu0
          %v4479 = vunpack.c.l.b16 %v4363
          %v4480 = vunpack.c.l.b16 %v4364
          %v4481 = vpack.c.b16 %v4480, %v4479
          %v4486 = vunpack.c.l.b16 %v4323
          %v4487 = vunpack.c.l.b16 %v4324
          %v4488 = vunpack.c.l.b16 %v4325
          %v4489 = vunpack.c.l.b16 %v4326
          %v4490 = vpack.c.b16 %v4487, %v4486
          %v4491 = vpack.c.b16 %v4489, %v4488
          %v4495 = vsel %vm3374, %v4481, 0
          %4497 = vmatpush.bf16.msra.mxu0 0
          %4498 = vmatpush.bf16.msra.mxu0 0
          %4499 = vmatpush.bf16.msra.mxu0 0
          %4500 = vmatpush.bf16.msra.mxu0 0
          %4501 = vmatpush.bf16.msra.mxu0 0
          %4502 = vmatpush.bf16.msra.mxu0 0
          %4503 = vmatpush.bf16.msra.mxu0 %v4491
          %4504 = vmatpush.bf16.msra.mxu0 %v4490
          %4505 = vmatmul.bf16.gmra.mxu0 %v4495
          %v4506 = vpop.f32.mrf.mxu0
          %v4507 = vadd.f32 0.0, %v4506
          %v4508 = vpop.f32.mrf.mxu0
          %v4509 = vadd.f32 0.0, %v4508
          %4510 = vdwg.mxu0
          %v4515 = vunpack.c.l.b16 %v4327
          %v4516 = vunpack.c.l.b16 %v4328
          %v4517 = vunpack.c.l.b16 %v4329
          %v4518 = vunpack.c.l.b16 %v4330
          %v4519 = vpack.c.b16 %v4516, %v4515
          %v4520 = vpack.c.b16 %v4518, %v4517
          %4523 = vmatpush.bf16.msra.mxu0 0
          %4524 = vmatpush.bf16.msra.mxu0 0
          %4525 = vmatpush.bf16.msra.mxu0 0
          %4526 = vmatpush.bf16.msra.mxu0 0
          %4527 = vmatpush.bf16.msra.mxu0 0
          %4528 = vmatpush.bf16.msra.mxu0 0
          %4529 = vmatpush.bf16.msra.mxu0 %v4520
          %4530 = vmatpush.bf16.msra.mxu0 %v4519
          %4531 = vmatmul.bf16.gmra.mxu0 %v4495
          %v4532 = vpop.f32.mrf.mxu0
          %v4533 = vadd.f32 0.0, %v4532
          %v4534 = vpop.f32.mrf.mxu0
          %v4535 = vadd.f32 0.0, %v4534
          %4536 = vdwg.mxu0
          %v4541 = vunpack.c.l.b16 %v4331
          %v4542 = vunpack.c.l.b16 %v4332
          %v4543 = vunpack.c.l.b16 %v4333
          %v4544 = vunpack.c.l.b16 %v4334
          %v4545 = vpack.c.b16 %v4542, %v4541
          %v4546 = vpack.c.b16 %v4544, %v4543
          %4549 = vmatpush.bf16.msra.mxu0 0
          %4550 = vmatpush.bf16.msra.mxu0 0
          %4551 = vmatpush.bf16.msra.mxu0 0
          %4552 = vmatpush.bf16.msra.mxu0 0
          %4553 = vmatpush.bf16.msra.mxu0 0
          %4554 = vmatpush.bf16.msra.mxu0 0
          %4555 = vmatpush.bf16.msra.mxu0 %v4546
          %4556 = vmatpush.bf16.msra.mxu0 %v4545
          %4557 = vmatmul.bf16.gmra.mxu0 %v4495
          %v4558 = vpop.f32.mrf.mxu0
          %v4559 = vadd.f32 0.0, %v4558
          %v4560 = vpop.f32.mrf.mxu0
          %v4561 = vadd.f32 0.0, %v4560
          %4562 = vdwg.mxu0
          %v4567 = vunpack.c.l.b16 %v4335
          %v4568 = vunpack.c.l.b16 %v4336
          %v4569 = vunpack.c.l.b16 %v4337
          %v4570 = vunpack.c.l.b16 %v4338
          %v4571 = vpack.c.b16 %v4568, %v4567
          %v4572 = vpack.c.b16 %v4570, %v4569
          %4575 = vmatpush.bf16.msra.mxu0 0
          %4576 = vmatpush.bf16.msra.mxu0 0
          %4577 = vmatpush.bf16.msra.mxu0 0
          %4578 = vmatpush.bf16.msra.mxu0 0
          %4579 = vmatpush.bf16.msra.mxu0 0
          %4580 = vmatpush.bf16.msra.mxu0 0
          %4581 = vmatpush.bf16.msra.mxu0 %v4572
          %4582 = vmatpush.bf16.msra.mxu0 %v4571
          %4583 = vmatmul.bf16.gmra.mxu0 %v4495
          %v4584 = vpop.f32.mrf.mxu0
          %v4585 = vadd.f32 0.0, %v4584
          %v4586 = vpop.f32.mrf.mxu0
          %v4587 = vadd.f32 0.0, %v4586
          %4588 = vdwg.mxu0
          %v4593 = vunpack.c.l.b16 %v4339
          %v4594 = vunpack.c.l.b16 %v4340
          %v4595 = vunpack.c.l.b16 %v4341
          %v4596 = vunpack.c.l.b16 %v4342
          %v4597 = vpack.c.b16 %v4594, %v4593
          %v4598 = vpack.c.b16 %v4596, %v4595
          %4601 = vmatpush.bf16.msra.mxu0 0
          %4602 = vmatpush.bf16.msra.mxu0 0
          %4603 = vmatpush.bf16.msra.mxu0 0
          %4604 = vmatpush.bf16.msra.mxu0 0
          %4605 = vmatpush.bf16.msra.mxu0 0
          %4606 = vmatpush.bf16.msra.mxu0 0
          %4607 = vmatpush.bf16.msra.mxu0 %v4598
          %4608 = vmatpush.bf16.msra.mxu0 %v4597
          %4609 = vmatmul.bf16.gmra.mxu0 %v4495
          %v4610 = vpop.f32.mrf.mxu0
          %v4611 = vadd.f32 0.0, %v4610
          %v4612 = vpop.f32.mrf.mxu0
          %v4613 = vadd.f32 0.0, %v4612
          %4614 = vdwg.mxu0
          %v4619 = vunpack.c.l.b16 %v4343
          %v4620 = vunpack.c.l.b16 %v4344
          %v4621 = vunpack.c.l.b16 %v4345
          %v4622 = vunpack.c.l.b16 %v4346
          %v4623 = vpack.c.b16 %v4620, %v4619
          %v4624 = vpack.c.b16 %v4622, %v4621
          %4627 = vmatpush.bf16.msra.mxu0 0
          %4628 = vmatpush.bf16.msra.mxu0 0
          %4629 = vmatpush.bf16.msra.mxu0 0
          %4630 = vmatpush.bf16.msra.mxu0 0
          %4631 = vmatpush.bf16.msra.mxu0 0
          %4632 = vmatpush.bf16.msra.mxu0 0
          %4633 = vmatpush.bf16.msra.mxu0 %v4624
          %4634 = vmatpush.bf16.msra.mxu0 %v4623
          %4635 = vmatmul.bf16.gmra.mxu0 %v4495
          %v4636 = vpop.f32.mrf.mxu0
          %v4637 = vadd.f32 0.0, %v4636
          %v4638 = vpop.f32.mrf.mxu0
          %v4639 = vadd.f32 0.0, %v4638
          %4640 = vdwg.mxu0
          %v4645 = vunpack.c.l.b16 %v4347
          %v4646 = vunpack.c.l.b16 %v4348
          %v4647 = vunpack.c.l.b16 %v4349
          %v4648 = vunpack.c.l.b16 %v4350
          %v4649 = vpack.c.b16 %v4646, %v4645
          %v4650 = vpack.c.b16 %v4648, %v4647
          %4653 = vmatpush.bf16.msra.mxu0 0
          %4654 = vmatpush.bf16.msra.mxu0 0
          %4655 = vmatpush.bf16.msra.mxu0 0
          %4656 = vmatpush.bf16.msra.mxu0 0
          %4657 = vmatpush.bf16.msra.mxu0 0
          %4658 = vmatpush.bf16.msra.mxu0 0
          %4659 = vmatpush.bf16.msra.mxu0 %v4650
          %4660 = vmatpush.bf16.msra.mxu0 %v4649
          %4661 = vmatmul.bf16.gmra.mxu0 %v4495
          %v4662 = vpop.f32.mrf.mxu0
          %v4663 = vadd.f32 0.0, %v4662
          %v4664 = vpop.f32.mrf.mxu0
          %v4665 = vadd.f32 0.0, %v4664
          %4666 = vdwg.mxu0
          %v4671 = vunpack.c.l.b16 %v4351
          %v4672 = vunpack.c.l.b16 %v4352
          %v4673 = vunpack.c.l.b16 %v4353
          %v4674 = vunpack.c.l.b16 %v4354
          %v4675 = vpack.c.b16 %v4672, %v4671
          %v4676 = vpack.c.b16 %v4674, %v4673
          %4679 = vmatpush.bf16.msra.mxu0 0
          %4680 = vmatpush.bf16.msra.mxu0 0
          %4681 = vmatpush.bf16.msra.mxu0 0
          %4682 = vmatpush.bf16.msra.mxu0 0
          %4683 = vmatpush.bf16.msra.mxu0 0
          %4684 = vmatpush.bf16.msra.mxu0 0
          %4685 = vmatpush.bf16.msra.mxu0 %v4676
          %4686 = vmatpush.bf16.msra.mxu0 %v4675
          %4687 = vmatmul.bf16.gmra.mxu0 %v4495
          %v4688 = vpop.f32.mrf.mxu0
          %v4689 = vadd.f32 0.0, %v4688
          %v4690 = vpop.f32.mrf.mxu0
          %v4691 = vadd.f32 0.0, %v4690
          %4692 = vdwg.mxu0
          %v4693 = vpack.c.bf16 %v4395, %v4395
          %v4694 = vpack.c.bf16 %v4397, %v4397
          %v4695 = vpack.c.bf16 %v4421, %v4421
          %v4696 = vpack.c.bf16 %v4423, %v4423
          %v4697 = vpack.c.bf16 %v4447, %v4447
          %v4698 = vpack.c.bf16 %v4449, %v4449
          %v4699 = vpack.c.bf16 %v4473, %v4473
          %v4700 = vpack.c.bf16 %v4475, %v4475
          %v4701 = vpack.c.bf16 %v4507, %v4507
          %v4702 = vpack.c.bf16 %v4509, %v4509
          %v4703 = vpack.c.bf16 %v4533, %v4533
          %v4704 = vpack.c.bf16 %v4535, %v4535
          %v4705 = vpack.c.bf16 %v4559, %v4559
          %v4706 = vpack.c.bf16 %v4561, %v4561
          %v4707 = vpack.c.bf16 %v4585, %v4585
          %v4708 = vpack.c.bf16 %v4587, %v4587
          %v4710 = vsel %vm3694, %v4693, 0
          %v4713 = vsel %vm3694, %v4701, 0
          %4715 = vmatpush.bf16.xpose.msra.mxu0 0
          %4716 = vmatpush.bf16.xpose.msra.mxu0 0
          %4717 = vmatpush.bf16.xpose.msra.mxu0 0
          %4718 = vmatpush.bf16.xpose.msra.mxu0 0
          %4719 = vmatpush.bf16.xpose.msra.mxu0 0
          %4720 = vmatpush.bf16.xpose.msra.mxu0 0
          %4721 = vmatpush.bf16.xpose.msra.mxu0 0
          %4722 = vmatpush.bf16.xpose.msra.mxu0 %v4713
          %4723 = vmatmul.bf16.gmra.mxu0 %v4710
          %v4724 = vpop.f32.mrf.mxu0
          %v4725 = vadd.f32 0.0, %v4724
          %v4726 = vpop.f32.mrf.mxu0
          %4727 = vdwg.mxu0
          %v4729 = vsel %vm3694, %v4694, 0
          %v4732 = vsel %vm3694, %v4702, 0
          %4734 = vmatpush.bf16.xpose.msra.mxu0 0
          %4735 = vmatpush.bf16.xpose.msra.mxu0 0
          %4736 = vmatpush.bf16.xpose.msra.mxu0 0
          %4737 = vmatpush.bf16.xpose.msra.mxu0 0
          %4738 = vmatpush.bf16.xpose.msra.mxu0 0
          %4739 = vmatpush.bf16.xpose.msra.mxu0 0
          %4740 = vmatpush.bf16.xpose.msra.mxu0 0
          %4741 = vmatpush.bf16.xpose.msra.mxu0 %v4732
          %4742 = vmatmul.bf16.gmra.mxu0 %v4729
          %v4743 = vpop.f32.mrf.mxu0
          %v4744 = vadd.f32 0.0, %v4743
          %v4745 = vpop.f32.mrf.mxu0
          %4746 = vdwg.mxu0
          %v4748 = vsel %vm3694, %v4695, 0
          %v4751 = vsel %vm3694, %v4703, 0
          %4753 = vmatpush.bf16.xpose.msra.mxu0 0
          %4754 = vmatpush.bf16.xpose.msra.mxu0 0
          %4755 = vmatpush.bf16.xpose.msra.mxu0 0
          %4756 = vmatpush.bf16.xpose.msra.mxu0 0
          %4757 = vmatpush.bf16.xpose.msra.mxu0 0
          %4758 = vmatpush.bf16.xpose.msra.mxu0 0
          %4759 = vmatpush.bf16.xpose.msra.mxu0 0
          %4760 = vmatpush.bf16.xpose.msra.mxu0 %v4751
          %4761 = vmatmul.bf16.gmra.mxu0 %v4748
          %v4762 = vpop.f32.mrf.mxu0
          %v4763 = vadd.f32 0.0, %v4762
          %v4764 = vpop.f32.mrf.mxu0
          %4765 = vdwg.mxu0
          %v4767 = vsel %vm3694, %v4696, 0
          %v4770 = vsel %vm3694, %v4704, 0
          %4772 = vmatpush.bf16.xpose.msra.mxu0 0
          %4773 = vmatpush.bf16.xpose.msra.mxu0 0
          %4774 = vmatpush.bf16.xpose.msra.mxu0 0
          %4775 = vmatpush.bf16.xpose.msra.mxu0 0
          %4776 = vmatpush.bf16.xpose.msra.mxu0 0
          %4777 = vmatpush.bf16.xpose.msra.mxu0 0
          %4778 = vmatpush.bf16.xpose.msra.mxu0 0
          %4779 = vmatpush.bf16.xpose.msra.mxu0 %v4770
          %4780 = vmatmul.bf16.gmra.mxu0 %v4767
          %v4781 = vpop.f32.mrf.mxu0
          %v4782 = vadd.f32 0.0, %v4781
          %v4783 = vpop.f32.mrf.mxu0
          %4784 = vdwg.mxu0
          %v4786 = vsel %vm3694, %v4697, 0
          %v4789 = vsel %vm3694, %v4705, 0
          %4791 = vmatpush.bf16.xpose.msra.mxu0 0
          %4792 = vmatpush.bf16.xpose.msra.mxu0 0
          %4793 = vmatpush.bf16.xpose.msra.mxu0 0
          %4794 = vmatpush.bf16.xpose.msra.mxu0 0
          %4795 = vmatpush.bf16.xpose.msra.mxu0 0
          %4796 = vmatpush.bf16.xpose.msra.mxu0 0
          %4797 = vmatpush.bf16.xpose.msra.mxu0 0
          %4798 = vmatpush.bf16.xpose.msra.mxu0 %v4789
          %4799 = vmatmul.bf16.gmra.mxu0 %v4786
          %v4800 = vpop.f32.mrf.mxu0
          %v4801 = vadd.f32 0.0, %v4800
          %v4802 = vpop.f32.mrf.mxu0
          %4803 = vdwg.mxu0
          %v4805 = vsel %vm3694, %v4698, 0
          %v4808 = vsel %vm3694, %v4706, 0
          %4810 = vmatpush.bf16.xpose.msra.mxu0 0
          %4811 = vmatpush.bf16.xpose.msra.mxu0 0
          %4812 = vmatpush.bf16.xpose.msra.mxu0 0
          %4813 = vmatpush.bf16.xpose.msra.mxu0 0
          %4814 = vmatpush.bf16.xpose.msra.mxu0 0
          %4815 = vmatpush.bf16.xpose.msra.mxu0 0
          %4816 = vmatpush.bf16.xpose.msra.mxu0 0
          %4817 = vmatpush.bf16.xpose.msra.mxu0 %v4808
          %4818 = vmatmul.bf16.gmra.mxu0 %v4805
          %v4819 = vpop.f32.mrf.mxu0
          %v4820 = vadd.f32 0.0, %v4819
          %v4821 = vpop.f32.mrf.mxu0
          %4822 = vdwg.mxu0
          %v4824 = vsel %vm3694, %v4699, 0
          %v4827 = vsel %vm3694, %v4707, 0
          %4829 = vmatpush.bf16.xpose.msra.mxu0 0
          %4830 = vmatpush.bf16.xpose.msra.mxu0 0
          %4831 = vmatpush.bf16.xpose.msra.mxu0 0
          %4832 = vmatpush.bf16.xpose.msra.mxu0 0
          %4833 = vmatpush.bf16.xpose.msra.mxu0 0
          %4834 = vmatpush.bf16.xpose.msra.mxu0 0
          %4835 = vmatpush.bf16.xpose.msra.mxu0 0
          %4836 = vmatpush.bf16.xpose.msra.mxu0 %v4827
          %4837 = vmatmul.bf16.gmra.mxu0 %v4824
          %v4838 = vpop.f32.mrf.mxu0
          %v4839 = vadd.f32 0.0, %v4838
          %v4840 = vpop.f32.mrf.mxu0
          %4841 = vdwg.mxu0
          %v4843 = vsel %vm3694, %v4700, 0
          %v4846 = vsel %vm3694, %v4708, 0
          %4848 = vmatpush.bf16.xpose.msra.mxu0 0
          %4849 = vmatpush.bf16.xpose.msra.mxu0 0
          %4850 = vmatpush.bf16.xpose.msra.mxu0 0
          %4851 = vmatpush.bf16.xpose.msra.mxu0 0
          %4852 = vmatpush.bf16.xpose.msra.mxu0 0
          %4853 = vmatpush.bf16.xpose.msra.mxu0 0
          %4854 = vmatpush.bf16.xpose.msra.mxu0 0
          %4855 = vmatpush.bf16.xpose.msra.mxu0 %v4846
          %4856 = vmatmul.bf16.gmra.mxu0 %v4843
          %v4857 = vpop.f32.mrf.mxu0
          %v4858 = vadd.f32 0.0, %v4857
          %v4859 = vpop.f32.mrf.mxu0
          %4860 = vdwg.mxu0
          %v4861 = vmul.f32 %v4725, 0.35355338
          %v4862 = vmul.f32 %v4744, 0.35355338
          %v4863 = vmul.f32 %v4763, 0.35355338
          %v4864 = vmul.f32 %v4782, 0.35355338
          %v4865 = vmul.f32 %v4801, 0.35355338
          %v4866 = vmul.f32 %v4820, 0.35355338
          %v4867 = vmul.f32 %v4839, 0.35355338
          %v4868 = vmul.f32 %v4858, 0.35355338
          %v4871 = vperm.slane %v4305, 0
          %v4872 = vperm.slane %v4306, 0
          %v4875 = vadd.f32 %v4861, %v4871
          %v4876 = vadd.f32 %v4862, %v4872
          %v4877 = vadd.f32 %v4863, %v4871
          %v4878 = vadd.f32 %v4864, %v4872
          %v4879 = vadd.f32 %v4865, %v4871
          %v4880 = vadd.f32 %v4866, %v4872
          %v4881 = vadd.f32 %v4867, %v4871
          %v4882 = vadd.f32 %v4868, %v4872
          %v4883 = vsel %vm3694, %v4875, -inf
          %4884 = vmax.xlane.f32.xlu0 %v4883
          %v4885 = vpop.xlane.xlu0 %4884
          %v4886 = vsel %vm3694, %v4876, -inf
          %4887 = vmax.xlane.f32.xlu0 %v4886
          %v4888 = vpop.xlane.xlu0 %4887
          %v4889 = vsel %vm3694, %v4877, -inf
          %4890 = vmax.xlane.f32.xlu0 %v4889
          %v4891 = vpop.xlane.xlu0 %4890
          %v4892 = vsel %vm3694, %v4878, -inf
          %4893 = vmax.xlane.f32.xlu0 %v4892
          %v4894 = vpop.xlane.xlu0 %4893
          %v4895 = vsel %vm3694, %v4879, -inf
          %4896 = vmax.xlane.f32.xlu0 %v4895
          %v4897 = vpop.xlane.xlu0 %4896
          %v4898 = vsel %vm3694, %v4880, -inf
          %4899 = vmax.xlane.f32.xlu0 %v4898
          %v4900 = vpop.xlane.xlu0 %4899
          %v4901 = vsel %vm3694, %v4881, -inf
          %4902 = vmax.xlane.f32.xlu0 %v4901
          %v4903 = vpop.xlane.xlu0 %4902
          %v4904 = vsel %vm3694, %v4882, -inf
          %4905 = vmax.xlane.f32.xlu0 %v4904
          %v4906 = vpop.xlane.xlu0 %4905
          %v4907 = vsub.f32 %v4875, %v4885
          %v4908 = vsub.f32 %v4876, %v4888
          %v4909 = vsub.f32 %v4877, %v4891
          %v4910 = vsub.f32 %v4878, %v4894
          %v4911 = vsub.f32 %v4879, %v4897
          %v4912 = vsub.f32 %v4880, %v4900
          %v4913 = vsub.f32 %v4881, %v4903
          %v4914 = vsub.f32 %v4882, %v4906
          %v4915 = vmul.f32 %v4907, 1.442695
          %v4916 = vpow.pop %v4915
          %v4917 = vmul.f32 %v4908, 1.442695
          %v4918 = vpow.pop %v4917
          %v4919 = vmul.f32 %v4909, 1.442695
          %v4920 = vpow.pop %v4919
          %v4921 = vmul.f32 %v4910, 1.442695
          %v4922 = vpow.pop %v4921
          %v4923 = vmul.f32 %v4911, 1.442695
          %v4924 = vpow.pop %v4923
          %v4925 = vmul.f32 %v4912, 1.442695
          %v4926 = vpow.pop %v4925
          %v4927 = vmul.f32 %v4913, 1.442695
          %v4928 = vpow.pop %v4927
          %v4929 = vmul.f32 %v4914, 1.442695
          %v4930 = vpow.pop %v4929
          %v4931 = vsel %vm3694, %v4916, 0.0
          %4932 = vadd.xlane.f32.xlu0 %v4931
          %v4933 = vpop.xlane.xlu0 %4932
          %v4934 = vsel %vm3694, %v4918, 0.0
          %4935 = vadd.xlane.f32.xlu0 %v4934
          %v4936 = vpop.xlane.xlu0 %4935
          %v4937 = vsel %vm3694, %v4920, 0.0
          %4938 = vadd.xlane.f32.xlu0 %v4937
          %v4939 = vpop.xlane.xlu0 %4938
          %v4940 = vsel %vm3694, %v4922, 0.0
          %4941 = vadd.xlane.f32.xlu0 %v4940
          %v4942 = vpop.xlane.xlu0 %4941
          %v4943 = vsel %vm3694, %v4924, 0.0
          %4944 = vadd.xlane.f32.xlu0 %v4943
          %v4945 = vpop.xlane.xlu0 %4944
          %v4946 = vsel %vm3694, %v4926, 0.0
          %4947 = vadd.xlane.f32.xlu0 %v4946
          %v4948 = vpop.xlane.xlu0 %4947
          %v4949 = vsel %vm3694, %v4928, 0.0
          %4950 = vadd.xlane.f32.xlu0 %v4949
          %v4951 = vpop.xlane.xlu0 %4950
          %v4952 = vsel %vm3694, %v4930, 0.0
          %4953 = vadd.xlane.f32.xlu0 %v4952
          %v4954 = vpop.xlane.xlu0 %4953
          %v4955 = vrcp.pop %v4933
          %v4956 = vrcp.pop %v4936
          %v4957 = vrcp.pop %v4939
          %v4958 = vrcp.pop %v4942
          %v4959 = vrcp.pop %v4945
          %v4960 = vrcp.pop %v4948
          %v4961 = vrcp.pop %v4951
          %v4962 = vrcp.pop %v4954
          %v4963 = vmul.f32 %v4916, %v4955
          %v4964 = vmul.f32 %v4918, %v4956
          %v4965 = vmul.f32 %v4920, %v4957
          %v4966 = vmul.f32 %v4922, %v4958
          %v4967 = vmul.f32 %v4924, %v4959
          %v4968 = vmul.f32 %v4926, %v4960
          %v4969 = vmul.f32 %v4928, %v4961
          %v4970 = vmul.f32 %v4930, %v4962
          %v4971 = vpack.c.bf16 %v4963, %v4963
          %v4972 = vpack.c.bf16 %v4964, %v4964
          %v4973 = vpack.c.bf16 %v4965, %v4965
          %v4974 = vpack.c.bf16 %v4966, %v4966
          %v4975 = vpack.c.bf16 %v4967, %v4967
          %v4976 = vpack.c.bf16 %v4968, %v4968
          %v4977 = vpack.c.bf16 %v4969, %v4969
          %v4978 = vpack.c.bf16 %v4970, %v4970
          %v4979 = vpack.c.bf16 %v4611, %v4611
          %v4980 = vpack.c.bf16 %v4613, %v4613
          %v4981 = vpack.c.bf16 %v4637, %v4637
          %v4982 = vpack.c.bf16 %v4639, %v4639
          %v4983 = vpack.c.bf16 %v4663, %v4663
          %v4984 = vpack.c.bf16 %v4665, %v4665
          %v4985 = vpack.c.bf16 %v4689, %v4689
          %v4986 = vpack.c.bf16 %v4691, %v4691
          %v4988 = vsel %vm3694, %v4971, 0
          %v4991 = vsel %vm3970, %v4979, 0
          %4993 = vmatpush.bf16.msra.mxu0 0
          %4994 = vmatpush.bf16.msra.mxu0 0
          %4995 = vmatpush.bf16.msra.mxu0 0
          %4996 = vmatpush.bf16.msra.mxu0 0
          %4997 = vmatpush.bf16.msra.mxu0 0
          %4998 = vmatpush.bf16.msra.mxu0 0
          %4999 = vmatpush.bf16.msra.mxu0 0
          %5000 = vmatpush.bf16.msra.mxu0 %v4991
          %5001 = vmatmul.bf16.gmra.mxu0 %v4988
          %v5002 = vpop.f32.mrf.mxu0
          %v5003 = vadd.f32 0.0, %v5002
          %v5004 = vpop.f32.mrf.mxu0
          %5005 = vdwg.mxu0
          %v5007 = vsel %vm3694, %v4972, 0
          %v5010 = vsel %vm3970, %v4980, 0
          %5012 = vmatpush.bf16.msra.mxu0 0
          %5013 = vmatpush.bf16.msra.mxu0 0
          %5014 = vmatpush.bf16.msra.mxu0 0
          %5015 = vmatpush.bf16.msra.mxu0 0
          %5016 = vmatpush.bf16.msra.mxu0 0
          %5017 = vmatpush.bf16.msra.mxu0 0
          %5018 = vmatpush.bf16.msra.mxu0 0
          %5019 = vmatpush.bf16.msra.mxu0 %v5010
          %5020 = vmatmul.bf16.gmra.mxu0 %v5007
          %v5021 = vpop.f32.mrf.mxu0
          %v5022 = vadd.f32 0.0, %v5021
          %v5023 = vpop.f32.mrf.mxu0
          %5024 = vdwg.mxu0
          %v5026 = vsel %vm3694, %v4973, 0
          %v5029 = vsel %vm3970, %v4981, 0
          %5031 = vmatpush.bf16.msra.mxu0 0
          %5032 = vmatpush.bf16.msra.mxu0 0
          %5033 = vmatpush.bf16.msra.mxu0 0
          %5034 = vmatpush.bf16.msra.mxu0 0
          %5035 = vmatpush.bf16.msra.mxu0 0
          %5036 = vmatpush.bf16.msra.mxu0 0
          %5037 = vmatpush.bf16.msra.mxu0 0
          %5038 = vmatpush.bf16.msra.mxu0 %v5029
          %5039 = vmatmul.bf16.gmra.mxu0 %v5026
          %v5040 = vpop.f32.mrf.mxu0
          %v5041 = vadd.f32 0.0, %v5040
          %v5042 = vpop.f32.mrf.mxu0
          %5043 = vdwg.mxu0
          %v5045 = vsel %vm3694, %v4974, 0
          %v5048 = vsel %vm3970, %v4982, 0
          %5050 = vmatpush.bf16.msra.mxu0 0
          %5051 = vmatpush.bf16.msra.mxu0 0
          %5052 = vmatpush.bf16.msra.mxu0 0
          %5053 = vmatpush.bf16.msra.mxu0 0
          %5054 = vmatpush.bf16.msra.mxu0 0
          %5055 = vmatpush.bf16.msra.mxu0 0
          %5056 = vmatpush.bf16.msra.mxu0 0
          %5057 = vmatpush.bf16.msra.mxu0 %v5048
          %5058 = vmatmul.bf16.gmra.mxu0 %v5045
          %v5059 = vpop.f32.mrf.mxu0
          %v5060 = vadd.f32 0.0, %v5059
          %v5061 = vpop.f32.mrf.mxu0
          %5062 = vdwg.mxu0
          %v5064 = vsel %vm3694, %v4975, 0
          %v5067 = vsel %vm3970, %v4983, 0
          %5069 = vmatpush.bf16.msra.mxu0 0
          %5070 = vmatpush.bf16.msra.mxu0 0
          %5071 = vmatpush.bf16.msra.mxu0 0
          %5072 = vmatpush.bf16.msra.mxu0 0
          %5073 = vmatpush.bf16.msra.mxu0 0
          %5074 = vmatpush.bf16.msra.mxu0 0
          %5075 = vmatpush.bf16.msra.mxu0 0
          %5076 = vmatpush.bf16.msra.mxu0 %v5067
          %5077 = vmatmul.bf16.gmra.mxu0 %v5064
          %v5078 = vpop.f32.mrf.mxu0
          %v5079 = vadd.f32 0.0, %v5078
          %v5080 = vpop.f32.mrf.mxu0
          %5081 = vdwg.mxu0
          %v5083 = vsel %vm3694, %v4976, 0
          %v5086 = vsel %vm3970, %v4984, 0
          %5088 = vmatpush.bf16.msra.mxu0 0
          %5089 = vmatpush.bf16.msra.mxu0 0
          %5090 = vmatpush.bf16.msra.mxu0 0
          %5091 = vmatpush.bf16.msra.mxu0 0
          %5092 = vmatpush.bf16.msra.mxu0 0
          %5093 = vmatpush.bf16.msra.mxu0 0
          %5094 = vmatpush.bf16.msra.mxu0 0
          %5095 = vmatpush.bf16.msra.mxu0 %v5086
          %5096 = vmatmul.bf16.gmra.mxu0 %v5083
          %v5097 = vpop.f32.mrf.mxu0
          %v5098 = vadd.f32 0.0, %v5097
          %v5099 = vpop.f32.mrf.mxu0
          %5100 = vdwg.mxu0
          %v5102 = vsel %vm3694, %v4977, 0
          %v5105 = vsel %vm3970, %v4985, 0
          %5107 = vmatpush.bf16.msra.mxu0 0
          %5108 = vmatpush.bf16.msra.mxu0 0
          %5109 = vmatpush.bf16.msra.mxu0 0
          %5110 = vmatpush.bf16.msra.mxu0 0
          %5111 = vmatpush.bf16.msra.mxu0 0
          %5112 = vmatpush.bf16.msra.mxu0 0
          %5113 = vmatpush.bf16.msra.mxu0 0
          %5114 = vmatpush.bf16.msra.mxu0 %v5105
          %5115 = vmatmul.bf16.gmra.mxu0 %v5102
          %v5116 = vpop.f32.mrf.mxu0
          %v5117 = vadd.f32 0.0, %v5116
          %v5118 = vpop.f32.mrf.mxu0
          %5119 = vdwg.mxu0
          %v5121 = vsel %vm3694, %v4978, 0
          %v5124 = vsel %vm3970, %v4986, 0
          %5126 = vmatpush.bf16.msra.mxu0 0
          %5127 = vmatpush.bf16.msra.mxu0 0
          %5128 = vmatpush.bf16.msra.mxu0 0
          %5129 = vmatpush.bf16.msra.mxu0 0
          %5130 = vmatpush.bf16.msra.mxu0 0
          %5131 = vmatpush.bf16.msra.mxu0 0
          %5132 = vmatpush.bf16.msra.mxu0 0
          %5133 = vmatpush.bf16.msra.mxu0 %v5124
          %5134 = vmatmul.bf16.gmra.mxu0 %v5121
          %v5135 = vpop.f32.mrf.mxu0
          %v5136 = vadd.f32 0.0, %v5135
          %v5137 = vpop.f32.mrf.mxu0
          %5138 = vdwg.mxu0
          %v5139 = vpack.c.bf16 %v5003, %v5003
          %v5140 = vpack.c.bf16 %v5022, %v5022
          %v5141 = vpack.c.bf16 %v5041, %v5041
          %v5142 = vpack.c.bf16 %v5060, %v5060
          %v5143 = vpack.c.bf16 %v5079, %v5079
          %v5144 = vpack.c.bf16 %v5098, %v5098
          %v5145 = vpack.c.bf16 %v5117, %v5117
          %v5146 = vpack.c.bf16 %v5136, %v5136
          %v5149 = vunpack.c.l.b16 %v5139
          %v5150 = vunpack.c.l.b16 %v5140
          %v5151 = vpack.c.b16 %v5150, %v5149
          %v5153 = vsel %vm3694, %v5151, 0
          %v5156 = vsel %vm3970, %v4355, 0
          %5158 = vmatpush.bf16.msra.mxu0 0
          %5159 = vmatpush.bf16.msra.mxu0 0
          %5160 = vmatpush.bf16.msra.mxu0 0
          %5161 = vmatpush.bf16.msra.mxu0 0
          %5162 = vmatpush.bf16.msra.mxu0 0
          %5163 = vmatpush.bf16.msra.mxu0 0
          %5164 = vmatpush.bf16.msra.mxu0 0
          %5165 = vmatpush.bf16.msra.mxu0 %v5156
          %5166 = vmatmul.bf16.gmra.mxu0 %v5153
          %v5167 = vpop.f32.mrf.mxu0
          %v5168 = vadd.f32 0.0, %v5167
          %v5169 = vpop.f32.mrf.mxu0
          %v5170 = vadd.f32 0.0, %v5169
          %5171 = vdwg.mxu0
          %v5174 = vunpack.c.l.b16 %v5141
          %v5175 = vunpack.c.l.b16 %v5142
          %v5176 = vpack.c.b16 %v5175, %v5174
          %v5178 = vsel %vm3694, %v5176, 0
          %v5181 = vsel %vm3970, %v4356, 0
          %5183 = vmatpush.bf16.msra.mxu0 0
          %5184 = vmatpush.bf16.msra.mxu0 0
          %5185 = vmatpush.bf16.msra.mxu0 0
          %5186 = vmatpush.bf16.msra.mxu0 0
          %5187 = vmatpush.bf16.msra.mxu0 0
          %5188 = vmatpush.bf16.msra.mxu0 0
          %5189 = vmatpush.bf16.msra.mxu0 0
          %5190 = vmatpush.bf16.msra.mxu0 %v5181
          %5191 = vmatmul.bf16.gmra.mxu0 %v5178
          %v5192 = vpop.f32.mrf.mxu0
          %v5193 = vadd.f32 0.0, %v5192
          %v5194 = vpop.f32.mrf.mxu0
          %v5195 = vadd.f32 0.0, %v5194
          %5196 = vdwg.mxu0
          %v5199 = vunpack.c.l.b16 %v5143
          %v5200 = vunpack.c.l.b16 %v5144
          %v5201 = vpack.c.b16 %v5200, %v5199
          %v5203 = vsel %vm3694, %v5201, 0
          %v5206 = vsel %vm3970, %v4357, 0
          %5208 = vmatpush.bf16.msra.mxu0 0
          %5209 = vmatpush.bf16.msra.mxu0 0
          %5210 = vmatpush.bf16.msra.mxu0 0
          %5211 = vmatpush.bf16.msra.mxu0 0
          %5212 = vmatpush.bf16.msra.mxu0 0
          %5213 = vmatpush.bf16.msra.mxu0 0
          %5214 = vmatpush.bf16.msra.mxu0 0
          %5215 = vmatpush.bf16.msra.mxu0 %v5206
          %5216 = vmatmul.bf16.gmra.mxu0 %v5203
          %v5217 = vpop.f32.mrf.mxu0
          %v5218 = vadd.f32 0.0, %v5217
          %v5219 = vpop.f32.mrf.mxu0
          %v5220 = vadd.f32 0.0, %v5219
          %5221 = vdwg.mxu0
          %v5224 = vunpack.c.l.b16 %v5145
          %v5225 = vunpack.c.l.b16 %v5146
          %v5226 = vpack.c.b16 %v5225, %v5224
          %v5228 = vsel %vm3694, %v5226, 0
          %v5231 = vsel %vm3970, %v4358, 0
          %5233 = vmatpush.bf16.msra.mxu0 0
          %5234 = vmatpush.bf16.msra.mxu0 0
          %5235 = vmatpush.bf16.msra.mxu0 0
          %5236 = vmatpush.bf16.msra.mxu0 0
          %5237 = vmatpush.bf16.msra.mxu0 0
          %5238 = vmatpush.bf16.msra.mxu0 0
          %5239 = vmatpush.bf16.msra.mxu0 0
          %5240 = vmatpush.bf16.msra.mxu0 %v5231
          %5241 = vmatmul.bf16.gmra.mxu0 %v5228
          %v5242 = vpop.f32.mrf.mxu0
          %v5243 = vadd.f32 0.0, %v5242
          %v5244 = vpop.f32.mrf.mxu0
          %v5245 = vadd.f32 0.0, %v5244
          %5246 = vdwg.mxu0
          %v5247 = vsel %vm3374, %v5168, 0.0
          %v5248 = vsel %vm3374, %v5193, 0.0
          %v5249 = vadd.f32 %v5247, %v5248
          %v5250 = vsel %vm3374, %v5218, 0.0
          %v5251 = vadd.f32 %v5249, %v5250
          %v5252 = vsel %vm3374, %v5243, 0.0
          %v5253 = vadd.f32 %v5251, %v5252
          %v5254 = vsel %vm3374, %v5170, 0.0
          %v5255 = vsel %vm3374, %v5195, 0.0
          %v5256 = vadd.f32 %v5254, %v5255
          %v5257 = vsel %vm3374, %v5220, 0.0
          %v5258 = vadd.f32 %v5256, %v5257
          %v5259 = vsel %vm3374, %v5245, 0.0
          %v5260 = vadd.f32 %v5258, %v5259
          %v5261 = vadd.f32 %v5253, %v4303
          %v5262 = vadd.f32 %v5260, %v4304
          %v5263 = vsel %vm3374, %v5261, 0.0
          %5264 = vadd.xlane.f32.xlu0 %v5263
          %v5265 = vpop.xlane.xlu0 %5264
          %v5266 = vsel %vm3374, %v5262, 0.0
          %5267 = vadd.xlane.f32.xlu0 %v5266
          %v5268 = vpop.xlane.xlu0 %5267
          %v5269 = vmul.f32 %v5265, %v4256
          %v5270 = vmul.f32 %v5268, %v4256
          %v5271 = vsub.f32 %v5261, %v5269
          %v5272 = vsub.f32 %v5262, %v5270
          %v5273 = vmul.f32 %v5271, %v5271
          %v5274 = vmul.f32 %v5272, %v5272
          %v5275 = vsel %vm3374, %v5273, 0.0
          %5276 = vadd.xlane.f32.xlu0 %v5275
          %v5277 = vpop.xlane.xlu0 %5276
          %v5278 = vsel %vm3374, %v5274, 0.0
          %5279 = vadd.xlane.f32.xlu0 %v5278
          %v5280 = vpop.xlane.xlu0 %5279
          %v5281 = vmul.f32 %v5277, %v4256
          %v5282 = vmul.f32 %v5280, %v4256
          %v5283 = vadd.f32 %v5281, 1e-06
          %v5284 = vadd.f32 %v5282, 1e-06
          %v5285 = vrsqrt.pop %v5283
          %v5286 = vmul.f32 %v5285, %v5283
          %v5287 = vmul.f32 %v5286, %v5285
          %v5288 = vmul.f32 0.5, %v5287
          %v5289 = vsub.f32 1.5, %v5288
          %v5290 = vmul.f32 %v5285, %v5289
          %vm5291 = vweird.f32 %v5283
          %vm5292 = vweird.f32 %v5285
          %vm5293 = vmor %vm5291, %vm5292
          %v5294 = vsel %vm5293, %v5285, %v5290
          %v5295 = vrsqrt.pop %v5284
          %v5296 = vmul.f32 %v5295, %v5284
          %v5297 = vmul.f32 %v5296, %v5295
          %v5298 = vmul.f32 0.5, %v5297
          %v5299 = vsub.f32 1.5, %v5298
          %v5300 = vmul.f32 %v5295, %v5299
          %vm5301 = vweird.f32 %v5284
          %vm5302 = vweird.f32 %v5295
          %vm5303 = vmor %vm5301, %vm5302
          %v5304 = vsel %vm5303, %v5295, %v5300
          %v5305 = vmul.f32 %v5271, %v5294
          %v5306 = vmul.f32 %v5272, %v5304
          %v5308 = vperm.slane %v4359, 0
          %v5310 = vmul.f32 %v5305, %v5308
          %v5311 = vmul.f32 %v5306, %v5308
          %v5313 = vperm.slane %v4360, 0
          %v5315 = vadd.f32 %v5310, %v5313
          %v5316 = vadd.f32 %v5311, %v5313
          %v5317 = vld [vmem:[%s2048] sm:$0xf]
          %v5318 = vld [vmem:[%s2048 + $0x4] sm:$0xf]
          %v5319 = vld [vmem:[%s2048 + $0x8] sm:$0xf]
          %v5320 = vld [vmem:[%s2048 + $0xc] sm:$0xf]
          %v5321 = vld [vmem:[%s2057] sm:$0x1]
          %v5322 = vld [vmem:[%s2068] sm:$0xf]
          %v5323 = vld [vmem:[%s2068 + $0x4] sm:$0xf]
          %v5324 = vld [vmem:[%s2068 + $0x8] sm:$0xf]
          %v5325 = vld [vmem:[%s2068 + $0xc] sm:$0xf]
          %v5326 = vld [vmem:[%s2068 + $0x10] sm:$0xf]
          %v5327 = vld [vmem:[%s2068 + $0x14] sm:$0xf]
          %v5328 = vld [vmem:[%s2068 + $0x18] sm:$0xf]
          %v5329 = vld [vmem:[%s2068 + $0x1c] sm:$0xf]
          %v5330 = vld [vmem:[%s2077] sm:$0x1]
          %v5331 = vld [vmem:[%s2086] sm:$0x1]
          %v5332 = vld [vmem:[%s2095] sm:$0x1]
          %v5333 = vpack.c.bf16 %v5316, %v5315
          %v5335 = vperm.slane %v5321, 0
          %v5341 = vunpack.c.l.b16 %v5317
          %v5342 = vunpack.c.l.b16 %v5318
          %v5343 = vunpack.c.l.b16 %v5319
          %v5344 = vunpack.c.l.b16 %v5320
          %v5345 = vpack.c.b16 %v5342, %v5341
          %v5346 = vpack.c.b16 %v5344, %v5343
          %v5350 = vsel %vm3374, %v5333, 0
          %5352 = vmatpush.bf16.msra.mxu0 0
          %5353 = vmatpush.bf16.msra.mxu0 0
          %5354 = vmatpush.bf16.msra.mxu0 0
          %5355 = vmatpush.bf16.msra.mxu0 0
          %5356 = vmatpush.bf16.msra.mxu0 0
          %5357 = vmatpush.bf16.msra.mxu0 0
          %5358 = vmatpush.bf16.msra.mxu0 %v5346
          %5359 = vmatpush.bf16.msra.mxu0 %v5345
          %5360 = vmatmul.bf16.gmra.mxu0 %v5350
          %v5361 = vpop.f32.mrf.mxu0
          %v5362 = vadd.f32 %v5335, %v5361
          %v5363 = vpop.f32.mrf.mxu0
          %v5364 = vadd.f32 %v5335, %v5363
          %5365 = vdwg.mxu0
          %v5366 = vmax.f32 %v5362, 0.0
          %v5367 = vmax.f32 %v5364, 0.0
          %v5368 = vpack.c.bf16 %v5367, %v5366
          %v5370 = vperm.slane %v5330, 0
          %v5380 = vunpack.c.l.b16 %v5322
          %v5381 = vunpack.c.l.b16 %v5323
          %v5382 = vunpack.c.l.b16 %v5324
          %v5383 = vunpack.c.l.b16 %v5325
          %v5384 = vunpack.c.l.b16 %v5326
          %v5385 = vunpack.c.l.b16 %v5327
          %v5386 = vunpack.c.l.b16 %v5328
          %v5387 = vunpack.c.l.b16 %v5329
          %v5388 = vpack.c.b16 %v5381, %v5380
          %v5389 = vpack.c.b16 %v5383, %v5382
          %v5390 = vpack.c.b16 %v5385, %v5384
          %v5391 = vpack.c.b16 %v5387, %v5386
          %vm5396 = vcmask 523264
          %v5398 = vsel %vm5396, %v5368, 0
          %5400 = vmatpush.bf16.msra.mxu0 0
          %5401 = vmatpush.bf16.msra.mxu0 0
          %5402 = vmatpush.bf16.msra.mxu0 0
          %5403 = vmatpush.bf16.msra.mxu0 0
          %5404 = vmatpush.bf16.msra.mxu0 %v5391
          %5405 = vmatpush.bf16.msra.mxu0 %v5390
          %5406 = vmatpush.bf16.msra.mxu0 %v5389
          %5407 = vmatpush.bf16.msra.mxu0 %v5388
          %5408 = vmatmul.bf16.gmra.mxu0 %v5398
          %v5409 = vpop.f32.mrf.mxu0
          %v5410 = vadd.f32 %v5370, %v5409
          %v5411 = vpop.f32.mrf.mxu0
          %v5412 = vadd.f32 %v5370, %v5411
          %5413 = vdwg.mxu0
          %v5414 = vadd.f32 %v5410, %v5315
          %v5415 = vadd.f32 %v5412, %v5316
          %v5416 = vsel %vm3374, %v5414, 0.0
          %5417 = vadd.xlane.f32.xlu0 %v5416
          %v5418 = vpop.xlane.xlu0 %5417
          %v5419 = vsel %vm3374, %v5415, 0.0
          %5420 = vadd.xlane.f32.xlu0 %v5419
          %v5421 = vpop.xlane.xlu0 %5420
          %v5422 = vmul.f32 %v5418, %v4256
          %v5423 = vmul.f32 %v5421, %v4256
          %v5424 = vsub.f32 %v5414, %v5422
          %v5425 = vsub.f32 %v5415, %v5423
          %v5426 = vmul.f32 %v5424, %v5424
          %v5427 = vmul.f32 %v5425, %v5425
          %v5428 = vsel %vm3374, %v5426, 0.0
          %5429 = vadd.xlane.f32.xlu0 %v5428
          %v5430 = vpop.xlane.xlu0 %5429
          %v5431 = vsel %vm3374, %v5427, 0.0
          %5432 = vadd.xlane.f32.xlu0 %v5431
          %v5433 = vpop.xlane.xlu0 %5432
          %v5434 = vmul.f32 %v5430, %v4256
          %v5435 = vmul.f32 %v5433, %v4256
          %v5436 = vadd.f32 %v5434, 1e-06
          %v5437 = vadd.f32 %v5435, 1e-06
          %v5438 = vrsqrt.pop %v5436
          %v5439 = vmul.f32 %v5438, %v5436
          %v5440 = vmul.f32 %v5439, %v5438
          %v5441 = vmul.f32 0.5, %v5440
          %v5442 = vsub.f32 1.5, %v5441
          %v5443 = vmul.f32 %v5438, %v5442
          %vm5444 = vweird.f32 %v5436
          %vm5445 = vweird.f32 %v5438
          %vm5446 = vmor %vm5444, %vm5445
          %v5447 = vsel %vm5446, %v5438, %v5443
          %v5448 = vrsqrt.pop %v5437
          %v5449 = vmul.f32 %v5448, %v5437
          %v5450 = vmul.f32 %v5449, %v5448
          %v5451 = vmul.f32 0.5, %v5450
          %v5452 = vsub.f32 1.5, %v5451
          %v5453 = vmul.f32 %v5448, %v5452
          %vm5454 = vweird.f32 %v5437
          %vm5455 = vweird.f32 %v5448
          %vm5456 = vmor %vm5454, %vm5455
          %v5457 = vsel %vm5456, %v5448, %v5453
          %v5458 = vmul.f32 %v5424, %v5447
          %v5459 = vmul.f32 %v5425, %v5457
          %v5461 = vperm.slane %v5331, 0
          %v5463 = vmul.f32 %v5458, %v5461
          %v5464 = vmul.f32 %v5459, %v5461
          %v5466 = vperm.slane %v5332, 0
          %v5468 = vadd.f32 %v5463, %v5466
          %v5469 = vadd.f32 %v5464, %v5466
          %5470 = vst.msk [vmem:[#allocation3] sm:$0xff] %vm3374, %v5468
          %5471 = vst.msk [vmem:[#allocation3 + $0x8] sm:$0xff] %vm3374, %v5469
        $region176: #{_lambda_.1} parent=159 // pred_fallthru
          _
        %p5472 = scmp.eq.s32.totalorder %s83, 3
        // Predicated region
        $region177: #{_lambda_.1} parent=159 // pred_check
          %p5473 = pneg %p5472
        $region178: #{_lambda_.1} parent=159 // pred_check_branch
          %5475 = sbr.rel (%p5473) target = $region180
        $region179: #{_lambda_.1} parent=159 // pred_region
          %v5476 = vld [vmem:[#allocation3] sm:$0xff]
          %v5477 = vld [vmem:[#allocation3 + $0x8] sm:$0xff]
          %v5478 = vpack.c.bf16 %v5477, %v5476
          %v5479 = vld [vmem:[%s69] sm:$0xf]
          %v5480 = vld [vmem:[%s69 + $0x4] sm:$0xf]
          %v5481 = vld [vmem:[%s69 + $0x8] sm:$0xf]
          %v5482 = vld [vmem:[%s69 + $0xc] sm:$0xf]
          %v5487 = vunpack.c.l.b16 %v5479
          %v5488 = vunpack.c.l.b16 %v5480
          %v5489 = vunpack.c.l.b16 %v5481
          %v5490 = vunpack.c.l.b16 %v5482
          %v5491 = vpack.c.b16 %v5488, %v5487
          %v5492 = vpack.c.b16 %v5490, %v5489
          %vm5495 = vcmask 261120
          %v5497 = vsel %vm5495, %v5478, 0
          %5499 = vmatpush.bf16.msra.mxu0 0
          %5500 = vmatpush.bf16.msra.mxu0 0
          %5501 = vmatpush.bf16.msra.mxu0 0
          %5502 = vmatpush.bf16.msra.mxu0 0
          %5503 = vmatpush.bf16.msra.mxu0 0
          %5504 = vmatpush.bf16.msra.mxu0 0
          %5505 = vmatpush.bf16.msra.mxu0 %v5492
          %5506 = vmatpush.bf16.msra.mxu0 %v5491
          %5507 = vmatmul.bf16.gmra.mxu0 %v5497
          %v5508 = vpop.f32.mrf.mxu0
          %v5509 = vadd.f32 0.0, %v5508
          %v5510 = vpop.f32.mrf.mxu0
          %v5511 = vadd.f32 0.0, %v5510
          %5512 = vdwg.mxu0
          %5513 = vst [vmem:[#allocation4] sm:$0xff] %v5509
          %5514 = vst [vmem:[#allocation4 + $0x8] sm:$0xff] %v5511
        $region180: #{_lambda_.1} parent=159 // pred_fallthru
          _
        // Predicated region
        $region181: #{_lambda_.1} parent=159 // pred_check
          %p5515 = pneg %p1137
        $region182: #{_lambda_.1} parent=159 // pred_check_branch
          %5517 = sbr.rel (%p5515) target = $region184
        $region183: #{_lambda_.1} parent=159 // pred_region
          %5519 = vsyncadd [#allocation5], 0
          %s5520 = sshll.u32 [#allocation4], 4
          %s5521 = int_to_ptr.vmem [resolvable:$true] %s5520
          %s5522 = sshll.u32 %s71, 4
          %s5523 = int_to_ptr.hbm [resolvable:$true] %s5522
          %5528 = dma.vmem_to_hbm [thread:$0]  %s5521, 256, %s5523, [#allocation5], 128, 128, 8
        $region184: #{_lambda_.1} parent=159 // pred_fallthru
          _
        // Predicated region
        $region185: #{_lambda_.1} parent=159 // pred_check
          %p5529 = pneg %p1137
        $region186: #{_lambda_.1} parent=159 // pred_check_branch
          %5531 = sbr.rel (%p5529) target = $region188
        $region187: #{_lambda_.1} parent=159 // pred_region
          %5533 = dma.done [#allocation5], 256
        $region188: #{_lambda_.1} parent=159 // pred_fallthru
          _
      $region160: #{_lambda_.1} parent=5 // pred_fallthru
        _
      %p5534 = scmp.le.s32.totalorder 2, %s78
      // Predicated region
      $region189: #{_lambda_.1} parent=5 // pred_check
        %p5535 = pneg %p5534
      $region190: #{_lambda_.1} parent=5 // pred_check_branch
        %5537 = sbr.rel (%p5535) target = $region192
      $region191: #{_lambda_.1} parent=5 // pred_region
        %s5538 = ssub.s32 %s78, 2
      $region192: #{_lambda_.1} parent=5 // pred_fallthru
        _
    $region6: #{_lambda_.1} parent=1 // loop_footer
      %s82 = sadd.s32 1, %s78
    $region7: #{_lambda_.1} parent=1 // loop_footer_branch
      %77 = sbr.rel target = $region3
    $region8: #{_lambda_.1} parent=1 // loop_exit
      _
    %5539 = vsyncpa [#allocation5], 1
    %s5540 = scalar_lea.sflag [#allocation5], 1
    %5541 = vsyncpa %s5540, 1

</llo_original>
